<compile_context>
chip_gen: v6e
topology: v6e:2x2x1
jax: 0.10.0
libtpu: 0.0.40
codegen_flags: <defaults>
</compile_context>

<pallas_src>
import functools

import jax
import jax.numpy as jnp
from jax import lax
from jax.experimental import pallas as pl
from jax.experimental.pallas import tpu as pltpu


def _stateful_lstm_kernel(*refs, T, B, L, H, DEPTH):
    """Kernel body.

    refs = [x_flat, h0, c0,
            (W_ih_T, W_hh_T, bias) * L,          # gate cols already [i,f,o,g]
            (Wp_T, bp, gamma, beta) * DEPTH,
            Wf_T, bf,
            y_out, h_out, c_out,
            gates_x_scratch (f32), seq_scratch (bf16)]

    B here is the (16-sublane-padded) batch.
    """
    n_in = 3 + 3 * L + 4 * DEPTH + 2
    in_refs = refs[:n_in]
    y_ref, h_out_ref, c_out_ref = refs[n_in:n_in + 3]
    gx_ref, seq_ref = refs[n_in + 3:]

    x_ref, h0_ref, c0_ref = in_refs[0], in_refs[1], in_refs[2]
    lstm_refs = in_refs[3:3 + 3 * L]
    post_refs = in_refs[3 + 3 * L:3 + 3 * L + 4 * DEPTH]
    wf_ref, bf_ref = in_refs[n_in - 2], in_refs[n_in - 1]

    out = None

    # ---- stacked LSTM recurrence --------------------------------------------
    for l in range(L):
        w_ih_ref = lstm_refs[3 * l]        # (I_l, 4H) bf16, cols [i,f,o,g]
        w_hh_ref = lstm_refs[3 * l + 1]    # (H,  4H) bf16, cols [i,f,o,g]
        bias_ref = lstm_refs[3 * l + 2]    # (1,  4H) f32  (= b_ih + b_hh)

        # Hoisted input projection: ONE big-M matmul over all T timesteps,
        # bias folded in.  Removes a matmul, the weight push and the bias add
        # from the serial per-step dependence chain.
        layer_in = x_ref[...] if l == 0 else seq_ref[...]     # bf16
        gx_ref[...] = (jnp.dot(layer_in, w_ih_ref[...],
                               preferred_element_type=jnp.float32)
                       + bias_ref[...])                        # (T*B, 4H) f32

        write_seq = l < L - 1      # last layer's sequence is never consumed
        h_bf = h0_ref[l].astype(jnp.bfloat16)  # (B, H) bf16, carried
        h_t = h0_ref[l]                        # (B, H) f32
        c_t = c0_ref[l]                        # (B, H) f32

        # Fully-unrolled time loop (T small): per step just one MXU matmul
        # (W_hh indexed from its ref each use, never held live) + gate math.
        # Gate order is [i, f, o, g]: one sigmoid over (B, 3H), one tanh.
        for t in range(T):
            gates = (jnp.dot(h_bf, w_hh_ref[...],
                             preferred_element_type=jnp.float32)
                     + gx_ref[t * B:(t + 1) * B, :])           # (B, 4H) f32
            sig = jax.nn.sigmoid(gates[:, :3 * H])             # i | f | o
            i_g = sig[:, 0 * H:1 * H]
            f_g = sig[:, 1 * H:2 * H]
            o_g = sig[:, 2 * H:3 * H]
            g_g = jnp.tanh(gates[:, 3 * H:4 * H])
            c_t = f_g * c_t + i_g * g_g
            h_t = o_g * jnp.tanh(c_t)
            h_bf = h_t.astype(jnp.bfloat16)    # single cast; reused next step
            if write_seq:
                seq_ref[t * B:(t + 1) * B, :] = h_bf           # (B, H) bf16

        h_out_ref[l] = h_t
        c_out_ref[l] = c_t
        if l == L - 1:
            out = h_t                                          # out = h[-1]

    # ---- posterior stack: Linear -> LayerNorm -> ReLU, DEPTH times ----------
    # (<1% of the work; kept in f32, sub-128-lane widths are fine here.)
    eps = 1e-5
    for d in range(DEPTH):
        w_t = post_refs[4 * d][...]        # (F_in, F_out)
        b = post_refs[4 * d + 1][...]      # (1, F_out)
        gamma = post_refs[4 * d + 2][...]  # (1, F_out)
        beta = post_refs[4 * d + 3][...]   # (1, F_out)
        z = jnp.dot(out, w_t, preferred_element_type=jnp.float32) + b
        mu = jnp.mean(z, axis=-1, keepdims=True)
        var = jnp.mean((z - mu) ** 2, axis=-1, keepdims=True)
        z = (z - mu) * lax.rsqrt(var + eps) * gamma + beta
        out = jnp.maximum(z, 0.0)

    # ---- final fully-connected layer ----------------------------------------
    y_ref[...] = (jnp.dot(out, wf_ref[...], preferred_element_type=jnp.float32)
                  + bf_ref[...])


def _reorder_gate_cols(m, H):
    """Permute gate column blocks [i|f|g|o] -> [i|f|o|g].  m: (rows, 4H)."""
    return jnp.concatenate(
        [m[:, :2 * H], m[:, 3 * H:4 * H], m[:, 2 * H:3 * H]], axis=1)


def init_params(key, input_size, hidden_size, output_size, layers,
                output_depth=4, output_size_decay=0.5):
    """Deterministic parameter init mirroring the PyTorch module shapes."""
    keys = iter(jax.random.split(key, 64))
    k = 1.0 / float(hidden_size) ** 0.5
    lstm = []
    for l in range(layers):
        in_sz = input_size if l == 0 else hidden_size
        w_ih = jax.random.uniform(next(keys), (4 * hidden_size, in_sz),
                                  jnp.float32, -k, k)
        w_hh = jax.random.uniform(next(keys), (4 * hidden_size, hidden_size),
                                  jnp.float32, -k, k)
        b_ih = jax.random.uniform(next(keys), (4 * hidden_size,),
                                  jnp.float32, -k, k)
        b_hh = jax.random.uniform(next(keys), (4 * hidden_size,),
                                  jnp.float32, -k, k)
        lstm.append((w_ih, w_hh, b_ih, b_hh))
    posterior = []
    for i in range(int(output_depth)):
        f_in = int(hidden_size * output_size_decay ** i)
        f_out = int(hidden_size * output_size_decay ** (i + 1))
        kk = 1.0 / float(f_in) ** 0.5
        w = jax.random.uniform(next(keys), (f_out, f_in), jnp.float32, -kk, kk)
        b = jax.random.uniform(next(keys), (f_out,), jnp.float32, -kk, kk)
        gamma = jnp.ones((f_out,), jnp.float32)
        beta = jnp.zeros((f_out,), jnp.float32)
        posterior.append((w, b, gamma, beta))
    f_in = int(hidden_size * output_size_decay ** output_depth)
    kk = 1.0 / float(f_in) ** 0.5
    w_last = jax.random.uniform(next(keys), (output_size, f_in),
                                jnp.float32, -kk, kk)
    b_last = jax.random.uniform(next(keys), (output_size,), jnp.float32, -kk, kk)
    return dict(lstm=lstm, posterior=posterior, last=(w_last, b_last))


def stateful_lstm_forward(params, x, h=None, c=None, state_connected=True):
    """Equivalent of StatefulLSTM.forward with a dense (padded) input.

    x: (B, T, input_size) float32   (batch_first, like PyTorch)
    Returns (y, (h, c)) with y: (B, 1, output_size), h/c: (L, B, H).
    """
    B, T, _ = x.shape
    lstm = params["lstm"]
    post = params["posterior"]
    w_last, b_last = params["last"]
    L = len(lstm)
    DEPTH = len(post)
    H = lstm[0][1].shape[1]
    out_size = w_last.shape[0]

    # Always materialize zero states when not provided.
    if h is None:
        h = jnp.zeros((L, B, H), jnp.float32)
    if c is None:
        c = jnp.zeros((L, B, H), jnp.float32)

    # bf16 vregs pack 16 sublanes -> pad the batch to a multiple of 16 so the
    # per-step gate vregs are fully occupied and all bf16 sequence-scratch
    # stores are unmasked and tile-aligned.  Padded rows run an independent
    # (discarded) LSTM trajectory; there is no cross-batch mixing anywhere,
    # so real rows are unaffected.
    Bp = ((B + 15) // 16) * 16
    pad = Bp - B

    x_tm = jnp.transpose(x, (1, 0, 2)).astype(jnp.float32)       # (T, B, I)
    h32 = h.astype(jnp.float32)
    c32 = c.astype(jnp.float32)
    if pad:
        x_tm = jnp.pad(x_tm, ((0, 0), (0, pad), (0, 0)))
        h32 = jnp.pad(h32, ((0, 0), (0, pad), (0, 0)))
        c32 = jnp.pad(c32, ((0, 0), (0, pad), (0, 0)))
    x_flat = x_tm.reshape(T * Bp, -1).astype(jnp.bfloat16)       # (T*Bp, I)

    inputs = [x_flat, h32, c32]
    for (w_ih, w_hh, b_ih, b_hh) in lstm:
        inputs += [
            _reorder_gate_cols(w_ih.T, H).astype(jnp.bfloat16),   # (I_l, 4H)
            _reorder_gate_cols(w_hh.T, H).astype(jnp.bfloat16),   # (H,  4H)
            _reorder_gate_cols((b_ih + b_hh).reshape(1, -1),
                               H).astype(jnp.float32),            # (1,  4H)
        ]
    for (w, b, gamma, beta) in post:
        inputs += [w.T.astype(jnp.float32), b.reshape(1, -1),
                   gamma.reshape(1, -1), beta.reshape(1, -1)]
    inputs += [w_last.T.astype(jnp.float32), b_last.reshape(1, -1)]

    kernel = functools.partial(_stateful_lstm_kernel,
                               T=T, B=Bp, L=L, H=H, DEPTH=DEPTH)
    vmem = pl.BlockSpec(memory_space=pltpu.MemorySpace.VMEM)

    y, h_out, c_out = pl.pallas_call(
        kernel,
        out_shape=(
            jax.ShapeDtypeStruct((Bp, out_size), jnp.float32),
            jax.ShapeDtypeStruct((L, Bp, H), jnp.float32),
            jax.ShapeDtypeStruct((L, Bp, H), jnp.float32),
        ),
        in_specs=[vmem] * len(inputs),
        out_specs=(vmem, vmem, vmem),
        scratch_shapes=[
            pltpu.VMEM((T * Bp, 4 * H), jnp.float32),   # precomputed gates_x
            pltpu.VMEM((T * Bp, H), jnp.bfloat16),      # inter-layer sequence
        ],
    )(*inputs)

    y = y[:B, None, :]                       # out.unsqueeze(1), drop batch pad
    if state_connected:
        return y, (h_out[:, :B], c_out[:, :B])
    return y, (None, None)


def _reference_forward(params, x, h, c):
    """Pure-JAX f32 reference of the PyTorch module (dense padded path)."""
    B, T, _ = x.shape
    lstm = params["lstm"]
    post = params["posterior"]
    w_last, b_last = params["last"]
    L = len(lstm)
    H = lstm[0][1].shape[1]
    h_t = [h[l] for l in range(L)]
    c_t = [c[l] for l in range(L)]
    layer_in = x
    for l, (w_ih, w_hh, b_ih, b_hh) in enumerate(lstm):
        ht, ct = h_t[l], c_t[l]
        hs = []
        for t in range(T):
            g = layer_in[:, t, :] @ w_ih.T + b_ih + ht @ w_hh.T + b_hh
            i_g = jax.nn.sigmoid(g[:, 0 * H:1 * H])
            f_g = jax.nn.sigmoid(g[:, 1 * H:2 * H])
            g_g = jnp.tanh(g[:, 2 * H:3 * H])
            o_g = jax.nn.sigmoid(g[:, 3 * H:4 * H])
            ct = f_g * ct + i_g * g_g
            ht = o_g * jnp.tanh(ct)
            hs.append(ht)
        h_t[l], c_t[l] = ht, ct
        layer_in = jnp.stack(hs, axis=1)
    out = h_t[-1]
    for (w, b, gamma, beta) in post:
        z = out @ w.T + b
        mu = z.mean(-1, keepdims=True)
        var = ((z - mu) ** 2).mean(-1, keepdims=True)
        z = (z - mu) / jnp.sqrt(var + 1e-5) * gamma + beta
        out = jnp.maximum(z, 0.0)
    y = out @ w_last.T + b_last
    return y[:, None, :], jnp.stack(h_t), jnp.stack(c_t)


if __name__ == "__main__":
    # Small shapes consistent with the module's forward.
    B, T = 2, 8
    INPUT_SIZE, HIDDEN_SIZE, OUTPUT_SIZE, LAYERS = 16, 128, 8, 2

    key = jax.random.PRNGKey(0)
    k_params, k_x = jax.random.split(key)
    params = init_params(k_params, INPUT_SIZE, HIDDEN_SIZE, OUTPUT_SIZE, LAYERS)
    x = jax.random.normal(k_x, (B, T, INPUT_SIZE), jnp.float32)

    y, (h_n, c_n) = stateful_lstm_forward(params, x, state_connected=True)
    jax.block_until_ready((y, h_n, c_n))

    assert y.shape == (B, 1, OUTPUT_SIZE)
    assert h_n.shape == (LAYERS, B, HIDDEN_SIZE)
    assert c_n.shape == (LAYERS, B, HIDDEN_SIZE)

    # Numerical check vs. a pure-JAX f32 reference (loose tolerance: the
    # kernel uses bf16 matmul operands; the review's strict-parity path would
    # keep the recurrent matmuls in f32).
    h0 = jnp.zeros((LAYERS, B, HIDDEN_SIZE), jnp.float32)
    c0 = jnp.zeros((LAYERS, B, HIDDEN_SIZE), jnp.float32)
    y_r, h_r, c_r = _reference_forward(params, x, h0, c0)
    jax.block_until_ready((y_r, h_r, c_r))
    dh = float(jnp.max(jnp.abs(h_n - h_r)))
    dc = float(jnp.max(jnp.abs(c_n - c_r)))
    dy = float(jnp.max(jnp.abs(y - y_r)))
    assert dh < 0.1, f"h mismatch: max abs diff {dh}"
    assert dc < 0.1, f"c mismatch: max abs diff {dc}"
    assert dy < 0.25, f"y mismatch: max abs diff {dy}"

    # Also exercise the state_connected=False path.
    y2, (h2, c2) = stateful_lstm_forward(params, x, state_connected=False)
    jax.block_until_ready(y2)
    assert y2.shape == (B, 1, OUTPUT_SIZE) and h2 is None and c2 is None

    print("KERNEL_OK")
</pallas_src>

<mosaic_0001>
module attributes {stable_mosaic.version = 11 : i64} {
  func.func @_stateful_lstm_kernel(%arg0: memref<128x16xbf16, #tpu.memory_space<vmem>>, %arg1: memref<2x16x128xf32, #tpu.memory_space<vmem>>, %arg2: memref<2x16x128xf32, #tpu.memory_space<vmem>>, %arg3: memref<16x512xbf16, #tpu.memory_space<vmem>>, %arg4: memref<128x512xbf16, #tpu.memory_space<vmem>>, %arg5: memref<1x512xf32, #tpu.memory_space<vmem>>, %arg6: memref<128x512xbf16, #tpu.memory_space<vmem>>, %arg7: memref<128x512xbf16, #tpu.memory_space<vmem>>, %arg8: memref<1x512xf32, #tpu.memory_space<vmem>>, %arg9: memref<128x64xf32, #tpu.memory_space<vmem>>, %arg10: memref<1x64xf32, #tpu.memory_space<vmem>>, %arg11: memref<1x64xf32, #tpu.memory_space<vmem>>, %arg12: memref<1x64xf32, #tpu.memory_space<vmem>>, %arg13: memref<64x32xf32, #tpu.memory_space<vmem>>, %arg14: memref<1x32xf32, #tpu.memory_space<vmem>>, %arg15: memref<1x32xf32, #tpu.memory_space<vmem>>, %arg16: memref<1x32xf32, #tpu.memory_space<vmem>>, %arg17: memref<32x16xf32, #tpu.memory_space<vmem>>, %arg18: memref<1x16xf32, #tpu.memory_space<vmem>>, %arg19: memref<1x16xf32, #tpu.memory_space<vmem>>, %arg20: memref<1x16xf32, #tpu.memory_space<vmem>>, %arg21: memref<16x8xf32, #tpu.memory_space<vmem>>, %arg22: memref<1x8xf32, #tpu.memory_space<vmem>>, %arg23: memref<1x8xf32, #tpu.memory_space<vmem>>, %arg24: memref<1x8xf32, #tpu.memory_space<vmem>>, %arg25: memref<8x8xf32, #tpu.memory_space<vmem>>, %arg26: memref<1x8xf32, #tpu.memory_space<vmem>>, %arg27: memref<16x8xf32, #tpu.memory_space<vmem>>, %arg28: memref<2x16x128xf32, #tpu.memory_space<vmem>>, %arg29: memref<2x16x128xf32, #tpu.memory_space<vmem>>, %arg30: memref<128x512xf32, #tpu.memory_space<vmem>>, %arg31: memref<128x128xbf16, #tpu.memory_space<vmem>>) attributes {dimension_semantics = [], scalar_prefetch = 0 : i64, scratch_operands = 2 : i64, tpu.core_type = #tpu.core_type<tc>} {
    %c0 = arith.constant 0 : index
    %c0_0 = arith.constant 0 : index
    %0 = vector.load %arg0[%c0, %c0_0] : memref<128x16xbf16, #tpu.memory_space<vmem>>, vector<128x16xbf16>
    %c0_1 = arith.constant 0 : index
    %c0_2 = arith.constant 0 : index
    %1 = vector.load %arg3[%c0_1, %c0_2] : memref<16x512xbf16, #tpu.memory_space<vmem>>, vector<16x512xbf16>
    %cst = arith.constant dense<0.000000e+00> : vector<128x512xf32>
    %2 = tpu.matmul %0, %1, %cst {dimension_numbers = #tpu.dot_dimension_numbers<[1], [0], [0], [1], [0, 0, 1, 1], [], []>} : vector<128x16xbf16>, vector<16x512xbf16>, vector<128x512xf32> -> vector<128x512xf32>
    %c0_3 = arith.constant 0 : index
    %c0_4 = arith.constant 0 : index
    %3 = vector.load %arg5[%c0_3, %c0_4] : memref<1x512xf32, #tpu.memory_space<vmem>>, vector<1x512xf32>
    %4 = vector.broadcast %3 : vector<1x512xf32> to vector<128x512xf32>
    %5 = arith.addf %2, %4 : vector<128x512xf32>
    %c0_5 = arith.constant 0 : index
    %c0_6 = arith.constant 0 : index
    %6 = vector.load %arg30[%c0_5, %c0_6] : memref<128x512xf32, #tpu.memory_space<vmem>>, vector<128x512xf32>
    tpu.vector_store %arg30[%c0_5, %c0_6], %5 {strides = array<i32>} : memref<128x512xf32, #tpu.memory_space<vmem>>, vector<128x512xf32>,
    %c0_7 = arith.constant 0 : index
    %c0_8 = arith.constant 0 : index
    %c0_9 = arith.constant 0 : index
    %7 = vector.load %arg1[%c0_7, %c0_8, %c0_9] : memref<2x16x128xf32, #tpu.memory_space<vmem>>, vector<1x16x128xf32>
    %8 = vector.shape_cast %7 : vector<1x16x128xf32> to vector<16x128xf32>
    %9 = arith.truncf %8 : vector<16x128xf32> to vector<16x128xbf16>
    %c0_10 = arith.constant 0 : index
    %c0_11 = arith.constant 0 : index
    %c0_12 = arith.constant 0 : index
    %10 = vector.load %arg2[%c0_10, %c0_11, %c0_12] : memref<2x16x128xf32, #tpu.memory_space<vmem>>, vector<1x16x128xf32>
    %11 = vector.shape_cast %10 : vector<1x16x128xf32> to vector<16x128xf32>
    %c0_13 = arith.constant 0 : index
    %c0_14 = arith.constant 0 : index
    %12 = vector.load %arg4[%c0_13, %c0_14] : memref<128x512xbf16, #tpu.memory_space<vmem>>, vector<128x512xbf16>
    %cst_15 = arith.constant dense<0.000000e+00> : vector<16x512xf32>
    %13 = tpu.matmul %9, %12, %cst_15 {dimension_numbers = #tpu.dot_dimension_numbers<[1], [0], [0], [1], [0, 0, 1, 1], [], []>} : vector<16x128xbf16>, vector<128x512xbf16>, vector<16x512xf32> -> vector<16x512xf32>
    %c0_16 = arith.constant 0 : index
    %c0_17 = arith.constant 0 : index
    %14 = vector.load %arg30[%c0_16, %c0_17] : memref<128x512xf32, #tpu.memory_space<vmem>>, vector<16x512xf32>
    %15 = arith.addf %13, %14 : vector<16x512xf32>
    %16 = vector.extract_strided_slice %15 {offsets = [0, 0], sizes = [16, 384], strides = [1, 1]} : vector<16x512xf32> to vector<16x384xf32>
    %17 = arith.negf %16 : vector<16x384xf32>
    %18 = math.exp %17 : vector<16x384xf32>
    %cst_18 = arith.constant 1.000000e+00 : f32
    %19 = vector.broadcast %cst_18 : f32 to vector<16x384xf32>
    %20 = arith.addf %19, %18 : vector<16x384xf32>
    %21 = arith.divf %19, %20 : vector<16x384xf32>
    %22 = vector.extract_strided_slice %21 {offsets = [0, 0], sizes = [16, 128], strides = [1, 1]} : vector<16x384xf32> to vector<16x128xf32>
    %23 = vector.extract_strided_slice %21 {offsets = [0, 128], sizes = [16, 128], strides = [1, 1]} : vector<16x384xf32> to vector<16x128xf32>
    %24 = vector.extract_strided_slice %21 {offsets = [0, 256], sizes = [16, 128], strides = [1, 1]} : vector<16x384xf32> to vector<16x128xf32>
    %25 = vector.extract_strided_slice %15 {offsets = [0, 384], sizes = [16, 128], strides = [1, 1]} : vector<16x512xf32> to vector<16x128xf32>
    %26 = math.tanh %25 : vector<16x128xf32>
    %27 = arith.mulf %23, %11 : vector<16x128xf32>
    %28 = arith.mulf %22, %26 : vector<16x128xf32>
    %29 = arith.addf %27, %28 : vector<16x128xf32>
    %30 = math.tanh %29 : vector<16x128xf32>
    %31 = arith.mulf %24, %30 : vector<16x128xf32>
    %32 = arith.truncf %31 : vector<16x128xf32> to vector<16x128xbf16>
    %c0_19 = arith.constant 0 : index
    %c0_20 = arith.constant 0 : index
    %33 = vector.load %arg31[%c0_19, %c0_20] : memref<128x128xbf16, #tpu.memory_space<vmem>>, vector<16x128xbf16>
    tpu.vector_store %arg31[%c0_19, %c0_20], %32 {strides = array<i32>} : memref<128x128xbf16, #tpu.memory_space<vmem>>, vector<16x128xbf16>,
    %c0_21 = arith.constant 0 : index
    %c0_22 = arith.constant 0 : index
    %34 = vector.load %arg4[%c0_21, %c0_22] : memref<128x512xbf16, #tpu.memory_space<vmem>>, vector<128x512xbf16>
    %cst_23 = arith.constant dense<0.000000e+00> : vector<16x512xf32>
    %35 = tpu.matmul %32, %34, %cst_23 {dimension_numbers = #tpu.dot_dimension_numbers<[1], [0], [0], [1], [0, 0, 1, 1], [], []>} : vector<16x128xbf16>, vector<128x512xbf16>, vector<16x512xf32> -> vector<16x512xf32>
    %c16 = arith.constant 16 : index
    %c0_24 = arith.constant 0 : index
    %36 = vector.load %arg30[%c16, %c0_24] : memref<128x512xf32, #tpu.memory_space<vmem>>, vector<16x512xf32>
    %37 = arith.addf %35, %36 : vector<16x512xf32>
    %38 = vector.extract_strided_slice %37 {offsets = [0, 0], sizes = [16, 384], strides = [1, 1]} : vector<16x512xf32> to vector<16x384xf32>
    %39 = arith.negf %38 : vector<16x384xf32>
    %40 = math.exp %39 : vector<16x384xf32>
    %cst_25 = arith.constant 1.000000e+00 : f32
    %41 = vector.broadcast %cst_25 : f32 to vector<16x384xf32>
    %42 = arith.addf %41, %40 : vector<16x384xf32>
    %43 = arith.divf %41, %42 : vector<16x384xf32>
    %44 = vector.extract_strided_slice %43 {offsets = [0, 0], sizes = [16, 128], strides = [1, 1]} : vector<16x384xf32> to vector<16x128xf32>
    %45 = vector.extract_strided_slice %43 {offsets = [0, 128], sizes = [16, 128], strides = [1, 1]} : vector<16x384xf32> to vector<16x128xf32>
    %46 = vector.extract_strided_slice %43 {offsets = [0, 256], sizes = [16, 128], strides = [1, 1]} : vector<16x384xf32> to vector<16x128xf32>
    %47 = vector.extract_strided_slice %37 {offsets = [0, 384], sizes = [16, 128], strides = [1, 1]} : vector<16x512xf32> to vector<16x128xf32>
    %48 = math.tanh %47 : vector<16x128xf32>
    %49 = arith.mulf %45, %29 : vector<16x128xf32>
    %50 = arith.mulf %44, %48 : vector<16x128xf32>
    %51 = arith.addf %49, %50 : vector<16x128xf32>
    %52 = math.tanh %51 : vector<16x128xf32>
    %53 = arith.mulf %46, %52 : vector<16x128xf32>
    %54 = arith.truncf %53 : vector<16x128xf32> to vector<16x128xbf16>
    %c16_26 = arith.constant 16 : index
    %c0_27 = arith.constant 0 : index
    %55 = vector.load %arg31[%c16_26, %c0_27] : memref<128x128xbf16, #tpu.memory_space<vmem>>, vector<16x128xbf16>
    tpu.vector_store %arg31[%c16_26, %c0_27], %54 {strides = array<i32>} : memref<128x128xbf16, #tpu.memory_space<vmem>>, vector<16x128xbf16>,
    %c0_28 = arith.constant 0 : index
    %c0_29 = arith.constant 0 : index
    %56 = vector.load %arg4[%c0_28, %c0_29] : memref<128x512xbf16, #tpu.memory_space<vmem>>, vector<128x512xbf16>
    %cst_30 = arith.constant dense<0.000000e+00> : vector<16x512xf32>
    %57 = tpu.matmul %54, %56, %cst_30 {dimension_numbers = #tpu.dot_dimension_numbers<[1], [0], [0], [1], [0, 0, 1, 1], [], []>} : vector<16x128xbf16>, vector<128x512xbf16>, vector<16x512xf32> -> vector<16x512xf32>
    %c32 = arith.constant 32 : index
    %c0_31 = arith.constant 0 : index
    %58 = vector.load %arg30[%c32, %c0_31] : memref<128x512xf32, #tpu.memory_space<vmem>>, vector<16x512xf32>
    %59 = arith.addf %57, %58 : vector<16x512xf32>
    %60 = vector.extract_strided_slice %59 {offsets = [0, 0], sizes = [16, 384], strides = [1, 1]} : vector<16x512xf32> to vector<16x384xf32>
    %61 = arith.negf %60 : vector<16x384xf32>
    %62 = math.exp %61 : vector<16x384xf32>
    %cst_32 = arith.constant 1.000000e+00 : f32
    %63 = vector.broadcast %cst_32 : f32 to vector<16x384xf32>
    %64 = arith.addf %63, %62 : vector<16x384xf32>
    %65 = arith.divf %63, %64 : vector<16x384xf32>
    %66 = vector.extract_strided_slice %65 {offsets = [0, 0], sizes = [16, 128], strides = [1, 1]} : vector<16x384xf32> to vector<16x128xf32>
    %67 = vector.extract_strided_slice %65 {offsets = [0, 128], sizes = [16, 128], strides = [1, 1]} : vector<16x384xf32> to vector<16x128xf32>
    %68 = vector.extract_strided_slice %65 {offsets = [0, 256], sizes = [16, 128], strides = [1, 1]} : vector<16x384xf32> to vector<16x128xf32>
    %69 = vector.extract_strided_slice %59 {offsets = [0, 384], sizes = [16, 128], strides = [1, 1]} : vector<16x512xf32> to vector<16x128xf32>
    %70 = math.tanh %69 : vector<16x128xf32>
    %71 = arith.mulf %67, %51 : vector<16x128xf32>
    %72 = arith.mulf %66, %70 : vector<16x128xf32>
    %73 = arith.addf %71, %72 : vector<16x128xf32>
    %74 = math.tanh %73 : vector<16x128xf32>
    %75 = arith.mulf %68, %74 : vector<16x128xf32>
    %76 = arith.truncf %75 : vector<16x128xf32> to vector<16x128xbf16>
    %c32_33 = arith.constant 32 : index
    %c0_34 = arith.constant 0 : index
    %77 = vector.load %arg31[%c32_33, %c0_34] : memref<128x128xbf16, #tpu.memory_space<vmem>>, vector<16x128xbf16>
    tpu.vector_store %arg31[%c32_33, %c0_34], %76 {strides = array<i32>} : memref<128x128xbf16, #tpu.memory_space<vmem>>, vector<16x128xbf16>,
    %c0_35 = arith.constant 0 : index
    %c0_36 = arith.constant 0 : index
    %78 = vector.load %arg4[%c0_35, %c0_36] : memref<128x512xbf16, #tpu.memory_space<vmem>>, vector<128x512xbf16>
    %cst_37 = arith.constant dense<0.000000e+00> : vector<16x512xf32>
    %79 = tpu.matmul %76, %78, %cst_37 {dimension_numbers = #tpu.dot_dimension_numbers<[1], [0], [0], [1], [0, 0, 1, 1], [], []>} : vector<16x128xbf16>, vector<128x512xbf16>, vector<16x512xf32> -> vector<16x512xf32>
    %c48 = arith.constant 48 : index
    %c0_38 = arith.constant 0 : index
    %80 = vector.load %arg30[%c48, %c0_38] : memref<128x512xf32, #tpu.memory_space<vmem>>, vector<16x512xf32>
    %81 = arith.addf %79, %80 : vector<16x512xf32>
    %82 = vector.extract_strided_slice %81 {offsets = [0, 0], sizes = [16, 384], strides = [1, 1]} : vector<16x512xf32> to vector<16x384xf32>
    %83 = arith.negf %82 : vector<16x384xf32>
    %84 = math.exp %83 : vector<16x384xf32>
    %cst_39 = arith.constant 1.000000e+00 : f32
    %85 = vector.broadcast %cst_39 : f32 to vector<16x384xf32>
    %86 = arith.addf %85, %84 : vector<16x384xf32>
    %87 = arith.divf %85, %86 : vector<16x384xf32>
    %88 = vector.extract_strided_slice %87 {offsets = [0, 0], sizes = [16, 128], strides = [1, 1]} : vector<16x384xf32> to vector<16x128xf32>
    %89 = vector.extract_strided_slice %87 {offsets = [0, 128], sizes = [16, 128], strides = [1, 1]} : vector<16x384xf32> to vector<16x128xf32>
    %90 = vector.extract_strided_slice %87 {offsets = [0, 256], sizes = [16, 128], strides = [1, 1]} : vector<16x384xf32> to vector<16x128xf32>
    %91 = vector.extract_strided_slice %81 {offsets = [0, 384], sizes = [16, 128], strides = [1, 1]} : vector<16x512xf32> to vector<16x128xf32>
    %92 = math.tanh %91 : vector<16x128xf32>
    %93 = arith.mulf %89, %73 : vector<16x128xf32>
    %94 = arith.mulf %88, %92 : vector<16x128xf32>
    %95 = arith.addf %93, %94 : vector<16x128xf32>
    %96 = math.tanh %95 : vector<16x128xf32>
    %97 = arith.mulf %90, %96 : vector<16x128xf32>
    %98 = arith.truncf %97 : vector<16x128xf32> to vector<16x128xbf16>
    %c48_40 = arith.constant 48 : index
    %c0_41 = arith.constant 0 : index
    %99 = vector.load %arg31[%c48_40, %c0_41] : memref<128x128xbf16, #tpu.memory_space<vmem>>, vector<16x128xbf16>
    tpu.vector_store %arg31[%c48_40, %c0_41], %98 {strides = array<i32>} : memref<128x128xbf16, #tpu.memory_space<vmem>>, vector<16x128xbf16>,
    %c0_42 = arith.constant 0 : index
    %c0_43 = arith.constant 0 : index
    %100 = vector.load %arg4[%c0_42, %c0_43] : memref<128x512xbf16, #tpu.memory_space<vmem>>, vector<128x512xbf16>
    %cst_44 = arith.constant dense<0.000000e+00> : vector<16x512xf32>
    %101 = tpu.matmul %98, %100, %cst_44 {dimension_numbers = #tpu.dot_dimension_numbers<[1], [0], [0], [1], [0, 0, 1, 1], [], []>} : vector<16x128xbf16>, vector<128x512xbf16>, vector<16x512xf32> -> vector<16x512xf32>
    %c64 = arith.constant 64 : index
    %c0_45 = arith.constant 0 : index
    %102 = vector.load %arg30[%c64, %c0_45] : memref<128x512xf32, #tpu.memory_space<vmem>>, vector<16x512xf32>
    %103 = arith.addf %101, %102 : vector<16x512xf32>
    %104 = vector.extract_strided_slice %103 {offsets = [0, 0], sizes = [16, 384], strides = [1, 1]} : vector<16x512xf32> to vector<16x384xf32>
    %105 = arith.negf %104 : vector<16x384xf32>
    %106 = math.exp %105 : vector<16x384xf32>
    %cst_46 = arith.constant 1.000000e+00 : f32
    %107 = vector.broadcast %cst_46 : f32 to vector<16x384xf32>
    %108 = arith.addf %107, %106 : vector<16x384xf32>
    %109 = arith.divf %107, %108 : vector<16x384xf32>
    %110 = vector.extract_strided_slice %109 {offsets = [0, 0], sizes = [16, 128], strides = [1, 1]} : vector<16x384xf32> to vector<16x128xf32>
    %111 = vector.extract_strided_slice %109 {offsets = [0, 128], sizes = [16, 128], strides = [1, 1]} : vector<16x384xf32> to vector<16x128xf32>
    %112 = vector.extract_strided_slice %109 {offsets = [0, 256], sizes = [16, 128], strides = [1, 1]} : vector<16x384xf32> to vector<16x128xf32>
    %113 = vector.extract_strided_slice %103 {offsets = [0, 384], sizes = [16, 128], strides = [1, 1]} : vector<16x512xf32> to vector<16x128xf32>
    %114 = math.tanh %113 : vector<16x128xf32>
    %115 = arith.mulf %111, %95 : vector<16x128xf32>
    %116 = arith.mulf %110, %114 : vector<16x128xf32>
    %117 = arith.addf %115, %116 : vector<16x128xf32>
    %118 = math.tanh %117 : vector<16x128xf32>
    %119 = arith.mulf %112, %118 : vector<16x128xf32>
    %120 = arith.truncf %119 : vector<16x128xf32> to vector<16x128xbf16>
    %c64_47 = arith.constant 64 : index
    %c0_48 = arith.constant 0 : index
    %121 = vector.load %arg31[%c64_47, %c0_48] : memref<128x128xbf16, #tpu.memory_space<vmem>>, vector<16x128xbf16>
    tpu.vector_store %arg31[%c64_47, %c0_48], %120 {strides = array<i32>} : memref<128x128xbf16, #tpu.memory_space<vmem>>, vector<16x128xbf16>,
    %c0_49 = arith.constant 0 : index
    %c0_50 = arith.constant 0 : index
    %122 = vector.load %arg4[%c0_49, %c0_50] : memref<128x512xbf16, #tpu.memory_space<vmem>>, vector<128x512xbf16>
    %cst_51 = arith.constant dense<0.000000e+00> : vector<16x512xf32>
    %123 = tpu.matmul %120, %122, %cst_51 {dimension_numbers = #tpu.dot_dimension_numbers<[1], [0], [0], [1], [0, 0, 1, 1], [], []>} : vector<16x128xbf16>, vector<128x512xbf16>, vector<16x512xf32> -> vector<16x512xf32>
    %c80 = arith.constant 80 : index
    %c0_52 = arith.constant 0 : index
    %124 = vector.load %arg30[%c80, %c0_52] : memref<128x512xf32, #tpu.memory_space<vmem>>, vector<16x512xf32>
    %125 = arith.addf %123, %124 : vector<16x512xf32>
    %126 = vector.extract_strided_slice %125 {offsets = [0, 0], sizes = [16, 384], strides = [1, 1]} : vector<16x512xf32> to vector<16x384xf32>
    %127 = arith.negf %126 : vector<16x384xf32>
    %128 = math.exp %127 : vector<16x384xf32>
    %cst_53 = arith.constant 1.000000e+00 : f32
    %129 = vector.broadcast %cst_53 : f32 to vector<16x384xf32>
    %130 = arith.addf %129, %128 : vector<16x384xf32>
    %131 = arith.divf %129, %130 : vector<16x384xf32>
    %132 = vector.extract_strided_slice %131 {offsets = [0, 0], sizes = [16, 128], strides = [1, 1]} : vector<16x384xf32> to vector<16x128xf32>
    %133 = vector.extract_strided_slice %131 {offsets = [0, 128], sizes = [16, 128], strides = [1, 1]} : vector<16x384xf32> to vector<16x128xf32>
    %134 = vector.extract_strided_slice %131 {offsets = [0, 256], sizes = [16, 128], strides = [1, 1]} : vector<16x384xf32> to vector<16x128xf32>
    %135 = vector.extract_strided_slice %125 {offsets = [0, 384], sizes = [16, 128], strides = [1, 1]} : vector<16x512xf32> to vector<16x128xf32>
    %136 = math.tanh %135 : vector<16x128xf32>
    %137 = arith.mulf %133, %117 : vector<16x128xf32>
    %138 = arith.mulf %132, %136 : vector<16x128xf32>
    %139 = arith.addf %137, %138 : vector<16x128xf32>
    %140 = math.tanh %139 : vector<16x128xf32>
    %141 = arith.mulf %134, %140 : vector<16x128xf32>
    %142 = arith.truncf %141 : vector<16x128xf32> to vector<16x128xbf16>
    %c80_54 = arith.constant 80 : index
    %c0_55 = arith.constant 0 : index
    %143 = vector.load %arg31[%c80_54, %c0_55] : memref<128x128xbf16, #tpu.memory_space<vmem>>, vector<16x128xbf16>
    tpu.vector_store %arg31[%c80_54, %c0_55], %142 {strides = array<i32>} : memref<128x128xbf16, #tpu.memory_space<vmem>>, vector<16x128xbf16>,
    %c0_56 = arith.constant 0 : index
    %c0_57 = arith.constant 0 : index
    %144 = vector.load %arg4[%c0_56, %c0_57] : memref<128x512xbf16, #tpu.memory_space<vmem>>, vector<128x512xbf16>
    %cst_58 = arith.constant dense<0.000000e+00> : vector<16x512xf32>
    %145 = tpu.matmul %142, %144, %cst_58 {dimension_numbers = #tpu.dot_dimension_numbers<[1], [0], [0], [1], [0, 0, 1, 1], [], []>} : vector<16x128xbf16>, vector<128x512xbf16>, vector<16x512xf32> -> vector<16x512xf32>
    %c96 = arith.constant 96 : index
    %c0_59 = arith.constant 0 : index
    %146 = vector.load %arg30[%c96, %c0_59] : memref<128x512xf32, #tpu.memory_space<vmem>>, vector<16x512xf32>
    %147 = arith.addf %145, %146 : vector<16x512xf32>
    %148 = vector.extract_strided_slice %147 {offsets = [0, 0], sizes = [16, 384], strides = [1, 1]} : vector<16x512xf32> to vector<16x384xf32>
    %149 = arith.negf %148 : vector<16x384xf32>
    %150 = math.exp %149 : vector<16x384xf32>
    %cst_60 = arith.constant 1.000000e+00 : f32
    %151 = vector.broadcast %cst_60 : f32 to vector<16x384xf32>
    %152 = arith.addf %151, %150 : vector<16x384xf32>
    %153 = arith.divf %151, %152 : vector<16x384xf32>
    %154 = vector.extract_strided_slice %153 {offsets = [0, 0], sizes = [16, 128], strides = [1, 1]} : vector<16x384xf32> to vector<16x128xf32>
    %155 = vector.extract_strided_slice %153 {offsets = [0, 128], sizes = [16, 128], strides = [1, 1]} : vector<16x384xf32> to vector<16x128xf32>
    %156 = vector.extract_strided_slice %153 {offsets = [0, 256], sizes = [16, 128], strides = [1, 1]} : vector<16x384xf32> to vector<16x128xf32>
    %157 = vector.extract_strided_slice %147 {offsets = [0, 384], sizes = [16, 128], strides = [1, 1]} : vector<16x512xf32> to vector<16x128xf32>
    %158 = math.tanh %157 : vector<16x128xf32>
    %159 = arith.mulf %155, %139 : vector<16x128xf32>
    %160 = arith.mulf %154, %158 : vector<16x128xf32>
    %161 = arith.addf %159, %160 : vector<16x128xf32>
    %162 = math.tanh %161 : vector<16x128xf32>
    %163 = arith.mulf %156, %162 : vector<16x128xf32>
    %164 = arith.truncf %163 : vector<16x128xf32> to vector<16x128xbf16>
    %c96_61 = arith.constant 96 : index
    %c0_62 = arith.constant 0 : index
    %165 = vector.load %arg31[%c96_61, %c0_62] : memref<128x128xbf16, #tpu.memory_space<vmem>>, vector<16x128xbf16>
    tpu.vector_store %arg31[%c96_61, %c0_62], %164 {strides = array<i32>} : memref<128x128xbf16, #tpu.memory_space<vmem>>, vector<16x128xbf16>,
    %c0_63 = arith.constant 0 : index
    %c0_64 = arith.constant 0 : index
    %166 = vector.load %arg4[%c0_63, %c0_64] : memref<128x512xbf16, #tpu.memory_space<vmem>>, vector<128x512xbf16>
    %cst_65 = arith.constant dense<0.000000e+00> : vector<16x512xf32>
    %167 = tpu.matmul %164, %166, %cst_65 {dimension_numbers = #tpu.dot_dimension_numbers<[1], [0], [0], [1], [0, 0, 1, 1], [], []>} : vector<16x128xbf16>, vector<128x512xbf16>, vector<16x512xf32> -> vector<16x512xf32>
    %c112 = arith.constant 112 : index
    %c0_66 = arith.constant 0 : index
    %168 = vector.load %arg30[%c112, %c0_66] : memref<128x512xf32, #tpu.memory_space<vmem>>, vector<16x512xf32>
    %169 = arith.addf %167, %168 : vector<16x512xf32>
    %170 = vector.extract_strided_slice %169 {offsets = [0, 0], sizes = [16, 384], strides = [1, 1]} : vector<16x512xf32> to vector<16x384xf32>
    %171 = arith.negf %170 : vector<16x384xf32>
    %172 = math.exp %171 : vector<16x384xf32>
    %cst_67 = arith.constant 1.000000e+00 : f32
    %173 = vector.broadcast %cst_67 : f32 to vector<16x384xf32>
    %174 = arith.addf %173, %172 : vector<16x384xf32>
    %175 = arith.divf %173, %174 : vector<16x384xf32>
    %176 = vector.extract_strided_slice %175 {offsets = [0, 0], sizes = [16, 128], strides = [1, 1]} : vector<16x384xf32> to vector<16x128xf32>
    %177 = vector.extract_strided_slice %175 {offsets = [0, 128], sizes = [16, 128], strides = [1, 1]} : vector<16x384xf32> to vector<16x128xf32>
    %178 = vector.extract_strided_slice %175 {offsets = [0, 256], sizes = [16, 128], strides = [1, 1]} : vector<16x384xf32> to vector<16x128xf32>
    %179 = vector.extract_strided_slice %169 {offsets = [0, 384], sizes = [16, 128], strides = [1, 1]} : vector<16x512xf32> to vector<16x128xf32>
    %180 = math.tanh %179 : vector<16x128xf32>
    %181 = arith.mulf %177, %161 : vector<16x128xf32>
    %182 = arith.mulf %176, %180 : vector<16x128xf32>
    %183 = arith.addf %181, %182 : vector<16x128xf32>
    %184 = math.tanh %183 : vector<16x128xf32>
    %185 = arith.mulf %178, %184 : vector<16x128xf32>
    %186 = arith.truncf %185 : vector<16x128xf32> to vector<16x128xbf16>
    %c112_68 = arith.constant 112 : index
    %c0_69 = arith.constant 0 : index
    %187 = vector.load %arg31[%c112_68, %c0_69] : memref<128x128xbf16, #tpu.memory_space<vmem>>, vector<16x128xbf16>
    tpu.vector_store %arg31[%c112_68, %c0_69], %186 {strides = array<i32>} : memref<128x128xbf16, #tpu.memory_space<vmem>>, vector<16x128xbf16>,
    %c0_70 = arith.constant 0 : index
    %c0_71 = arith.constant 0 : index
    %c0_72 = arith.constant 0 : index
    %188 = vector.load %arg28[%c0_70, %c0_71, %c0_72] : memref<2x16x128xf32, #tpu.memory_space<vmem>>, vector<1x16x128xf32>
    %189 = vector.shape_cast %188 : vector<1x16x128xf32> to vector<16x128xf32>
    %190 = vector.shape_cast %185 : vector<16x128xf32> to vector<1x16x128xf32>
    tpu.vector_store %arg28[%c0_70, %c0_71, %c0_72], %190 {strides = array<i32>} : memref<2x16x128xf32, #tpu.memory_space<vmem>>, vector<1x16x128xf32>,
    %c0_73 = arith.constant 0 : index
    %c0_74 = arith.constant 0 : index
    %c0_75 = arith.constant 0 : index
    %191 = vector.load %arg29[%c0_73, %c0_74, %c0_75] : memref<2x16x128xf32, #tpu.memory_space<vmem>>, vector<1x16x128xf32>
    %192 = vector.shape_cast %191 : vector<1x16x128xf32> to vector<16x128xf32>
    %193 = vector.shape_cast %183 : vector<16x128xf32> to vector<1x16x128xf32>
    tpu.vector_store %arg29[%c0_73, %c0_74, %c0_75], %193 {strides = array<i32>} : memref<2x16x128xf32, #tpu.memory_space<vmem>>, vector<1x16x128xf32>,
    %c0_76 = arith.constant 0 : index
    %c0_77 = arith.constant 0 : index
    %194 = vector.load %arg31[%c0_76, %c0_77] : memref<128x128xbf16, #tpu.memory_space<vmem>>, vector<128x128xbf16>
    %c0_78 = arith.constant 0 : index
    %c0_79 = arith.constant 0 : index
    %195 = vector.load %arg6[%c0_78, %c0_79] : memref<128x512xbf16, #tpu.memory_space<vmem>>, vector<128x512xbf16>
    %cst_80 = arith.constant dense<0.000000e+00> : vector<128x512xf32>
    %196 = tpu.matmul %194, %195, %cst_80 {dimension_numbers = #tpu.dot_dimension_numbers<[1], [0], [0], [1], [0, 0, 1, 1], [], []>} : vector<128x128xbf16>, vector<128x512xbf16>, vector<128x512xf32> -> vector<128x512xf32>
    %c0_81 = arith.constant 0 : index
    %c0_82 = arith.constant 0 : index
    %197 = vector.load %arg8[%c0_81, %c0_82] : memref<1x512xf32, #tpu.memory_space<vmem>>, vector<1x512xf32>
    %198 = vector.broadcast %197 : vector<1x512xf32> to vector<128x512xf32>
    %199 = arith.addf %196, %198 : vector<128x512xf32>
    %c0_83 = arith.constant 0 : index
    %c0_84 = arith.constant 0 : index
    %200 = vector.load %arg30[%c0_83, %c0_84] : memref<128x512xf32, #tpu.memory_space<vmem>>, vector<128x512xf32>
    tpu.vector_store %arg30[%c0_83, %c0_84], %199 {strides = array<i32>} : memref<128x512xf32, #tpu.memory_space<vmem>>, vector<128x512xf32>,
    %c1 = arith.constant 1 : index
    %c0_85 = arith.constant 0 : index
    %c0_86 = arith.constant 0 : index
    %201 = vector.load %arg1[%c1, %c0_85, %c0_86] : memref<2x16x128xf32, #tpu.memory_space<vmem>>, vector<1x16x128xf32>
    %202 = vector.shape_cast %201 : vector<1x16x128xf32> to vector<16x128xf32>
    %203 = arith.truncf %202 : vector<16x128xf32> to vector<16x128xbf16>
    %c1_87 = arith.constant 1 : index
    %c0_88 = arith.constant 0 : index
    %c0_89 = arith.constant 0 : index
    %204 = vector.load %arg2[%c1_87, %c0_88, %c0_89] : memref<2x16x128xf32, #tpu.memory_space<vmem>>, vector<1x16x128xf32>
    %205 = vector.shape_cast %204 : vector<1x16x128xf32> to vector<16x128xf32>
    %c0_90 = arith.constant 0 : index
    %c0_91 = arith.constant 0 : index
    %206 = vector.load %arg7[%c0_90, %c0_91] : memref<128x512xbf16, #tpu.memory_space<vmem>>, vector<128x512xbf16>
    %cst_92 = arith.constant dense<0.000000e+00> : vector<16x512xf32>
    %207 = tpu.matmul %203, %206, %cst_92 {dimension_numbers = #tpu.dot_dimension_numbers<[1], [0], [0], [1], [0, 0, 1, 1], [], []>} : vector<16x128xbf16>, vector<128x512xbf16>, vector<16x512xf32> -> vector<16x512xf32>
    %c0_93 = arith.constant 0 : index
    %c0_94 = arith.constant 0 : index
    %208 = vector.load %arg30[%c0_93, %c0_94] : memref<128x512xf32, #tpu.memory_space<vmem>>, vector<16x512xf32>
    %209 = arith.addf %207, %208 : vector<16x512xf32>
    %210 = vector.extract_strided_slice %209 {offsets = [0, 0], sizes = [16, 384], strides = [1, 1]} : vector<16x512xf32> to vector<16x384xf32>
    %211 = arith.negf %210 : vector<16x384xf32>
    %212 = math.exp %211 : vector<16x384xf32>
    %cst_95 = arith.constant 1.000000e+00 : f32
    %213 = vector.broadcast %cst_95 : f32 to vector<16x384xf32>
    %214 = arith.addf %213, %212 : vector<16x384xf32>
    %215 = arith.divf %213, %214 : vector<16x384xf32>
    %216 = vector.extract_strided_slice %215 {offsets = [0, 0], sizes = [16, 128], strides = [1, 1]} : vector<16x384xf32> to vector<16x128xf32>
    %217 = vector.extract_strided_slice %215 {offsets = [0, 128], sizes = [16, 128], strides = [1, 1]} : vector<16x384xf32> to vector<16x128xf32>
    %218 = vector.extract_strided_slice %215 {offsets = [0, 256], sizes = [16, 128], strides = [1, 1]} : vector<16x384xf32> to vector<16x128xf32>
    %219 = vector.extract_strided_slice %209 {offsets = [0, 384], sizes = [16, 128], strides = [1, 1]} : vector<16x512xf32> to vector<16x128xf32>
    %220 = math.tanh %219 : vector<16x128xf32>
    %221 = arith.mulf %217, %205 : vector<16x128xf32>
    %222 = arith.mulf %216, %220 : vector<16x128xf32>
    %223 = arith.addf %221, %222 : vector<16x128xf32>
    %224 = math.tanh %223 : vector<16x128xf32>
    %225 = arith.mulf %218, %224 : vector<16x128xf32>
    %226 = arith.truncf %225 : vector<16x128xf32> to vector<16x128xbf16>
    %c0_96 = arith.constant 0 : index
    %c0_97 = arith.constant 0 : index
    %227 = vector.load %arg7[%c0_96, %c0_97] : memref<128x512xbf16, #tpu.memory_space<vmem>>, vector<128x512xbf16>
    %cst_98 = arith.constant dense<0.000000e+00> : vector<16x512xf32>
    %228 = tpu.matmul %226, %227, %cst_98 {dimension_numbers = #tpu.dot_dimension_numbers<[1], [0], [0], [1], [0, 0, 1, 1], [], []>} : vector<16x128xbf16>, vector<128x512xbf16>, vector<16x512xf32> -> vector<16x512xf32>
    %c16_99 = arith.constant 16 : index
    %c0_100 = arith.constant 0 : index
    %229 = vector.load %arg30[%c16_99, %c0_100] : memref<128x512xf32, #tpu.memory_space<vmem>>, vector<16x512xf32>
    %230 = arith.addf %228, %229 : vector<16x512xf32>
    %231 = vector.extract_strided_slice %230 {offsets = [0, 0], sizes = [16, 384], strides = [1, 1]} : vector<16x512xf32> to vector<16x384xf32>
    %232 = arith.negf %231 : vector<16x384xf32>
    %233 = math.exp %232 : vector<16x384xf32>
    %cst_101 = arith.constant 1.000000e+00 : f32
    %234 = vector.broadcast %cst_101 : f32 to vector<16x384xf32>
    %235 = arith.addf %234, %233 : vector<16x384xf32>
    %236 = arith.divf %234, %235 : vector<16x384xf32>
    %237 = vector.extract_strided_slice %236 {offsets = [0, 0], sizes = [16, 128], strides = [1, 1]} : vector<16x384xf32> to vector<16x128xf32>
    %238 = vector.extract_strided_slice %236 {offsets = [0, 128], sizes = [16, 128], strides = [1, 1]} : vector<16x384xf32> to vector<16x128xf32>
    %239 = vector.extract_strided_slice %236 {offsets = [0, 256], sizes = [16, 128], strides = [1, 1]} : vector<16x384xf32> to vector<16x128xf32>
    %240 = vector.extract_strided_slice %230 {offsets = [0, 384], sizes = [16, 128], strides = [1, 1]} : vector<16x512xf32> to vector<16x128xf32>
    %241 = math.tanh %240 : vector<16x128xf32>
    %242 = arith.mulf %238, %223 : vector<16x128xf32>
    %243 = arith.mulf %237, %241 : vector<16x128xf32>
    %244 = arith.addf %242, %243 : vector<16x128xf32>
    %245 = math.tanh %244 : vector<16x128xf32>
    %246 = arith.mulf %239, %245 : vector<16x128xf32>
    %247 = arith.truncf %246 : vector<16x128xf32> to vector<16x128xbf16>
    %c0_102 = arith.constant 0 : index
    %c0_103 = arith.constant 0 : index
    %248 = vector.load %arg7[%c0_102, %c0_103] : memref<128x512xbf16, #tpu.memory_space<vmem>>, vector<128x512xbf16>
    %cst_104 = arith.constant dense<0.000000e+00> : vector<16x512xf32>
    %249 = tpu.matmul %247, %248, %cst_104 {dimension_numbers = #tpu.dot_dimension_numbers<[1], [0], [0], [1], [0, 0, 1, 1], [], []>} : vector<16x128xbf16>, vector<128x512xbf16>, vector<16x512xf32> -> vector<16x512xf32>
    %c32_105 = arith.constant 32 : index
    %c0_106 = arith.constant 0 : index
    %250 = vector.load %arg30[%c32_105, %c0_106] : memref<128x512xf32, #tpu.memory_space<vmem>>, vector<16x512xf32>
    %251 = arith.addf %249, %250 : vector<16x512xf32>
    %252 = vector.extract_strided_slice %251 {offsets = [0, 0], sizes = [16, 384], strides = [1, 1]} : vector<16x512xf32> to vector<16x384xf32>
    %253 = arith.negf %252 : vector<16x384xf32>
    %254 = math.exp %253 : vector<16x384xf32>
    %cst_107 = arith.constant 1.000000e+00 : f32
    %255 = vector.broadcast %cst_107 : f32 to vector<16x384xf32>
    %256 = arith.addf %255, %254 : vector<16x384xf32>
    %257 = arith.divf %255, %256 : vector<16x384xf32>
    %258 = vector.extract_strided_slice %257 {offsets = [0, 0], sizes = [16, 128], strides = [1, 1]} : vector<16x384xf32> to vector<16x128xf32>
    %259 = vector.extract_strided_slice %257 {offsets = [0, 128], sizes = [16, 128], strides = [1, 1]} : vector<16x384xf32> to vector<16x128xf32>
    %260 = vector.extract_strided_slice %257 {offsets = [0, 256], sizes = [16, 128], strides = [1, 1]} : vector<16x384xf32> to vector<16x128xf32>
    %261 = vector.extract_strided_slice %251 {offsets = [0, 384], sizes = [16, 128], strides = [1, 1]} : vector<16x512xf32> to vector<16x128xf32>
    %262 = math.tanh %261 : vector<16x128xf32>
    %263 = arith.mulf %259, %244 : vector<16x128xf32>
    %264 = arith.mulf %258, %262 : vector<16x128xf32>
    %265 = arith.addf %263, %264 : vector<16x128xf32>
    %266 = math.tanh %265 : vector<16x128xf32>
    %267 = arith.mulf %260, %266 : vector<16x128xf32>
    %268 = arith.truncf %267 : vector<16x128xf32> to vector<16x128xbf16>
    %c0_108 = arith.constant 0 : index
    %c0_109 = arith.constant 0 : index
    %269 = vector.load %arg7[%c0_108, %c0_109] : memref<128x512xbf16, #tpu.memory_space<vmem>>, vector<128x512xbf16>
    %cst_110 = arith.constant dense<0.000000e+00> : vector<16x512xf32>
    %270 = tpu.matmul %268, %269, %cst_110 {dimension_numbers = #tpu.dot_dimension_numbers<[1], [0], [0], [1], [0, 0, 1, 1], [], []>} : vector<16x128xbf16>, vector<128x512xbf16>, vector<16x512xf32> -> vector<16x512xf32>
    %c48_111 = arith.constant 48 : index
    %c0_112 = arith.constant 0 : index
    %271 = vector.load %arg30[%c48_111, %c0_112] : memref<128x512xf32, #tpu.memory_space<vmem>>, vector<16x512xf32>
    %272 = arith.addf %270, %271 : vector<16x512xf32>
    %273 = vector.extract_strided_slice %272 {offsets = [0, 0], sizes = [16, 384], strides = [1, 1]} : vector<16x512xf32> to vector<16x384xf32>
    %274 = arith.negf %273 : vector<16x384xf32>
    %275 = math.exp %274 : vector<16x384xf32>
    %cst_113 = arith.constant 1.000000e+00 : f32
    %276 = vector.broadcast %cst_113 : f32 to vector<16x384xf32>
    %277 = arith.addf %276, %275 : vector<16x384xf32>
    %278 = arith.divf %276, %277 : vector<16x384xf32>
    %279 = vector.extract_strided_slice %278 {offsets = [0, 0], sizes = [16, 128], strides = [1, 1]} : vector<16x384xf32> to vector<16x128xf32>
    %280 = vector.extract_strided_slice %278 {offsets = [0, 128], sizes = [16, 128], strides = [1, 1]} : vector<16x384xf32> to vector<16x128xf32>
    %281 = vector.extract_strided_slice %278 {offsets = [0, 256], sizes = [16, 128], strides = [1, 1]} : vector<16x384xf32> to vector<16x128xf32>
    %282 = vector.extract_strided_slice %272 {offsets = [0, 384], sizes = [16, 128], strides = [1, 1]} : vector<16x512xf32> to vector<16x128xf32>
    %283 = math.tanh %282 : vector<16x128xf32>
    %284 = arith.mulf %280, %265 : vector<16x128xf32>
    %285 = arith.mulf %279, %283 : vector<16x128xf32>
    %286 = arith.addf %284, %285 : vector<16x128xf32>
    %287 = math.tanh %286 : vector<16x128xf32>
    %288 = arith.mulf %281, %287 : vector<16x128xf32>
    %289 = arith.truncf %288 : vector<16x128xf32> to vector<16x128xbf16>
    %c0_114 = arith.constant 0 : index
    %c0_115 = arith.constant 0 : index
    %290 = vector.load %arg7[%c0_114, %c0_115] : memref<128x512xbf16, #tpu.memory_space<vmem>>, vector<128x512xbf16>
    %cst_116 = arith.constant dense<0.000000e+00> : vector<16x512xf32>
    %291 = tpu.matmul %289, %290, %cst_116 {dimension_numbers = #tpu.dot_dimension_numbers<[1], [0], [0], [1], [0, 0, 1, 1], [], []>} : vector<16x128xbf16>, vector<128x512xbf16>, vector<16x512xf32> -> vector<16x512xf32>
    %c64_117 = arith.constant 64 : index
    %c0_118 = arith.constant 0 : index
    %292 = vector.load %arg30[%c64_117, %c0_118] : memref<128x512xf32, #tpu.memory_space<vmem>>, vector<16x512xf32>
    %293 = arith.addf %291, %292 : vector<16x512xf32>
    %294 = vector.extract_strided_slice %293 {offsets = [0, 0], sizes = [16, 384], strides = [1, 1]} : vector<16x512xf32> to vector<16x384xf32>
    %295 = arith.negf %294 : vector<16x384xf32>
    %296 = math.exp %295 : vector<16x384xf32>
    %cst_119 = arith.constant 1.000000e+00 : f32
    %297 = vector.broadcast %cst_119 : f32 to vector<16x384xf32>
    %298 = arith.addf %297, %296 : vector<16x384xf32>
    %299 = arith.divf %297, %298 : vector<16x384xf32>
    %300 = vector.extract_strided_slice %299 {offsets = [0, 0], sizes = [16, 128], strides = [1, 1]} : vector<16x384xf32> to vector<16x128xf32>
    %301 = vector.extract_strided_slice %299 {offsets = [0, 128], sizes = [16, 128], strides = [1, 1]} : vector<16x384xf32> to vector<16x128xf32>
    %302 = vector.extract_strided_slice %299 {offsets = [0, 256], sizes = [16, 128], strides = [1, 1]} : vector<16x384xf32> to vector<16x128xf32>
    %303 = vector.extract_strided_slice %293 {offsets = [0, 384], sizes = [16, 128], strides = [1, 1]} : vector<16x512xf32> to vector<16x128xf32>
    %304 = math.tanh %303 : vector<16x128xf32>
    %305 = arith.mulf %301, %286 : vector<16x128xf32>
    %306 = arith.mulf %300, %304 : vector<16x128xf32>
    %307 = arith.addf %305, %306 : vector<16x128xf32>
    %308 = math.tanh %307 : vector<16x128xf32>
    %309 = arith.mulf %302, %308 : vector<16x128xf32>
    %310 = arith.truncf %309 : vector<16x128xf32> to vector<16x128xbf16>
    %c0_120 = arith.constant 0 : index
    %c0_121 = arith.constant 0 : index
    %311 = vector.load %arg7[%c0_120, %c0_121] : memref<128x512xbf16, #tpu.memory_space<vmem>>, vector<128x512xbf16>
    %cst_122 = arith.constant dense<0.000000e+00> : vector<16x512xf32>
    %312 = tpu.matmul %310, %311, %cst_122 {dimension_numbers = #tpu.dot_dimension_numbers<[1], [0], [0], [1], [0, 0, 1, 1], [], []>} : vector<16x128xbf16>, vector<128x512xbf16>, vector<16x512xf32> -> vector<16x512xf32>
    %c80_123 = arith.constant 80 : index
    %c0_124 = arith.constant 0 : index
    %313 = vector.load %arg30[%c80_123, %c0_124] : memref<128x512xf32, #tpu.memory_space<vmem>>, vector<16x512xf32>
    %314 = arith.addf %312, %313 : vector<16x512xf32>
    %315 = vector.extract_strided_slice %314 {offsets = [0, 0], sizes = [16, 384], strides = [1, 1]} : vector<16x512xf32> to vector<16x384xf32>
    %316 = arith.negf %315 : vector<16x384xf32>
    %317 = math.exp %316 : vector<16x384xf32>
    %cst_125 = arith.constant 1.000000e+00 : f32
    %318 = vector.broadcast %cst_125 : f32 to vector<16x384xf32>
    %319 = arith.addf %318, %317 : vector<16x384xf32>
    %320 = arith.divf %318, %319 : vector<16x384xf32>
    %321 = vector.extract_strided_slice %320 {offsets = [0, 0], sizes = [16, 128], strides = [1, 1]} : vector<16x384xf32> to vector<16x128xf32>
    %322 = vector.extract_strided_slice %320 {offsets = [0, 128], sizes = [16, 128], strides = [1, 1]} : vector<16x384xf32> to vector<16x128xf32>
    %323 = vector.extract_strided_slice %320 {offsets = [0, 256], sizes = [16, 128], strides = [1, 1]} : vector<16x384xf32> to vector<16x128xf32>
    %324 = vector.extract_strided_slice %314 {offsets = [0, 384], sizes = [16, 128], strides = [1, 1]} : vector<16x512xf32> to vector<16x128xf32>
    %325 = math.tanh %324 : vector<16x128xf32>
    %326 = arith.mulf %322, %307 : vector<16x128xf32>
    %327 = arith.mulf %321, %325 : vector<16x128xf32>
    %328 = arith.addf %326, %327 : vector<16x128xf32>
    %329 = math.tanh %328 : vector<16x128xf32>
    %330 = arith.mulf %323, %329 : vector<16x128xf32>
    %331 = arith.truncf %330 : vector<16x128xf32> to vector<16x128xbf16>
    %c0_126 = arith.constant 0 : index
    %c0_127 = arith.constant 0 : index
    %332 = vector.load %arg7[%c0_126, %c0_127] : memref<128x512xbf16, #tpu.memory_space<vmem>>, vector<128x512xbf16>
    %cst_128 = arith.constant dense<0.000000e+00> : vector<16x512xf32>
    %333 = tpu.matmul %331, %332, %cst_128 {dimension_numbers = #tpu.dot_dimension_numbers<[1], [0], [0], [1], [0, 0, 1, 1], [], []>} : vector<16x128xbf16>, vector<128x512xbf16>, vector<16x512xf32> -> vector<16x512xf32>
    %c96_129 = arith.constant 96 : index
    %c0_130 = arith.constant 0 : index
    %334 = vector.load %arg30[%c96_129, %c0_130] : memref<128x512xf32, #tpu.memory_space<vmem>>, vector<16x512xf32>
    %335 = arith.addf %333, %334 : vector<16x512xf32>
    %336 = vector.extract_strided_slice %335 {offsets = [0, 0], sizes = [16, 384], strides = [1, 1]} : vector<16x512xf32> to vector<16x384xf32>
    %337 = arith.negf %336 : vector<16x384xf32>
    %338 = math.exp %337 : vector<16x384xf32>
    %cst_131 = arith.constant 1.000000e+00 : f32
    %339 = vector.broadcast %cst_131 : f32 to vector<16x384xf32>
    %340 = arith.addf %339, %338 : vector<16x384xf32>
    %341 = arith.divf %339, %340 : vector<16x384xf32>
    %342 = vector.extract_strided_slice %341 {offsets = [0, 0], sizes = [16, 128], strides = [1, 1]} : vector<16x384xf32> to vector<16x128xf32>
    %343 = vector.extract_strided_slice %341 {offsets = [0, 128], sizes = [16, 128], strides = [1, 1]} : vector<16x384xf32> to vector<16x128xf32>
    %344 = vector.extract_strided_slice %341 {offsets = [0, 256], sizes = [16, 128], strides = [1, 1]} : vector<16x384xf32> to vector<16x128xf32>
    %345 = vector.extract_strided_slice %335 {offsets = [0, 384], sizes = [16, 128], strides = [1, 1]} : vector<16x512xf32> to vector<16x128xf32>
    %346 = math.tanh %345 : vector<16x128xf32>
    %347 = arith.mulf %343, %328 : vector<16x128xf32>
    %348 = arith.mulf %342, %346 : vector<16x128xf32>
    %349 = arith.addf %347, %348 : vector<16x128xf32>
    %350 = math.tanh %349 : vector<16x128xf32>
    %351 = arith.mulf %344, %350 : vector<16x128xf32>
    %352 = arith.truncf %351 : vector<16x128xf32> to vector<16x128xbf16>
    %c0_132 = arith.constant 0 : index
    %c0_133 = arith.constant 0 : index
    %353 = vector.load %arg7[%c0_132, %c0_133] : memref<128x512xbf16, #tpu.memory_space<vmem>>, vector<128x512xbf16>
    %cst_134 = arith.constant dense<0.000000e+00> : vector<16x512xf32>
    %354 = tpu.matmul %352, %353, %cst_134 {dimension_numbers = #tpu.dot_dimension_numbers<[1], [0], [0], [1], [0, 0, 1, 1], [], []>} : vector<16x128xbf16>, vector<128x512xbf16>, vector<16x512xf32> -> vector<16x512xf32>
    %c112_135 = arith.constant 112 : index
    %c0_136 = arith.constant 0 : index
    %355 = vector.load %arg30[%c112_135, %c0_136] : memref<128x512xf32, #tpu.memory_space<vmem>>, vector<16x512xf32>
    %356 = arith.addf %354, %355 : vector<16x512xf32>
    %357 = vector.extract_strided_slice %356 {offsets = [0, 0], sizes = [16, 384], strides = [1, 1]} : vector<16x512xf32> to vector<16x384xf32>
    %358 = arith.negf %357 : vector<16x384xf32>
    %359 = math.exp %358 : vector<16x384xf32>
    %cst_137 = arith.constant 1.000000e+00 : f32
    %360 = vector.broadcast %cst_137 : f32 to vector<16x384xf32>
    %361 = arith.addf %360, %359 : vector<16x384xf32>
    %362 = arith.divf %360, %361 : vector<16x384xf32>
    %363 = vector.extract_strided_slice %362 {offsets = [0, 0], sizes = [16, 128], strides = [1, 1]} : vector<16x384xf32> to vector<16x128xf32>
    %364 = vector.extract_strided_slice %362 {offsets = [0, 128], sizes = [16, 128], strides = [1, 1]} : vector<16x384xf32> to vector<16x128xf32>
    %365 = vector.extract_strided_slice %362 {offsets = [0, 256], sizes = [16, 128], strides = [1, 1]} : vector<16x384xf32> to vector<16x128xf32>
    %366 = vector.extract_strided_slice %356 {offsets = [0, 384], sizes = [16, 128], strides = [1, 1]} : vector<16x512xf32> to vector<16x128xf32>
    %367 = math.tanh %366 : vector<16x128xf32>
    %368 = arith.mulf %364, %349 : vector<16x128xf32>
    %369 = arith.mulf %363, %367 : vector<16x128xf32>
    %370 = arith.addf %368, %369 : vector<16x128xf32>
    %371 = math.tanh %370 : vector<16x128xf32>
    %372 = arith.mulf %365, %371 : vector<16x128xf32>
    %c1_138 = arith.constant 1 : index
    %c0_139 = arith.constant 0 : index
    %c0_140 = arith.constant 0 : index
    %373 = vector.load %arg28[%c1_138, %c0_139, %c0_140] : memref<2x16x128xf32, #tpu.memory_space<vmem>>, vector<1x16x128xf32>
    %374 = vector.shape_cast %373 : vector<1x16x128xf32> to vector<16x128xf32>
    %375 = vector.shape_cast %372 : vector<16x128xf32> to vector<1x16x128xf32>
    tpu.vector_store %arg28[%c1_138, %c0_139, %c0_140], %375 {strides = array<i32>} : memref<2x16x128xf32, #tpu.memory_space<vmem>>, vector<1x16x128xf32>,
    %c1_141 = arith.constant 1 : index
    %c0_142 = arith.constant 0 : index
    %c0_143 = arith.constant 0 : index
    %376 = vector.load %arg29[%c1_141, %c0_142, %c0_143] : memref<2x16x128xf32, #tpu.memory_space<vmem>>, vector<1x16x128xf32>
    %377 = vector.shape_cast %376 : vector<1x16x128xf32> to vector<16x128xf32>
    %378 = vector.shape_cast %370 : vector<16x128xf32> to vector<1x16x128xf32>
    tpu.vector_store %arg29[%c1_141, %c0_142, %c0_143], %378 {strides = array<i32>} : memref<2x16x128xf32, #tpu.memory_space<vmem>>, vector<1x16x128xf32>,
    %c0_144 = arith.constant 0 : index
    %c0_145 = arith.constant 0 : index
    %379 = vector.load %arg9[%c0_144, %c0_145] : memref<128x64xf32, #tpu.memory_space<vmem>>, vector<128x64xf32>
    %c0_146 = arith.constant 0 : index
    %c0_147 = arith.constant 0 : index
    %380 = vector.load %arg10[%c0_146, %c0_147] : memref<1x64xf32, #tpu.memory_space<vmem>>, vector<1x64xf32>
    %c0_148 = arith.constant 0 : index
    %c0_149 = arith.constant 0 : index
    %381 = vector.load %arg11[%c0_148, %c0_149] : memref<1x64xf32, #tpu.memory_space<vmem>>, vector<1x64xf32>
    %c0_150 = arith.constant 0 : index
    %c0_151 = arith.constant 0 : index
    %382 = vector.load %arg12[%c0_150, %c0_151] : memref<1x64xf32, #tpu.memory_space<vmem>>, vector<1x64xf32>
    %cst_152 = arith.constant dense<0.000000e+00> : vector<16x64xf32>
    %383 = tpu.matmul %372, %379, %cst_152 {dimension_numbers = #tpu.dot_dimension_numbers<[1], [0], [0], [1], [0, 0, 1, 1], [], []>} : vector<16x128xf32>, vector<128x64xf32>, vector<16x64xf32> -> vector<16x64xf32>
    %384 = vector.broadcast %380 : vector<1x64xf32> to vector<16x64xf32>
    %385 = arith.addf %383, %384 : vector<16x64xf32>
    %cst_153 = arith.constant dense<0.000000e+00> : vector<16xf32>
    %386 = vector.multi_reduction <add>, %385, %cst_153 [1] : vector<16x64xf32> to vector<16xf32>
    %387 = vector.shape_cast %386 : vector<16xf32> to vector<16x1xf32>
    %cst_154 = arith.constant 6.400000e+01 : f32
    %388 = vector.broadcast %cst_154 : f32 to vector<16x1xf32>
    %389 = arith.divf %387, %388 : vector<16x1xf32>
    %390 = vector.broadcast %389 : vector<16x1xf32> to vector<16x64xf32>
    %391 = arith.subf %385, %390 : vector<16x64xf32>
    %392 = arith.mulf %391, %391 : vector<16x64xf32>
    %cst_155 = arith.constant dense<0.000000e+00> : vector<16xf32>
    %393 = vector.multi_reduction <add>, %392, %cst_155 [1] : vector<16x64xf32> to vector<16xf32>
    %394 = vector.shape_cast %393 : vector<16xf32> to vector<16x1xf32>
    %cst_156 = arith.constant 6.400000e+01 : f32
    %395 = vector.broadcast %cst_156 : f32 to vector<16x1xf32>
    %396 = arith.divf %394, %395 : vector<16x1xf32>
    %397 = vector.broadcast %389 : vector<16x1xf32> to vector<16x64xf32>
    %398 = arith.subf %385, %397 : vector<16x64xf32>
    %cst_157 = arith.constant 9.99999974E-6 : f32
    %399 = vector.broadcast %cst_157 : f32 to vector<16x1xf32>
    %400 = arith.addf %396, %399 : vector<16x1xf32>
    %401 = math.rsqrt %400 : vector<16x1xf32>
    %402 = vector.broadcast %401 : vector<16x1xf32> to vector<16x64xf32>
    %403 = arith.mulf %398, %402 : vector<16x64xf32>
    %404 = vector.broadcast %381 : vector<1x64xf32> to vector<16x64xf32>
    %405 = arith.mulf %403, %404 : vector<16x64xf32>
    %406 = vector.broadcast %382 : vector<1x64xf32> to vector<16x64xf32>
    %407 = arith.addf %405, %406 : vector<16x64xf32>
    %cst_158 = arith.constant 0.000000e+00 : f32
    %408 = vector.broadcast %cst_158 : f32 to vector<16x64xf32>
    %409 = arith.maximumf %407, %408 : vector<16x64xf32>
    %c0_159 = arith.constant 0 : index
    %c0_160 = arith.constant 0 : index
    %410 = vector.load %arg13[%c0_159, %c0_160] : memref<64x32xf32, #tpu.memory_space<vmem>>, vector<64x32xf32>
    %c0_161 = arith.constant 0 : index
    %c0_162 = arith.constant 0 : index
    %411 = vector.load %arg14[%c0_161, %c0_162] : memref<1x32xf32, #tpu.memory_space<vmem>>, vector<1x32xf32>
    %c0_163 = arith.constant 0 : index
    %c0_164 = arith.constant 0 : index
    %412 = vector.load %arg15[%c0_163, %c0_164] : memref<1x32xf32, #tpu.memory_space<vmem>>, vector<1x32xf32>
    %c0_165 = arith.constant 0 : index
    %c0_166 = arith.constant 0 : index
    %413 = vector.load %arg16[%c0_165, %c0_166] : memref<1x32xf32, #tpu.memory_space<vmem>>, vector<1x32xf32>
    %cst_167 = arith.constant dense<0.000000e+00> : vector<16x32xf32>
    %414 = tpu.matmul %409, %410, %cst_167 {dimension_numbers = #tpu.dot_dimension_numbers<[1], [0], [0], [1], [0, 0, 1, 1], [], []>} : vector<16x64xf32>, vector<64x32xf32>, vector<16x32xf32> -> vector<16x32xf32>
    %415 = vector.broadcast %411 : vector<1x32xf32> to vector<16x32xf32>
    %416 = arith.addf %414, %415 : vector<16x32xf32>
    %cst_168 = arith.constant dense<0.000000e+00> : vector<16xf32>
    %417 = vector.multi_reduction <add>, %416, %cst_168 [1] : vector<16x32xf32> to vector<16xf32>
    %418 = vector.shape_cast %417 : vector<16xf32> to vector<16x1xf32>
    %cst_169 = arith.constant 3.200000e+01 : f32
    %419 = vector.broadcast %cst_169 : f32 to vector<16x1xf32>
    %420 = arith.divf %418, %419 : vector<16x1xf32>
    %421 = vector.broadcast %420 : vector<16x1xf32> to vector<16x32xf32>
    %422 = arith.subf %416, %421 : vector<16x32xf32>
    %423 = arith.mulf %422, %422 : vector<16x32xf32>
    %cst_170 = arith.constant dense<0.000000e+00> : vector<16xf32>
    %424 = vector.multi_reduction <add>, %423, %cst_170 [1] : vector<16x32xf32> to vector<16xf32>
    %425 = vector.shape_cast %424 : vector<16xf32> to vector<16x1xf32>
    %cst_171 = arith.constant 3.200000e+01 : f32
    %426 = vector.broadcast %cst_171 : f32 to vector<16x1xf32>
    %427 = arith.divf %425, %426 : vector<16x1xf32>
    %428 = vector.broadcast %420 : vector<16x1xf32> to vector<16x32xf32>
    %429 = arith.subf %416, %428 : vector<16x32xf32>
    %cst_172 = arith.constant 9.99999974E-6 : f32
    %430 = vector.broadcast %cst_172 : f32 to vector<16x1xf32>
    %431 = arith.addf %427, %430 : vector<16x1xf32>
    %432 = math.rsqrt %431 : vector<16x1xf32>
    %433 = vector.broadcast %432 : vector<16x1xf32> to vector<16x32xf32>
    %434 = arith.mulf %429, %433 : vector<16x32xf32>
    %435 = vector.broadcast %412 : vector<1x32xf32> to vector<16x32xf32>
    %436 = arith.mulf %434, %435 : vector<16x32xf32>
    %437 = vector.broadcast %413 : vector<1x32xf32> to vector<16x32xf32>
    %438 = arith.addf %436, %437 : vector<16x32xf32>
    %cst_173 = arith.constant 0.000000e+00 : f32
    %439 = vector.broadcast %cst_173 : f32 to vector<16x32xf32>
    %440 = arith.maximumf %438, %439 : vector<16x32xf32>
    %c0_174 = arith.constant 0 : index
    %c0_175 = arith.constant 0 : index
    %441 = vector.load %arg17[%c0_174, %c0_175] : memref<32x16xf32, #tpu.memory_space<vmem>>, vector<32x16xf32>
    %c0_176 = arith.constant 0 : index
    %c0_177 = arith.constant 0 : index
    %442 = vector.load %arg18[%c0_176, %c0_177] : memref<1x16xf32, #tpu.memory_space<vmem>>, vector<1x16xf32>
    %c0_178 = arith.constant 0 : index
    %c0_179 = arith.constant 0 : index
    %443 = vector.load %arg19[%c0_178, %c0_179] : memref<1x16xf32, #tpu.memory_space<vmem>>, vector<1x16xf32>
    %c0_180 = arith.constant 0 : index
    %c0_181 = arith.constant 0 : index
    %444 = vector.load %arg20[%c0_180, %c0_181] : memref<1x16xf32, #tpu.memory_space<vmem>>, vector<1x16xf32>
    %cst_182 = arith.constant dense<0.000000e+00> : vector<16x16xf32>
    %445 = tpu.matmul %440, %441, %cst_182 {dimension_numbers = #tpu.dot_dimension_numbers<[1], [0], [0], [1], [0, 0, 1, 1], [], []>} : vector<16x32xf32>, vector<32x16xf32>, vector<16x16xf32> -> vector<16x16xf32>
    %446 = vector.broadcast %442 : vector<1x16xf32> to vector<16x16xf32>
    %447 = arith.addf %445, %446 : vector<16x16xf32>
    %cst_183 = arith.constant dense<0.000000e+00> : vector<16xf32>
    %448 = vector.multi_reduction <add>, %447, %cst_183 [1] : vector<16x16xf32> to vector<16xf32>
    %449 = vector.shape_cast %448 : vector<16xf32> to vector<16x1xf32>
    %cst_184 = arith.constant 1.600000e+01 : f32
    %450 = vector.broadcast %cst_184 : f32 to vector<16x1xf32>
    %451 = arith.divf %449, %450 : vector<16x1xf32>
    %452 = vector.broadcast %451 : vector<16x1xf32> to vector<16x16xf32>
    %453 = arith.subf %447, %452 : vector<16x16xf32>
    %454 = arith.mulf %453, %453 : vector<16x16xf32>
    %cst_185 = arith.constant dense<0.000000e+00> : vector<16xf32>
    %455 = vector.multi_reduction <add>, %454, %cst_185 [1] : vector<16x16xf32> to vector<16xf32>
    %456 = vector.shape_cast %455 : vector<16xf32> to vector<16x1xf32>
    %cst_186 = arith.constant 1.600000e+01 : f32
    %457 = vector.broadcast %cst_186 : f32 to vector<16x1xf32>
    %458 = arith.divf %456, %457 : vector<16x1xf32>
    %459 = vector.broadcast %451 : vector<16x1xf32> to vector<16x16xf32>
    %460 = arith.subf %447, %459 : vector<16x16xf32>
    %cst_187 = arith.constant 9.99999974E-6 : f32
    %461 = vector.broadcast %cst_187 : f32 to vector<16x1xf32>
    %462 = arith.addf %458, %461 : vector<16x1xf32>
    %463 = math.rsqrt %462 : vector<16x1xf32>
    %464 = vector.broadcast %463 : vector<16x1xf32> to vector<16x16xf32>
    %465 = arith.mulf %460, %464 : vector<16x16xf32>
    %466 = vector.broadcast %443 : vector<1x16xf32> to vector<16x16xf32>
    %467 = arith.mulf %465, %466 : vector<16x16xf32>
    %468 = vector.broadcast %444 : vector<1x16xf32> to vector<16x16xf32>
    %469 = arith.addf %467, %468 : vector<16x16xf32>
    %cst_188 = arith.constant 0.000000e+00 : f32
    %470 = vector.broadcast %cst_188 : f32 to vector<16x16xf32>
    %471 = arith.maximumf %469, %470 : vector<16x16xf32>
    %c0_189 = arith.constant 0 : index
    %c0_190 = arith.constant 0 : index
    %472 = vector.load %arg21[%c0_189, %c0_190] : memref<16x8xf32, #tpu.memory_space<vmem>>, vector<16x8xf32>
    %c0_191 = arith.constant 0 : index
    %c0_192 = arith.constant 0 : index
    %473 = vector.load %arg22[%c0_191, %c0_192] : memref<1x8xf32, #tpu.memory_space<vmem>>, vector<1x8xf32>
    %c0_193 = arith.constant 0 : index
    %c0_194 = arith.constant 0 : index
    %474 = vector.load %arg23[%c0_193, %c0_194] : memref<1x8xf32, #tpu.memory_space<vmem>>, vector<1x8xf32>
    %c0_195 = arith.constant 0 : index
    %c0_196 = arith.constant 0 : index
    %475 = vector.load %arg24[%c0_195, %c0_196] : memref<1x8xf32, #tpu.memory_space<vmem>>, vector<1x8xf32>
    %cst_197 = arith.constant dense<0.000000e+00> : vector<16x8xf32>
    %476 = tpu.matmul %471, %472, %cst_197 {dimension_numbers = #tpu.dot_dimension_numbers<[1], [0], [0], [1], [0, 0, 1, 1], [], []>} : vector<16x16xf32>, vector<16x8xf32>, vector<16x8xf32> -> vector<16x8xf32>
    %477 = vector.broadcast %473 : vector<1x8xf32> to vector<16x8xf32>
    %478 = arith.addf %476, %477 : vector<16x8xf32>
    %cst_198 = arith.constant dense<0.000000e+00> : vector<16xf32>
    %479 = vector.multi_reduction <add>, %478, %cst_198 [1] : vector<16x8xf32> to vector<16xf32>
    %480 = vector.shape_cast %479 : vector<16xf32> to vector<16x1xf32>
    %cst_199 = arith.constant 8.000000e+00 : f32
    %481 = vector.broadcast %cst_199 : f32 to vector<16x1xf32>
    %482 = arith.divf %480, %481 : vector<16x1xf32>
    %483 = vector.broadcast %482 : vector<16x1xf32> to vector<16x8xf32>
    %484 = arith.subf %478, %483 : vector<16x8xf32>
    %485 = arith.mulf %484, %484 : vector<16x8xf32>
    %cst_200 = arith.constant dense<0.000000e+00> : vector<16xf32>
    %486 = vector.multi_reduction <add>, %485, %cst_200 [1] : vector<16x8xf32> to vector<16xf32>
    %487 = vector.shape_cast %486 : vector<16xf32> to vector<16x1xf32>
    %cst_201 = arith.constant 8.000000e+00 : f32
    %488 = vector.broadcast %cst_201 : f32 to vector<16x1xf32>
    %489 = arith.divf %487, %488 : vector<16x1xf32>
    %490 = vector.broadcast %482 : vector<16x1xf32> to vector<16x8xf32>
    %491 = arith.subf %478, %490 : vector<16x8xf32>
    %cst_202 = arith.constant 9.99999974E-6 : f32
    %492 = vector.broadcast %cst_202 : f32 to vector<16x1xf32>
    %493 = arith.addf %489, %492 : vector<16x1xf32>
    %494 = math.rsqrt %493 : vector<16x1xf32>
    %495 = vector.broadcast %494 : vector<16x1xf32> to vector<16x8xf32>
    %496 = arith.mulf %491, %495 : vector<16x8xf32>
    %497 = vector.broadcast %474 : vector<1x8xf32> to vector<16x8xf32>
    %498 = arith.mulf %496, %497 : vector<16x8xf32>
    %499 = vector.broadcast %475 : vector<1x8xf32> to vector<16x8xf32>
    %500 = arith.addf %498, %499 : vector<16x8xf32>
    %cst_203 = arith.constant 0.000000e+00 : f32
    %501 = vector.broadcast %cst_203 : f32 to vector<16x8xf32>
    %502 = arith.maximumf %500, %501 : vector<16x8xf32>
    %c0_204 = arith.constant 0 : index
    %c0_205 = arith.constant 0 : index
    %503 = vector.load %arg25[%c0_204, %c0_205] : memref<8x8xf32, #tpu.memory_space<vmem>>, vector<8x8xf32>
    %cst_206 = arith.constant dense<0.000000e+00> : vector<16x8xf32>
    %504 = tpu.matmul %502, %503, %cst_206 {dimension_numbers = #tpu.dot_dimension_numbers<[1], [0], [0], [1], [0, 0, 1, 1], [], []>} : vector<16x8xf32>, vector<8x8xf32>, vector<16x8xf32> -> vector<16x8xf32>
    %c0_207 = arith.constant 0 : index
    %c0_208 = arith.constant 0 : index
    %505 = vector.load %arg26[%c0_207, %c0_208] : memref<1x8xf32, #tpu.memory_space<vmem>>, vector<1x8xf32>
    %506 = vector.broadcast %505 : vector<1x8xf32> to vector<16x8xf32>
    %507 = arith.addf %504, %506 : vector<16x8xf32>
    %c0_209 = arith.constant 0 : index
    %c0_210 = arith.constant 0 : index
    %508 = vector.load %arg27[%c0_209, %c0_210] : memref<16x8xf32, #tpu.memory_space<vmem>>, vector<16x8xf32>
    tpu.vector_store %arg27[%c0_209, %c0_210], %507 {strides = array<i32>} : memref<16x8xf32, #tpu.memory_space<vmem>>, vector<16x8xf32>,
    return
  }
}

</mosaic_0001>

<llo_original>
// kernel: tpu_custom_call.1
$region0: #{tpu_custom_call.1}
  #allocation0 [shape = 'u32[]', space=smem, size = 0x4, offset = 0x4, fixed_abs, tag = 'smem constant byte address 0x4 - core index']
  #allocation1 [shape = 'u32[144,128]{1,0:T(1,128)}', space=vmem, size = 0x12000, scoped, tag = 'internal scratch']
  #allocation2 [shape = 'f32[128,512]{1,0:T(8,128)}', space=vmem, size = 0x40000, scoped, tag = 'scratch operand']
  #allocation3 [shape = 'bf16[128,128]{1,0:T(8,128)(2,1)}', space=vmem, size = 0x8000, scoped, tag = 'scratch operand']
  %s0 = inlined_call_operand.smem [shape: u32[30], index: -1, kind: input, shape index: {}]
  %s1 = sld [smem:[%s0]]
  %s2 = scalar_lea.smem %s0, 1
  %s3 = sld [smem:[%s2]]
  %s4 = scalar_lea.smem %s0, 2
  %s5 = sld [smem:[%s4]]
  %s6 = scalar_lea.smem %s0, 3
  %s7 = sld [smem:[%s6]]
  %s8 = scalar_lea.smem %s0, 4
  %s9 = sld [smem:[%s8]]
  %s10 = scalar_lea.smem %s0, 5
  %s11 = sld [smem:[%s10]]
  %s12 = scalar_lea.smem %s0, 6
  %s13 = sld [smem:[%s12]]
  %s14 = scalar_lea.smem %s0, 7
  %s15 = sld [smem:[%s14]]
  %s16 = scalar_lea.smem %s0, 8
  %s17 = sld [smem:[%s16]]
  %s18 = scalar_lea.smem %s0, 9
  %s19 = sld [smem:[%s18]]
  %s20 = scalar_lea.smem %s0, 10
  %s21 = sld [smem:[%s20]]
  %s22 = scalar_lea.smem %s0, 11
  %s23 = sld [smem:[%s22]]
  %s24 = scalar_lea.smem %s0, 12
  %s25 = sld [smem:[%s24]]
  %s26 = scalar_lea.smem %s0, 13
  %s27 = sld [smem:[%s26]]
  %s28 = scalar_lea.smem %s0, 14
  %s29 = sld [smem:[%s28]]
  %s30 = scalar_lea.smem %s0, 15
  %s31 = sld [smem:[%s30]]
  %s32 = scalar_lea.smem %s0, 16
  %s33 = sld [smem:[%s32]]
  %s34 = scalar_lea.smem %s0, 17
  %s35 = sld [smem:[%s34]]
  %s36 = scalar_lea.smem %s0, 18
  %s37 = sld [smem:[%s36]]
  %s38 = scalar_lea.smem %s0, 19
  %s39 = sld [smem:[%s38]]
  %s40 = scalar_lea.smem %s0, 20
  %s41 = sld [smem:[%s40]]
  %s42 = scalar_lea.smem %s0, 21
  %s43 = sld [smem:[%s42]]
  %s44 = scalar_lea.smem %s0, 22
  %s45 = sld [smem:[%s44]]
  %s46 = scalar_lea.smem %s0, 23
  %s47 = sld [smem:[%s46]]
  %s48 = scalar_lea.smem %s0, 24
  %s49 = sld [smem:[%s48]]
  %s50 = scalar_lea.smem %s0, 25
  %s51 = sld [smem:[%s50]]
  %s52 = scalar_lea.smem %s0, 26
  %s53 = sld [smem:[%s52]]
  %s54 = scalar_lea.smem %s0, 27
  %s55 = sld [smem:[%s54]]
  %s56 = scalar_lea.smem %s0, 28
  %s57 = sld [smem:[%s56]]
  %s58 = scalar_lea.smem %s0, 29
  %s59 = sld [smem:[%s58]]
  %60 = xla_tuple %s55, %s57, %s59
  %s61 = sld [smem:[#allocation0]]
  $region162: #{tpu_custom_call.1} parent=0
    _
  %s63 = ssub.s32 1, %s61
  %s64 = scalar_select 0, %s63, %s61
  $region1: #{tpu_custom_call.1} parent=0
    #allocation4 [shape = 'u8[16384]{0}', space=vmem, size = 0x4000, scoped, tag = 'input window, operand 3, single buffered']
    #allocation5 [shape = 's32[1]{0}', space=sflag, size = 0x4, scoped, tag = 'scoped memory for tpu_custom_call.1']
    #allocation6 [shape = 's32[1]{0}', space=sflag, size = 0x4, scoped, tag = 'scoped memory for tpu_custom_call.1']
    #allocation7 [shape = 'u8[2048]{0}', space=vmem, size = 0x800, scoped, tag = 'input window, operand 5, single buffered']
    #allocation8 [shape = 's32[1]{0}', space=sflag, size = 0x4, scoped, tag = 'scoped memory for tpu_custom_call.1']
    #allocation9 [shape = 'u8[131072]{0}', space=vmem, size = 0x20000, scoped, tag = 'input window, operand 6, single buffered']
    #allocation10 [shape = 'u8[131072]{0}', space=vmem, size = 0x20000, scoped, tag = 'input window, operand 7, single buffered']
    #allocation11 [shape = 's32[1]{0}', space=sflag, size = 0x4, scoped, tag = 'scoped memory for tpu_custom_call.1']
    #allocation12 [shape = 'u8[2048]{0}', space=vmem, size = 0x800, scoped, tag = 'input window, operand 8, single buffered']
    #allocation13 [shape = 'u8[512]{0}', space=vmem, size = 0x400, scoped, tag = 'input window, operand 10, single buffered']
    #allocation14 [shape = 's32[1]{0}', space=sflag, size = 0x4, scoped, tag = 'scoped memory for tpu_custom_call.1']
    #allocation15 [shape = 'u8[512]{0}', space=vmem, size = 0x400, scoped, tag = 'input window, operand 11, single buffered']
    #allocation16 [shape = 'u8[16384]{0}', space=vmem, size = 0x4000, scoped, tag = 'output window, operand 1, single buffered']
    #allocation17 [shape = 'u8[16384]{0}', space=vmem, size = 0x4000, scoped, tag = 'output window, operand 2, single buffered']
    #allocation18 [shape = 's32[1]{0}', space=sflag, size = 0x4, scoped, tag = 'scoped memory for tpu_custom_call.1']
    %65 = vsyncpa [#allocation5], 0
    %66 = vsyncpa [#allocation8], 0
    %67 = vsyncpa [#allocation11], 0
    %68 = vsyncpa [#allocation14], 0
    %69 = vsyncpa [#allocation6], 0
    %70 = vsyncpa [#allocation18], 0
    // Predicated region
    $region2: #{tpu_custom_call.1} parent=1 // pred_check
      _
    $region3: #{tpu_custom_call.1} parent=1 // pred_check_branch
      %72 = sbr.rel (0) target = $region5
    $region4: #{tpu_custom_call.1} parent=1 // pred_region
      _
    $region5: #{tpu_custom_call.1} parent=1 // pred_fallthru
      _
    // Predicated region
    $region6: #{tpu_custom_call.1} parent=1 // pred_check
      _
    $region7: #{tpu_custom_call.1} parent=1 // pred_check_branch
      %74 = sbr.rel (0) target = $region9
    $region8: #{tpu_custom_call.1} parent=1 // pred_region
      _
    $region9: #{tpu_custom_call.1} parent=1 // pred_fallthru
      _
    // Predicated region
    $region10: #{tpu_custom_call.1} parent=1 // pred_check
      _
    $region11: #{tpu_custom_call.1} parent=1 // pred_check_branch
      %76 = sbr.rel (0) target = $region13
    $region12: #{tpu_custom_call.1} parent=1 // pred_region
      _
    $region13: #{tpu_custom_call.1} parent=1 // pred_fallthru
      _
    // Predicated region
    $region14: #{tpu_custom_call.1} parent=1 // pred_check
      _
    $region15: #{tpu_custom_call.1} parent=1 // pred_check_branch
      %78 = sbr.rel (0) target = $region17
    $region16: #{tpu_custom_call.1} parent=1 // pred_region
      %s80 = ssub.s32 512, 512
      %81 = vsyncadd [#allocation5], %s80
      %s82 = sshll.u32 [#allocation4], 4
      %s83 = int_to_ptr.vmem [resolvable:$true] %s82
      %88 = dma.hbm_to_vmem [thread:$0]  %s7, 512, %s83, [#allocation5], 256, 256, 16
    $region17: #{tpu_custom_call.1} parent=1 // pred_fallthru
      _
    // Predicated region
    $region18: #{tpu_custom_call.1} parent=1 // pred_check
      _
    $region19: #{tpu_custom_call.1} parent=1 // pred_check_branch
      %90 = sbr.rel (0) target = $region21
    $region20: #{tpu_custom_call.1} parent=1 // pred_region
      _
    $region21: #{tpu_custom_call.1} parent=1 // pred_fallthru
      _
    // Predicated region
    $region22: #{tpu_custom_call.1} parent=1 // pred_check
      _
    $region23: #{tpu_custom_call.1} parent=1 // pred_check_branch
      %92 = sbr.rel (0) target = $region25
    $region24: #{tpu_custom_call.1} parent=1 // pred_region
      %s94 = ssub.s32 64, 64
      %95 = vsyncadd [#allocation8], %s94
      %s97 = sshll.u32 [#allocation7], 4
      %s98 = int_to_ptr.vmem [resolvable:$true] %s97
      %100 = dma.hbm_to_vmem [thread:$0]  %s11, 64, %s98, [#allocation8]
    $region25: #{tpu_custom_call.1} parent=1 // pred_fallthru
      _
    // Predicated region
    $region26: #{tpu_custom_call.1} parent=1 // pred_check
      _
    $region27: #{tpu_custom_call.1} parent=1 // pred_check_branch
      %102 = sbr.rel (0) target = $region29
    $region28: #{tpu_custom_call.1} parent=1 // pred_region
      %s104 = ssub.s32 4096, 4096
      %105 = vsyncadd [#allocation8], %s104
      %s106 = sshll.u32 [#allocation9], 4
      %s107 = int_to_ptr.vmem [resolvable:$true] %s106
      %112 = dma.hbm_to_vmem [thread:$0]  %s13, 4096, %s107, [#allocation8], 256, 256, 16
    $region29: #{tpu_custom_call.1} parent=1 // pred_fallthru
      _
    // Predicated region
    $region30: #{tpu_custom_call.1} parent=1 // pred_check
      _
    $region31: #{tpu_custom_call.1} parent=1 // pred_check_branch
      %114 = sbr.rel (0) target = $region33
    $region32: #{tpu_custom_call.1} parent=1 // pred_region
      %s116 = ssub.s32 4096, 4096
      %117 = vsyncadd [#allocation11], %s116
      %s118 = sshll.u32 [#allocation10], 4
      %s119 = int_to_ptr.vmem [resolvable:$true] %s118
      %124 = dma.hbm_to_vmem [thread:$0]  %s15, 4096, %s119, [#allocation11], 256, 256, 16
    $region33: #{tpu_custom_call.1} parent=1 // pred_fallthru
      _
    // Predicated region
    $region34: #{tpu_custom_call.1} parent=1 // pred_check
      _
    $region35: #{tpu_custom_call.1} parent=1 // pred_check_branch
      %126 = sbr.rel (0) target = $region37
    $region36: #{tpu_custom_call.1} parent=1 // pred_region
      %s128 = ssub.s32 64, 64
      %129 = vsyncadd [#allocation11], %s128
      %s131 = sshll.u32 [#allocation12], 4
      %s132 = int_to_ptr.vmem [resolvable:$true] %s131
      %134 = dma.hbm_to_vmem [thread:$0]  %s17, 64, %s132, [#allocation11]
    $region37: #{tpu_custom_call.1} parent=1 // pred_fallthru
      _
    // Predicated region
    $region38: #{tpu_custom_call.1} parent=1 // pred_check
      _
    $region39: #{tpu_custom_call.1} parent=1 // pred_check_branch
      %136 = sbr.rel (0) target = $region41
    $region40: #{tpu_custom_call.1} parent=1 // pred_region
      _
    $region41: #{tpu_custom_call.1} parent=1 // pred_fallthru
      _
    // Predicated region
    $region42: #{tpu_custom_call.1} parent=1 // pred_check
      _
    $region43: #{tpu_custom_call.1} parent=1 // pred_check_branch
      %138 = sbr.rel (0) target = $region45
    $region44: #{tpu_custom_call.1} parent=1 // pred_region
      %s140 = ssub.s32 16, 16
      %141 = vsyncadd [#allocation14], %s140
      %s143 = sshll.u32 [#allocation13], 4
      %s144 = int_to_ptr.vmem [resolvable:$true] %s143
      %146 = dma.hbm_to_vmem [thread:$0]  %s21, 16, %s144, [#allocation14]
    $region45: #{tpu_custom_call.1} parent=1 // pred_fallthru
      _
    // Predicated region
    $region46: #{tpu_custom_call.1} parent=1 // pred_check
      _
    $region47: #{tpu_custom_call.1} parent=1 // pred_check_branch
      %148 = sbr.rel (0) target = $region49
    $region48: #{tpu_custom_call.1} parent=1 // pred_region
      %s150 = ssub.s32 16, 16
      %151 = vsyncadd [#allocation14], %s150
      %s153 = sshll.u32 [#allocation15], 4
      %s154 = int_to_ptr.vmem [resolvable:$true] %s153
      %156 = dma.hbm_to_vmem [thread:$0]  %s23, 16, %s154, [#allocation14]
    $region49: #{tpu_custom_call.1} parent=1 // pred_fallthru
      _
    // Predicated region
    $region50: #{tpu_custom_call.1} parent=1 // pred_check
      _
    $region51: #{tpu_custom_call.1} parent=1 // pred_check_branch
      %158 = sbr.rel (0) target = $region53
    $region52: #{tpu_custom_call.1} parent=1 // pred_region
      _
    $region53: #{tpu_custom_call.1} parent=1 // pred_fallthru
      _
    // Predicated region
    $region54: #{tpu_custom_call.1} parent=1 // pred_check
      _
    $region55: #{tpu_custom_call.1} parent=1 // pred_check_branch
      %160 = sbr.rel (0) target = $region57
    $region56: #{tpu_custom_call.1} parent=1 // pred_region
      _
    $region57: #{tpu_custom_call.1} parent=1 // pred_fallthru
      _
    // Predicated region
    $region58: #{tpu_custom_call.1} parent=1 // pred_check
      _
    $region59: #{tpu_custom_call.1} parent=1 // pred_check_branch
      %162 = sbr.rel (0) target = $region61
    $region60: #{tpu_custom_call.1} parent=1 // pred_region
      _
    $region61: #{tpu_custom_call.1} parent=1 // pred_fallthru
      _
    // Predicated region
    $region62: #{tpu_custom_call.1} parent=1 // pred_check
      _
    $region63: #{tpu_custom_call.1} parent=1 // pred_check_branch
      %164 = sbr.rel (0) target = $region65
    $region64: #{tpu_custom_call.1} parent=1 // pred_region
      _
    $region65: #{tpu_custom_call.1} parent=1 // pred_fallthru
      _
    // Predicated region
    $region66: #{tpu_custom_call.1} parent=1 // pred_check
      _
    $region67: #{tpu_custom_call.1} parent=1 // pred_check_branch
      %166 = sbr.rel (0) target = $region69
    $region68: #{tpu_custom_call.1} parent=1 // pred_region
      _
    $region69: #{tpu_custom_call.1} parent=1 // pred_fallthru
      _
    // Predicated region
    $region70: #{tpu_custom_call.1} parent=1 // pred_check
      _
    $region71: #{tpu_custom_call.1} parent=1 // pred_check_branch
      %168 = sbr.rel (0) target = $region73
    $region72: #{tpu_custom_call.1} parent=1 // pred_region
      _
    $region73: #{tpu_custom_call.1} parent=1 // pred_fallthru
      _
    // Predicated region
    $region74: #{tpu_custom_call.1} parent=1 // pred_check
      _
    $region75: #{tpu_custom_call.1} parent=1 // pred_check_branch
      %170 = sbr.rel (0) target = $region77
    $region76: #{tpu_custom_call.1} parent=1 // pred_region
      _
    $region77: #{tpu_custom_call.1} parent=1 // pred_fallthru
      _
    // Predicated region
    $region78: #{tpu_custom_call.1} parent=1 // pred_check
      _
    $region79: #{tpu_custom_call.1} parent=1 // pred_check_branch
      %172 = sbr.rel (0) target = $region81
    $region80: #{tpu_custom_call.1} parent=1 // pred_region
      _
    $region81: #{tpu_custom_call.1} parent=1 // pred_fallthru
      _
    // Predicated region
    $region82: #{tpu_custom_call.1} parent=1 // pred_check
      _
    $region83: #{tpu_custom_call.1} parent=1 // pred_check_branch
      %174 = sbr.rel (0) target = $region85
    $region84: #{tpu_custom_call.1} parent=1 // pred_region
      _
    $region85: #{tpu_custom_call.1} parent=1 // pred_fallthru
      _
    // Predicated region
    $region86: #{tpu_custom_call.1} parent=1 // pred_check
      _
    $region87: #{tpu_custom_call.1} parent=1 // pred_check_branch
      %176 = sbr.rel (0) target = $region89
    $region88: #{tpu_custom_call.1} parent=1 // pred_region
      _
    $region89: #{tpu_custom_call.1} parent=1 // pred_fallthru
      _
    // Predicated region
    $region90: #{tpu_custom_call.1} parent=1 // pred_check
      _
    $region91: #{tpu_custom_call.1} parent=1 // pred_check_branch
      %178 = sbr.rel (0) target = $region93
    $region92: #{tpu_custom_call.1} parent=1 // pred_region
      _
    $region93: #{tpu_custom_call.1} parent=1 // pred_fallthru
      _
    // Predicated region
    $region94: #{tpu_custom_call.1} parent=1 // pred_check
      _
    $region95: #{tpu_custom_call.1} parent=1 // pred_check_branch
      %180 = sbr.rel (0) target = $region97
    $region96: #{tpu_custom_call.1} parent=1 // pred_region
      _
    $region97: #{tpu_custom_call.1} parent=1 // pred_fallthru
      _
    // Predicated region
    $region98: #{tpu_custom_call.1} parent=1 // pred_check
      _
    $region99: #{tpu_custom_call.1} parent=1 // pred_check_branch
      %182 = sbr.rel (0) target = $region101
    $region100: #{tpu_custom_call.1} parent=1 // pred_region
      _
    $region101: #{tpu_custom_call.1} parent=1 // pred_fallthru
      _
    // Predicated region
    $region102: #{tpu_custom_call.1} parent=1 // pred_check
      _
    $region103: #{tpu_custom_call.1} parent=1 // pred_check_branch
      %184 = sbr.rel (0) target = $region105
    $region104: #{tpu_custom_call.1} parent=1 // pred_region
      _
    $region105: #{tpu_custom_call.1} parent=1 // pred_fallthru
      _
    // Predicated region
    $region106: #{tpu_custom_call.1} parent=1 // pred_check
      _
    $region107: #{tpu_custom_call.1} parent=1 // pred_check_branch
      %186 = sbr.rel (0) target = $region109
    $region108: #{tpu_custom_call.1} parent=1 // pred_region
      _
    $region109: #{tpu_custom_call.1} parent=1 // pred_fallthru
      _
    // Predicated region
    $region110: #{tpu_custom_call.1} parent=1 // pred_check
      _
    $region111: #{tpu_custom_call.1} parent=1 // pred_check_branch
      %188 = sbr.rel (0) target = $region113
    $region112: #{tpu_custom_call.1} parent=1 // pred_region
      %189 = dma.done [#allocation5], 512
    $region113: #{tpu_custom_call.1} parent=1 // pred_fallthru
      _
    // Predicated region
    $region114: #{tpu_custom_call.1} parent=1 // pred_check
      _
    $region115: #{tpu_custom_call.1} parent=1 // pred_check_branch
      %191 = sbr.rel (0) target = $region117
    $region116: #{tpu_custom_call.1} parent=1 // pred_region
      %192 = dma.done [#allocation8], 64
    $region117: #{tpu_custom_call.1} parent=1 // pred_fallthru
      _
    // Predicated region
    $region118: #{tpu_custom_call.1} parent=1 // pred_check
      _
    $region119: #{tpu_custom_call.1} parent=1 // pred_check_branch
      %194 = sbr.rel (0) target = $region121
    $region120: #{tpu_custom_call.1} parent=1 // pred_region
      %195 = dma.done [#allocation8], 4096
    $region121: #{tpu_custom_call.1} parent=1 // pred_fallthru
      _
    // Predicated region
    $region122: #{tpu_custom_call.1} parent=1 // pred_check
      _
    $region123: #{tpu_custom_call.1} parent=1 // pred_check_branch
      %197 = sbr.rel (0) target = $region125
    $region124: #{tpu_custom_call.1} parent=1 // pred_region
      %198 = dma.done [#allocation11], 4096
    $region125: #{tpu_custom_call.1} parent=1 // pred_fallthru
      _
    // Predicated region
    $region126: #{tpu_custom_call.1} parent=1 // pred_check
      _
    $region127: #{tpu_custom_call.1} parent=1 // pred_check_branch
      %200 = sbr.rel (0) target = $region129
    $region128: #{tpu_custom_call.1} parent=1 // pred_region
      %201 = dma.done [#allocation11], 64
    $region129: #{tpu_custom_call.1} parent=1 // pred_fallthru
      _
    // Predicated region
    $region130: #{tpu_custom_call.1} parent=1 // pred_check
      _
    $region131: #{tpu_custom_call.1} parent=1 // pred_check_branch
      %203 = sbr.rel (0) target = $region133
    $region132: #{tpu_custom_call.1} parent=1 // pred_region
      %204 = dma.done [#allocation14], 16
    $region133: #{tpu_custom_call.1} parent=1 // pred_fallthru
      _
    // Predicated region
    $region134: #{tpu_custom_call.1} parent=1 // pred_check
      _
    $region135: #{tpu_custom_call.1} parent=1 // pred_check_branch
      %206 = sbr.rel (0) target = $region137
    $region136: #{tpu_custom_call.1} parent=1 // pred_region
      %207 = dma.done [#allocation14], 16
    $region137: #{tpu_custom_call.1} parent=1 // pred_fallthru
      _
    %v209 = vld [vmem:[%s1] sm:$0xf]
    %v210 = vld [vmem:[%s1 + $0x4] sm:$0xf]
    %v211 = vld [vmem:[%s1 + $0x8] sm:$0xf]
    %v212 = vld [vmem:[%s1 + $0xc] sm:$0xf]
    %v213 = vld [vmem:[%s1 + $0x10] sm:$0xf]
    %v214 = vld [vmem:[%s1 + $0x14] sm:$0xf]
    %v215 = vld [vmem:[%s1 + $0x18] sm:$0xf]
    %v216 = vld [vmem:[%s1 + $0x1c] sm:$0xf]
    %v217 = vld [vmem:[%s1 + $0x20] sm:$0xf]
    %v218 = vld [vmem:[%s1 + $0x24] sm:$0xf]
    %v219 = vld [vmem:[%s1 + $0x28] sm:$0xf]
    %v220 = vld [vmem:[%s1 + $0x2c] sm:$0xf]
    %v221 = vld [vmem:[%s1 + $0x30] sm:$0xf]
    %v222 = vld [vmem:[%s1 + $0x34] sm:$0xf]
    %v223 = vld [vmem:[%s1 + $0x38] sm:$0xf]
    %v224 = vld [vmem:[%s1 + $0x3c] sm:$0xf]
    %v225 = vld [vmem:[#allocation4] sm:$0xff]
    %v226 = vld [vmem:[#allocation4 + $0x8] sm:$0xff]
    %v227 = vld [vmem:[#allocation4 + $0x10] sm:$0xff]
    %v228 = vld [vmem:[#allocation4 + $0x18] sm:$0xff]
    %v229 = vld [vmem:[#allocation7] sm:$0xf]
    %v231 = vlaneseq
    %v232 = vshrl.u32 %v231, 7
    %v233 = vsub.s32 0, %v232
    %v234 = vrot.slane %v229, %v233
    %v235 = vlaneseq
    %v236 = vshrl.u32 %v235, 7
    %v237 = vsub.s32 1, %v236
    %v238 = vrot.slane %v229, %v237
    %v239 = vlaneseq
    %v240 = vshrl.u32 %v239, 7
    %v241 = vsub.s32 2, %v240
    %v242 = vrot.slane %v229, %v241
    %v243 = vlaneseq
    %v244 = vshrl.u32 %v243, 7
    %v245 = vsub.s32 3, %v244
    %v246 = vrot.slane %v229, %v245
    %v267 = vunpack.c.l.b16 %v209
    %v268 = vunpack.c.l.b16 %v210
    %v269 = vunpack.c.l.b16 %v211
    %v270 = vunpack.c.l.b16 %v212
    %v271 = vunpack.c.l.b16 %v213
    %v272 = vunpack.c.l.b16 %v214
    %v273 = vunpack.c.l.b16 %v215
    %v274 = vunpack.c.l.b16 %v216
    %v275 = vunpack.c.l.b16 %v217
    %v276 = vunpack.c.l.b16 %v218
    %v277 = vunpack.c.l.b16 %v219
    %v278 = vunpack.c.l.b16 %v220
    %v279 = vunpack.c.l.b16 %v221
    %v280 = vunpack.c.l.b16 %v222
    %v281 = vunpack.c.l.b16 %v223
    %v282 = vunpack.c.l.b16 %v224
    %v283 = vpack.c.b16 %v268, %v267
    %v284 = vpack.c.b16 %v270, %v269
    %v285 = vpack.c.b16 %v272, %v271
    %v286 = vpack.c.b16 %v274, %v273
    %v287 = vpack.c.b16 %v276, %v275
    %v288 = vpack.c.b16 %v278, %v277
    %v289 = vpack.c.b16 %v280, %v279
    %v290 = vpack.c.b16 %v282, %v281
    %v295 = vunpack.c.l.b16 %v225
    %v296 = vunpack.c.h.b16 %v225
    %v297 = vunpack.c.l.b16 %v226
    %v298 = vunpack.c.h.b16 %v226
    %v299 = vunpack.c.l.b16 %v227
    %v300 = vunpack.c.h.b16 %v227
    %v301 = vunpack.c.l.b16 %v228
    %v302 = vunpack.c.h.b16 %v228
    %v303 = vpack.c.b16 %v299, %v295
    %v304 = vpack.c.b16 %v300, %v296
    %v305 = vpack.c.b16 %v301, %v297
    %v306 = vpack.c.b16 %v302, %v298
    %vm311 = vcmask 130048
    %v313 = vsel %vm311, %v283, 0
    %v316 = vsel %vm311, %v284, 0
    %v319 = vsel %vm311, %v285, 0
    %v322 = vsel %vm311, %v286, 0
    %v325 = vsel %vm311, %v287, 0
    %v328 = vsel %vm311, %v288, 0
    %v331 = vsel %vm311, %v289, 0
    %v334 = vsel %vm311, %v290, 0
    %336 = vmatprep.subr.bf16.mxu0 0
    %337 = vmatpush1.bf16.msra.mxu0 0
    %338 = vmatprep.subr.bf16.mxu0 0
    %339 = vmatpush1.bf16.msra.mxu0 0
    %340 = vmatprep.subr.bf16.mxu0 0
    %341 = vmatpush1.bf16.msra.mxu0 0
    %342 = vmatprep.subr.bf16.mxu0 0
    %343 = vmatpush1.bf16.msra.mxu0 0
    %344 = vmatprep.subr.bf16.mxu0 0
    %345 = vmatpush1.bf16.msra.mxu0 0
    %346 = vmatprep.subr.bf16.mxu0 0
    %347 = vmatpush1.bf16.msra.mxu0 0
    %348 = vmatprep.subr.bf16.mxu0 0
    %349 = vmatpush1.bf16.msra.mxu0 0
    %350 = vmatprep.subr.bf16.mxu0 %v304
    %351 = vmatpush1.bf16.msra.mxu0 %v303
    %352 = vmatprep.subr.bf16.mxu0 0
    %353 = vmatpush2.bf16.msra.mxu0 0
    %354 = vmatprep.subr.bf16.mxu0 0
    %355 = vmatpush2.bf16.msra.mxu0 0
    %356 = vmatprep.subr.bf16.mxu0 0
    %357 = vmatpush2.bf16.msra.mxu0 0
    %358 = vmatprep.subr.bf16.mxu0 0
    %359 = vmatpush2.bf16.msra.mxu0 0
    %360 = vmatprep.subr.bf16.mxu0 0
    %361 = vmatpush2.bf16.msra.mxu0 0
    %362 = vmatprep.subr.bf16.mxu0 0
    %363 = vmatpush2.bf16.msra.mxu0 0
    %364 = vmatprep.subr.bf16.mxu0 0
    %365 = vmatpush2.bf16.msra.mxu0 0
    %366 = vmatprep.subr.bf16.mxu0 0
    %367 = vmatpush2.bf16.msra.mxu0 0
    %368 = vmatprep.mubr.bf16.mxu0 0
    %369 = vmatmul.mubr.bf16.gmra.mxu0 %v313
    %v370 = vpop.f32.mrf.mxu0
    %v371 = vadd.f32 %v234, %v370
    %v372 = vpop.f32.mrf.mxu0
    %v373 = vadd.f32 %v238, %v372
    %v374 = vpop.f32.mrf.mxu0
    %v375 = vadd.f32 %v234, %v374
    %v376 = vpop.f32.mrf.mxu0
    %v377 = vadd.f32 %v238, %v376
    %378 = vmatprep.mubr.bf16.mxu0 0
    %379 = vmatmul.mubr.bf16.gmra.mxu0 %v316
    %v380 = vpop.f32.mrf.mxu0
    %v381 = vadd.f32 %v234, %v380
    %v382 = vpop.f32.mrf.mxu0
    %v383 = vadd.f32 %v238, %v382
    %v384 = vpop.f32.mrf.mxu0
    %v385 = vadd.f32 %v234, %v384
    %v386 = vpop.f32.mrf.mxu0
    %v387 = vadd.f32 %v238, %v386
    %388 = vmatprep.mubr.bf16.mxu0 0
    %389 = vmatmul.mubr.bf16.gmra.mxu0 %v319
    %v390 = vpop.f32.mrf.mxu0
    %v391 = vadd.f32 %v234, %v390
    %v392 = vpop.f32.mrf.mxu0
    %v393 = vadd.f32 %v238, %v392
    %v394 = vpop.f32.mrf.mxu0
    %v395 = vadd.f32 %v234, %v394
    %v396 = vpop.f32.mrf.mxu0
    %v397 = vadd.f32 %v238, %v396
    %398 = vmatprep.mubr.bf16.mxu0 0
    %399 = vmatmul.mubr.bf16.gmra.mxu0 %v322
    %v400 = vpop.f32.mrf.mxu0
    %v401 = vadd.f32 %v234, %v400
    %v402 = vpop.f32.mrf.mxu0
    %v403 = vadd.f32 %v238, %v402
    %v404 = vpop.f32.mrf.mxu0
    %v405 = vadd.f32 %v234, %v404
    %v406 = vpop.f32.mrf.mxu0
    %v407 = vadd.f32 %v238, %v406
    %408 = vmatprep.mubr.bf16.mxu0 0
    %409 = vmatmul.mubr.bf16.gmra.mxu0 %v325
    %v410 = vpop.f32.mrf.mxu0
    %v411 = vadd.f32 %v234, %v410
    %v412 = vpop.f32.mrf.mxu0
    %v413 = vadd.f32 %v238, %v412
    %v414 = vpop.f32.mrf.mxu0
    %v415 = vadd.f32 %v234, %v414
    %v416 = vpop.f32.mrf.mxu0
    %v417 = vadd.f32 %v238, %v416
    %418 = vmatprep.mubr.bf16.mxu0 0
    %419 = vmatmul.mubr.bf16.gmra.mxu0 %v328
    %v420 = vpop.f32.mrf.mxu0
    %v421 = vadd.f32 %v234, %v420
    %v422 = vpop.f32.mrf.mxu0
    %v423 = vadd.f32 %v238, %v422
    %v424 = vpop.f32.mrf.mxu0
    %v425 = vadd.f32 %v234, %v424
    %v426 = vpop.f32.mrf.mxu0
    %v427 = vadd.f32 %v238, %v426
    %428 = vmatprep.mubr.bf16.mxu0 0
    %429 = vmatmul.mubr.bf16.gmra.mxu0 %v331
    %v430 = vpop.f32.mrf.mxu0
    %v431 = vadd.f32 %v234, %v430
    %v432 = vpop.f32.mrf.mxu0
    %v433 = vadd.f32 %v238, %v432
    %v434 = vpop.f32.mrf.mxu0
    %v435 = vadd.f32 %v234, %v434
    %v436 = vpop.f32.mrf.mxu0
    %v437 = vadd.f32 %v238, %v436
    %438 = vmatprep.mubr.bf16.mxu0 0
    %439 = vmatmul.mubr.bf16.gmra.mxu0 %v334
    %v440 = vpop.f32.mrf.mxu0
    %v441 = vadd.f32 %v234, %v440
    %v442 = vpop.f32.mrf.mxu0
    %v443 = vadd.f32 %v238, %v442
    %v444 = vpop.f32.mrf.mxu0
    %v445 = vadd.f32 %v234, %v444
    %v446 = vpop.f32.mrf.mxu0
    %v447 = vadd.f32 %v238, %v446
    %448 = vdwg.mxu0
    %449 = vmatprep.subr.bf16.mxu0 0
    %450 = vmatpush1.bf16.msra.mxu0 0
    %451 = vmatprep.subr.bf16.mxu0 0
    %452 = vmatpush1.bf16.msra.mxu0 0
    %453 = vmatprep.subr.bf16.mxu0 0
    %454 = vmatpush1.bf16.msra.mxu0 0
    %455 = vmatprep.subr.bf16.mxu0 0
    %456 = vmatpush1.bf16.msra.mxu0 0
    %457 = vmatprep.subr.bf16.mxu0 0
    %458 = vmatpush1.bf16.msra.mxu0 0
    %459 = vmatprep.subr.bf16.mxu0 0
    %460 = vmatpush1.bf16.msra.mxu0 0
    %461 = vmatprep.subr.bf16.mxu0 0
    %462 = vmatpush1.bf16.msra.mxu0 0
    %463 = vmatprep.subr.bf16.mxu0 %v306
    %464 = vmatpush1.bf16.msra.mxu0 %v305
    %465 = vmatprep.subr.bf16.mxu0 0
    %466 = vmatpush2.bf16.msra.mxu0 0
    %467 = vmatprep.subr.bf16.mxu0 0
    %468 = vmatpush2.bf16.msra.mxu0 0
    %469 = vmatprep.subr.bf16.mxu0 0
    %470 = vmatpush2.bf16.msra.mxu0 0
    %471 = vmatprep.subr.bf16.mxu0 0
    %472 = vmatpush2.bf16.msra.mxu0 0
    %473 = vmatprep.subr.bf16.mxu0 0
    %474 = vmatpush2.bf16.msra.mxu0 0
    %475 = vmatprep.subr.bf16.mxu0 0
    %476 = vmatpush2.bf16.msra.mxu0 0
    %477 = vmatprep.subr.bf16.mxu0 0
    %478 = vmatpush2.bf16.msra.mxu0 0
    %479 = vmatprep.subr.bf16.mxu0 0
    %480 = vmatpush2.bf16.msra.mxu0 0
    %481 = vmatprep.mubr.bf16.mxu0 0
    %482 = vmatmul.mubr.bf16.gmra.mxu0 %v313
    %v483 = vpop.f32.mrf.mxu0
    %v484 = vadd.f32 %v242, %v483
    %v485 = vpop.f32.mrf.mxu0
    %v486 = vadd.f32 %v246, %v485
    %v487 = vpop.f32.mrf.mxu0
    %v488 = vadd.f32 %v242, %v487
    %v489 = vpop.f32.mrf.mxu0
    %v490 = vadd.f32 %v246, %v489
    %491 = vmatprep.mubr.bf16.mxu0 0
    %492 = vmatmul.mubr.bf16.gmra.mxu0 %v316
    %v493 = vpop.f32.mrf.mxu0
    %v494 = vadd.f32 %v242, %v493
    %v495 = vpop.f32.mrf.mxu0
    %v496 = vadd.f32 %v246, %v495
    %v497 = vpop.f32.mrf.mxu0
    %v498 = vadd.f32 %v242, %v497
    %v499 = vpop.f32.mrf.mxu0
    %v500 = vadd.f32 %v246, %v499
    %501 = vmatprep.mubr.bf16.mxu0 0
    %502 = vmatmul.mubr.bf16.gmra.mxu0 %v319
    %v503 = vpop.f32.mrf.mxu0
    %v504 = vadd.f32 %v242, %v503
    %v505 = vpop.f32.mrf.mxu0
    %v506 = vadd.f32 %v246, %v505
    %v507 = vpop.f32.mrf.mxu0
    %v508 = vadd.f32 %v242, %v507
    %v509 = vpop.f32.mrf.mxu0
    %v510 = vadd.f32 %v246, %v509
    %511 = vmatprep.mubr.bf16.mxu0 0
    %512 = vmatmul.mubr.bf16.gmra.mxu0 %v322
    %v513 = vpop.f32.mrf.mxu0
    %v514 = vadd.f32 %v242, %v513
    %v515 = vpop.f32.mrf.mxu0
    %v516 = vadd.f32 %v246, %v515
    %v517 = vpop.f32.mrf.mxu0
    %v518 = vadd.f32 %v242, %v517
    %v519 = vpop.f32.mrf.mxu0
    %v520 = vadd.f32 %v246, %v519
    %521 = vmatprep.mubr.bf16.mxu0 0
    %522 = vmatmul.mubr.bf16.gmra.mxu0 %v325
    %v523 = vpop.f32.mrf.mxu0
    %v524 = vadd.f32 %v242, %v523
    %v525 = vpop.f32.mrf.mxu0
    %v526 = vadd.f32 %v246, %v525
    %v527 = vpop.f32.mrf.mxu0
    %v528 = vadd.f32 %v242, %v527
    %v529 = vpop.f32.mrf.mxu0
    %v530 = vadd.f32 %v246, %v529
    %531 = vmatprep.mubr.bf16.mxu0 0
    %532 = vmatmul.mubr.bf16.gmra.mxu0 %v328
    %v533 = vpop.f32.mrf.mxu0
    %v534 = vadd.f32 %v242, %v533
    %v535 = vpop.f32.mrf.mxu0
    %v536 = vadd.f32 %v246, %v535
    %v537 = vpop.f32.mrf.mxu0
    %v538 = vadd.f32 %v242, %v537
    %v539 = vpop.f32.mrf.mxu0
    %v540 = vadd.f32 %v246, %v539
    %541 = vmatprep.mubr.bf16.mxu0 0
    %542 = vmatmul.mubr.bf16.gmra.mxu0 %v331
    %v543 = vpop.f32.mrf.mxu0
    %v544 = vadd.f32 %v242, %v543
    %v545 = vpop.f32.mrf.mxu0
    %v546 = vadd.f32 %v246, %v545
    %v547 = vpop.f32.mrf.mxu0
    %v548 = vadd.f32 %v242, %v547
    %v549 = vpop.f32.mrf.mxu0
    %v550 = vadd.f32 %v246, %v549
    %551 = vmatprep.mubr.bf16.mxu0 0
    %552 = vmatmul.mubr.bf16.gmra.mxu0 %v334
    %v553 = vpop.f32.mrf.mxu0
    %v554 = vadd.f32 %v242, %v553
    %v555 = vpop.f32.mrf.mxu0
    %v556 = vadd.f32 %v246, %v555
    %v557 = vpop.f32.mrf.mxu0
    %v558 = vadd.f32 %v242, %v557
    %v559 = vpop.f32.mrf.mxu0
    %v560 = vadd.f32 %v246, %v559
    %561 = vdwg.mxu0
    %562 = vst [vmem:[#allocation2] sm:$0xff] %v371
    %563 = vst [vmem:[#allocation2 + $0x8] sm:$0xff] %v373
    %564 = vst [vmem:[#allocation2 + $0x10] sm:$0xff] %v484
    %565 = vst [vmem:[#allocation2 + $0x18] sm:$0xff] %v486
    %566 = vst [vmem:[#allocation2 + $0x20] sm:$0xff] %v375
    %567 = vst [vmem:[#allocation2 + $0x28] sm:$0xff] %v377
    %568 = vst [vmem:[#allocation2 + $0x30] sm:$0xff] %v488
    %569 = vst [vmem:[#allocation2 + $0x38] sm:$0xff] %v490
    %570 = vst [vmem:[#allocation2 + $0x40] sm:$0xff] %v381
    %571 = vst [vmem:[#allocation2 + $0x48] sm:$0xff] %v383
    %572 = vst [vmem:[#allocation2 + $0x50] sm:$0xff] %v494
    %573 = vst [vmem:[#allocation2 + $0x58] sm:$0xff] %v496
    %574 = vst [vmem:[#allocation2 + $0x60] sm:$0xff] %v385
    %575 = vst [vmem:[#allocation2 + $0x68] sm:$0xff] %v387
    %576 = vst [vmem:[#allocation2 + $0x70] sm:$0xff] %v498
    %577 = vst [vmem:[#allocation2 + $0x78] sm:$0xff] %v500
    %578 = vst [vmem:[#allocation2 + $0x80] sm:$0xff] %v391
    %579 = vst [vmem:[#allocation2 + $0x88] sm:$0xff] %v393
    %580 = vst [vmem:[#allocation2 + $0x90] sm:$0xff] %v504
    %581 = vst [vmem:[#allocation2 + $0x98] sm:$0xff] %v506
    %582 = vst [vmem:[#allocation2 + $0xa0] sm:$0xff] %v395
    %583 = vst [vmem:[#allocation2 + $0xa8] sm:$0xff] %v397
    %584 = vst [vmem:[#allocation2 + $0xb0] sm:$0xff] %v508
    %585 = vst [vmem:[#allocation2 + $0xb8] sm:$0xff] %v510
    %586 = vst [vmem:[#allocation2 + $0xc0] sm:$0xff] %v401
    %587 = vst [vmem:[#allocation2 + $0xc8] sm:$0xff] %v403
    %588 = vst [vmem:[#allocation2 + $0xd0] sm:$0xff] %v514
    %589 = vst [vmem:[#allocation2 + $0xd8] sm:$0xff] %v516
    %590 = vst [vmem:[#allocation2 + $0xe0] sm:$0xff] %v405
    %591 = vst [vmem:[#allocation2 + $0xe8] sm:$0xff] %v407
    %592 = vst [vmem:[#allocation2 + $0xf0] sm:$0xff] %v518
    %593 = vst [vmem:[#allocation2 + $0xf8] sm:$0xff] %v520
    %594 = vst [vmem:[#allocation2 + $0x100] sm:$0xff] %v411
    %595 = vst [vmem:[#allocation2 + $0x108] sm:$0xff] %v413
    %596 = vst [vmem:[#allocation2 + $0x110] sm:$0xff] %v524
    %597 = vst [vmem:[#allocation2 + $0x118] sm:$0xff] %v526
    %598 = vst [vmem:[#allocation2 + $0x120] sm:$0xff] %v415
    %599 = vst [vmem:[#allocation2 + $0x128] sm:$0xff] %v417
    %600 = vst [vmem:[#allocation2 + $0x130] sm:$0xff] %v528
    %601 = vst [vmem:[#allocation2 + $0x138] sm:$0xff] %v530
    %602 = vst [vmem:[#allocation2 + $0x140] sm:$0xff] %v421
    %603 = vst [vmem:[#allocation2 + $0x148] sm:$0xff] %v423
    %604 = vst [vmem:[#allocation2 + $0x150] sm:$0xff] %v534
    %605 = vst [vmem:[#allocation2 + $0x158] sm:$0xff] %v536
    %606 = vst [vmem:[#allocation2 + $0x160] sm:$0xff] %v425
    %607 = vst [vmem:[#allocation2 + $0x168] sm:$0xff] %v427
    %608 = vst [vmem:[#allocation2 + $0x170] sm:$0xff] %v538
    %609 = vst [vmem:[#allocation2 + $0x178] sm:$0xff] %v540
    %610 = vst [vmem:[#allocation2 + $0x180] sm:$0xff] %v431
    %611 = vst [vmem:[#allocation2 + $0x188] sm:$0xff] %v433
    %612 = vst [vmem:[#allocation2 + $0x190] sm:$0xff] %v544
    %613 = vst [vmem:[#allocation2 + $0x198] sm:$0xff] %v546
    %614 = vst [vmem:[#allocation2 + $0x1a0] sm:$0xff] %v435
    %615 = vst [vmem:[#allocation2 + $0x1a8] sm:$0xff] %v437
    %616 = vst [vmem:[#allocation2 + $0x1b0] sm:$0xff] %v548
    %617 = vst [vmem:[#allocation2 + $0x1b8] sm:$0xff] %v550
    %618 = vst [vmem:[#allocation2 + $0x1c0] sm:$0xff] %v441
    %619 = vst [vmem:[#allocation2 + $0x1c8] sm:$0xff] %v443
    %620 = vst [vmem:[#allocation2 + $0x1d0] sm:$0xff] %v554
    %621 = vst [vmem:[#allocation2 + $0x1d8] sm:$0xff] %v556
    %622 = vst [vmem:[#allocation2 + $0x1e0] sm:$0xff] %v445
    %623 = vst [vmem:[#allocation2 + $0x1e8] sm:$0xff] %v447
    %624 = vst [vmem:[#allocation2 + $0x1f0] sm:$0xff] %v558
    %625 = vst [vmem:[#allocation2 + $0x1f8] sm:$0xff] %v560
    %v626 = vld [vmem:[%s3] sm:$0xff]
    %v627 = vld [vmem:[%s3 + $0x8] sm:$0xff]
    %v628 = vpack.c.bf16 %v627, %v626
    %v629 = vld [vmem:[%s5] sm:$0xff]
    %v630 = vld [vmem:[%s5 + $0x8] sm:$0xff]
    %v631 = vld [vmem:[%s9] sm:$0xff]
    %v632 = vld [vmem:[%s9 + $0x8] sm:$0xff]
    %v633 = vld [vmem:[%s9 + $0x10] sm:$0xff]
    %v634 = vld [vmem:[%s9 + $0x18] sm:$0xff]
    %v635 = vld [vmem:[%s9 + $0x20] sm:$0xff]
    %v636 = vld [vmem:[%s9 + $0x28] sm:$0xff]
    %v637 = vld [vmem:[%s9 + $0x30] sm:$0xff]
    %v638 = vld [vmem:[%s9 + $0x38] sm:$0xff]
    %v639 = vld [vmem:[%s9 + $0x40] sm:$0xff]
    %v640 = vld [vmem:[%s9 + $0x48] sm:$0xff]
    %v641 = vld [vmem:[%s9 + $0x50] sm:$0xff]
    %v642 = vld [vmem:[%s9 + $0x58] sm:$0xff]
    %v643 = vld [vmem:[%s9 + $0x60] sm:$0xff]
    %v644 = vld [vmem:[%s9 + $0x68] sm:$0xff]
    %v645 = vld [vmem:[%s9 + $0x70] sm:$0xff]
    %v646 = vld [vmem:[%s9 + $0x78] sm:$0xff]
    %v647 = vld [vmem:[%s9 + $0x80] sm:$0xff]
    %v648 = vld [vmem:[%s9 + $0x88] sm:$0xff]
    %v649 = vld [vmem:[%s9 + $0x90] sm:$0xff]
    %v650 = vld [vmem:[%s9 + $0x98] sm:$0xff]
    %v651 = vld [vmem:[%s9 + $0xa0] sm:$0xff]
    %v652 = vld [vmem:[%s9 + $0xa8] sm:$0xff]
    %v653 = vld [vmem:[%s9 + $0xb0] sm:$0xff]
    %v654 = vld [vmem:[%s9 + $0xb8] sm:$0xff]
    %v655 = vld [vmem:[%s9 + $0xc0] sm:$0xff]
    %v656 = vld [vmem:[%s9 + $0xc8] sm:$0xff]
    %v657 = vld [vmem:[%s9 + $0xd0] sm:$0xff]
    %v658 = vld [vmem:[%s9 + $0xd8] sm:$0xff]
    %v659 = vld [vmem:[%s9 + $0xe0] sm:$0xff]
    %v660 = vld [vmem:[%s9 + $0xe8] sm:$0xff]
    %v661 = vld [vmem:[%s9 + $0xf0] sm:$0xff]
    %v662 = vld [vmem:[%s9 + $0xf8] sm:$0xff]
    %v663 = vld [vmem:[#allocation2] sm:$0xff]
    %v664 = vld [vmem:[#allocation2 + $0x8] sm:$0xff]
    %v665 = vld [vmem:[#allocation2 + $0x10] sm:$0xff]
    %v666 = vld [vmem:[#allocation2 + $0x18] sm:$0xff]
    %v667 = vld [vmem:[#allocation2 + $0x20] sm:$0xff]
    %v668 = vld [vmem:[#allocation2 + $0x28] sm:$0xff]
    %v669 = vld [vmem:[#allocation2 + $0x30] sm:$0xff]
    %v670 = vld [vmem:[#allocation2 + $0x38] sm:$0xff]
    %v703 = vunpack.c.l.b16 %v631
    %v704 = vunpack.c.h.b16 %v631
    %v705 = vunpack.c.l.b16 %v632
    %v706 = vunpack.c.h.b16 %v632
    %v707 = vunpack.c.l.b16 %v633
    %v708 = vunpack.c.h.b16 %v633
    %v709 = vunpack.c.l.b16 %v634
    %v710 = vunpack.c.h.b16 %v634
    %v711 = vunpack.c.l.b16 %v635
    %v712 = vunpack.c.h.b16 %v635
    %v713 = vunpack.c.l.b16 %v636
    %v714 = vunpack.c.h.b16 %v636
    %v715 = vunpack.c.l.b16 %v637
    %v716 = vunpack.c.h.b16 %v637
    %v717 = vunpack.c.l.b16 %v638
    %v718 = vunpack.c.h.b16 %v638
    %v719 = vunpack.c.l.b16 %v639
    %v720 = vunpack.c.h.b16 %v639
    %v721 = vunpack.c.l.b16 %v640
    %v722 = vunpack.c.h.b16 %v640
    %v723 = vunpack.c.l.b16 %v641
    %v724 = vunpack.c.h.b16 %v641
    %v725 = vunpack.c.l.b16 %v642
    %v726 = vunpack.c.h.b16 %v642
    %v727 = vunpack.c.l.b16 %v643
    %v728 = vunpack.c.h.b16 %v643
    %v729 = vunpack.c.l.b16 %v644
    %v730 = vunpack.c.h.b16 %v644
    %v731 = vunpack.c.l.b16 %v645
    %v732 = vunpack.c.h.b16 %v645
    %v733 = vunpack.c.l.b16 %v646
    %v734 = vunpack.c.h.b16 %v646
    %v735 = vunpack.c.l.b16 %v647
    %v736 = vunpack.c.h.b16 %v647
    %v737 = vunpack.c.l.b16 %v648
    %v738 = vunpack.c.h.b16 %v648
    %v739 = vunpack.c.l.b16 %v649
    %v740 = vunpack.c.h.b16 %v649
    %v741 = vunpack.c.l.b16 %v650
    %v742 = vunpack.c.h.b16 %v650
    %v743 = vunpack.c.l.b16 %v651
    %v744 = vunpack.c.h.b16 %v651
    %v745 = vunpack.c.l.b16 %v652
    %v746 = vunpack.c.h.b16 %v652
    %v747 = vunpack.c.l.b16 %v653
    %v748 = vunpack.c.h.b16 %v653
    %v749 = vunpack.c.l.b16 %v654
    %v750 = vunpack.c.h.b16 %v654
    %v751 = vunpack.c.l.b16 %v655
    %v752 = vunpack.c.h.b16 %v655
    %v753 = vunpack.c.l.b16 %v656
    %v754 = vunpack.c.h.b16 %v656
    %v755 = vunpack.c.l.b16 %v657
    %v756 = vunpack.c.h.b16 %v657
    %v757 = vunpack.c.l.b16 %v658
    %v758 = vunpack.c.h.b16 %v658
    %v759 = vunpack.c.l.b16 %v659
    %v760 = vunpack.c.h.b16 %v659
    %v761 = vunpack.c.l.b16 %v660
    %v762 = vunpack.c.h.b16 %v660
    %v763 = vunpack.c.l.b16 %v661
    %v764 = vunpack.c.h.b16 %v661
    %v765 = vunpack.c.l.b16 %v662
    %v766 = vunpack.c.h.b16 %v662
    %v767 = vpack.c.b16 %v707, %v703
    %v768 = vpack.c.b16 %v708, %v704
    %v769 = vpack.c.b16 %v709, %v705
    %v770 = vpack.c.b16 %v710, %v706
    %v771 = vpack.c.b16 %v715, %v711
    %v772 = vpack.c.b16 %v716, %v712
    %v773 = vpack.c.b16 %v717, %v713
    %v774 = vpack.c.b16 %v718, %v714
    %v775 = vpack.c.b16 %v723, %v719
    %v776 = vpack.c.b16 %v724, %v720
    %v777 = vpack.c.b16 %v725, %v721
    %v778 = vpack.c.b16 %v726, %v722
    %v779 = vpack.c.b16 %v731, %v727
    %v780 = vpack.c.b16 %v732, %v728
    %v781 = vpack.c.b16 %v733, %v729
    %v782 = vpack.c.b16 %v734, %v730
    %v783 = vpack.c.b16 %v739, %v735
    %v784 = vpack.c.b16 %v740, %v736
    %v785 = vpack.c.b16 %v741, %v737
    %v786 = vpack.c.b16 %v742, %v738
    %v787 = vpack.c.b16 %v747, %v743
    %v788 = vpack.c.b16 %v748, %v744
    %v789 = vpack.c.b16 %v749, %v745
    %v790 = vpack.c.b16 %v750, %v746
    %v791 = vpack.c.b16 %v755, %v751
    %v792 = vpack.c.b16 %v756, %v752
    %v793 = vpack.c.b16 %v757, %v753
    %v794 = vpack.c.b16 %v758, %v754
    %v795 = vpack.c.b16 %v763, %v759
    %v796 = vpack.c.b16 %v764, %v760
    %v797 = vpack.c.b16 %v765, %v761
    %v798 = vpack.c.b16 %v766, %v762
    %831 = vmatprep.subr.bf16.mxu0 %v796
    %832 = vmatpush1.bf16.msra.mxu0 %v795
    %833 = vmatprep.subr.bf16.mxu0 %v792
    %834 = vmatpush1.bf16.msra.mxu0 %v791
    %835 = vmatprep.subr.bf16.mxu0 %v788
    %836 = vmatpush1.bf16.msra.mxu0 %v787
    %837 = vmatprep.subr.bf16.mxu0 %v784
    %838 = vmatpush1.bf16.msra.mxu0 %v783
    %839 = vmatprep.subr.bf16.mxu0 %v780
    %840 = vmatpush1.bf16.msra.mxu0 %v779
    %841 = vmatprep.subr.bf16.mxu0 %v776
    %842 = vmatpush1.bf16.msra.mxu0 %v775
    %843 = vmatprep.subr.bf16.mxu0 %v772
    %844 = vmatpush1.bf16.msra.mxu0 %v771
    %845 = vmatprep.subr.bf16.mxu0 %v768
    %846 = vmatpush1.bf16.msra.mxu0 %v767
    %847 = vmatprep.subr.bf16.mxu0 0
    %848 = vmatpush2.bf16.msra.mxu0 0
    %849 = vmatprep.subr.bf16.mxu0 0
    %850 = vmatpush2.bf16.msra.mxu0 0
    %851 = vmatprep.subr.bf16.mxu0 0
    %852 = vmatpush2.bf16.msra.mxu0 0
    %853 = vmatprep.subr.bf16.mxu0 0
    %854 = vmatpush2.bf16.msra.mxu0 0
    %855 = vmatprep.subr.bf16.mxu0 0
    %856 = vmatpush2.bf16.msra.mxu0 0
    %857 = vmatprep.subr.bf16.mxu0 0
    %858 = vmatpush2.bf16.msra.mxu0 0
    %859 = vmatprep.subr.bf16.mxu0 0
    %860 = vmatpush2.bf16.msra.mxu0 0
    %861 = vmatprep.subr.bf16.mxu0 0
    %862 = vmatpush2.bf16.msra.mxu0 0
    %863 = vmatprep.mubr.bf16.mxu0 0
    %864 = vmatmul.mubr.bf16.gmra.mxu0 %v628
    %v865 = vpop.f32.mrf.mxu0
    %v866 = vadd.f32 %v663, %v865
    %v867 = vpop.f32.mrf.mxu0
    %v868 = vadd.f32 %v664, %v867
    %v869 = vpop.f32.mrf.mxu0
    %v870 = vadd.f32 %v667, %v869
    %v871 = vpop.f32.mrf.mxu0
    %v872 = vadd.f32 %v668, %v871
    %873 = vdwg.mxu0
    %874 = vmatprep.subr.bf16.mxu0 %v798
    %875 = vmatpush1.bf16.msra.mxu0 %v797
    %876 = vmatprep.subr.bf16.mxu0 %v794
    %877 = vmatpush1.bf16.msra.mxu0 %v793
    %878 = vmatprep.subr.bf16.mxu0 %v790
    %879 = vmatpush1.bf16.msra.mxu0 %v789
    %880 = vmatprep.subr.bf16.mxu0 %v786
    %881 = vmatpush1.bf16.msra.mxu0 %v785
    %882 = vmatprep.subr.bf16.mxu0 %v782
    %883 = vmatpush1.bf16.msra.mxu0 %v781
    %884 = vmatprep.subr.bf16.mxu0 %v778
    %885 = vmatpush1.bf16.msra.mxu0 %v777
    %886 = vmatprep.subr.bf16.mxu0 %v774
    %887 = vmatpush1.bf16.msra.mxu0 %v773
    %888 = vmatprep.subr.bf16.mxu0 %v770
    %889 = vmatpush1.bf16.msra.mxu0 %v769
    %890 = vmatprep.subr.bf16.mxu0 0
    %891 = vmatpush2.bf16.msra.mxu0 0
    %892 = vmatprep.subr.bf16.mxu0 0
    %893 = vmatpush2.bf16.msra.mxu0 0
    %894 = vmatprep.subr.bf16.mxu0 0
    %895 = vmatpush2.bf16.msra.mxu0 0
    %896 = vmatprep.subr.bf16.mxu0 0
    %897 = vmatpush2.bf16.msra.mxu0 0
    %898 = vmatprep.subr.bf16.mxu0 0
    %899 = vmatpush2.bf16.msra.mxu0 0
    %900 = vmatprep.subr.bf16.mxu0 0
    %901 = vmatpush2.bf16.msra.mxu0 0
    %902 = vmatprep.subr.bf16.mxu0 0
    %903 = vmatpush2.bf16.msra.mxu0 0
    %904 = vmatprep.subr.bf16.mxu0 0
    %905 = vmatpush2.bf16.msra.mxu0 0
    %906 = vmatprep.mubr.bf16.mxu0 0
    %907 = vmatmul.mubr.bf16.gmra.mxu0 %v628
    %v908 = vpop.f32.mrf.mxu0
    %v909 = vadd.f32 %v665, %v908
    %v910 = vpop.f32.mrf.mxu0
    %v911 = vadd.f32 %v666, %v910
    %v912 = vpop.f32.mrf.mxu0
    %v913 = vadd.f32 %v669, %v912
    %v914 = vpop.f32.mrf.mxu0
    %v915 = vadd.f32 %v670, %v914
    %916 = vdwg.mxu0
    %v917 = vxor.u32 %v866, 2147483648
    %v918 = vxor.u32 %v868, 2147483648
    %v919 = vxor.u32 %v909, 2147483648
    %v920 = vxor.u32 %v870, 2147483648
    %v921 = vxor.u32 %v872, 2147483648
    %v922 = vxor.u32 %v913, 2147483648
    %v923 = vmul.f32 %v917, 1.442695
    %v924 = vpow.pop %v923
    %v925 = vmul.f32 %v918, 1.442695
    %v926 = vpow.pop %v925
    %v927 = vmul.f32 %v919, 1.442695
    %v928 = vpow.pop %v927
    %v929 = vmul.f32 %v920, 1.442695
    %v930 = vpow.pop %v929
    %v931 = vmul.f32 %v921, 1.442695
    %v932 = vpow.pop %v931
    %v933 = vmul.f32 %v922, 1.442695
    %v934 = vpow.pop %v933
    %v935 = vadd.f32 %v924, 1.0
    %v936 = vadd.f32 %v926, 1.0
    %v937 = vadd.f32 %v928, 1.0
    %v938 = vadd.f32 %v930, 1.0
    %v939 = vadd.f32 %v932, 1.0
    %v940 = vadd.f32 %v934, 1.0
    %v941 = vrcp.pop %v935
    %v942 = vmul.f32 1.0, %v941
    %v943 = vrcp.pop %v936
    %v944 = vmul.f32 1.0, %v943
    %v945 = vrcp.pop %v937
    %v946 = vmul.f32 1.0, %v945
    %v947 = vrcp.pop %v938
    %v948 = vmul.f32 1.0, %v947
    %v949 = vrcp.pop %v939
    %v950 = vmul.f32 1.0, %v949
    %v951 = vrcp.pop %v940
    %v952 = vmul.f32 1.0, %v951
    %v953 = vtanh.pop %v911
    %v954 = vtanh.pop %v915
    %v955 = vmul.f32 %v944, %v629
    %v956 = vmul.f32 %v950, %v630
    %v957 = vmul.f32 %v942, %v953
    %v958 = vmul.f32 %v948, %v954
    %v959 = vadd.f32 %v955, %v957
    %v960 = vadd.f32 %v956, %v958
    %v961 = vtanh.pop %v959
    %v962 = vtanh.pop %v960
    %v963 = vmul.f32 %v946, %v961
    %v964 = vmul.f32 %v952, %v962
    %v965 = vpack.c.bf16 %v964, %v963
    %v967 = vunpack.c.l.b16 %v965
    %v968 = vunpack.c.h.b16 %v965
    %v969 = vpack.c.b16 %v967, %v967
    %v970 = vpack.c.b16 %v968, %v968
    %973 = vst [vmem:[#allocation3] sm:$0xf] %v969
    %974 = vst [vmem:[#allocation3 + $0x4] sm:$0xf] %v970
    %v975 = vld [vmem:[%s9] sm:$0xff]
    %v976 = vld [vmem:[%s9 + $0x8] sm:$0xff]
    %v977 = vld [vmem:[%s9 + $0x10] sm:$0xff]
    %v978 = vld [vmem:[%s9 + $0x18] sm:$0xff]
    %v979 = vld [vmem:[%s9 + $0x20] sm:$0xff]
    %v980 = vld [vmem:[%s9 + $0x28] sm:$0xff]
    %v981 = vld [vmem:[%s9 + $0x30] sm:$0xff]
    %v982 = vld [vmem:[%s9 + $0x38] sm:$0xff]
    %v983 = vld [vmem:[%s9 + $0x40] sm:$0xff]
    %v984 = vld [vmem:[%s9 + $0x48] sm:$0xff]
    %v985 = vld [vmem:[%s9 + $0x50] sm:$0xff]
    %v986 = vld [vmem:[%s9 + $0x58] sm:$0xff]
    %v987 = vld [vmem:[%s9 + $0x60] sm:$0xff]
    %v988 = vld [vmem:[%s9 + $0x68] sm:$0xff]
    %v989 = vld [vmem:[%s9 + $0x70] sm:$0xff]
    %v990 = vld [vmem:[%s9 + $0x78] sm:$0xff]
    %v991 = vld [vmem:[%s9 + $0x80] sm:$0xff]
    %v992 = vld [vmem:[%s9 + $0x88] sm:$0xff]
    %v993 = vld [vmem:[%s9 + $0x90] sm:$0xff]
    %v994 = vld [vmem:[%s9 + $0x98] sm:$0xff]
    %v995 = vld [vmem:[%s9 + $0xa0] sm:$0xff]
    %v996 = vld [vmem:[%s9 + $0xa8] sm:$0xff]
    %v997 = vld [vmem:[%s9 + $0xb0] sm:$0xff]
    %v998 = vld [vmem:[%s9 + $0xb8] sm:$0xff]
    %v999 = vld [vmem:[%s9 + $0xc0] sm:$0xff]
    %v1000 = vld [vmem:[%s9 + $0xc8] sm:$0xff]
    %v1001 = vld [vmem:[%s9 + $0xd0] sm:$0xff]
    %v1002 = vld [vmem:[%s9 + $0xd8] sm:$0xff]
    %v1003 = vld [vmem:[%s9 + $0xe0] sm:$0xff]
    %v1004 = vld [vmem:[%s9 + $0xe8] sm:$0xff]
    %v1005 = vld [vmem:[%s9 + $0xf0] sm:$0xff]
    %v1006 = vld [vmem:[%s9 + $0xf8] sm:$0xff]
    %v1007 = vld [vmem:[#allocation2 + $0x40] sm:$0xff]
    %v1008 = vld [vmem:[#allocation2 + $0x48] sm:$0xff]
    %v1009 = vld [vmem:[#allocation2 + $0x50] sm:$0xff]
    %v1010 = vld [vmem:[#allocation2 + $0x58] sm:$0xff]
    %v1011 = vld [vmem:[#allocation2 + $0x60] sm:$0xff]
    %v1012 = vld [vmem:[#allocation2 + $0x68] sm:$0xff]
    %v1013 = vld [vmem:[#allocation2 + $0x70] sm:$0xff]
    %v1014 = vld [vmem:[#allocation2 + $0x78] sm:$0xff]
    %v1047 = vunpack.c.l.b16 %v975
    %v1048 = vunpack.c.h.b16 %v975
    %v1049 = vunpack.c.l.b16 %v976
    %v1050 = vunpack.c.h.b16 %v976
    %v1051 = vunpack.c.l.b16 %v977
    %v1052 = vunpack.c.h.b16 %v977
    %v1053 = vunpack.c.l.b16 %v978
    %v1054 = vunpack.c.h.b16 %v978
    %v1055 = vunpack.c.l.b16 %v979
    %v1056 = vunpack.c.h.b16 %v979
    %v1057 = vunpack.c.l.b16 %v980
    %v1058 = vunpack.c.h.b16 %v980
    %v1059 = vunpack.c.l.b16 %v981
    %v1060 = vunpack.c.h.b16 %v981
    %v1061 = vunpack.c.l.b16 %v982
    %v1062 = vunpack.c.h.b16 %v982
    %v1063 = vunpack.c.l.b16 %v983
    %v1064 = vunpack.c.h.b16 %v983
    %v1065 = vunpack.c.l.b16 %v984
    %v1066 = vunpack.c.h.b16 %v984
    %v1067 = vunpack.c.l.b16 %v985
    %v1068 = vunpack.c.h.b16 %v985
    %v1069 = vunpack.c.l.b16 %v986
    %v1070 = vunpack.c.h.b16 %v986
    %v1071 = vunpack.c.l.b16 %v987
    %v1072 = vunpack.c.h.b16 %v987
    %v1073 = vunpack.c.l.b16 %v988
    %v1074 = vunpack.c.h.b16 %v988
    %v1075 = vunpack.c.l.b16 %v989
    %v1076 = vunpack.c.h.b16 %v989
    %v1077 = vunpack.c.l.b16 %v990
    %v1078 = vunpack.c.h.b16 %v990
    %v1079 = vunpack.c.l.b16 %v991
    %v1080 = vunpack.c.h.b16 %v991
    %v1081 = vunpack.c.l.b16 %v992
    %v1082 = vunpack.c.h.b16 %v992
    %v1083 = vunpack.c.l.b16 %v993
    %v1084 = vunpack.c.h.b16 %v993
    %v1085 = vunpack.c.l.b16 %v994
    %v1086 = vunpack.c.h.b16 %v994
    %v1087 = vunpack.c.l.b16 %v995
    %v1088 = vunpack.c.h.b16 %v995
    %v1089 = vunpack.c.l.b16 %v996
    %v1090 = vunpack.c.h.b16 %v996
    %v1091 = vunpack.c.l.b16 %v997
    %v1092 = vunpack.c.h.b16 %v997
    %v1093 = vunpack.c.l.b16 %v998
    %v1094 = vunpack.c.h.b16 %v998
    %v1095 = vunpack.c.l.b16 %v999
    %v1096 = vunpack.c.h.b16 %v999
    %v1097 = vunpack.c.l.b16 %v1000
    %v1098 = vunpack.c.h.b16 %v1000
    %v1099 = vunpack.c.l.b16 %v1001
    %v1100 = vunpack.c.h.b16 %v1001
    %v1101 = vunpack.c.l.b16 %v1002
    %v1102 = vunpack.c.h.b16 %v1002
    %v1103 = vunpack.c.l.b16 %v1003
    %v1104 = vunpack.c.h.b16 %v1003
    %v1105 = vunpack.c.l.b16 %v1004
    %v1106 = vunpack.c.h.b16 %v1004
    %v1107 = vunpack.c.l.b16 %v1005
    %v1108 = vunpack.c.h.b16 %v1005
    %v1109 = vunpack.c.l.b16 %v1006
    %v1110 = vunpack.c.h.b16 %v1006
    %v1111 = vpack.c.b16 %v1051, %v1047
    %v1112 = vpack.c.b16 %v1052, %v1048
    %v1113 = vpack.c.b16 %v1053, %v1049
    %v1114 = vpack.c.b16 %v1054, %v1050
    %v1115 = vpack.c.b16 %v1059, %v1055
    %v1116 = vpack.c.b16 %v1060, %v1056
    %v1117 = vpack.c.b16 %v1061, %v1057
    %v1118 = vpack.c.b16 %v1062, %v1058
    %v1119 = vpack.c.b16 %v1067, %v1063
    %v1120 = vpack.c.b16 %v1068, %v1064
    %v1121 = vpack.c.b16 %v1069, %v1065
    %v1122 = vpack.c.b16 %v1070, %v1066
    %v1123 = vpack.c.b16 %v1075, %v1071
    %v1124 = vpack.c.b16 %v1076, %v1072
    %v1125 = vpack.c.b16 %v1077, %v1073
    %v1126 = vpack.c.b16 %v1078, %v1074
    %v1127 = vpack.c.b16 %v1083, %v1079
    %v1128 = vpack.c.b16 %v1084, %v1080
    %v1129 = vpack.c.b16 %v1085, %v1081
    %v1130 = vpack.c.b16 %v1086, %v1082
    %v1131 = vpack.c.b16 %v1091, %v1087
    %v1132 = vpack.c.b16 %v1092, %v1088
    %v1133 = vpack.c.b16 %v1093, %v1089
    %v1134 = vpack.c.b16 %v1094, %v1090
    %v1135 = vpack.c.b16 %v1099, %v1095
    %v1136 = vpack.c.b16 %v1100, %v1096
    %v1137 = vpack.c.b16 %v1101, %v1097
    %v1138 = vpack.c.b16 %v1102, %v1098
    %v1139 = vpack.c.b16 %v1107, %v1103
    %v1140 = vpack.c.b16 %v1108, %v1104
    %v1141 = vpack.c.b16 %v1109, %v1105
    %v1142 = vpack.c.b16 %v1110, %v1106
    %1175 = vmatprep.subr.bf16.mxu0 %v1140
    %1176 = vmatpush1.bf16.msra.mxu0 %v1139
    %1177 = vmatprep.subr.bf16.mxu0 %v1136
    %1178 = vmatpush1.bf16.msra.mxu0 %v1135
    %1179 = vmatprep.subr.bf16.mxu0 %v1132
    %1180 = vmatpush1.bf16.msra.mxu0 %v1131
    %1181 = vmatprep.subr.bf16.mxu0 %v1128
    %1182 = vmatpush1.bf16.msra.mxu0 %v1127
    %1183 = vmatprep.subr.bf16.mxu0 %v1124
    %1184 = vmatpush1.bf16.msra.mxu0 %v1123
    %1185 = vmatprep.subr.bf16.mxu0 %v1120
    %1186 = vmatpush1.bf16.msra.mxu0 %v1119
    %1187 = vmatprep.subr.bf16.mxu0 %v1116
    %1188 = vmatpush1.bf16.msra.mxu0 %v1115
    %1189 = vmatprep.subr.bf16.mxu0 %v1112
    %1190 = vmatpush1.bf16.msra.mxu0 %v1111
    %1191 = vmatprep.subr.bf16.mxu0 0
    %1192 = vmatpush2.bf16.msra.mxu0 0
    %1193 = vmatprep.subr.bf16.mxu0 0
    %1194 = vmatpush2.bf16.msra.mxu0 0
    %1195 = vmatprep.subr.bf16.mxu0 0
    %1196 = vmatpush2.bf16.msra.mxu0 0
    %1197 = vmatprep.subr.bf16.mxu0 0
    %1198 = vmatpush2.bf16.msra.mxu0 0
    %1199 = vmatprep.subr.bf16.mxu0 0
    %1200 = vmatpush2.bf16.msra.mxu0 0
    %1201 = vmatprep.subr.bf16.mxu0 0
    %1202 = vmatpush2.bf16.msra.mxu0 0
    %1203 = vmatprep.subr.bf16.mxu0 0
    %1204 = vmatpush2.bf16.msra.mxu0 0
    %1205 = vmatprep.subr.bf16.mxu0 0
    %1206 = vmatpush2.bf16.msra.mxu0 0
    %1207 = vmatprep.mubr.bf16.mxu0 0
    %1208 = vmatmul.mubr.bf16.gmra.mxu0 %v965
    %v1209 = vpop.f32.mrf.mxu0
    %v1210 = vadd.f32 %v1007, %v1209
    %v1211 = vpop.f32.mrf.mxu0
    %v1212 = vadd.f32 %v1008, %v1211
    %v1213 = vpop.f32.mrf.mxu0
    %v1214 = vadd.f32 %v1011, %v1213
    %v1215 = vpop.f32.mrf.mxu0
    %v1216 = vadd.f32 %v1012, %v1215
    %1217 = vdwg.mxu0
    %1218 = vmatprep.subr.bf16.mxu0 %v1142
    %1219 = vmatpush1.bf16.msra.mxu0 %v1141
    %1220 = vmatprep.subr.bf16.mxu0 %v1138
    %1221 = vmatpush1.bf16.msra.mxu0 %v1137
    %1222 = vmatprep.subr.bf16.mxu0 %v1134
    %1223 = vmatpush1.bf16.msra.mxu0 %v1133
    %1224 = vmatprep.subr.bf16.mxu0 %v1130
    %1225 = vmatpush1.bf16.msra.mxu0 %v1129
    %1226 = vmatprep.subr.bf16.mxu0 %v1126
    %1227 = vmatpush1.bf16.msra.mxu0 %v1125
    %1228 = vmatprep.subr.bf16.mxu0 %v1122
    %1229 = vmatpush1.bf16.msra.mxu0 %v1121
    %1230 = vmatprep.subr.bf16.mxu0 %v1118
    %1231 = vmatpush1.bf16.msra.mxu0 %v1117
    %1232 = vmatprep.subr.bf16.mxu0 %v1114
    %1233 = vmatpush1.bf16.msra.mxu0 %v1113
    %1234 = vmatprep.subr.bf16.mxu0 0
    %1235 = vmatpush2.bf16.msra.mxu0 0
    %1236 = vmatprep.subr.bf16.mxu0 0
    %1237 = vmatpush2.bf16.msra.mxu0 0
    %1238 = vmatprep.subr.bf16.mxu0 0
    %1239 = vmatpush2.bf16.msra.mxu0 0
    %1240 = vmatprep.subr.bf16.mxu0 0
    %1241 = vmatpush2.bf16.msra.mxu0 0
    %1242 = vmatprep.subr.bf16.mxu0 0
    %1243 = vmatpush2.bf16.msra.mxu0 0
    %1244 = vmatprep.subr.bf16.mxu0 0
    %1245 = vmatpush2.bf16.msra.mxu0 0
    %1246 = vmatprep.subr.bf16.mxu0 0
    %1247 = vmatpush2.bf16.msra.mxu0 0
    %1248 = vmatprep.subr.bf16.mxu0 0
    %1249 = vmatpush2.bf16.msra.mxu0 0
    %1250 = vmatprep.mubr.bf16.mxu0 0
    %1251 = vmatmul.mubr.bf16.gmra.mxu0 %v965
    %v1252 = vpop.f32.mrf.mxu0
    %v1253 = vadd.f32 %v1009, %v1252
    %v1254 = vpop.f32.mrf.mxu0
    %v1255 = vadd.f32 %v1010, %v1254
    %v1256 = vpop.f32.mrf.mxu0
    %v1257 = vadd.f32 %v1013, %v1256
    %v1258 = vpop.f32.mrf.mxu0
    %v1259 = vadd.f32 %v1014, %v1258
    %1260 = vdwg.mxu0
    %v1261 = vxor.u32 %v1210, 2147483648
    %v1262 = vxor.u32 %v1212, 2147483648
    %v1263 = vxor.u32 %v1253, 2147483648
    %v1264 = vxor.u32 %v1214, 2147483648
    %v1265 = vxor.u32 %v1216, 2147483648
    %v1266 = vxor.u32 %v1257, 2147483648
    %v1267 = vmul.f32 %v1261, 1.442695
    %v1268 = vpow.pop %v1267
    %v1269 = vmul.f32 %v1262, 1.442695
    %v1270 = vpow.pop %v1269
    %v1271 = vmul.f32 %v1263, 1.442695
    %v1272 = vpow.pop %v1271
    %v1273 = vmul.f32 %v1264, 1.442695
    %v1274 = vpow.pop %v1273
    %v1275 = vmul.f32 %v1265, 1.442695
    %v1276 = vpow.pop %v1275
    %v1277 = vmul.f32 %v1266, 1.442695
    %v1278 = vpow.pop %v1277
    %v1279 = vadd.f32 %v1268, 1.0
    %v1280 = vadd.f32 %v1270, 1.0
    %v1281 = vadd.f32 %v1272, 1.0
    %v1282 = vadd.f32 %v1274, 1.0
    %v1283 = vadd.f32 %v1276, 1.0
    %v1284 = vadd.f32 %v1278, 1.0
    %v1285 = vrcp.pop %v1279
    %v1286 = vmul.f32 1.0, %v1285
    %v1287 = vrcp.pop %v1280
    %v1288 = vmul.f32 1.0, %v1287
    %v1289 = vrcp.pop %v1281
    %v1290 = vmul.f32 1.0, %v1289
    %v1291 = vrcp.pop %v1282
    %v1292 = vmul.f32 1.0, %v1291
    %v1293 = vrcp.pop %v1283
    %v1294 = vmul.f32 1.0, %v1293
    %v1295 = vrcp.pop %v1284
    %v1296 = vmul.f32 1.0, %v1295
    %v1297 = vtanh.pop %v1255
    %v1298 = vtanh.pop %v1259
    %v1299 = vmul.f32 %v1288, %v959
    %v1300 = vmul.f32 %v1294, %v960
    %v1301 = vmul.f32 %v1286, %v1297
    %v1302 = vmul.f32 %v1292, %v1298
    %v1303 = vadd.f32 %v1299, %v1301
    %v1304 = vadd.f32 %v1300, %v1302
    %v1305 = vtanh.pop %v1303
    %v1306 = vtanh.pop %v1304
    %v1307 = vmul.f32 %v1290, %v1305
    %v1308 = vmul.f32 %v1296, %v1306
    %v1309 = vpack.c.bf16 %v1308, %v1307
    %v1311 = vunpack.c.l.b16 %v1309
    %v1312 = vunpack.c.h.b16 %v1309
    %v1313 = vpack.c.b16 %v1311, %v1311
    %v1314 = vpack.c.b16 %v1312, %v1312
    %1317 = vst [vmem:[#allocation3 + $0x8] sm:$0xf] %v1313
    %1318 = vst [vmem:[#allocation3 + $0xc] sm:$0xf] %v1314
    %v1319 = vld [vmem:[%s9] sm:$0xff]
    %v1320 = vld [vmem:[%s9 + $0x8] sm:$0xff]
    %v1321 = vld [vmem:[%s9 + $0x10] sm:$0xff]
    %v1322 = vld [vmem:[%s9 + $0x18] sm:$0xff]
    %v1323 = vld [vmem:[%s9 + $0x20] sm:$0xff]
    %v1324 = vld [vmem:[%s9 + $0x28] sm:$0xff]
    %v1325 = vld [vmem:[%s9 + $0x30] sm:$0xff]
    %v1326 = vld [vmem:[%s9 + $0x38] sm:$0xff]
    %v1327 = vld [vmem:[%s9 + $0x40] sm:$0xff]
    %v1328 = vld [vmem:[%s9 + $0x48] sm:$0xff]
    %v1329 = vld [vmem:[%s9 + $0x50] sm:$0xff]
    %v1330 = vld [vmem:[%s9 + $0x58] sm:$0xff]
    %v1331 = vld [vmem:[%s9 + $0x60] sm:$0xff]
    %v1332 = vld [vmem:[%s9 + $0x68] sm:$0xff]
    %v1333 = vld [vmem:[%s9 + $0x70] sm:$0xff]
    %v1334 = vld [vmem:[%s9 + $0x78] sm:$0xff]
    %v1335 = vld [vmem:[%s9 + $0x80] sm:$0xff]
    %v1336 = vld [vmem:[%s9 + $0x88] sm:$0xff]
    %v1337 = vld [vmem:[%s9 + $0x90] sm:$0xff]
    %v1338 = vld [vmem:[%s9 + $0x98] sm:$0xff]
    %v1339 = vld [vmem:[%s9 + $0xa0] sm:$0xff]
    %v1340 = vld [vmem:[%s9 + $0xa8] sm:$0xff]
    %v1341 = vld [vmem:[%s9 + $0xb0] sm:$0xff]
    %v1342 = vld [vmem:[%s9 + $0xb8] sm:$0xff]
    %v1343 = vld [vmem:[%s9 + $0xc0] sm:$0xff]
    %v1344 = vld [vmem:[%s9 + $0xc8] sm:$0xff]
    %v1345 = vld [vmem:[%s9 + $0xd0] sm:$0xff]
    %v1346 = vld [vmem:[%s9 + $0xd8] sm:$0xff]
    %v1347 = vld [vmem:[%s9 + $0xe0] sm:$0xff]
    %v1348 = vld [vmem:[%s9 + $0xe8] sm:$0xff]
    %v1349 = vld [vmem:[%s9 + $0xf0] sm:$0xff]
    %v1350 = vld [vmem:[%s9 + $0xf8] sm:$0xff]
    %v1351 = vld [vmem:[#allocation2 + $0x80] sm:$0xff]
    %v1352 = vld [vmem:[#allocation2 + $0x88] sm:$0xff]
    %v1353 = vld [vmem:[#allocation2 + $0x90] sm:$0xff]
    %v1354 = vld [vmem:[#allocation2 + $0x98] sm:$0xff]
    %v1355 = vld [vmem:[#allocation2 + $0xa0] sm:$0xff]
    %v1356 = vld [vmem:[#allocation2 + $0xa8] sm:$0xff]
    %v1357 = vld [vmem:[#allocation2 + $0xb0] sm:$0xff]
    %v1358 = vld [vmem:[#allocation2 + $0xb8] sm:$0xff]
    %v1391 = vunpack.c.l.b16 %v1319
    %v1392 = vunpack.c.h.b16 %v1319
    %v1393 = vunpack.c.l.b16 %v1320
    %v1394 = vunpack.c.h.b16 %v1320
    %v1395 = vunpack.c.l.b16 %v1321
    %v1396 = vunpack.c.h.b16 %v1321
    %v1397 = vunpack.c.l.b16 %v1322
    %v1398 = vunpack.c.h.b16 %v1322
    %v1399 = vunpack.c.l.b16 %v1323
    %v1400 = vunpack.c.h.b16 %v1323
    %v1401 = vunpack.c.l.b16 %v1324
    %v1402 = vunpack.c.h.b16 %v1324
    %v1403 = vunpack.c.l.b16 %v1325
    %v1404 = vunpack.c.h.b16 %v1325
    %v1405 = vunpack.c.l.b16 %v1326
    %v1406 = vunpack.c.h.b16 %v1326
    %v1407 = vunpack.c.l.b16 %v1327
    %v1408 = vunpack.c.h.b16 %v1327
    %v1409 = vunpack.c.l.b16 %v1328
    %v1410 = vunpack.c.h.b16 %v1328
    %v1411 = vunpack.c.l.b16 %v1329
    %v1412 = vunpack.c.h.b16 %v1329
    %v1413 = vunpack.c.l.b16 %v1330
    %v1414 = vunpack.c.h.b16 %v1330
    %v1415 = vunpack.c.l.b16 %v1331
    %v1416 = vunpack.c.h.b16 %v1331
    %v1417 = vunpack.c.l.b16 %v1332
    %v1418 = vunpack.c.h.b16 %v1332
    %v1419 = vunpack.c.l.b16 %v1333
    %v1420 = vunpack.c.h.b16 %v1333
    %v1421 = vunpack.c.l.b16 %v1334
    %v1422 = vunpack.c.h.b16 %v1334
    %v1423 = vunpack.c.l.b16 %v1335
    %v1424 = vunpack.c.h.b16 %v1335
    %v1425 = vunpack.c.l.b16 %v1336
    %v1426 = vunpack.c.h.b16 %v1336
    %v1427 = vunpack.c.l.b16 %v1337
    %v1428 = vunpack.c.h.b16 %v1337
    %v1429 = vunpack.c.l.b16 %v1338
    %v1430 = vunpack.c.h.b16 %v1338
    %v1431 = vunpack.c.l.b16 %v1339
    %v1432 = vunpack.c.h.b16 %v1339
    %v1433 = vunpack.c.l.b16 %v1340
    %v1434 = vunpack.c.h.b16 %v1340
    %v1435 = vunpack.c.l.b16 %v1341
    %v1436 = vunpack.c.h.b16 %v1341
    %v1437 = vunpack.c.l.b16 %v1342
    %v1438 = vunpack.c.h.b16 %v1342
    %v1439 = vunpack.c.l.b16 %v1343
    %v1440 = vunpack.c.h.b16 %v1343
    %v1441 = vunpack.c.l.b16 %v1344
    %v1442 = vunpack.c.h.b16 %v1344
    %v1443 = vunpack.c.l.b16 %v1345
    %v1444 = vunpack.c.h.b16 %v1345
    %v1445 = vunpack.c.l.b16 %v1346
    %v1446 = vunpack.c.h.b16 %v1346
    %v1447 = vunpack.c.l.b16 %v1347
    %v1448 = vunpack.c.h.b16 %v1347
    %v1449 = vunpack.c.l.b16 %v1348
    %v1450 = vunpack.c.h.b16 %v1348
    %v1451 = vunpack.c.l.b16 %v1349
    %v1452 = vunpack.c.h.b16 %v1349
    %v1453 = vunpack.c.l.b16 %v1350
    %v1454 = vunpack.c.h.b16 %v1350
    %v1455 = vpack.c.b16 %v1395, %v1391
    %v1456 = vpack.c.b16 %v1396, %v1392
    %v1457 = vpack.c.b16 %v1397, %v1393
    %v1458 = vpack.c.b16 %v1398, %v1394
    %v1459 = vpack.c.b16 %v1403, %v1399
    %v1460 = vpack.c.b16 %v1404, %v1400
    %v1461 = vpack.c.b16 %v1405, %v1401
    %v1462 = vpack.c.b16 %v1406, %v1402
    %v1463 = vpack.c.b16 %v1411, %v1407
    %v1464 = vpack.c.b16 %v1412, %v1408
    %v1465 = vpack.c.b16 %v1413, %v1409
    %v1466 = vpack.c.b16 %v1414, %v1410
    %v1467 = vpack.c.b16 %v1419, %v1415
    %v1468 = vpack.c.b16 %v1420, %v1416
    %v1469 = vpack.c.b16 %v1421, %v1417
    %v1470 = vpack.c.b16 %v1422, %v1418
    %v1471 = vpack.c.b16 %v1427, %v1423
    %v1472 = vpack.c.b16 %v1428, %v1424
    %v1473 = vpack.c.b16 %v1429, %v1425
    %v1474 = vpack.c.b16 %v1430, %v1426
    %v1475 = vpack.c.b16 %v1435, %v1431
    %v1476 = vpack.c.b16 %v1436, %v1432
    %v1477 = vpack.c.b16 %v1437, %v1433
    %v1478 = vpack.c.b16 %v1438, %v1434
    %v1479 = vpack.c.b16 %v1443, %v1439
    %v1480 = vpack.c.b16 %v1444, %v1440
    %v1481 = vpack.c.b16 %v1445, %v1441
    %v1482 = vpack.c.b16 %v1446, %v1442
    %v1483 = vpack.c.b16 %v1451, %v1447
    %v1484 = vpack.c.b16 %v1452, %v1448
    %v1485 = vpack.c.b16 %v1453, %v1449
    %v1486 = vpack.c.b16 %v1454, %v1450
    %1519 = vmatprep.subr.bf16.mxu0 %v1484
    %1520 = vmatpush1.bf16.msra.mxu0 %v1483
    %1521 = vmatprep.subr.bf16.mxu0 %v1480
    %1522 = vmatpush1.bf16.msra.mxu0 %v1479
    %1523 = vmatprep.subr.bf16.mxu0 %v1476
    %1524 = vmatpush1.bf16.msra.mxu0 %v1475
    %1525 = vmatprep.subr.bf16.mxu0 %v1472
    %1526 = vmatpush1.bf16.msra.mxu0 %v1471
    %1527 = vmatprep.subr.bf16.mxu0 %v1468
    %1528 = vmatpush1.bf16.msra.mxu0 %v1467
    %1529 = vmatprep.subr.bf16.mxu0 %v1464
    %1530 = vmatpush1.bf16.msra.mxu0 %v1463
    %1531 = vmatprep.subr.bf16.mxu0 %v1460
    %1532 = vmatpush1.bf16.msra.mxu0 %v1459
    %1533 = vmatprep.subr.bf16.mxu0 %v1456
    %1534 = vmatpush1.bf16.msra.mxu0 %v1455
    %1535 = vmatprep.subr.bf16.mxu0 0
    %1536 = vmatpush2.bf16.msra.mxu0 0
    %1537 = vmatprep.subr.bf16.mxu0 0
    %1538 = vmatpush2.bf16.msra.mxu0 0
    %1539 = vmatprep.subr.bf16.mxu0 0
    %1540 = vmatpush2.bf16.msra.mxu0 0
    %1541 = vmatprep.subr.bf16.mxu0 0
    %1542 = vmatpush2.bf16.msra.mxu0 0
    %1543 = vmatprep.subr.bf16.mxu0 0
    %1544 = vmatpush2.bf16.msra.mxu0 0
    %1545 = vmatprep.subr.bf16.mxu0 0
    %1546 = vmatpush2.bf16.msra.mxu0 0
    %1547 = vmatprep.subr.bf16.mxu0 0
    %1548 = vmatpush2.bf16.msra.mxu0 0
    %1549 = vmatprep.subr.bf16.mxu0 0
    %1550 = vmatpush2.bf16.msra.mxu0 0
    %1551 = vmatprep.mubr.bf16.mxu0 0
    %1552 = vmatmul.mubr.bf16.gmra.mxu0 %v1309
    %v1553 = vpop.f32.mrf.mxu0
    %v1554 = vadd.f32 %v1351, %v1553
    %v1555 = vpop.f32.mrf.mxu0
    %v1556 = vadd.f32 %v1352, %v1555
    %v1557 = vpop.f32.mrf.mxu0
    %v1558 = vadd.f32 %v1355, %v1557
    %v1559 = vpop.f32.mrf.mxu0
    %v1560 = vadd.f32 %v1356, %v1559
    %1561 = vdwg.mxu0
    %1562 = vmatprep.subr.bf16.mxu0 %v1486
    %1563 = vmatpush1.bf16.msra.mxu0 %v1485
    %1564 = vmatprep.subr.bf16.mxu0 %v1482
    %1565 = vmatpush1.bf16.msra.mxu0 %v1481
    %1566 = vmatprep.subr.bf16.mxu0 %v1478
    %1567 = vmatpush1.bf16.msra.mxu0 %v1477
    %1568 = vmatprep.subr.bf16.mxu0 %v1474
    %1569 = vmatpush1.bf16.msra.mxu0 %v1473
    %1570 = vmatprep.subr.bf16.mxu0 %v1470
    %1571 = vmatpush1.bf16.msra.mxu0 %v1469
    %1572 = vmatprep.subr.bf16.mxu0 %v1466
    %1573 = vmatpush1.bf16.msra.mxu0 %v1465
    %1574 = vmatprep.subr.bf16.mxu0 %v1462
    %1575 = vmatpush1.bf16.msra.mxu0 %v1461
    %1576 = vmatprep.subr.bf16.mxu0 %v1458
    %1577 = vmatpush1.bf16.msra.mxu0 %v1457
    %1578 = vmatprep.subr.bf16.mxu0 0
    %1579 = vmatpush2.bf16.msra.mxu0 0
    %1580 = vmatprep.subr.bf16.mxu0 0
    %1581 = vmatpush2.bf16.msra.mxu0 0
    %1582 = vmatprep.subr.bf16.mxu0 0
    %1583 = vmatpush2.bf16.msra.mxu0 0
    %1584 = vmatprep.subr.bf16.mxu0 0
    %1585 = vmatpush2.bf16.msra.mxu0 0
    %1586 = vmatprep.subr.bf16.mxu0 0
    %1587 = vmatpush2.bf16.msra.mxu0 0
    %1588 = vmatprep.subr.bf16.mxu0 0
    %1589 = vmatpush2.bf16.msra.mxu0 0
    %1590 = vmatprep.subr.bf16.mxu0 0
    %1591 = vmatpush2.bf16.msra.mxu0 0
    %1592 = vmatprep.subr.bf16.mxu0 0
    %1593 = vmatpush2.bf16.msra.mxu0 0
    %1594 = vmatprep.mubr.bf16.mxu0 0
    %1595 = vmatmul.mubr.bf16.gmra.mxu0 %v1309
    %v1596 = vpop.f32.mrf.mxu0
    %v1597 = vadd.f32 %v1353, %v1596
    %v1598 = vpop.f32.mrf.mxu0
    %v1599 = vadd.f32 %v1354, %v1598
    %v1600 = vpop.f32.mrf.mxu0
    %v1601 = vadd.f32 %v1357, %v1600
    %v1602 = vpop.f32.mrf.mxu0
    %v1603 = vadd.f32 %v1358, %v1602
    %1604 = vdwg.mxu0
    %v1605 = vxor.u32 %v1554, 2147483648
    %v1606 = vxor.u32 %v1556, 2147483648
    %v1607 = vxor.u32 %v1597, 2147483648
    %v1608 = vxor.u32 %v1558, 2147483648
    %v1609 = vxor.u32 %v1560, 2147483648
    %v1610 = vxor.u32 %v1601, 2147483648
    %v1611 = vmul.f32 %v1605, 1.442695
    %v1612 = vpow.pop %v1611
    %v1613 = vmul.f32 %v1606, 1.442695
    %v1614 = vpow.pop %v1613
    %v1615 = vmul.f32 %v1607, 1.442695
    %v1616 = vpow.pop %v1615
    %v1617 = vmul.f32 %v1608, 1.442695
    %v1618 = vpow.pop %v1617
    %v1619 = vmul.f32 %v1609, 1.442695
    %v1620 = vpow.pop %v1619
    %v1621 = vmul.f32 %v1610, 1.442695
    %v1622 = vpow.pop %v1621
    %v1623 = vadd.f32 %v1612, 1.0
    %v1624 = vadd.f32 %v1614, 1.0
    %v1625 = vadd.f32 %v1616, 1.0
    %v1626 = vadd.f32 %v1618, 1.0
    %v1627 = vadd.f32 %v1620, 1.0
    %v1628 = vadd.f32 %v1622, 1.0
    %v1629 = vrcp.pop %v1623
    %v1630 = vmul.f32 1.0, %v1629
    %v1631 = vrcp.pop %v1624
    %v1632 = vmul.f32 1.0, %v1631
    %v1633 = vrcp.pop %v1625
    %v1634 = vmul.f32 1.0, %v1633
    %v1635 = vrcp.pop %v1626
    %v1636 = vmul.f32 1.0, %v1635
    %v1637 = vrcp.pop %v1627
    %v1638 = vmul.f32 1.0, %v1637
    %v1639 = vrcp.pop %v1628
    %v1640 = vmul.f32 1.0, %v1639
    %v1641 = vtanh.pop %v1599
    %v1642 = vtanh.pop %v1603
    %v1643 = vmul.f32 %v1632, %v1303
    %v1644 = vmul.f32 %v1638, %v1304
    %v1645 = vmul.f32 %v1630, %v1641
    %v1646 = vmul.f32 %v1636, %v1642
    %v1647 = vadd.f32 %v1643, %v1645
    %v1648 = vadd.f32 %v1644, %v1646
    %v1649 = vtanh.pop %v1647
    %v1650 = vtanh.pop %v1648
    %v1651 = vmul.f32 %v1634, %v1649
    %v1652 = vmul.f32 %v1640, %v1650
    %v1653 = vpack.c.bf16 %v1652, %v1651
    %v1655 = vunpack.c.l.b16 %v1653
    %v1656 = vunpack.c.h.b16 %v1653
    %v1657 = vpack.c.b16 %v1655, %v1655
    %v1658 = vpack.c.b16 %v1656, %v1656
    %1661 = vst [vmem:[#allocation3 + $0x10] sm:$0xf] %v1657
    %1662 = vst [vmem:[#allocation3 + $0x14] sm:$0xf] %v1658
    %v1663 = vld [vmem:[%s9] sm:$0xff]
    %v1664 = vld [vmem:[%s9 + $0x8] sm:$0xff]
    %v1665 = vld [vmem:[%s9 + $0x10] sm:$0xff]
    %v1666 = vld [vmem:[%s9 + $0x18] sm:$0xff]
    %v1667 = vld [vmem:[%s9 + $0x20] sm:$0xff]
    %v1668 = vld [vmem:[%s9 + $0x28] sm:$0xff]
    %v1669 = vld [vmem:[%s9 + $0x30] sm:$0xff]
    %v1670 = vld [vmem:[%s9 + $0x38] sm:$0xff]
    %v1671 = vld [vmem:[%s9 + $0x40] sm:$0xff]
    %v1672 = vld [vmem:[%s9 + $0x48] sm:$0xff]
    %v1673 = vld [vmem:[%s9 + $0x50] sm:$0xff]
    %v1674 = vld [vmem:[%s9 + $0x58] sm:$0xff]
    %v1675 = vld [vmem:[%s9 + $0x60] sm:$0xff]
    %v1676 = vld [vmem:[%s9 + $0x68] sm:$0xff]
    %v1677 = vld [vmem:[%s9 + $0x70] sm:$0xff]
    %v1678 = vld [vmem:[%s9 + $0x78] sm:$0xff]
    %v1679 = vld [vmem:[%s9 + $0x80] sm:$0xff]
    %v1680 = vld [vmem:[%s9 + $0x88] sm:$0xff]
    %v1681 = vld [vmem:[%s9 + $0x90] sm:$0xff]
    %v1682 = vld [vmem:[%s9 + $0x98] sm:$0xff]
    %v1683 = vld [vmem:[%s9 + $0xa0] sm:$0xff]
    %v1684 = vld [vmem:[%s9 + $0xa8] sm:$0xff]
    %v1685 = vld [vmem:[%s9 + $0xb0] sm:$0xff]
    %v1686 = vld [vmem:[%s9 + $0xb8] sm:$0xff]
    %v1687 = vld [vmem:[%s9 + $0xc0] sm:$0xff]
    %v1688 = vld [vmem:[%s9 + $0xc8] sm:$0xff]
    %v1689 = vld [vmem:[%s9 + $0xd0] sm:$0xff]
    %v1690 = vld [vmem:[%s9 + $0xd8] sm:$0xff]
    %v1691 = vld [vmem:[%s9 + $0xe0] sm:$0xff]
    %v1692 = vld [vmem:[%s9 + $0xe8] sm:$0xff]
    %v1693 = vld [vmem:[%s9 + $0xf0] sm:$0xff]
    %v1694 = vld [vmem:[%s9 + $0xf8] sm:$0xff]
    %v1695 = vld [vmem:[#allocation2 + $0xc0] sm:$0xff]
    %v1696 = vld [vmem:[#allocation2 + $0xc8] sm:$0xff]
    %v1697 = vld [vmem:[#allocation2 + $0xd0] sm:$0xff]
    %v1698 = vld [vmem:[#allocation2 + $0xd8] sm:$0xff]
    %v1699 = vld [vmem:[#allocation2 + $0xe0] sm:$0xff]
    %v1700 = vld [vmem:[#allocation2 + $0xe8] sm:$0xff]
    %v1701 = vld [vmem:[#allocation2 + $0xf0] sm:$0xff]
    %v1702 = vld [vmem:[#allocation2 + $0xf8] sm:$0xff]
    %v1735 = vunpack.c.l.b16 %v1663
    %v1736 = vunpack.c.h.b16 %v1663
    %v1737 = vunpack.c.l.b16 %v1664
    %v1738 = vunpack.c.h.b16 %v1664
    %v1739 = vunpack.c.l.b16 %v1665
    %v1740 = vunpack.c.h.b16 %v1665
    %v1741 = vunpack.c.l.b16 %v1666
    %v1742 = vunpack.c.h.b16 %v1666
    %v1743 = vunpack.c.l.b16 %v1667
    %v1744 = vunpack.c.h.b16 %v1667
    %v1745 = vunpack.c.l.b16 %v1668
    %v1746 = vunpack.c.h.b16 %v1668
    %v1747 = vunpack.c.l.b16 %v1669
    %v1748 = vunpack.c.h.b16 %v1669
    %v1749 = vunpack.c.l.b16 %v1670
    %v1750 = vunpack.c.h.b16 %v1670
    %v1751 = vunpack.c.l.b16 %v1671
    %v1752 = vunpack.c.h.b16 %v1671
    %v1753 = vunpack.c.l.b16 %v1672
    %v1754 = vunpack.c.h.b16 %v1672
    %v1755 = vunpack.c.l.b16 %v1673
    %v1756 = vunpack.c.h.b16 %v1673
    %v1757 = vunpack.c.l.b16 %v1674
    %v1758 = vunpack.c.h.b16 %v1674
    %v1759 = vunpack.c.l.b16 %v1675
    %v1760 = vunpack.c.h.b16 %v1675
    %v1761 = vunpack.c.l.b16 %v1676
    %v1762 = vunpack.c.h.b16 %v1676
    %v1763 = vunpack.c.l.b16 %v1677
    %v1764 = vunpack.c.h.b16 %v1677
    %v1765 = vunpack.c.l.b16 %v1678
    %v1766 = vunpack.c.h.b16 %v1678
    %v1767 = vunpack.c.l.b16 %v1679
    %v1768 = vunpack.c.h.b16 %v1679
    %v1769 = vunpack.c.l.b16 %v1680
    %v1770 = vunpack.c.h.b16 %v1680
    %v1771 = vunpack.c.l.b16 %v1681
    %v1772 = vunpack.c.h.b16 %v1681
    %v1773 = vunpack.c.l.b16 %v1682
    %v1774 = vunpack.c.h.b16 %v1682
    %v1775 = vunpack.c.l.b16 %v1683
    %v1776 = vunpack.c.h.b16 %v1683
    %v1777 = vunpack.c.l.b16 %v1684
    %v1778 = vunpack.c.h.b16 %v1684
    %v1779 = vunpack.c.l.b16 %v1685
    %v1780 = vunpack.c.h.b16 %v1685
    %v1781 = vunpack.c.l.b16 %v1686
    %v1782 = vunpack.c.h.b16 %v1686
    %v1783 = vunpack.c.l.b16 %v1687
    %v1784 = vunpack.c.h.b16 %v1687
    %v1785 = vunpack.c.l.b16 %v1688
    %v1786 = vunpack.c.h.b16 %v1688
    %v1787 = vunpack.c.l.b16 %v1689
    %v1788 = vunpack.c.h.b16 %v1689
    %v1789 = vunpack.c.l.b16 %v1690
    %v1790 = vunpack.c.h.b16 %v1690
    %v1791 = vunpack.c.l.b16 %v1691
    %v1792 = vunpack.c.h.b16 %v1691
    %v1793 = vunpack.c.l.b16 %v1692
    %v1794 = vunpack.c.h.b16 %v1692
    %v1795 = vunpack.c.l.b16 %v1693
    %v1796 = vunpack.c.h.b16 %v1693
    %v1797 = vunpack.c.l.b16 %v1694
    %v1798 = vunpack.c.h.b16 %v1694
    %v1799 = vpack.c.b16 %v1739, %v1735
    %v1800 = vpack.c.b16 %v1740, %v1736
    %v1801 = vpack.c.b16 %v1741, %v1737
    %v1802 = vpack.c.b16 %v1742, %v1738
    %v1803 = vpack.c.b16 %v1747, %v1743
    %v1804 = vpack.c.b16 %v1748, %v1744
    %v1805 = vpack.c.b16 %v1749, %v1745
    %v1806 = vpack.c.b16 %v1750, %v1746
    %v1807 = vpack.c.b16 %v1755, %v1751
    %v1808 = vpack.c.b16 %v1756, %v1752
    %v1809 = vpack.c.b16 %v1757, %v1753
    %v1810 = vpack.c.b16 %v1758, %v1754
    %v1811 = vpack.c.b16 %v1763, %v1759
    %v1812 = vpack.c.b16 %v1764, %v1760
    %v1813 = vpack.c.b16 %v1765, %v1761
    %v1814 = vpack.c.b16 %v1766, %v1762
    %v1815 = vpack.c.b16 %v1771, %v1767
    %v1816 = vpack.c.b16 %v1772, %v1768
    %v1817 = vpack.c.b16 %v1773, %v1769
    %v1818 = vpack.c.b16 %v1774, %v1770
    %v1819 = vpack.c.b16 %v1779, %v1775
    %v1820 = vpack.c.b16 %v1780, %v1776
    %v1821 = vpack.c.b16 %v1781, %v1777
    %v1822 = vpack.c.b16 %v1782, %v1778
    %v1823 = vpack.c.b16 %v1787, %v1783
    %v1824 = vpack.c.b16 %v1788, %v1784
    %v1825 = vpack.c.b16 %v1789, %v1785
    %v1826 = vpack.c.b16 %v1790, %v1786
    %v1827 = vpack.c.b16 %v1795, %v1791
    %v1828 = vpack.c.b16 %v1796, %v1792
    %v1829 = vpack.c.b16 %v1797, %v1793
    %v1830 = vpack.c.b16 %v1798, %v1794
    %1863 = vmatprep.subr.bf16.mxu0 %v1828
    %1864 = vmatpush1.bf16.msra.mxu0 %v1827
    %1865 = vmatprep.subr.bf16.mxu0 %v1824
    %1866 = vmatpush1.bf16.msra.mxu0 %v1823
    %1867 = vmatprep.subr.bf16.mxu0 %v1820
    %1868 = vmatpush1.bf16.msra.mxu0 %v1819
    %1869 = vmatprep.subr.bf16.mxu0 %v1816
    %1870 = vmatpush1.bf16.msra.mxu0 %v1815
    %1871 = vmatprep.subr.bf16.mxu0 %v1812
    %1872 = vmatpush1.bf16.msra.mxu0 %v1811
    %1873 = vmatprep.subr.bf16.mxu0 %v1808
    %1874 = vmatpush1.bf16.msra.mxu0 %v1807
    %1875 = vmatprep.subr.bf16.mxu0 %v1804
    %1876 = vmatpush1.bf16.msra.mxu0 %v1803
    %1877 = vmatprep.subr.bf16.mxu0 %v1800
    %1878 = vmatpush1.bf16.msra.mxu0 %v1799
    %1879 = vmatprep.subr.bf16.mxu0 0
    %1880 = vmatpush2.bf16.msra.mxu0 0
    %1881 = vmatprep.subr.bf16.mxu0 0
    %1882 = vmatpush2.bf16.msra.mxu0 0
    %1883 = vmatprep.subr.bf16.mxu0 0
    %1884 = vmatpush2.bf16.msra.mxu0 0
    %1885 = vmatprep.subr.bf16.mxu0 0
    %1886 = vmatpush2.bf16.msra.mxu0 0
    %1887 = vmatprep.subr.bf16.mxu0 0
    %1888 = vmatpush2.bf16.msra.mxu0 0
    %1889 = vmatprep.subr.bf16.mxu0 0
    %1890 = vmatpush2.bf16.msra.mxu0 0
    %1891 = vmatprep.subr.bf16.mxu0 0
    %1892 = vmatpush2.bf16.msra.mxu0 0
    %1893 = vmatprep.subr.bf16.mxu0 0
    %1894 = vmatpush2.bf16.msra.mxu0 0
    %1895 = vmatprep.mubr.bf16.mxu0 0
    %1896 = vmatmul.mubr.bf16.gmra.mxu0 %v1653
    %v1897 = vpop.f32.mrf.mxu0
    %v1898 = vadd.f32 %v1695, %v1897
    %v1899 = vpop.f32.mrf.mxu0
    %v1900 = vadd.f32 %v1696, %v1899
    %v1901 = vpop.f32.mrf.mxu0
    %v1902 = vadd.f32 %v1699, %v1901
    %v1903 = vpop.f32.mrf.mxu0
    %v1904 = vadd.f32 %v1700, %v1903
    %1905 = vdwg.mxu0
    %1906 = vmatprep.subr.bf16.mxu0 %v1830
    %1907 = vmatpush1.bf16.msra.mxu0 %v1829
    %1908 = vmatprep.subr.bf16.mxu0 %v1826
    %1909 = vmatpush1.bf16.msra.mxu0 %v1825
    %1910 = vmatprep.subr.bf16.mxu0 %v1822
    %1911 = vmatpush1.bf16.msra.mxu0 %v1821
    %1912 = vmatprep.subr.bf16.mxu0 %v1818
    %1913 = vmatpush1.bf16.msra.mxu0 %v1817
    %1914 = vmatprep.subr.bf16.mxu0 %v1814
    %1915 = vmatpush1.bf16.msra.mxu0 %v1813
    %1916 = vmatprep.subr.bf16.mxu0 %v1810
    %1917 = vmatpush1.bf16.msra.mxu0 %v1809
    %1918 = vmatprep.subr.bf16.mxu0 %v1806
    %1919 = vmatpush1.bf16.msra.mxu0 %v1805
    %1920 = vmatprep.subr.bf16.mxu0 %v1802
    %1921 = vmatpush1.bf16.msra.mxu0 %v1801
    %1922 = vmatprep.subr.bf16.mxu0 0
    %1923 = vmatpush2.bf16.msra.mxu0 0
    %1924 = vmatprep.subr.bf16.mxu0 0
    %1925 = vmatpush2.bf16.msra.mxu0 0
    %1926 = vmatprep.subr.bf16.mxu0 0
    %1927 = vmatpush2.bf16.msra.mxu0 0
    %1928 = vmatprep.subr.bf16.mxu0 0
    %1929 = vmatpush2.bf16.msra.mxu0 0
    %1930 = vmatprep.subr.bf16.mxu0 0
    %1931 = vmatpush2.bf16.msra.mxu0 0
    %1932 = vmatprep.subr.bf16.mxu0 0
    %1933 = vmatpush2.bf16.msra.mxu0 0
    %1934 = vmatprep.subr.bf16.mxu0 0
    %1935 = vmatpush2.bf16.msra.mxu0 0
    %1936 = vmatprep.subr.bf16.mxu0 0
    %1937 = vmatpush2.bf16.msra.mxu0 0
    %1938 = vmatprep.mubr.bf16.mxu0 0
    %1939 = vmatmul.mubr.bf16.gmra.mxu0 %v1653
    %v1940 = vpop.f32.mrf.mxu0
    %v1941 = vadd.f32 %v1697, %v1940
    %v1942 = vpop.f32.mrf.mxu0
    %v1943 = vadd.f32 %v1698, %v1942
    %v1944 = vpop.f32.mrf.mxu0
    %v1945 = vadd.f32 %v1701, %v1944
    %v1946 = vpop.f32.mrf.mxu0
    %v1947 = vadd.f32 %v1702, %v1946
    %1948 = vdwg.mxu0
    %v1949 = vxor.u32 %v1898, 2147483648
    %v1950 = vxor.u32 %v1900, 2147483648
    %v1951 = vxor.u32 %v1941, 2147483648
    %v1952 = vxor.u32 %v1902, 2147483648
    %v1953 = vxor.u32 %v1904, 2147483648
    %v1954 = vxor.u32 %v1945, 2147483648
    %v1955 = vmul.f32 %v1949, 1.442695
    %v1956 = vpow.pop %v1955
    %v1957 = vmul.f32 %v1950, 1.442695
    %v1958 = vpow.pop %v1957
    %v1959 = vmul.f32 %v1951, 1.442695
    %v1960 = vpow.pop %v1959
    %v1961 = vmul.f32 %v1952, 1.442695
    %v1962 = vpow.pop %v1961
    %v1963 = vmul.f32 %v1953, 1.442695
    %v1964 = vpow.pop %v1963
    %v1965 = vmul.f32 %v1954, 1.442695
    %v1966 = vpow.pop %v1965
    %v1967 = vadd.f32 %v1956, 1.0
    %v1968 = vadd.f32 %v1958, 1.0
    %v1969 = vadd.f32 %v1960, 1.0
    %v1970 = vadd.f32 %v1962, 1.0
    %v1971 = vadd.f32 %v1964, 1.0
    %v1972 = vadd.f32 %v1966, 1.0
    %v1973 = vrcp.pop %v1967
    %v1974 = vmul.f32 1.0, %v1973
    %v1975 = vrcp.pop %v1968
    %v1976 = vmul.f32 1.0, %v1975
    %v1977 = vrcp.pop %v1969
    %v1978 = vmul.f32 1.0, %v1977
    %v1979 = vrcp.pop %v1970
    %v1980 = vmul.f32 1.0, %v1979
    %v1981 = vrcp.pop %v1971
    %v1982 = vmul.f32 1.0, %v1981
    %v1983 = vrcp.pop %v1972
    %v1984 = vmul.f32 1.0, %v1983
    %v1985 = vtanh.pop %v1943
    %v1986 = vtanh.pop %v1947
    %v1987 = vmul.f32 %v1976, %v1647
    %v1988 = vmul.f32 %v1982, %v1648
    %v1989 = vmul.f32 %v1974, %v1985
    %v1990 = vmul.f32 %v1980, %v1986
    %v1991 = vadd.f32 %v1987, %v1989
    %v1992 = vadd.f32 %v1988, %v1990
    %v1993 = vtanh.pop %v1991
    %v1994 = vtanh.pop %v1992
    %v1995 = vmul.f32 %v1978, %v1993
    %v1996 = vmul.f32 %v1984, %v1994
    %v1997 = vpack.c.bf16 %v1996, %v1995
    %v1999 = vunpack.c.l.b16 %v1997
    %v2000 = vunpack.c.h.b16 %v1997
    %v2001 = vpack.c.b16 %v1999, %v1999
    %v2002 = vpack.c.b16 %v2000, %v2000
    %2005 = vst [vmem:[#allocation3 + $0x18] sm:$0xf] %v2001
    %2006 = vst [vmem:[#allocation3 + $0x1c] sm:$0xf] %v2002
    %v2007 = vld [vmem:[%s9] sm:$0xff]
    %v2008 = vld [vmem:[%s9 + $0x8] sm:$0xff]
    %v2009 = vld [vmem:[%s9 + $0x10] sm:$0xff]
    %v2010 = vld [vmem:[%s9 + $0x18] sm:$0xff]
    %v2011 = vld [vmem:[%s9 + $0x20] sm:$0xff]
    %v2012 = vld [vmem:[%s9 + $0x28] sm:$0xff]
    %v2013 = vld [vmem:[%s9 + $0x30] sm:$0xff]
    %v2014 = vld [vmem:[%s9 + $0x38] sm:$0xff]
    %v2015 = vld [vmem:[%s9 + $0x40] sm:$0xff]
    %v2016 = vld [vmem:[%s9 + $0x48] sm:$0xff]
    %v2017 = vld [vmem:[%s9 + $0x50] sm:$0xff]
    %v2018 = vld [vmem:[%s9 + $0x58] sm:$0xff]
    %v2019 = vld [vmem:[%s9 + $0x60] sm:$0xff]
    %v2020 = vld [vmem:[%s9 + $0x68] sm:$0xff]
    %v2021 = vld [vmem:[%s9 + $0x70] sm:$0xff]
    %v2022 = vld [vmem:[%s9 + $0x78] sm:$0xff]
    %v2023 = vld [vmem:[%s9 + $0x80] sm:$0xff]
    %v2024 = vld [vmem:[%s9 + $0x88] sm:$0xff]
    %v2025 = vld [vmem:[%s9 + $0x90] sm:$0xff]
    %v2026 = vld [vmem:[%s9 + $0x98] sm:$0xff]
    %v2027 = vld [vmem:[%s9 + $0xa0] sm:$0xff]
    %v2028 = vld [vmem:[%s9 + $0xa8] sm:$0xff]
    %v2029 = vld [vmem:[%s9 + $0xb0] sm:$0xff]
    %v2030 = vld [vmem:[%s9 + $0xb8] sm:$0xff]
    %v2031 = vld [vmem:[%s9 + $0xc0] sm:$0xff]
    %v2032 = vld [vmem:[%s9 + $0xc8] sm:$0xff]
    %v2033 = vld [vmem:[%s9 + $0xd0] sm:$0xff]
    %v2034 = vld [vmem:[%s9 + $0xd8] sm:$0xff]
    %v2035 = vld [vmem:[%s9 + $0xe0] sm:$0xff]
    %v2036 = vld [vmem:[%s9 + $0xe8] sm:$0xff]
    %v2037 = vld [vmem:[%s9 + $0xf0] sm:$0xff]
    %v2038 = vld [vmem:[%s9 + $0xf8] sm:$0xff]
    %v2039 = vld [vmem:[#allocation2 + $0x100] sm:$0xff]
    %v2040 = vld [vmem:[#allocation2 + $0x108] sm:$0xff]
    %v2041 = vld [vmem:[#allocation2 + $0x110] sm:$0xff]
    %v2042 = vld [vmem:[#allocation2 + $0x118] sm:$0xff]
    %v2043 = vld [vmem:[#allocation2 + $0x120] sm:$0xff]
    %v2044 = vld [vmem:[#allocation2 + $0x128] sm:$0xff]
    %v2045 = vld [vmem:[#allocation2 + $0x130] sm:$0xff]
    %v2046 = vld [vmem:[#allocation2 + $0x138] sm:$0xff]
    %v2079 = vunpack.c.l.b16 %v2007
    %v2080 = vunpack.c.h.b16 %v2007
    %v2081 = vunpack.c.l.b16 %v2008
    %v2082 = vunpack.c.h.b16 %v2008
    %v2083 = vunpack.c.l.b16 %v2009
    %v2084 = vunpack.c.h.b16 %v2009
    %v2085 = vunpack.c.l.b16 %v2010
    %v2086 = vunpack.c.h.b16 %v2010
    %v2087 = vunpack.c.l.b16 %v2011
    %v2088 = vunpack.c.h.b16 %v2011
    %v2089 = vunpack.c.l.b16 %v2012
    %v2090 = vunpack.c.h.b16 %v2012
    %v2091 = vunpack.c.l.b16 %v2013
    %v2092 = vunpack.c.h.b16 %v2013
    %v2093 = vunpack.c.l.b16 %v2014
    %v2094 = vunpack.c.h.b16 %v2014
    %v2095 = vunpack.c.l.b16 %v2015
    %v2096 = vunpack.c.h.b16 %v2015
    %v2097 = vunpack.c.l.b16 %v2016
    %v2098 = vunpack.c.h.b16 %v2016
    %v2099 = vunpack.c.l.b16 %v2017
    %v2100 = vunpack.c.h.b16 %v2017
    %v2101 = vunpack.c.l.b16 %v2018
    %v2102 = vunpack.c.h.b16 %v2018
    %v2103 = vunpack.c.l.b16 %v2019
    %v2104 = vunpack.c.h.b16 %v2019
    %v2105 = vunpack.c.l.b16 %v2020
    %v2106 = vunpack.c.h.b16 %v2020
    %v2107 = vunpack.c.l.b16 %v2021
    %v2108 = vunpack.c.h.b16 %v2021
    %v2109 = vunpack.c.l.b16 %v2022
    %v2110 = vunpack.c.h.b16 %v2022
    %v2111 = vunpack.c.l.b16 %v2023
    %v2112 = vunpack.c.h.b16 %v2023
    %v2113 = vunpack.c.l.b16 %v2024
    %v2114 = vunpack.c.h.b16 %v2024
    %v2115 = vunpack.c.l.b16 %v2025
    %v2116 = vunpack.c.h.b16 %v2025
    %v2117 = vunpack.c.l.b16 %v2026
    %v2118 = vunpack.c.h.b16 %v2026
    %v2119 = vunpack.c.l.b16 %v2027
    %v2120 = vunpack.c.h.b16 %v2027
    %v2121 = vunpack.c.l.b16 %v2028
    %v2122 = vunpack.c.h.b16 %v2028
    %v2123 = vunpack.c.l.b16 %v2029
    %v2124 = vunpack.c.h.b16 %v2029
    %v2125 = vunpack.c.l.b16 %v2030
    %v2126 = vunpack.c.h.b16 %v2030
    %v2127 = vunpack.c.l.b16 %v2031
    %v2128 = vunpack.c.h.b16 %v2031
    %v2129 = vunpack.c.l.b16 %v2032
    %v2130 = vunpack.c.h.b16 %v2032
    %v2131 = vunpack.c.l.b16 %v2033
    %v2132 = vunpack.c.h.b16 %v2033
    %v2133 = vunpack.c.l.b16 %v2034
    %v2134 = vunpack.c.h.b16 %v2034
    %v2135 = vunpack.c.l.b16 %v2035
    %v2136 = vunpack.c.h.b16 %v2035
    %v2137 = vunpack.c.l.b16 %v2036
    %v2138 = vunpack.c.h.b16 %v2036
    %v2139 = vunpack.c.l.b16 %v2037
    %v2140 = vunpack.c.h.b16 %v2037
    %v2141 = vunpack.c.l.b16 %v2038
    %v2142 = vunpack.c.h.b16 %v2038
    %v2143 = vpack.c.b16 %v2083, %v2079
    %v2144 = vpack.c.b16 %v2084, %v2080
    %v2145 = vpack.c.b16 %v2085, %v2081
    %v2146 = vpack.c.b16 %v2086, %v2082
    %v2147 = vpack.c.b16 %v2091, %v2087
    %v2148 = vpack.c.b16 %v2092, %v2088
    %v2149 = vpack.c.b16 %v2093, %v2089
    %v2150 = vpack.c.b16 %v2094, %v2090
    %v2151 = vpack.c.b16 %v2099, %v2095
    %v2152 = vpack.c.b16 %v2100, %v2096
    %v2153 = vpack.c.b16 %v2101, %v2097
    %v2154 = vpack.c.b16 %v2102, %v2098
    %v2155 = vpack.c.b16 %v2107, %v2103
    %v2156 = vpack.c.b16 %v2108, %v2104
    %v2157 = vpack.c.b16 %v2109, %v2105
    %v2158 = vpack.c.b16 %v2110, %v2106
    %v2159 = vpack.c.b16 %v2115, %v2111
    %v2160 = vpack.c.b16 %v2116, %v2112
    %v2161 = vpack.c.b16 %v2117, %v2113
    %v2162 = vpack.c.b16 %v2118, %v2114
    %v2163 = vpack.c.b16 %v2123, %v2119
    %v2164 = vpack.c.b16 %v2124, %v2120
    %v2165 = vpack.c.b16 %v2125, %v2121
    %v2166 = vpack.c.b16 %v2126, %v2122
    %v2167 = vpack.c.b16 %v2131, %v2127
    %v2168 = vpack.c.b16 %v2132, %v2128
    %v2169 = vpack.c.b16 %v2133, %v2129
    %v2170 = vpack.c.b16 %v2134, %v2130
    %v2171 = vpack.c.b16 %v2139, %v2135
    %v2172 = vpack.c.b16 %v2140, %v2136
    %v2173 = vpack.c.b16 %v2141, %v2137
    %v2174 = vpack.c.b16 %v2142, %v2138
    %2207 = vmatprep.subr.bf16.mxu0 %v2172
    %2208 = vmatpush1.bf16.msra.mxu0 %v2171
    %2209 = vmatprep.subr.bf16.mxu0 %v2168
    %2210 = vmatpush1.bf16.msra.mxu0 %v2167
    %2211 = vmatprep.subr.bf16.mxu0 %v2164
    %2212 = vmatpush1.bf16.msra.mxu0 %v2163
    %2213 = vmatprep.subr.bf16.mxu0 %v2160
    %2214 = vmatpush1.bf16.msra.mxu0 %v2159
    %2215 = vmatprep.subr.bf16.mxu0 %v2156
    %2216 = vmatpush1.bf16.msra.mxu0 %v2155
    %2217 = vmatprep.subr.bf16.mxu0 %v2152
    %2218 = vmatpush1.bf16.msra.mxu0 %v2151
    %2219 = vmatprep.subr.bf16.mxu0 %v2148
    %2220 = vmatpush1.bf16.msra.mxu0 %v2147
    %2221 = vmatprep.subr.bf16.mxu0 %v2144
    %2222 = vmatpush1.bf16.msra.mxu0 %v2143
    %2223 = vmatprep.subr.bf16.mxu0 0
    %2224 = vmatpush2.bf16.msra.mxu0 0
    %2225 = vmatprep.subr.bf16.mxu0 0
    %2226 = vmatpush2.bf16.msra.mxu0 0
    %2227 = vmatprep.subr.bf16.mxu0 0
    %2228 = vmatpush2.bf16.msra.mxu0 0
    %2229 = vmatprep.subr.bf16.mxu0 0
    %2230 = vmatpush2.bf16.msra.mxu0 0
    %2231 = vmatprep.subr.bf16.mxu0 0
    %2232 = vmatpush2.bf16.msra.mxu0 0
    %2233 = vmatprep.subr.bf16.mxu0 0
    %2234 = vmatpush2.bf16.msra.mxu0 0
    %2235 = vmatprep.subr.bf16.mxu0 0
    %2236 = vmatpush2.bf16.msra.mxu0 0
    %2237 = vmatprep.subr.bf16.mxu0 0
    %2238 = vmatpush2.bf16.msra.mxu0 0
    %2239 = vmatprep.mubr.bf16.mxu0 0
    %2240 = vmatmul.mubr.bf16.gmra.mxu0 %v1997
    %v2241 = vpop.f32.mrf.mxu0
    %v2242 = vadd.f32 %v2039, %v2241
    %v2243 = vpop.f32.mrf.mxu0
    %v2244 = vadd.f32 %v2040, %v2243
    %v2245 = vpop.f32.mrf.mxu0
    %v2246 = vadd.f32 %v2043, %v2245
    %v2247 = vpop.f32.mrf.mxu0
    %v2248 = vadd.f32 %v2044, %v2247
    %2249 = vdwg.mxu0
    %2250 = vmatprep.subr.bf16.mxu0 %v2174
    %2251 = vmatpush1.bf16.msra.mxu0 %v2173
    %2252 = vmatprep.subr.bf16.mxu0 %v2170
    %2253 = vmatpush1.bf16.msra.mxu0 %v2169
    %2254 = vmatprep.subr.bf16.mxu0 %v2166
    %2255 = vmatpush1.bf16.msra.mxu0 %v2165
    %2256 = vmatprep.subr.bf16.mxu0 %v2162
    %2257 = vmatpush1.bf16.msra.mxu0 %v2161
    %2258 = vmatprep.subr.bf16.mxu0 %v2158
    %2259 = vmatpush1.bf16.msra.mxu0 %v2157
    %2260 = vmatprep.subr.bf16.mxu0 %v2154
    %2261 = vmatpush1.bf16.msra.mxu0 %v2153
    %2262 = vmatprep.subr.bf16.mxu0 %v2150
    %2263 = vmatpush1.bf16.msra.mxu0 %v2149
    %2264 = vmatprep.subr.bf16.mxu0 %v2146
    %2265 = vmatpush1.bf16.msra.mxu0 %v2145
    %2266 = vmatprep.subr.bf16.mxu0 0
    %2267 = vmatpush2.bf16.msra.mxu0 0
    %2268 = vmatprep.subr.bf16.mxu0 0
    %2269 = vmatpush2.bf16.msra.mxu0 0
    %2270 = vmatprep.subr.bf16.mxu0 0
    %2271 = vmatpush2.bf16.msra.mxu0 0
    %2272 = vmatprep.subr.bf16.mxu0 0
    %2273 = vmatpush2.bf16.msra.mxu0 0
    %2274 = vmatprep.subr.bf16.mxu0 0
    %2275 = vmatpush2.bf16.msra.mxu0 0
    %2276 = vmatprep.subr.bf16.mxu0 0
    %2277 = vmatpush2.bf16.msra.mxu0 0
    %2278 = vmatprep.subr.bf16.mxu0 0
    %2279 = vmatpush2.bf16.msra.mxu0 0
    %2280 = vmatprep.subr.bf16.mxu0 0
    %2281 = vmatpush2.bf16.msra.mxu0 0
    %2282 = vmatprep.mubr.bf16.mxu0 0
    %2283 = vmatmul.mubr.bf16.gmra.mxu0 %v1997
    %v2284 = vpop.f32.mrf.mxu0
    %v2285 = vadd.f32 %v2041, %v2284
    %v2286 = vpop.f32.mrf.mxu0
    %v2287 = vadd.f32 %v2042, %v2286
    %v2288 = vpop.f32.mrf.mxu0
    %v2289 = vadd.f32 %v2045, %v2288
    %v2290 = vpop.f32.mrf.mxu0
    %v2291 = vadd.f32 %v2046, %v2290
    %2292 = vdwg.mxu0
    %v2293 = vxor.u32 %v2242, 2147483648
    %v2294 = vxor.u32 %v2244, 2147483648
    %v2295 = vxor.u32 %v2285, 2147483648
    %v2296 = vxor.u32 %v2246, 2147483648
    %v2297 = vxor.u32 %v2248, 2147483648
    %v2298 = vxor.u32 %v2289, 2147483648
    %v2299 = vmul.f32 %v2293, 1.442695
    %v2300 = vpow.pop %v2299
    %v2301 = vmul.f32 %v2294, 1.442695
    %v2302 = vpow.pop %v2301
    %v2303 = vmul.f32 %v2295, 1.442695
    %v2304 = vpow.pop %v2303
    %v2305 = vmul.f32 %v2296, 1.442695
    %v2306 = vpow.pop %v2305
    %v2307 = vmul.f32 %v2297, 1.442695
    %v2308 = vpow.pop %v2307
    %v2309 = vmul.f32 %v2298, 1.442695
    %v2310 = vpow.pop %v2309
    %v2311 = vadd.f32 %v2300, 1.0
    %v2312 = vadd.f32 %v2302, 1.0
    %v2313 = vadd.f32 %v2304, 1.0
    %v2314 = vadd.f32 %v2306, 1.0
    %v2315 = vadd.f32 %v2308, 1.0
    %v2316 = vadd.f32 %v2310, 1.0
    %v2317 = vrcp.pop %v2311
    %v2318 = vmul.f32 1.0, %v2317
    %v2319 = vrcp.pop %v2312
    %v2320 = vmul.f32 1.0, %v2319
    %v2321 = vrcp.pop %v2313
    %v2322 = vmul.f32 1.0, %v2321
    %v2323 = vrcp.pop %v2314
    %v2324 = vmul.f32 1.0, %v2323
    %v2325 = vrcp.pop %v2315
    %v2326 = vmul.f32 1.0, %v2325
    %v2327 = vrcp.pop %v2316
    %v2328 = vmul.f32 1.0, %v2327
    %v2329 = vtanh.pop %v2287
    %v2330 = vtanh.pop %v2291
    %v2331 = vmul.f32 %v2320, %v1991
    %v2332 = vmul.f32 %v2326, %v1992
    %v2333 = vmul.f32 %v2318, %v2329
    %v2334 = vmul.f32 %v2324, %v2330
    %v2335 = vadd.f32 %v2331, %v2333
    %v2336 = vadd.f32 %v2332, %v2334
    %v2337 = vtanh.pop %v2335
    %v2338 = vtanh.pop %v2336
    %v2339 = vmul.f32 %v2322, %v2337
    %v2340 = vmul.f32 %v2328, %v2338
    %v2341 = vpack.c.bf16 %v2340, %v2339
    %v2343 = vunpack.c.l.b16 %v2341
    %v2344 = vunpack.c.h.b16 %v2341
    %v2345 = vpack.c.b16 %v2343, %v2343
    %v2346 = vpack.c.b16 %v2344, %v2344
    %2349 = vst [vmem:[#allocation3 + $0x20] sm:$0xf] %v2345
    %2350 = vst [vmem:[#allocation3 + $0x24] sm:$0xf] %v2346
    %v2351 = vld [vmem:[%s9] sm:$0xff]
    %v2352 = vld [vmem:[%s9 + $0x8] sm:$0xff]
    %v2353 = vld [vmem:[%s9 + $0x10] sm:$0xff]
    %v2354 = vld [vmem:[%s9 + $0x18] sm:$0xff]
    %v2355 = vld [vmem:[%s9 + $0x20] sm:$0xff]
    %v2356 = vld [vmem:[%s9 + $0x28] sm:$0xff]
    %v2357 = vld [vmem:[%s9 + $0x30] sm:$0xff]
    %v2358 = vld [vmem:[%s9 + $0x38] sm:$0xff]
    %v2359 = vld [vmem:[%s9 + $0x40] sm:$0xff]
    %v2360 = vld [vmem:[%s9 + $0x48] sm:$0xff]
    %v2361 = vld [vmem:[%s9 + $0x50] sm:$0xff]
    %v2362 = vld [vmem:[%s9 + $0x58] sm:$0xff]
    %v2363 = vld [vmem:[%s9 + $0x60] sm:$0xff]
    %v2364 = vld [vmem:[%s9 + $0x68] sm:$0xff]
    %v2365 = vld [vmem:[%s9 + $0x70] sm:$0xff]
    %v2366 = vld [vmem:[%s9 + $0x78] sm:$0xff]
    %v2367 = vld [vmem:[%s9 + $0x80] sm:$0xff]
    %v2368 = vld [vmem:[%s9 + $0x88] sm:$0xff]
    %v2369 = vld [vmem:[%s9 + $0x90] sm:$0xff]
    %v2370 = vld [vmem:[%s9 + $0x98] sm:$0xff]
    %v2371 = vld [vmem:[%s9 + $0xa0] sm:$0xff]
    %v2372 = vld [vmem:[%s9 + $0xa8] sm:$0xff]
    %v2373 = vld [vmem:[%s9 + $0xb0] sm:$0xff]
    %v2374 = vld [vmem:[%s9 + $0xb8] sm:$0xff]
    %v2375 = vld [vmem:[%s9 + $0xc0] sm:$0xff]
    %v2376 = vld [vmem:[%s9 + $0xc8] sm:$0xff]
    %v2377 = vld [vmem:[%s9 + $0xd0] sm:$0xff]
    %v2378 = vld [vmem:[%s9 + $0xd8] sm:$0xff]
    %v2379 = vld [vmem:[%s9 + $0xe0] sm:$0xff]
    %v2380 = vld [vmem:[%s9 + $0xe8] sm:$0xff]
    %v2381 = vld [vmem:[%s9 + $0xf0] sm:$0xff]
    %v2382 = vld [vmem:[%s9 + $0xf8] sm:$0xff]
    %v2383 = vld [vmem:[#allocation2 + $0x140] sm:$0xff]
    %v2384 = vld [vmem:[#allocation2 + $0x148] sm:$0xff]
    %v2385 = vld [vmem:[#allocation2 + $0x150] sm:$0xff]
    %v2386 = vld [vmem:[#allocation2 + $0x158] sm:$0xff]
    %v2387 = vld [vmem:[#allocation2 + $0x160] sm:$0xff]
    %v2388 = vld [vmem:[#allocation2 + $0x168] sm:$0xff]
    %v2389 = vld [vmem:[#allocation2 + $0x170] sm:$0xff]
    %v2390 = vld [vmem:[#allocation2 + $0x178] sm:$0xff]
    %v2423 = vunpack.c.l.b16 %v2351
    %v2424 = vunpack.c.h.b16 %v2351
    %v2425 = vunpack.c.l.b16 %v2352
    %v2426 = vunpack.c.h.b16 %v2352
    %v2427 = vunpack.c.l.b16 %v2353
    %v2428 = vunpack.c.h.b16 %v2353
    %v2429 = vunpack.c.l.b16 %v2354
    %v2430 = vunpack.c.h.b16 %v2354
    %v2431 = vunpack.c.l.b16 %v2355
    %v2432 = vunpack.c.h.b16 %v2355
    %v2433 = vunpack.c.l.b16 %v2356
    %v2434 = vunpack.c.h.b16 %v2356
    %v2435 = vunpack.c.l.b16 %v2357
    %v2436 = vunpack.c.h.b16 %v2357
    %v2437 = vunpack.c.l.b16 %v2358
    %v2438 = vunpack.c.h.b16 %v2358
    %v2439 = vunpack.c.l.b16 %v2359
    %v2440 = vunpack.c.h.b16 %v2359
    %v2441 = vunpack.c.l.b16 %v2360
    %v2442 = vunpack.c.h.b16 %v2360
    %v2443 = vunpack.c.l.b16 %v2361
    %v2444 = vunpack.c.h.b16 %v2361
    %v2445 = vunpack.c.l.b16 %v2362
    %v2446 = vunpack.c.h.b16 %v2362
    %v2447 = vunpack.c.l.b16 %v2363
    %v2448 = vunpack.c.h.b16 %v2363
    %v2449 = vunpack.c.l.b16 %v2364
    %v2450 = vunpack.c.h.b16 %v2364
    %v2451 = vunpack.c.l.b16 %v2365
    %v2452 = vunpack.c.h.b16 %v2365
    %v2453 = vunpack.c.l.b16 %v2366
    %v2454 = vunpack.c.h.b16 %v2366
    %v2455 = vunpack.c.l.b16 %v2367
    %v2456 = vunpack.c.h.b16 %v2367
    %v2457 = vunpack.c.l.b16 %v2368
    %v2458 = vunpack.c.h.b16 %v2368
    %v2459 = vunpack.c.l.b16 %v2369
    %v2460 = vunpack.c.h.b16 %v2369
    %v2461 = vunpack.c.l.b16 %v2370
    %v2462 = vunpack.c.h.b16 %v2370
    %v2463 = vunpack.c.l.b16 %v2371
    %v2464 = vunpack.c.h.b16 %v2371
    %v2465 = vunpack.c.l.b16 %v2372
    %v2466 = vunpack.c.h.b16 %v2372
    %v2467 = vunpack.c.l.b16 %v2373
    %v2468 = vunpack.c.h.b16 %v2373
    %v2469 = vunpack.c.l.b16 %v2374
    %v2470 = vunpack.c.h.b16 %v2374
    %v2471 = vunpack.c.l.b16 %v2375
    %v2472 = vunpack.c.h.b16 %v2375
    %v2473 = vunpack.c.l.b16 %v2376
    %v2474 = vunpack.c.h.b16 %v2376
    %v2475 = vunpack.c.l.b16 %v2377
    %v2476 = vunpack.c.h.b16 %v2377
    %v2477 = vunpack.c.l.b16 %v2378
    %v2478 = vunpack.c.h.b16 %v2378
    %v2479 = vunpack.c.l.b16 %v2379
    %v2480 = vunpack.c.h.b16 %v2379
    %v2481 = vunpack.c.l.b16 %v2380
    %v2482 = vunpack.c.h.b16 %v2380
    %v2483 = vunpack.c.l.b16 %v2381
    %v2484 = vunpack.c.h.b16 %v2381
    %v2485 = vunpack.c.l.b16 %v2382
    %v2486 = vunpack.c.h.b16 %v2382
    %v2487 = vpack.c.b16 %v2427, %v2423
    %v2488 = vpack.c.b16 %v2428, %v2424
    %v2489 = vpack.c.b16 %v2429, %v2425
    %v2490 = vpack.c.b16 %v2430, %v2426
    %v2491 = vpack.c.b16 %v2435, %v2431
    %v2492 = vpack.c.b16 %v2436, %v2432
    %v2493 = vpack.c.b16 %v2437, %v2433
    %v2494 = vpack.c.b16 %v2438, %v2434
    %v2495 = vpack.c.b16 %v2443, %v2439
    %v2496 = vpack.c.b16 %v2444, %v2440
    %v2497 = vpack.c.b16 %v2445, %v2441
    %v2498 = vpack.c.b16 %v2446, %v2442
    %v2499 = vpack.c.b16 %v2451, %v2447
    %v2500 = vpack.c.b16 %v2452, %v2448
    %v2501 = vpack.c.b16 %v2453, %v2449
    %v2502 = vpack.c.b16 %v2454, %v2450
    %v2503 = vpack.c.b16 %v2459, %v2455
    %v2504 = vpack.c.b16 %v2460, %v2456
    %v2505 = vpack.c.b16 %v2461, %v2457
    %v2506 = vpack.c.b16 %v2462, %v2458
    %v2507 = vpack.c.b16 %v2467, %v2463
    %v2508 = vpack.c.b16 %v2468, %v2464
    %v2509 = vpack.c.b16 %v2469, %v2465
    %v2510 = vpack.c.b16 %v2470, %v2466
    %v2511 = vpack.c.b16 %v2475, %v2471
    %v2512 = vpack.c.b16 %v2476, %v2472
    %v2513 = vpack.c.b16 %v2477, %v2473
    %v2514 = vpack.c.b16 %v2478, %v2474
    %v2515 = vpack.c.b16 %v2483, %v2479
    %v2516 = vpack.c.b16 %v2484, %v2480
    %v2517 = vpack.c.b16 %v2485, %v2481
    %v2518 = vpack.c.b16 %v2486, %v2482
    %2551 = vmatprep.subr.bf16.mxu0 %v2516
    %2552 = vmatpush1.bf16.msra.mxu0 %v2515
    %2553 = vmatprep.subr.bf16.mxu0 %v2512
    %2554 = vmatpush1.bf16.msra.mxu0 %v2511
    %2555 = vmatprep.subr.bf16.mxu0 %v2508
    %2556 = vmatpush1.bf16.msra.mxu0 %v2507
    %2557 = vmatprep.subr.bf16.mxu0 %v2504
    %2558 = vmatpush1.bf16.msra.mxu0 %v2503
    %2559 = vmatprep.subr.bf16.mxu0 %v2500
    %2560 = vmatpush1.bf16.msra.mxu0 %v2499
    %2561 = vmatprep.subr.bf16.mxu0 %v2496
    %2562 = vmatpush1.bf16.msra.mxu0 %v2495
    %2563 = vmatprep.subr.bf16.mxu0 %v2492
    %2564 = vmatpush1.bf16.msra.mxu0 %v2491
    %2565 = vmatprep.subr.bf16.mxu0 %v2488
    %2566 = vmatpush1.bf16.msra.mxu0 %v2487
    %2567 = vmatprep.subr.bf16.mxu0 0
    %2568 = vmatpush2.bf16.msra.mxu0 0
    %2569 = vmatprep.subr.bf16.mxu0 0
    %2570 = vmatpush2.bf16.msra.mxu0 0
    %2571 = vmatprep.subr.bf16.mxu0 0
    %2572 = vmatpush2.bf16.msra.mxu0 0
    %2573 = vmatprep.subr.bf16.mxu0 0
    %2574 = vmatpush2.bf16.msra.mxu0 0
    %2575 = vmatprep.subr.bf16.mxu0 0
    %2576 = vmatpush2.bf16.msra.mxu0 0
    %2577 = vmatprep.subr.bf16.mxu0 0
    %2578 = vmatpush2.bf16.msra.mxu0 0
    %2579 = vmatprep.subr.bf16.mxu0 0
    %2580 = vmatpush2.bf16.msra.mxu0 0
    %2581 = vmatprep.subr.bf16.mxu0 0
    %2582 = vmatpush2.bf16.msra.mxu0 0
    %2583 = vmatprep.mubr.bf16.mxu0 0
    %2584 = vmatmul.mubr.bf16.gmra.mxu0 %v2341
    %v2585 = vpop.f32.mrf.mxu0
    %v2586 = vadd.f32 %v2383, %v2585
    %v2587 = vpop.f32.mrf.mxu0
    %v2588 = vadd.f32 %v2384, %v2587
    %v2589 = vpop.f32.mrf.mxu0
    %v2590 = vadd.f32 %v2387, %v2589
    %v2591 = vpop.f32.mrf.mxu0
    %v2592 = vadd.f32 %v2388, %v2591
    %2593 = vdwg.mxu0
    %2594 = vmatprep.subr.bf16.mxu0 %v2518
    %2595 = vmatpush1.bf16.msra.mxu0 %v2517
    %2596 = vmatprep.subr.bf16.mxu0 %v2514
    %2597 = vmatpush1.bf16.msra.mxu0 %v2513
    %2598 = vmatprep.subr.bf16.mxu0 %v2510
    %2599 = vmatpush1.bf16.msra.mxu0 %v2509
    %2600 = vmatprep.subr.bf16.mxu0 %v2506
    %2601 = vmatpush1.bf16.msra.mxu0 %v2505
    %2602 = vmatprep.subr.bf16.mxu0 %v2502
    %2603 = vmatpush1.bf16.msra.mxu0 %v2501
    %2604 = vmatprep.subr.bf16.mxu0 %v2498
    %2605 = vmatpush1.bf16.msra.mxu0 %v2497
    %2606 = vmatprep.subr.bf16.mxu0 %v2494
    %2607 = vmatpush1.bf16.msra.mxu0 %v2493
    %2608 = vmatprep.subr.bf16.mxu0 %v2490
    %2609 = vmatpush1.bf16.msra.mxu0 %v2489
    %2610 = vmatprep.subr.bf16.mxu0 0
    %2611 = vmatpush2.bf16.msra.mxu0 0
    %2612 = vmatprep.subr.bf16.mxu0 0
    %2613 = vmatpush2.bf16.msra.mxu0 0
    %2614 = vmatprep.subr.bf16.mxu0 0
    %2615 = vmatpush2.bf16.msra.mxu0 0
    %2616 = vmatprep.subr.bf16.mxu0 0
    %2617 = vmatpush2.bf16.msra.mxu0 0
    %2618 = vmatprep.subr.bf16.mxu0 0
    %2619 = vmatpush2.bf16.msra.mxu0 0
    %2620 = vmatprep.subr.bf16.mxu0 0
    %2621 = vmatpush2.bf16.msra.mxu0 0
    %2622 = vmatprep.subr.bf16.mxu0 0
    %2623 = vmatpush2.bf16.msra.mxu0 0
    %2624 = vmatprep.subr.bf16.mxu0 0
    %2625 = vmatpush2.bf16.msra.mxu0 0
    %2626 = vmatprep.mubr.bf16.mxu0 0
    %2627 = vmatmul.mubr.bf16.gmra.mxu0 %v2341
    %v2628 = vpop.f32.mrf.mxu0
    %v2629 = vadd.f32 %v2385, %v2628
    %v2630 = vpop.f32.mrf.mxu0
    %v2631 = vadd.f32 %v2386, %v2630
    %v2632 = vpop.f32.mrf.mxu0
    %v2633 = vadd.f32 %v2389, %v2632
    %v2634 = vpop.f32.mrf.mxu0
    %v2635 = vadd.f32 %v2390, %v2634
    %2636 = vdwg.mxu0
    %v2637 = vxor.u32 %v2586, 2147483648
    %v2638 = vxor.u32 %v2588, 2147483648
    %v2639 = vxor.u32 %v2629, 2147483648
    %v2640 = vxor.u32 %v2590, 2147483648
    %v2641 = vxor.u32 %v2592, 2147483648
    %v2642 = vxor.u32 %v2633, 2147483648
    %v2643 = vmul.f32 %v2637, 1.442695
    %v2644 = vpow.pop %v2643
    %v2645 = vmul.f32 %v2638, 1.442695
    %v2646 = vpow.pop %v2645
    %v2647 = vmul.f32 %v2639, 1.442695
    %v2648 = vpow.pop %v2647
    %v2649 = vmul.f32 %v2640, 1.442695
    %v2650 = vpow.pop %v2649
    %v2651 = vmul.f32 %v2641, 1.442695
    %v2652 = vpow.pop %v2651
    %v2653 = vmul.f32 %v2642, 1.442695
    %v2654 = vpow.pop %v2653
    %v2655 = vadd.f32 %v2644, 1.0
    %v2656 = vadd.f32 %v2646, 1.0
    %v2657 = vadd.f32 %v2648, 1.0
    %v2658 = vadd.f32 %v2650, 1.0
    %v2659 = vadd.f32 %v2652, 1.0
    %v2660 = vadd.f32 %v2654, 1.0
    %v2661 = vrcp.pop %v2655
    %v2662 = vmul.f32 1.0, %v2661
    %v2663 = vrcp.pop %v2656
    %v2664 = vmul.f32 1.0, %v2663
    %v2665 = vrcp.pop %v2657
    %v2666 = vmul.f32 1.0, %v2665
    %v2667 = vrcp.pop %v2658
    %v2668 = vmul.f32 1.0, %v2667
    %v2669 = vrcp.pop %v2659
    %v2670 = vmul.f32 1.0, %v2669
    %v2671 = vrcp.pop %v2660
    %v2672 = vmul.f32 1.0, %v2671
    %v2673 = vtanh.pop %v2631
    %v2674 = vtanh.pop %v2635
    %v2675 = vmul.f32 %v2664, %v2335
    %v2676 = vmul.f32 %v2670, %v2336
    %v2677 = vmul.f32 %v2662, %v2673
    %v2678 = vmul.f32 %v2668, %v2674
    %v2679 = vadd.f32 %v2675, %v2677
    %v2680 = vadd.f32 %v2676, %v2678
    %v2681 = vtanh.pop %v2679
    %v2682 = vtanh.pop %v2680
    %v2683 = vmul.f32 %v2666, %v2681
    %v2684 = vmul.f32 %v2672, %v2682
    %v2685 = vpack.c.bf16 %v2684, %v2683
    %v2687 = vunpack.c.l.b16 %v2685
    %v2688 = vunpack.c.h.b16 %v2685
    %v2689 = vpack.c.b16 %v2687, %v2687
    %v2690 = vpack.c.b16 %v2688, %v2688
    %2693 = vst [vmem:[#allocation3 + $0x28] sm:$0xf] %v2689
    %2694 = vst [vmem:[#allocation3 + $0x2c] sm:$0xf] %v2690
    %v2695 = vld [vmem:[%s9] sm:$0xff]
    %v2696 = vld [vmem:[%s9 + $0x8] sm:$0xff]
    %v2697 = vld [vmem:[%s9 + $0x10] sm:$0xff]
    %v2698 = vld [vmem:[%s9 + $0x18] sm:$0xff]
    %v2699 = vld [vmem:[%s9 + $0x20] sm:$0xff]
    %v2700 = vld [vmem:[%s9 + $0x28] sm:$0xff]
    %v2701 = vld [vmem:[%s9 + $0x30] sm:$0xff]
    %v2702 = vld [vmem:[%s9 + $0x38] sm:$0xff]
    %v2703 = vld [vmem:[%s9 + $0x40] sm:$0xff]
    %v2704 = vld [vmem:[%s9 + $0x48] sm:$0xff]
    %v2705 = vld [vmem:[%s9 + $0x50] sm:$0xff]
    %v2706 = vld [vmem:[%s9 + $0x58] sm:$0xff]
    %v2707 = vld [vmem:[%s9 + $0x60] sm:$0xff]
    %v2708 = vld [vmem:[%s9 + $0x68] sm:$0xff]
    %v2709 = vld [vmem:[%s9 + $0x70] sm:$0xff]
    %v2710 = vld [vmem:[%s9 + $0x78] sm:$0xff]
    %v2711 = vld [vmem:[%s9 + $0x80] sm:$0xff]
    %v2712 = vld [vmem:[%s9 + $0x88] sm:$0xff]
    %v2713 = vld [vmem:[%s9 + $0x90] sm:$0xff]
    %v2714 = vld [vmem:[%s9 + $0x98] sm:$0xff]
    %v2715 = vld [vmem:[%s9 + $0xa0] sm:$0xff]
    %v2716 = vld [vmem:[%s9 + $0xa8] sm:$0xff]
    %v2717 = vld [vmem:[%s9 + $0xb0] sm:$0xff]
    %v2718 = vld [vmem:[%s9 + $0xb8] sm:$0xff]
    %v2719 = vld [vmem:[%s9 + $0xc0] sm:$0xff]
    %v2720 = vld [vmem:[%s9 + $0xc8] sm:$0xff]
    %v2721 = vld [vmem:[%s9 + $0xd0] sm:$0xff]
    %v2722 = vld [vmem:[%s9 + $0xd8] sm:$0xff]
    %v2723 = vld [vmem:[%s9 + $0xe0] sm:$0xff]
    %v2724 = vld [vmem:[%s9 + $0xe8] sm:$0xff]
    %v2725 = vld [vmem:[%s9 + $0xf0] sm:$0xff]
    %v2726 = vld [vmem:[%s9 + $0xf8] sm:$0xff]
    %v2727 = vld [vmem:[#allocation2 + $0x180] sm:$0xff]
    %v2728 = vld [vmem:[#allocation2 + $0x188] sm:$0xff]
    %v2729 = vld [vmem:[#allocation2 + $0x190] sm:$0xff]
    %v2730 = vld [vmem:[#allocation2 + $0x198] sm:$0xff]
    %v2731 = vld [vmem:[#allocation2 + $0x1a0] sm:$0xff]
    %v2732 = vld [vmem:[#allocation2 + $0x1a8] sm:$0xff]
    %v2733 = vld [vmem:[#allocation2 + $0x1b0] sm:$0xff]
    %v2734 = vld [vmem:[#allocation2 + $0x1b8] sm:$0xff]
    %v2767 = vunpack.c.l.b16 %v2695
    %v2768 = vunpack.c.h.b16 %v2695
    %v2769 = vunpack.c.l.b16 %v2696
    %v2770 = vunpack.c.h.b16 %v2696
    %v2771 = vunpack.c.l.b16 %v2697
    %v2772 = vunpack.c.h.b16 %v2697
    %v2773 = vunpack.c.l.b16 %v2698
    %v2774 = vunpack.c.h.b16 %v2698
    %v2775 = vunpack.c.l.b16 %v2699
    %v2776 = vunpack.c.h.b16 %v2699
    %v2777 = vunpack.c.l.b16 %v2700
    %v2778 = vunpack.c.h.b16 %v2700
    %v2779 = vunpack.c.l.b16 %v2701
    %v2780 = vunpack.c.h.b16 %v2701
    %v2781 = vunpack.c.l.b16 %v2702
    %v2782 = vunpack.c.h.b16 %v2702
    %v2783 = vunpack.c.l.b16 %v2703
    %v2784 = vunpack.c.h.b16 %v2703
    %v2785 = vunpack.c.l.b16 %v2704
    %v2786 = vunpack.c.h.b16 %v2704
    %v2787 = vunpack.c.l.b16 %v2705
    %v2788 = vunpack.c.h.b16 %v2705
    %v2789 = vunpack.c.l.b16 %v2706
    %v2790 = vunpack.c.h.b16 %v2706
    %v2791 = vunpack.c.l.b16 %v2707
    %v2792 = vunpack.c.h.b16 %v2707
    %v2793 = vunpack.c.l.b16 %v2708
    %v2794 = vunpack.c.h.b16 %v2708
    %v2795 = vunpack.c.l.b16 %v2709
    %v2796 = vunpack.c.h.b16 %v2709
    %v2797 = vunpack.c.l.b16 %v2710
    %v2798 = vunpack.c.h.b16 %v2710
    %v2799 = vunpack.c.l.b16 %v2711
    %v2800 = vunpack.c.h.b16 %v2711
    %v2801 = vunpack.c.l.b16 %v2712
    %v2802 = vunpack.c.h.b16 %v2712
    %v2803 = vunpack.c.l.b16 %v2713
    %v2804 = vunpack.c.h.b16 %v2713
    %v2805 = vunpack.c.l.b16 %v2714
    %v2806 = vunpack.c.h.b16 %v2714
    %v2807 = vunpack.c.l.b16 %v2715
    %v2808 = vunpack.c.h.b16 %v2715
    %v2809 = vunpack.c.l.b16 %v2716
    %v2810 = vunpack.c.h.b16 %v2716
    %v2811 = vunpack.c.l.b16 %v2717
    %v2812 = vunpack.c.h.b16 %v2717
    %v2813 = vunpack.c.l.b16 %v2718
    %v2814 = vunpack.c.h.b16 %v2718
    %v2815 = vunpack.c.l.b16 %v2719
    %v2816 = vunpack.c.h.b16 %v2719
    %v2817 = vunpack.c.l.b16 %v2720
    %v2818 = vunpack.c.h.b16 %v2720
    %v2819 = vunpack.c.l.b16 %v2721
    %v2820 = vunpack.c.h.b16 %v2721
    %v2821 = vunpack.c.l.b16 %v2722
    %v2822 = vunpack.c.h.b16 %v2722
    %v2823 = vunpack.c.l.b16 %v2723
    %v2824 = vunpack.c.h.b16 %v2723
    %v2825 = vunpack.c.l.b16 %v2724
    %v2826 = vunpack.c.h.b16 %v2724
    %v2827 = vunpack.c.l.b16 %v2725
    %v2828 = vunpack.c.h.b16 %v2725
    %v2829 = vunpack.c.l.b16 %v2726
    %v2830 = vunpack.c.h.b16 %v2726
    %v2831 = vpack.c.b16 %v2771, %v2767
    %v2832 = vpack.c.b16 %v2772, %v2768
    %v2833 = vpack.c.b16 %v2773, %v2769
    %v2834 = vpack.c.b16 %v2774, %v2770
    %v2835 = vpack.c.b16 %v2779, %v2775
    %v2836 = vpack.c.b16 %v2780, %v2776
    %v2837 = vpack.c.b16 %v2781, %v2777
    %v2838 = vpack.c.b16 %v2782, %v2778
    %v2839 = vpack.c.b16 %v2787, %v2783
    %v2840 = vpack.c.b16 %v2788, %v2784
    %v2841 = vpack.c.b16 %v2789, %v2785
    %v2842 = vpack.c.b16 %v2790, %v2786
    %v2843 = vpack.c.b16 %v2795, %v2791
    %v2844 = vpack.c.b16 %v2796, %v2792
    %v2845 = vpack.c.b16 %v2797, %v2793
    %v2846 = vpack.c.b16 %v2798, %v2794
    %v2847 = vpack.c.b16 %v2803, %v2799
    %v2848 = vpack.c.b16 %v2804, %v2800
    %v2849 = vpack.c.b16 %v2805, %v2801
    %v2850 = vpack.c.b16 %v2806, %v2802
    %v2851 = vpack.c.b16 %v2811, %v2807
    %v2852 = vpack.c.b16 %v2812, %v2808
    %v2853 = vpack.c.b16 %v2813, %v2809
    %v2854 = vpack.c.b16 %v2814, %v2810
    %v2855 = vpack.c.b16 %v2819, %v2815
    %v2856 = vpack.c.b16 %v2820, %v2816
    %v2857 = vpack.c.b16 %v2821, %v2817
    %v2858 = vpack.c.b16 %v2822, %v2818
    %v2859 = vpack.c.b16 %v2827, %v2823
    %v2860 = vpack.c.b16 %v2828, %v2824
    %v2861 = vpack.c.b16 %v2829, %v2825
    %v2862 = vpack.c.b16 %v2830, %v2826
    %2895 = vmatprep.subr.bf16.mxu0 %v2860
    %2896 = vmatpush1.bf16.msra.mxu0 %v2859
    %2897 = vmatprep.subr.bf16.mxu0 %v2856
    %2898 = vmatpush1.bf16.msra.mxu0 %v2855
    %2899 = vmatprep.subr.bf16.mxu0 %v2852
    %2900 = vmatpush1.bf16.msra.mxu0 %v2851
    %2901 = vmatprep.subr.bf16.mxu0 %v2848
    %2902 = vmatpush1.bf16.msra.mxu0 %v2847
    %2903 = vmatprep.subr.bf16.mxu0 %v2844
    %2904 = vmatpush1.bf16.msra.mxu0 %v2843
    %2905 = vmatprep.subr.bf16.mxu0 %v2840
    %2906 = vmatpush1.bf16.msra.mxu0 %v2839
    %2907 = vmatprep.subr.bf16.mxu0 %v2836
    %2908 = vmatpush1.bf16.msra.mxu0 %v2835
    %2909 = vmatprep.subr.bf16.mxu0 %v2832
    %2910 = vmatpush1.bf16.msra.mxu0 %v2831
    %2911 = vmatprep.subr.bf16.mxu0 0
    %2912 = vmatpush2.bf16.msra.mxu0 0
    %2913 = vmatprep.subr.bf16.mxu0 0
    %2914 = vmatpush2.bf16.msra.mxu0 0
    %2915 = vmatprep.subr.bf16.mxu0 0
    %2916 = vmatpush2.bf16.msra.mxu0 0
    %2917 = vmatprep.subr.bf16.mxu0 0
    %2918 = vmatpush2.bf16.msra.mxu0 0
    %2919 = vmatprep.subr.bf16.mxu0 0
    %2920 = vmatpush2.bf16.msra.mxu0 0
    %2921 = vmatprep.subr.bf16.mxu0 0
    %2922 = vmatpush2.bf16.msra.mxu0 0
    %2923 = vmatprep.subr.bf16.mxu0 0
    %2924 = vmatpush2.bf16.msra.mxu0 0
    %2925 = vmatprep.subr.bf16.mxu0 0
    %2926 = vmatpush2.bf16.msra.mxu0 0
    %2927 = vmatprep.mubr.bf16.mxu0 0
    %2928 = vmatmul.mubr.bf16.gmra.mxu0 %v2685
    %v2929 = vpop.f32.mrf.mxu0
    %v2930 = vadd.f32 %v2727, %v2929
    %v2931 = vpop.f32.mrf.mxu0
    %v2932 = vadd.f32 %v2728, %v2931
    %v2933 = vpop.f32.mrf.mxu0
    %v2934 = vadd.f32 %v2731, %v2933
    %v2935 = vpop.f32.mrf.mxu0
    %v2936 = vadd.f32 %v2732, %v2935
    %2937 = vdwg.mxu0
    %2938 = vmatprep.subr.bf16.mxu0 %v2862
    %2939 = vmatpush1.bf16.msra.mxu0 %v2861
    %2940 = vmatprep.subr.bf16.mxu0 %v2858
    %2941 = vmatpush1.bf16.msra.mxu0 %v2857
    %2942 = vmatprep.subr.bf16.mxu0 %v2854
    %2943 = vmatpush1.bf16.msra.mxu0 %v2853
    %2944 = vmatprep.subr.bf16.mxu0 %v2850
    %2945 = vmatpush1.bf16.msra.mxu0 %v2849
    %2946 = vmatprep.subr.bf16.mxu0 %v2846
    %2947 = vmatpush1.bf16.msra.mxu0 %v2845
    %2948 = vmatprep.subr.bf16.mxu0 %v2842
    %2949 = vmatpush1.bf16.msra.mxu0 %v2841
    %2950 = vmatprep.subr.bf16.mxu0 %v2838
    %2951 = vmatpush1.bf16.msra.mxu0 %v2837
    %2952 = vmatprep.subr.bf16.mxu0 %v2834
    %2953 = vmatpush1.bf16.msra.mxu0 %v2833
    %2954 = vmatprep.subr.bf16.mxu0 0
    %2955 = vmatpush2.bf16.msra.mxu0 0
    %2956 = vmatprep.subr.bf16.mxu0 0
    %2957 = vmatpush2.bf16.msra.mxu0 0
    %2958 = vmatprep.subr.bf16.mxu0 0
    %2959 = vmatpush2.bf16.msra.mxu0 0
    %2960 = vmatprep.subr.bf16.mxu0 0
    %2961 = vmatpush2.bf16.msra.mxu0 0
    %2962 = vmatprep.subr.bf16.mxu0 0
    %2963 = vmatpush2.bf16.msra.mxu0 0
    %2964 = vmatprep.subr.bf16.mxu0 0
    %2965 = vmatpush2.bf16.msra.mxu0 0
    %2966 = vmatprep.subr.bf16.mxu0 0
    %2967 = vmatpush2.bf16.msra.mxu0 0
    %2968 = vmatprep.subr.bf16.mxu0 0
    %2969 = vmatpush2.bf16.msra.mxu0 0
    %2970 = vmatprep.mubr.bf16.mxu0 0
    %2971 = vmatmul.mubr.bf16.gmra.mxu0 %v2685
    %v2972 = vpop.f32.mrf.mxu0
    %v2973 = vadd.f32 %v2729, %v2972
    %v2974 = vpop.f32.mrf.mxu0
    %v2975 = vadd.f32 %v2730, %v2974
    %v2976 = vpop.f32.mrf.mxu0
    %v2977 = vadd.f32 %v2733, %v2976
    %v2978 = vpop.f32.mrf.mxu0
    %v2979 = vadd.f32 %v2734, %v2978
    %2980 = vdwg.mxu0
    %v2981 = vxor.u32 %v2930, 2147483648
    %v2982 = vxor.u32 %v2932, 2147483648
    %v2983 = vxor.u32 %v2973, 2147483648
    %v2984 = vxor.u32 %v2934, 2147483648
    %v2985 = vxor.u32 %v2936, 2147483648
    %v2986 = vxor.u32 %v2977, 2147483648
    %v2987 = vmul.f32 %v2981, 1.442695
    %v2988 = vpow.pop %v2987
    %v2989 = vmul.f32 %v2982, 1.442695
    %v2990 = vpow.pop %v2989
    %v2991 = vmul.f32 %v2983, 1.442695
    %v2992 = vpow.pop %v2991
    %v2993 = vmul.f32 %v2984, 1.442695
    %v2994 = vpow.pop %v2993
    %v2995 = vmul.f32 %v2985, 1.442695
    %v2996 = vpow.pop %v2995
    %v2997 = vmul.f32 %v2986, 1.442695
    %v2998 = vpow.pop %v2997
    %v2999 = vadd.f32 %v2988, 1.0
    %v3000 = vadd.f32 %v2990, 1.0
    %v3001 = vadd.f32 %v2992, 1.0
    %v3002 = vadd.f32 %v2994, 1.0
    %v3003 = vadd.f32 %v2996, 1.0
    %v3004 = vadd.f32 %v2998, 1.0
    %v3005 = vrcp.pop %v2999
    %v3006 = vmul.f32 1.0, %v3005
    %v3007 = vrcp.pop %v3000
    %v3008 = vmul.f32 1.0, %v3007
    %v3009 = vrcp.pop %v3001
    %v3010 = vmul.f32 1.0, %v3009
    %v3011 = vrcp.pop %v3002
    %v3012 = vmul.f32 1.0, %v3011
    %v3013 = vrcp.pop %v3003
    %v3014 = vmul.f32 1.0, %v3013
    %v3015 = vrcp.pop %v3004
    %v3016 = vmul.f32 1.0, %v3015
    %v3017 = vtanh.pop %v2975
    %v3018 = vtanh.pop %v2979
    %v3019 = vmul.f32 %v3008, %v2679
    %v3020 = vmul.f32 %v3014, %v2680
    %v3021 = vmul.f32 %v3006, %v3017
    %v3022 = vmul.f32 %v3012, %v3018
    %v3023 = vadd.f32 %v3019, %v3021
    %v3024 = vadd.f32 %v3020, %v3022
    %v3025 = vtanh.pop %v3023
    %v3026 = vtanh.pop %v3024
    %v3027 = vmul.f32 %v3010, %v3025
    %v3028 = vmul.f32 %v3016, %v3026
    %v3029 = vpack.c.bf16 %v3028, %v3027
    %v3031 = vunpack.c.l.b16 %v3029
    %v3032 = vunpack.c.h.b16 %v3029
    %v3033 = vpack.c.b16 %v3031, %v3031
    %v3034 = vpack.c.b16 %v3032, %v3032
    %3037 = vst [vmem:[#allocation3 + $0x30] sm:$0xf] %v3033
    %3038 = vst [vmem:[#allocation3 + $0x34] sm:$0xf] %v3034
    %v3039 = vld [vmem:[%s9] sm:$0xff]
    %v3040 = vld [vmem:[%s9 + $0x8] sm:$0xff]
    %v3041 = vld [vmem:[%s9 + $0x10] sm:$0xff]
    %v3042 = vld [vmem:[%s9 + $0x18] sm:$0xff]
    %v3043 = vld [vmem:[%s9 + $0x20] sm:$0xff]
    %v3044 = vld [vmem:[%s9 + $0x28] sm:$0xff]
    %v3045 = vld [vmem:[%s9 + $0x30] sm:$0xff]
    %v3046 = vld [vmem:[%s9 + $0x38] sm:$0xff]
    %v3047 = vld [vmem:[%s9 + $0x40] sm:$0xff]
    %v3048 = vld [vmem:[%s9 + $0x48] sm:$0xff]
    %v3049 = vld [vmem:[%s9 + $0x50] sm:$0xff]
    %v3050 = vld [vmem:[%s9 + $0x58] sm:$0xff]
    %v3051 = vld [vmem:[%s9 + $0x60] sm:$0xff]
    %v3052 = vld [vmem:[%s9 + $0x68] sm:$0xff]
    %v3053 = vld [vmem:[%s9 + $0x70] sm:$0xff]
    %v3054 = vld [vmem:[%s9 + $0x78] sm:$0xff]
    %v3055 = vld [vmem:[%s9 + $0x80] sm:$0xff]
    %v3056 = vld [vmem:[%s9 + $0x88] sm:$0xff]
    %v3057 = vld [vmem:[%s9 + $0x90] sm:$0xff]
    %v3058 = vld [vmem:[%s9 + $0x98] sm:$0xff]
    %v3059 = vld [vmem:[%s9 + $0xa0] sm:$0xff]
    %v3060 = vld [vmem:[%s9 + $0xa8] sm:$0xff]
    %v3061 = vld [vmem:[%s9 + $0xb0] sm:$0xff]
    %v3062 = vld [vmem:[%s9 + $0xb8] sm:$0xff]
    %v3063 = vld [vmem:[%s9 + $0xc0] sm:$0xff]
    %v3064 = vld [vmem:[%s9 + $0xc8] sm:$0xff]
    %v3065 = vld [vmem:[%s9 + $0xd0] sm:$0xff]
    %v3066 = vld [vmem:[%s9 + $0xd8] sm:$0xff]
    %v3067 = vld [vmem:[%s9 + $0xe0] sm:$0xff]
    %v3068 = vld [vmem:[%s9 + $0xe8] sm:$0xff]
    %v3069 = vld [vmem:[%s9 + $0xf0] sm:$0xff]
    %v3070 = vld [vmem:[%s9 + $0xf8] sm:$0xff]
    %v3071 = vld [vmem:[#allocation2 + $0x1c0] sm:$0xff]
    %v3072 = vld [vmem:[#allocation2 + $0x1c8] sm:$0xff]
    %v3073 = vld [vmem:[#allocation2 + $0x1d0] sm:$0xff]
    %v3074 = vld [vmem:[#allocation2 + $0x1d8] sm:$0xff]
    %v3075 = vld [vmem:[#allocation2 + $0x1e0] sm:$0xff]
    %v3076 = vld [vmem:[#allocation2 + $0x1e8] sm:$0xff]
    %v3077 = vld [vmem:[#allocation2 + $0x1f0] sm:$0xff]
    %v3078 = vld [vmem:[#allocation2 + $0x1f8] sm:$0xff]
    %v3111 = vunpack.c.l.b16 %v3039
    %v3112 = vunpack.c.h.b16 %v3039
    %v3113 = vunpack.c.l.b16 %v3040
    %v3114 = vunpack.c.h.b16 %v3040
    %v3115 = vunpack.c.l.b16 %v3041
    %v3116 = vunpack.c.h.b16 %v3041
    %v3117 = vunpack.c.l.b16 %v3042
    %v3118 = vunpack.c.h.b16 %v3042
    %v3119 = vunpack.c.l.b16 %v3043
    %v3120 = vunpack.c.h.b16 %v3043
    %v3121 = vunpack.c.l.b16 %v3044
    %v3122 = vunpack.c.h.b16 %v3044
    %v3123 = vunpack.c.l.b16 %v3045
    %v3124 = vunpack.c.h.b16 %v3045
    %v3125 = vunpack.c.l.b16 %v3046
    %v3126 = vunpack.c.h.b16 %v3046
    %v3127 = vunpack.c.l.b16 %v3047
    %v3128 = vunpack.c.h.b16 %v3047
    %v3129 = vunpack.c.l.b16 %v3048
    %v3130 = vunpack.c.h.b16 %v3048
    %v3131 = vunpack.c.l.b16 %v3049
    %v3132 = vunpack.c.h.b16 %v3049
    %v3133 = vunpack.c.l.b16 %v3050
    %v3134 = vunpack.c.h.b16 %v3050
    %v3135 = vunpack.c.l.b16 %v3051
    %v3136 = vunpack.c.h.b16 %v3051
    %v3137 = vunpack.c.l.b16 %v3052
    %v3138 = vunpack.c.h.b16 %v3052
    %v3139 = vunpack.c.l.b16 %v3053
    %v3140 = vunpack.c.h.b16 %v3053
    %v3141 = vunpack.c.l.b16 %v3054
    %v3142 = vunpack.c.h.b16 %v3054
    %v3143 = vunpack.c.l.b16 %v3055
    %v3144 = vunpack.c.h.b16 %v3055
    %v3145 = vunpack.c.l.b16 %v3056
    %v3146 = vunpack.c.h.b16 %v3056
    %v3147 = vunpack.c.l.b16 %v3057
    %v3148 = vunpack.c.h.b16 %v3057
    %v3149 = vunpack.c.l.b16 %v3058
    %v3150 = vunpack.c.h.b16 %v3058
    %v3151 = vunpack.c.l.b16 %v3059
    %v3152 = vunpack.c.h.b16 %v3059
    %v3153 = vunpack.c.l.b16 %v3060
    %v3154 = vunpack.c.h.b16 %v3060
    %v3155 = vunpack.c.l.b16 %v3061
    %v3156 = vunpack.c.h.b16 %v3061
    %v3157 = vunpack.c.l.b16 %v3062
    %v3158 = vunpack.c.h.b16 %v3062
    %v3159 = vunpack.c.l.b16 %v3063
    %v3160 = vunpack.c.h.b16 %v3063
    %v3161 = vunpack.c.l.b16 %v3064
    %v3162 = vunpack.c.h.b16 %v3064
    %v3163 = vunpack.c.l.b16 %v3065
    %v3164 = vunpack.c.h.b16 %v3065
    %v3165 = vunpack.c.l.b16 %v3066
    %v3166 = vunpack.c.h.b16 %v3066
    %v3167 = vunpack.c.l.b16 %v3067
    %v3168 = vunpack.c.h.b16 %v3067
    %v3169 = vunpack.c.l.b16 %v3068
    %v3170 = vunpack.c.h.b16 %v3068
    %v3171 = vunpack.c.l.b16 %v3069
    %v3172 = vunpack.c.h.b16 %v3069
    %v3173 = vunpack.c.l.b16 %v3070
    %v3174 = vunpack.c.h.b16 %v3070
    %v3175 = vpack.c.b16 %v3115, %v3111
    %v3176 = vpack.c.b16 %v3116, %v3112
    %v3177 = vpack.c.b16 %v3117, %v3113
    %v3178 = vpack.c.b16 %v3118, %v3114
    %v3179 = vpack.c.b16 %v3123, %v3119
    %v3180 = vpack.c.b16 %v3124, %v3120
    %v3181 = vpack.c.b16 %v3125, %v3121
    %v3182 = vpack.c.b16 %v3126, %v3122
    %v3183 = vpack.c.b16 %v3131, %v3127
    %v3184 = vpack.c.b16 %v3132, %v3128
    %v3185 = vpack.c.b16 %v3133, %v3129
    %v3186 = vpack.c.b16 %v3134, %v3130
    %v3187 = vpack.c.b16 %v3139, %v3135
    %v3188 = vpack.c.b16 %v3140, %v3136
    %v3189 = vpack.c.b16 %v3141, %v3137
    %v3190 = vpack.c.b16 %v3142, %v3138
    %v3191 = vpack.c.b16 %v3147, %v3143
    %v3192 = vpack.c.b16 %v3148, %v3144
    %v3193 = vpack.c.b16 %v3149, %v3145
    %v3194 = vpack.c.b16 %v3150, %v3146
    %v3195 = vpack.c.b16 %v3155, %v3151
    %v3196 = vpack.c.b16 %v3156, %v3152
    %v3197 = vpack.c.b16 %v3157, %v3153
    %v3198 = vpack.c.b16 %v3158, %v3154
    %v3199 = vpack.c.b16 %v3163, %v3159
    %v3200 = vpack.c.b16 %v3164, %v3160
    %v3201 = vpack.c.b16 %v3165, %v3161
    %v3202 = vpack.c.b16 %v3166, %v3162
    %v3203 = vpack.c.b16 %v3171, %v3167
    %v3204 = vpack.c.b16 %v3172, %v3168
    %v3205 = vpack.c.b16 %v3173, %v3169
    %v3206 = vpack.c.b16 %v3174, %v3170
    %3239 = vmatprep.subr.bf16.mxu0 %v3204
    %3240 = vmatpush1.bf16.msra.mxu0 %v3203
    %3241 = vmatprep.subr.bf16.mxu0 %v3200
    %3242 = vmatpush1.bf16.msra.mxu0 %v3199
    %3243 = vmatprep.subr.bf16.mxu0 %v3196
    %3244 = vmatpush1.bf16.msra.mxu0 %v3195
    %3245 = vmatprep.subr.bf16.mxu0 %v3192
    %3246 = vmatpush1.bf16.msra.mxu0 %v3191
    %3247 = vmatprep.subr.bf16.mxu0 %v3188
    %3248 = vmatpush1.bf16.msra.mxu0 %v3187
    %3249 = vmatprep.subr.bf16.mxu0 %v3184
    %3250 = vmatpush1.bf16.msra.mxu0 %v3183
    %3251 = vmatprep.subr.bf16.mxu0 %v3180
    %3252 = vmatpush1.bf16.msra.mxu0 %v3179
    %3253 = vmatprep.subr.bf16.mxu0 %v3176
    %3254 = vmatpush1.bf16.msra.mxu0 %v3175
    %3255 = vmatprep.subr.bf16.mxu0 0
    %3256 = vmatpush2.bf16.msra.mxu0 0
    %3257 = vmatprep.subr.bf16.mxu0 0
    %3258 = vmatpush2.bf16.msra.mxu0 0
    %3259 = vmatprep.subr.bf16.mxu0 0
    %3260 = vmatpush2.bf16.msra.mxu0 0
    %3261 = vmatprep.subr.bf16.mxu0 0
    %3262 = vmatpush2.bf16.msra.mxu0 0
    %3263 = vmatprep.subr.bf16.mxu0 0
    %3264 = vmatpush2.bf16.msra.mxu0 0
    %3265 = vmatprep.subr.bf16.mxu0 0
    %3266 = vmatpush2.bf16.msra.mxu0 0
    %3267 = vmatprep.subr.bf16.mxu0 0
    %3268 = vmatpush2.bf16.msra.mxu0 0
    %3269 = vmatprep.subr.bf16.mxu0 0
    %3270 = vmatpush2.bf16.msra.mxu0 0
    %3271 = vmatprep.mubr.bf16.mxu0 0
    %3272 = vmatmul.mubr.bf16.gmra.mxu0 %v3029
    %v3273 = vpop.f32.mrf.mxu0
    %v3274 = vadd.f32 %v3071, %v3273
    %v3275 = vpop.f32.mrf.mxu0
    %v3276 = vadd.f32 %v3072, %v3275
    %v3277 = vpop.f32.mrf.mxu0
    %v3278 = vadd.f32 %v3075, %v3277
    %v3279 = vpop.f32.mrf.mxu0
    %v3280 = vadd.f32 %v3076, %v3279
    %3281 = vdwg.mxu0
    %3282 = vmatprep.subr.bf16.mxu0 %v3206
    %3283 = vmatpush1.bf16.msra.mxu0 %v3205
    %3284 = vmatprep.subr.bf16.mxu0 %v3202
    %3285 = vmatpush1.bf16.msra.mxu0 %v3201
    %3286 = vmatprep.subr.bf16.mxu0 %v3198
    %3287 = vmatpush1.bf16.msra.mxu0 %v3197
    %3288 = vmatprep.subr.bf16.mxu0 %v3194
    %3289 = vmatpush1.bf16.msra.mxu0 %v3193
    %3290 = vmatprep.subr.bf16.mxu0 %v3190
    %3291 = vmatpush1.bf16.msra.mxu0 %v3189
    %3292 = vmatprep.subr.bf16.mxu0 %v3186
    %3293 = vmatpush1.bf16.msra.mxu0 %v3185
    %3294 = vmatprep.subr.bf16.mxu0 %v3182
    %3295 = vmatpush1.bf16.msra.mxu0 %v3181
    %3296 = vmatprep.subr.bf16.mxu0 %v3178
    %3297 = vmatpush1.bf16.msra.mxu0 %v3177
    %3298 = vmatprep.subr.bf16.mxu0 0
    %3299 = vmatpush2.bf16.msra.mxu0 0
    %3300 = vmatprep.subr.bf16.mxu0 0
    %3301 = vmatpush2.bf16.msra.mxu0 0
    %3302 = vmatprep.subr.bf16.mxu0 0
    %3303 = vmatpush2.bf16.msra.mxu0 0
    %3304 = vmatprep.subr.bf16.mxu0 0
    %3305 = vmatpush2.bf16.msra.mxu0 0
    %3306 = vmatprep.subr.bf16.mxu0 0
    %3307 = vmatpush2.bf16.msra.mxu0 0
    %3308 = vmatprep.subr.bf16.mxu0 0
    %3309 = vmatpush2.bf16.msra.mxu0 0
    %3310 = vmatprep.subr.bf16.mxu0 0
    %3311 = vmatpush2.bf16.msra.mxu0 0
    %3312 = vmatprep.subr.bf16.mxu0 0
    %3313 = vmatpush2.bf16.msra.mxu0 0
    %3314 = vmatprep.mubr.bf16.mxu0 0
    %3315 = vmatmul.mubr.bf16.gmra.mxu0 %v3029
    %v3316 = vpop.f32.mrf.mxu0
    %v3317 = vadd.f32 %v3073, %v3316
    %v3318 = vpop.f32.mrf.mxu0
    %v3319 = vadd.f32 %v3074, %v3318
    %v3320 = vpop.f32.mrf.mxu0
    %v3321 = vadd.f32 %v3077, %v3320
    %v3322 = vpop.f32.mrf.mxu0
    %v3323 = vadd.f32 %v3078, %v3322
    %3324 = vdwg.mxu0
    %v3325 = vxor.u32 %v3274, 2147483648
    %v3326 = vxor.u32 %v3276, 2147483648
    %v3327 = vxor.u32 %v3317, 2147483648
    %v3328 = vxor.u32 %v3278, 2147483648
    %v3329 = vxor.u32 %v3280, 2147483648
    %v3330 = vxor.u32 %v3321, 2147483648
    %v3331 = vmul.f32 %v3325, 1.442695
    %v3332 = vpow.pop %v3331
    %v3333 = vmul.f32 %v3326, 1.442695
    %v3334 = vpow.pop %v3333
    %v3335 = vmul.f32 %v3327, 1.442695
    %v3336 = vpow.pop %v3335
    %v3337 = vmul.f32 %v3328, 1.442695
    %v3338 = vpow.pop %v3337
    %v3339 = vmul.f32 %v3329, 1.442695
    %v3340 = vpow.pop %v3339
    %v3341 = vmul.f32 %v3330, 1.442695
    %v3342 = vpow.pop %v3341
    %v3343 = vadd.f32 %v3332, 1.0
    %v3344 = vadd.f32 %v3334, 1.0
    %v3345 = vadd.f32 %v3336, 1.0
    %v3346 = vadd.f32 %v3338, 1.0
    %v3347 = vadd.f32 %v3340, 1.0
    %v3348 = vadd.f32 %v3342, 1.0
    %v3349 = vrcp.pop %v3343
    %v3350 = vmul.f32 1.0, %v3349
    %v3351 = vrcp.pop %v3344
    %v3352 = vmul.f32 1.0, %v3351
    %v3353 = vrcp.pop %v3345
    %v3354 = vmul.f32 1.0, %v3353
    %v3355 = vrcp.pop %v3346
    %v3356 = vmul.f32 1.0, %v3355
    %v3357 = vrcp.pop %v3347
    %v3358 = vmul.f32 1.0, %v3357
    %v3359 = vrcp.pop %v3348
    %v3360 = vmul.f32 1.0, %v3359
    %v3361 = vtanh.pop %v3319
    %v3362 = vtanh.pop %v3323
    %v3363 = vmul.f32 %v3352, %v3023
    %v3364 = vmul.f32 %v3358, %v3024
    %v3365 = vmul.f32 %v3350, %v3361
    %v3366 = vmul.f32 %v3356, %v3362
    %v3367 = vadd.f32 %v3363, %v3365
    %v3368 = vadd.f32 %v3364, %v3366
    %v3369 = vtanh.pop %v3367
    %v3370 = vtanh.pop %v3368
    %v3371 = vmul.f32 %v3354, %v3369
    %v3372 = vmul.f32 %v3360, %v3370
    %v3373 = vpack.c.bf16 %v3372, %v3371
    %v3375 = vunpack.c.l.b16 %v3373
    %v3376 = vunpack.c.h.b16 %v3373
    %v3377 = vpack.c.b16 %v3375, %v3375
    %v3378 = vpack.c.b16 %v3376, %v3376
    %3381 = vst [vmem:[#allocation3 + $0x38] sm:$0xf] %v3377
    %3382 = vst [vmem:[#allocation3 + $0x3c] sm:$0xf] %v3378
    %3383 = vst [vmem:[#allocation16] sm:$0xff] %v3371
    %3384 = vst [vmem:[#allocation16 + $0x8] sm:$0xff] %v3372
    %3385 = vst [vmem:[#allocation17] sm:$0xff] %v3367
    %3386 = vst [vmem:[#allocation17 + $0x8] sm:$0xff] %v3368
    %v3387 = vld [vmem:[#allocation3] sm:$0xf]
    %v3388 = vld [vmem:[#allocation3 + $0x4] sm:$0xf]
    %v3389 = vld [vmem:[#allocation3 + $0x8] sm:$0xf]
    %v3390 = vld [vmem:[#allocation3 + $0xc] sm:$0xf]
    %v3391 = vld [vmem:[#allocation3 + $0x10] sm:$0xf]
    %v3392 = vld [vmem:[#allocation3 + $0x14] sm:$0xf]
    %v3393 = vld [vmem:[#allocation3 + $0x18] sm:$0xf]
    %v3394 = vld [vmem:[#allocation3 + $0x1c] sm:$0xf]
    %v3395 = vld [vmem:[#allocation3 + $0x20] sm:$0xf]
    %v3396 = vld [vmem:[#allocation3 + $0x24] sm:$0xf]
    %v3397 = vld [vmem:[#allocation3 + $0x28] sm:$0xf]
    %v3398 = vld [vmem:[#allocation3 + $0x2c] sm:$0xf]
    %v3399 = vld [vmem:[#allocation3 + $0x30] sm:$0xf]
    %v3400 = vld [vmem:[#allocation3 + $0x34] sm:$0xf]
    %v3401 = vld [vmem:[#allocation3 + $0x38] sm:$0xf]
    %v3402 = vld [vmem:[#allocation3 + $0x3c] sm:$0xf]
    %v3403 = vld [vmem:[#allocation9] sm:$0xff]
    %v3404 = vld [vmem:[#allocation9 + $0x8] sm:$0xff]
    %v3405 = vld [vmem:[#allocation9 + $0x10] sm:$0xff]
    %v3406 = vld [vmem:[#allocation9 + $0x18] sm:$0xff]
    %v3407 = vld [vmem:[#allocation9 + $0x20] sm:$0xff]
    %v3408 = vld [vmem:[#allocation9 + $0x28] sm:$0xff]
    %v3409 = vld [vmem:[#allocation9 + $0x30] sm:$0xff]
    %v3410 = vld [vmem:[#allocation9 + $0x38] sm:$0xff]
    %v3411 = vld [vmem:[#allocation9 + $0x40] sm:$0xff]
    %v3412 = vld [vmem:[#allocation9 + $0x48] sm:$0xff]
    %v3413 = vld [vmem:[#allocation9 + $0x50] sm:$0xff]
    %v3414 = vld [vmem:[#allocation9 + $0x58] sm:$0xff]
    %v3415 = vld [vmem:[#allocation9 + $0x60] sm:$0xff]
    %v3416 = vld [vmem:[#allocation9 + $0x68] sm:$0xff]
    %v3417 = vld [vmem:[#allocation9 + $0x70] sm:$0xff]
    %v3418 = vld [vmem:[#allocation9 + $0x78] sm:$0xff]
    %v3419 = vld [vmem:[#allocation9 + $0x80] sm:$0xff]
    %v3420 = vld [vmem:[#allocation9 + $0x88] sm:$0xff]
    %v3421 = vld [vmem:[#allocation9 + $0x90] sm:$0xff]
    %v3422 = vld [vmem:[#allocation9 + $0x98] sm:$0xff]
    %v3423 = vld [vmem:[#allocation9 + $0xa0] sm:$0xff]
    %v3424 = vld [vmem:[#allocation9 + $0xa8] sm:$0xff]
    %v3425 = vld [vmem:[#allocation9 + $0xb0] sm:$0xff]
    %v3426 = vld [vmem:[#allocation9 + $0xb8] sm:$0xff]
    %v3427 = vld [vmem:[#allocation9 + $0xc0] sm:$0xff]
    %v3428 = vld [vmem:[#allocation9 + $0xc8] sm:$0xff]
    %v3429 = vld [vmem:[#allocation9 + $0xd0] sm:$0xff]
    %v3430 = vld [vmem:[#allocation9 + $0xd8] sm:$0xff]
    %v3431 = vld [vmem:[#allocation9 + $0xe0] sm:$0xff]
    %v3432 = vld [vmem:[#allocation9 + $0xe8] sm:$0xff]
    %v3433 = vld [vmem:[#allocation9 + $0xf0] sm:$0xff]
    %v3434 = vld [vmem:[#allocation9 + $0xf8] sm:$0xff]
    %v3435 = vld [vmem:[#allocation12] sm:$0xf]
    %v3437 = vlaneseq
    %v3438 = vshrl.u32 %v3437, 7
    %v3439 = vsub.s32 0, %v3438
    %v3440 = vrot.slane %v3435, %v3439
    %v3441 = vlaneseq
    %v3442 = vshrl.u32 %v3441, 7
    %v3443 = vsub.s32 1, %v3442
    %v3444 = vrot.slane %v3435, %v3443
    %v3445 = vlaneseq
    %v3446 = vshrl.u32 %v3445, 7
    %v3447 = vsub.s32 2, %v3446
    %v3448 = vrot.slane %v3435, %v3447
    %v3449 = vlaneseq
    %v3450 = vshrl.u32 %v3449, 7
    %v3451 = vsub.s32 3, %v3450
    %v3452 = vrot.slane %v3435, %v3451
    %v3473 = vunpack.c.l.b16 %v3387
    %v3474 = vunpack.c.l.b16 %v3388
    %v3475 = vunpack.c.l.b16 %v3389
    %v3476 = vunpack.c.l.b16 %v3390
    %v3477 = vunpack.c.l.b16 %v3391
    %v3478 = vunpack.c.l.b16 %v3392
    %v3479 = vunpack.c.l.b16 %v3393
    %v3480 = vunpack.c.l.b16 %v3394
    %v3481 = vunpack.c.l.b16 %v3395
    %v3482 = vunpack.c.l.b16 %v3396
    %v3483 = vunpack.c.l.b16 %v3397
    %v3484 = vunpack.c.l.b16 %v3398
    %v3485 = vunpack.c.l.b16 %v3399
    %v3486 = vunpack.c.l.b16 %v3400
    %v3487 = vunpack.c.l.b16 %v3401
    %v3488 = vunpack.c.l.b16 %v3402
    %v3489 = vpack.c.b16 %v3474, %v3473
    %v3490 = vpack.c.b16 %v3476, %v3475
    %v3491 = vpack.c.b16 %v3478, %v3477
    %v3492 = vpack.c.b16 %v3480, %v3479
    %v3493 = vpack.c.b16 %v3482, %v3481
    %v3494 = vpack.c.b16 %v3484, %v3483
    %v3495 = vpack.c.b16 %v3486, %v3485
    %v3496 = vpack.c.b16 %v3488, %v3487
    %v3537 = vunpack.c.l.b16 %v3403
    %v3538 = vunpack.c.h.b16 %v3403
    %v3539 = vunpack.c.l.b16 %v3404
    %v3540 = vunpack.c.h.b16 %v3404
    %v3541 = vunpack.c.l.b16 %v3405
    %v3542 = vunpack.c.h.b16 %v3405
    %v3543 = vunpack.c.l.b16 %v3406
    %v3544 = vunpack.c.h.b16 %v3406
    %v3545 = vunpack.c.l.b16 %v3407
    %v3546 = vunpack.c.h.b16 %v3407
    %v3547 = vunpack.c.l.b16 %v3408
    %v3548 = vunpack.c.h.b16 %v3408
    %v3549 = vunpack.c.l.b16 %v3409
    %v3550 = vunpack.c.h.b16 %v3409
    %v3551 = vunpack.c.l.b16 %v3410
    %v3552 = vunpack.c.h.b16 %v3410
    %v3553 = vunpack.c.l.b16 %v3411
    %v3554 = vunpack.c.h.b16 %v3411
    %v3555 = vunpack.c.l.b16 %v3412
    %v3556 = vunpack.c.h.b16 %v3412
    %v3557 = vunpack.c.l.b16 %v3413
    %v3558 = vunpack.c.h.b16 %v3413
    %v3559 = vunpack.c.l.b16 %v3414
    %v3560 = vunpack.c.h.b16 %v3414
    %v3561 = vunpack.c.l.b16 %v3415
    %v3562 = vunpack.c.h.b16 %v3415
    %v3563 = vunpack.c.l.b16 %v3416
    %v3564 = vunpack.c.h.b16 %v3416
    %v3565 = vunpack.c.l.b16 %v3417
    %v3566 = vunpack.c.h.b16 %v3417
    %v3567 = vunpack.c.l.b16 %v3418
    %v3568 = vunpack.c.h.b16 %v3418
    %v3569 = vunpack.c.l.b16 %v3419
    %v3570 = vunpack.c.h.b16 %v3419
    %v3571 = vunpack.c.l.b16 %v3420
    %v3572 = vunpack.c.h.b16 %v3420
    %v3573 = vunpack.c.l.b16 %v3421
    %v3574 = vunpack.c.h.b16 %v3421
    %v3575 = vunpack.c.l.b16 %v3422
    %v3576 = vunpack.c.h.b16 %v3422
    %v3577 = vunpack.c.l.b16 %v3423
    %v3578 = vunpack.c.h.b16 %v3423
    %v3579 = vunpack.c.l.b16 %v3424
    %v3580 = vunpack.c.h.b16 %v3424
    %v3581 = vunpack.c.l.b16 %v3425
    %v3582 = vunpack.c.h.b16 %v3425
    %v3583 = vunpack.c.l.b16 %v3426
    %v3584 = vunpack.c.h.b16 %v3426
    %v3585 = vunpack.c.l.b16 %v3427
    %v3586 = vunpack.c.h.b16 %v3427
    %v3587 = vunpack.c.l.b16 %v3428
    %v3588 = vunpack.c.h.b16 %v3428
    %v3589 = vunpack.c.l.b16 %v3429
    %v3590 = vunpack.c.h.b16 %v3429
    %v3591 = vunpack.c.l.b16 %v3430
    %v3592 = vunpack.c.h.b16 %v3430
    %v3593 = vunpack.c.l.b16 %v3431
    %v3594 = vunpack.c.h.b16 %v3431
    %v3595 = vunpack.c.l.b16 %v3432
    %v3596 = vunpack.c.h.b16 %v3432
    %v3597 = vunpack.c.l.b16 %v3433
    %v3598 = vunpack.c.h.b16 %v3433
    %v3599 = vunpack.c.l.b16 %v3434
    %v3600 = vunpack.c.h.b16 %v3434
    %v3601 = vpack.c.b16 %v3541, %v3537
    %v3602 = vpack.c.b16 %v3542, %v3538
    %v3603 = vpack.c.b16 %v3543, %v3539
    %v3604 = vpack.c.b16 %v3544, %v3540
    %v3605 = vpack.c.b16 %v3549, %v3545
    %v3606 = vpack.c.b16 %v3550, %v3546
    %v3607 = vpack.c.b16 %v3551, %v3547
    %v3608 = vpack.c.b16 %v3552, %v3548
    %v3609 = vpack.c.b16 %v3557, %v3553
    %v3610 = vpack.c.b16 %v3558, %v3554
    %v3611 = vpack.c.b16 %v3559, %v3555
    %v3612 = vpack.c.b16 %v3560, %v3556
    %v3613 = vpack.c.b16 %v3565, %v3561
    %v3614 = vpack.c.b16 %v3566, %v3562
    %v3615 = vpack.c.b16 %v3567, %v3563
    %v3616 = vpack.c.b16 %v3568, %v3564
    %v3617 = vpack.c.b16 %v3573, %v3569
    %v3618 = vpack.c.b16 %v3574, %v3570
    %v3619 = vpack.c.b16 %v3575, %v3571
    %v3620 = vpack.c.b16 %v3576, %v3572
    %v3621 = vpack.c.b16 %v3581, %v3577
    %v3622 = vpack.c.b16 %v3582, %v3578
    %v3623 = vpack.c.b16 %v3583, %v3579
    %v3624 = vpack.c.b16 %v3584, %v3580
    %v3625 = vpack.c.b16 %v3589, %v3585
    %v3626 = vpack.c.b16 %v3590, %v3586
    %v3627 = vpack.c.b16 %v3591, %v3587
    %v3628 = vpack.c.b16 %v3592, %v3588
    %v3629 = vpack.c.b16 %v3597, %v3593
    %v3630 = vpack.c.b16 %v3598, %v3594
    %v3631 = vpack.c.b16 %v3599, %v3595
    %v3632 = vpack.c.b16 %v3600, %v3596
    %3665 = vmatprep.subr.bf16.mxu0 %v3630
    %3666 = vmatpush1.bf16.msra.mxu0 %v3629
    %3667 = vmatprep.subr.bf16.mxu0 %v3626
    %3668 = vmatpush1.bf16.msra.mxu0 %v3625
    %3669 = vmatprep.subr.bf16.mxu0 %v3622
    %3670 = vmatpush1.bf16.msra.mxu0 %v3621
    %3671 = vmatprep.subr.bf16.mxu0 %v3618
    %3672 = vmatpush1.bf16.msra.mxu0 %v3617
    %3673 = vmatprep.subr.bf16.mxu0 %v3614
    %3674 = vmatpush1.bf16.msra.mxu0 %v3613
    %3675 = vmatprep.subr.bf16.mxu0 %v3610
    %3676 = vmatpush1.bf16.msra.mxu0 %v3609
    %3677 = vmatprep.subr.bf16.mxu0 %v3606
    %3678 = vmatpush1.bf16.msra.mxu0 %v3605
    %3679 = vmatprep.subr.bf16.mxu0 %v3602
    %3680 = vmatpush1.bf16.msra.mxu0 %v3601
    %3681 = vmatprep.subr.bf16.mxu0 0
    %3682 = vmatpush2.bf16.msra.mxu0 0
    %3683 = vmatprep.subr.bf16.mxu0 0
    %3684 = vmatpush2.bf16.msra.mxu0 0
    %3685 = vmatprep.subr.bf16.mxu0 0
    %3686 = vmatpush2.bf16.msra.mxu0 0
    %3687 = vmatprep.subr.bf16.mxu0 0
    %3688 = vmatpush2.bf16.msra.mxu0 0
    %3689 = vmatprep.subr.bf16.mxu0 0
    %3690 = vmatpush2.bf16.msra.mxu0 0
    %3691 = vmatprep.subr.bf16.mxu0 0
    %3692 = vmatpush2.bf16.msra.mxu0 0
    %3693 = vmatprep.subr.bf16.mxu0 0
    %3694 = vmatpush2.bf16.msra.mxu0 0
    %3695 = vmatprep.subr.bf16.mxu0 0
    %3696 = vmatpush2.bf16.msra.mxu0 0
    %3697 = vmatprep.mubr.bf16.mxu0 0
    %3698 = vmatmul.mubr.bf16.gmra.mxu0 %v3489
    %v3699 = vpop.f32.mrf.mxu0
    %v3700 = vadd.f32 %v3440, %v3699
    %v3701 = vpop.f32.mrf.mxu0
    %v3702 = vadd.f32 %v3444, %v3701
    %v3703 = vpop.f32.mrf.mxu0
    %v3704 = vadd.f32 %v3440, %v3703
    %v3705 = vpop.f32.mrf.mxu0
    %v3706 = vadd.f32 %v3444, %v3705
    %3707 = vmatprep.mubr.bf16.mxu0 0
    %3708 = vmatmul.mubr.bf16.gmra.mxu0 %v3490
    %v3709 = vpop.f32.mrf.mxu0
    %v3710 = vadd.f32 %v3440, %v3709
    %v3711 = vpop.f32.mrf.mxu0
    %v3712 = vadd.f32 %v3444, %v3711
    %v3713 = vpop.f32.mrf.mxu0
    %v3714 = vadd.f32 %v3440, %v3713
    %v3715 = vpop.f32.mrf.mxu0
    %v3716 = vadd.f32 %v3444, %v3715
    %3717 = vmatprep.mubr.bf16.mxu0 0
    %3718 = vmatmul.mubr.bf16.gmra.mxu0 %v3491
    %v3719 = vpop.f32.mrf.mxu0
    %v3720 = vadd.f32 %v3440, %v3719
    %v3721 = vpop.f32.mrf.mxu0
    %v3722 = vadd.f32 %v3444, %v3721
    %v3723 = vpop.f32.mrf.mxu0
    %v3724 = vadd.f32 %v3440, %v3723
    %v3725 = vpop.f32.mrf.mxu0
    %v3726 = vadd.f32 %v3444, %v3725
    %3727 = vmatprep.mubr.bf16.mxu0 0
    %3728 = vmatmul.mubr.bf16.gmra.mxu0 %v3492
    %v3729 = vpop.f32.mrf.mxu0
    %v3730 = vadd.f32 %v3440, %v3729
    %v3731 = vpop.f32.mrf.mxu0
    %v3732 = vadd.f32 %v3444, %v3731
    %v3733 = vpop.f32.mrf.mxu0
    %v3734 = vadd.f32 %v3440, %v3733
    %v3735 = vpop.f32.mrf.mxu0
    %v3736 = vadd.f32 %v3444, %v3735
    %3737 = vmatprep.mubr.bf16.mxu0 0
    %3738 = vmatmul.mubr.bf16.gmra.mxu0 %v3493
    %v3739 = vpop.f32.mrf.mxu0
    %v3740 = vadd.f32 %v3440, %v3739
    %v3741 = vpop.f32.mrf.mxu0
    %v3742 = vadd.f32 %v3444, %v3741
    %v3743 = vpop.f32.mrf.mxu0
    %v3744 = vadd.f32 %v3440, %v3743
    %v3745 = vpop.f32.mrf.mxu0
    %v3746 = vadd.f32 %v3444, %v3745
    %3747 = vmatprep.mubr.bf16.mxu0 0
    %3748 = vmatmul.mubr.bf16.gmra.mxu0 %v3494
    %v3749 = vpop.f32.mrf.mxu0
    %v3750 = vadd.f32 %v3440, %v3749
    %v3751 = vpop.f32.mrf.mxu0
    %v3752 = vadd.f32 %v3444, %v3751
    %v3753 = vpop.f32.mrf.mxu0
    %v3754 = vadd.f32 %v3440, %v3753
    %v3755 = vpop.f32.mrf.mxu0
    %v3756 = vadd.f32 %v3444, %v3755
    %3757 = vmatprep.mubr.bf16.mxu0 0
    %3758 = vmatmul.mubr.bf16.gmra.mxu0 %v3495
    %v3759 = vpop.f32.mrf.mxu0
    %v3760 = vadd.f32 %v3440, %v3759
    %v3761 = vpop.f32.mrf.mxu0
    %v3762 = vadd.f32 %v3444, %v3761
    %v3763 = vpop.f32.mrf.mxu0
    %v3764 = vadd.f32 %v3440, %v3763
    %v3765 = vpop.f32.mrf.mxu0
    %v3766 = vadd.f32 %v3444, %v3765
    %3767 = vmatprep.mubr.bf16.mxu0 0
    %3768 = vmatmul.mubr.bf16.gmra.mxu0 %v3496
    %v3769 = vpop.f32.mrf.mxu0
    %v3770 = vadd.f32 %v3440, %v3769
    %v3771 = vpop.f32.mrf.mxu0
    %v3772 = vadd.f32 %v3444, %v3771
    %v3773 = vpop.f32.mrf.mxu0
    %v3774 = vadd.f32 %v3440, %v3773
    %v3775 = vpop.f32.mrf.mxu0
    %v3776 = vadd.f32 %v3444, %v3775
    %3777 = vdwg.mxu0
    %3778 = vmatprep.subr.bf16.mxu0 %v3632
    %3779 = vmatpush1.bf16.msra.mxu0 %v3631
    %3780 = vmatprep.subr.bf16.mxu0 %v3628
    %3781 = vmatpush1.bf16.msra.mxu0 %v3627
    %3782 = vmatprep.subr.bf16.mxu0 %v3624
    %3783 = vmatpush1.bf16.msra.mxu0 %v3623
    %3784 = vmatprep.subr.bf16.mxu0 %v3620
    %3785 = vmatpush1.bf16.msra.mxu0 %v3619
    %3786 = vmatprep.subr.bf16.mxu0 %v3616
    %3787 = vmatpush1.bf16.msra.mxu0 %v3615
    %3788 = vmatprep.subr.bf16.mxu0 %v3612
    %3789 = vmatpush1.bf16.msra.mxu0 %v3611
    %3790 = vmatprep.subr.bf16.mxu0 %v3608
    %3791 = vmatpush1.bf16.msra.mxu0 %v3607
    %3792 = vmatprep.subr.bf16.mxu0 %v3604
    %3793 = vmatpush1.bf16.msra.mxu0 %v3603
    %3794 = vmatprep.subr.bf16.mxu0 0
    %3795 = vmatpush2.bf16.msra.mxu0 0
    %3796 = vmatprep.subr.bf16.mxu0 0
    %3797 = vmatpush2.bf16.msra.mxu0 0
    %3798 = vmatprep.subr.bf16.mxu0 0
    %3799 = vmatpush2.bf16.msra.mxu0 0
    %3800 = vmatprep.subr.bf16.mxu0 0
    %3801 = vmatpush2.bf16.msra.mxu0 0
    %3802 = vmatprep.subr.bf16.mxu0 0
    %3803 = vmatpush2.bf16.msra.mxu0 0
    %3804 = vmatprep.subr.bf16.mxu0 0
    %3805 = vmatpush2.bf16.msra.mxu0 0
    %3806 = vmatprep.subr.bf16.mxu0 0
    %3807 = vmatpush2.bf16.msra.mxu0 0
    %3808 = vmatprep.subr.bf16.mxu0 0
    %3809 = vmatpush2.bf16.msra.mxu0 0
    %3810 = vmatprep.mubr.bf16.mxu0 0
    %3811 = vmatmul.mubr.bf16.gmra.mxu0 %v3489
    %v3812 = vpop.f32.mrf.mxu0
    %v3813 = vadd.f32 %v3448, %v3812
    %v3814 = vpop.f32.mrf.mxu0
    %v3815 = vadd.f32 %v3452, %v3814
    %v3816 = vpop.f32.mrf.mxu0
    %v3817 = vadd.f32 %v3448, %v3816
    %v3818 = vpop.f32.mrf.mxu0
    %v3819 = vadd.f32 %v3452, %v3818
    %3820 = vmatprep.mubr.bf16.mxu0 0
    %3821 = vmatmul.mubr.bf16.gmra.mxu0 %v3490
    %v3822 = vpop.f32.mrf.mxu0
    %v3823 = vadd.f32 %v3448, %v3822
    %v3824 = vpop.f32.mrf.mxu0
    %v3825 = vadd.f32 %v3452, %v3824
    %v3826 = vpop.f32.mrf.mxu0
    %v3827 = vadd.f32 %v3448, %v3826
    %v3828 = vpop.f32.mrf.mxu0
    %v3829 = vadd.f32 %v3452, %v3828
    %3830 = vmatprep.mubr.bf16.mxu0 0
    %3831 = vmatmul.mubr.bf16.gmra.mxu0 %v3491
    %v3832 = vpop.f32.mrf.mxu0
    %v3833 = vadd.f32 %v3448, %v3832
    %v3834 = vpop.f32.mrf.mxu0
    %v3835 = vadd.f32 %v3452, %v3834
    %v3836 = vpop.f32.mrf.mxu0
    %v3837 = vadd.f32 %v3448, %v3836
    %v3838 = vpop.f32.mrf.mxu0
    %v3839 = vadd.f32 %v3452, %v3838
    %3840 = vmatprep.mubr.bf16.mxu0 0
    %3841 = vmatmul.mubr.bf16.gmra.mxu0 %v3492
    %v3842 = vpop.f32.mrf.mxu0
    %v3843 = vadd.f32 %v3448, %v3842
    %v3844 = vpop.f32.mrf.mxu0
    %v3845 = vadd.f32 %v3452, %v3844
    %v3846 = vpop.f32.mrf.mxu0
    %v3847 = vadd.f32 %v3448, %v3846
    %v3848 = vpop.f32.mrf.mxu0
    %v3849 = vadd.f32 %v3452, %v3848
    %3850 = vmatprep.mubr.bf16.mxu0 0
    %3851 = vmatmul.mubr.bf16.gmra.mxu0 %v3493
    %v3852 = vpop.f32.mrf.mxu0
    %v3853 = vadd.f32 %v3448, %v3852
    %v3854 = vpop.f32.mrf.mxu0
    %v3855 = vadd.f32 %v3452, %v3854
    %v3856 = vpop.f32.mrf.mxu0
    %v3857 = vadd.f32 %v3448, %v3856
    %v3858 = vpop.f32.mrf.mxu0
    %v3859 = vadd.f32 %v3452, %v3858
    %3860 = vmatprep.mubr.bf16.mxu0 0
    %3861 = vmatmul.mubr.bf16.gmra.mxu0 %v3494
    %v3862 = vpop.f32.mrf.mxu0
    %v3863 = vadd.f32 %v3448, %v3862
    %v3864 = vpop.f32.mrf.mxu0
    %v3865 = vadd.f32 %v3452, %v3864
    %v3866 = vpop.f32.mrf.mxu0
    %v3867 = vadd.f32 %v3448, %v3866
    %v3868 = vpop.f32.mrf.mxu0
    %v3869 = vadd.f32 %v3452, %v3868
    %3870 = vmatprep.mubr.bf16.mxu0 0
    %3871 = vmatmul.mubr.bf16.gmra.mxu0 %v3495
    %v3872 = vpop.f32.mrf.mxu0
    %v3873 = vadd.f32 %v3448, %v3872
    %v3874 = vpop.f32.mrf.mxu0
    %v3875 = vadd.f32 %v3452, %v3874
    %v3876 = vpop.f32.mrf.mxu0
    %v3877 = vadd.f32 %v3448, %v3876
    %v3878 = vpop.f32.mrf.mxu0
    %v3879 = vadd.f32 %v3452, %v3878
    %3880 = vmatprep.mubr.bf16.mxu0 0
    %3881 = vmatmul.mubr.bf16.gmra.mxu0 %v3496
    %v3882 = vpop.f32.mrf.mxu0
    %v3883 = vadd.f32 %v3448, %v3882
    %v3884 = vpop.f32.mrf.mxu0
    %v3885 = vadd.f32 %v3452, %v3884
    %v3886 = vpop.f32.mrf.mxu0
    %v3887 = vadd.f32 %v3448, %v3886
    %v3888 = vpop.f32.mrf.mxu0
    %v3889 = vadd.f32 %v3452, %v3888
    %3890 = vdwg.mxu0
    %3891 = vst [vmem:[#allocation2] sm:$0xff] %v3700
    %3892 = vst [vmem:[#allocation2 + $0x8] sm:$0xff] %v3702
    %3893 = vst [vmem:[#allocation2 + $0x10] sm:$0xff] %v3813
    %3894 = vst [vmem:[#allocation2 + $0x18] sm:$0xff] %v3815
    %3895 = vst [vmem:[#allocation2 + $0x20] sm:$0xff] %v3704
    %3896 = vst [vmem:[#allocation2 + $0x28] sm:$0xff] %v3706
    %3897 = vst [vmem:[#allocation2 + $0x30] sm:$0xff] %v3817
    %3898 = vst [vmem:[#allocation2 + $0x38] sm:$0xff] %v3819
    %3899 = vst [vmem:[#allocation2 + $0x40] sm:$0xff] %v3710
    %3900 = vst [vmem:[#allocation2 + $0x48] sm:$0xff] %v3712
    %3901 = vst [vmem:[#allocation2 + $0x50] sm:$0xff] %v3823
    %3902 = vst [vmem:[#allocation2 + $0x58] sm:$0xff] %v3825
    %3903 = vst [vmem:[#allocation2 + $0x60] sm:$0xff] %v3714
    %3904 = vst [vmem:[#allocation2 + $0x68] sm:$0xff] %v3716
    %3905 = vst [vmem:[#allocation2 + $0x70] sm:$0xff] %v3827
    %3906 = vst [vmem:[#allocation2 + $0x78] sm:$0xff] %v3829
    %3907 = vst [vmem:[#allocation2 + $0x80] sm:$0xff] %v3720
    %3908 = vst [vmem:[#allocation2 + $0x88] sm:$0xff] %v3722
    %3909 = vst [vmem:[#allocation2 + $0x90] sm:$0xff] %v3833
    %3910 = vst [vmem:[#allocation2 + $0x98] sm:$0xff] %v3835
    %3911 = vst [vmem:[#allocation2 + $0xa0] sm:$0xff] %v3724
    %3912 = vst [vmem:[#allocation2 + $0xa8] sm:$0xff] %v3726
    %3913 = vst [vmem:[#allocation2 + $0xb0] sm:$0xff] %v3837
    %3914 = vst [vmem:[#allocation2 + $0xb8] sm:$0xff] %v3839
    %3915 = vst [vmem:[#allocation2 + $0xc0] sm:$0xff] %v3730
    %3916 = vst [vmem:[#allocation2 + $0xc8] sm:$0xff] %v3732
    %3917 = vst [vmem:[#allocation2 + $0xd0] sm:$0xff] %v3843
    %3918 = vst [vmem:[#allocation2 + $0xd8] sm:$0xff] %v3845
    %3919 = vst [vmem:[#allocation2 + $0xe0] sm:$0xff] %v3734
    %3920 = vst [vmem:[#allocation2 + $0xe8] sm:$0xff] %v3736
    %3921 = vst [vmem:[#allocation2 + $0xf0] sm:$0xff] %v3847
    %3922 = vst [vmem:[#allocation2 + $0xf8] sm:$0xff] %v3849
    %3923 = vst [vmem:[#allocation2 + $0x100] sm:$0xff] %v3740
    %3924 = vst [vmem:[#allocation2 + $0x108] sm:$0xff] %v3742
    %3925 = vst [vmem:[#allocation2 + $0x110] sm:$0xff] %v3853
    %3926 = vst [vmem:[#allocation2 + $0x118] sm:$0xff] %v3855
    %3927 = vst [vmem:[#allocation2 + $0x120] sm:$0xff] %v3744
    %3928 = vst [vmem:[#allocation2 + $0x128] sm:$0xff] %v3746
    %3929 = vst [vmem:[#allocation2 + $0x130] sm:$0xff] %v3857
    %3930 = vst [vmem:[#allocation2 + $0x138] sm:$0xff] %v3859
    %3931 = vst [vmem:[#allocation2 + $0x140] sm:$0xff] %v3750
    %3932 = vst [vmem:[#allocation2 + $0x148] sm:$0xff] %v3752
    %3933 = vst [vmem:[#allocation2 + $0x150] sm:$0xff] %v3863
    %3934 = vst [vmem:[#allocation2 + $0x158] sm:$0xff] %v3865
    %3935 = vst [vmem:[#allocation2 + $0x160] sm:$0xff] %v3754
    %3936 = vst [vmem:[#allocation2 + $0x168] sm:$0xff] %v3756
    %3937 = vst [vmem:[#allocation2 + $0x170] sm:$0xff] %v3867
    %3938 = vst [vmem:[#allocation2 + $0x178] sm:$0xff] %v3869
    %3939 = vst [vmem:[#allocation2 + $0x180] sm:$0xff] %v3760
    %3940 = vst [vmem:[#allocation2 + $0x188] sm:$0xff] %v3762
    %3941 = vst [vmem:[#allocation2 + $0x190] sm:$0xff] %v3873
    %3942 = vst [vmem:[#allocation2 + $0x198] sm:$0xff] %v3875
    %3943 = vst [vmem:[#allocation2 + $0x1a0] sm:$0xff] %v3764
    %3944 = vst [vmem:[#allocation2 + $0x1a8] sm:$0xff] %v3766
    %3945 = vst [vmem:[#allocation2 + $0x1b0] sm:$0xff] %v3877
    %3946 = vst [vmem:[#allocation2 + $0x1b8] sm:$0xff] %v3879
    %3947 = vst [vmem:[#allocation2 + $0x1c0] sm:$0xff] %v3770
    %3948 = vst [vmem:[#allocation2 + $0x1c8] sm:$0xff] %v3772
    %3949 = vst [vmem:[#allocation2 + $0x1d0] sm:$0xff] %v3883
    %3950 = vst [vmem:[#allocation2 + $0x1d8] sm:$0xff] %v3885
    %3951 = vst [vmem:[#allocation2 + $0x1e0] sm:$0xff] %v3774
    %3952 = vst [vmem:[#allocation2 + $0x1e8] sm:$0xff] %v3776
    %3953 = vst [vmem:[#allocation2 + $0x1f0] sm:$0xff] %v3887
    %3954 = vst [vmem:[#allocation2 + $0x1f8] sm:$0xff] %v3889
    %s3955 = scalar_lea.vmem %s3, 16
    %v3956 = vld [vmem:[%s3955] sm:$0xff]
    %v3957 = vld [vmem:[%s3955 + $0x8] sm:$0xff]
    %v3958 = vpack.c.bf16 %v3957, %v3956
    %s3959 = scalar_lea.vmem %s5, 16
    %v3960 = vld [vmem:[%s3959] sm:$0xff]
    %v3961 = vld [vmem:[%s3959 + $0x8] sm:$0xff]
    %v3962 = vld [vmem:[#allocation10] sm:$0xff]
    %v3963 = vld [vmem:[#allocation10 + $0x8] sm:$0xff]
    %v3964 = vld [vmem:[#allocation10 + $0x10] sm:$0xff]
    %v3965 = vld [vmem:[#allocation10 + $0x18] sm:$0xff]
    %v3966 = vld [vmem:[#allocation10 + $0x20] sm:$0xff]
    %v3967 = vld [vmem:[#allocation10 + $0x28] sm:$0xff]
    %v3968 = vld [vmem:[#allocation10 + $0x30] sm:$0xff]
    %v3969 = vld [vmem:[#allocation10 + $0x38] sm:$0xff]
    %v3970 = vld [vmem:[#allocation10 + $0x40] sm:$0xff]
    %v3971 = vld [vmem:[#allocation10 + $0x48] sm:$0xff]
    %v3972 = vld [vmem:[#allocation10 + $0x50] sm:$0xff]
    %v3973 = vld [vmem:[#allocation10 + $0x58] sm:$0xff]
    %v3974 = vld [vmem:[#allocation10 + $0x60] sm:$0xff]
    %v3975 = vld [vmem:[#allocation10 + $0x68] sm:$0xff]
    %v3976 = vld [vmem:[#allocation10 + $0x70] sm:$0xff]
    %v3977 = vld [vmem:[#allocation10 + $0x78] sm:$0xff]
    %v3978 = vld [vmem:[#allocation10 + $0x80] sm:$0xff]
    %v3979 = vld [vmem:[#allocation10 + $0x88] sm:$0xff]
    %v3980 = vld [vmem:[#allocation10 + $0x90] sm:$0xff]
    %v3981 = vld [vmem:[#allocation10 + $0x98] sm:$0xff]
    %v3982 = vld [vmem:[#allocation10 + $0xa0] sm:$0xff]
    %v3983 = vld [vmem:[#allocation10 + $0xa8] sm:$0xff]
    %v3984 = vld [vmem:[#allocation10 + $0xb0] sm:$0xff]
    %v3985 = vld [vmem:[#allocation10 + $0xb8] sm:$0xff]
    %v3986 = vld [vmem:[#allocation10 + $0xc0] sm:$0xff]
    %v3987 = vld [vmem:[#allocation10 + $0xc8] sm:$0xff]
    %v3988 = vld [vmem:[#allocation10 + $0xd0] sm:$0xff]
    %v3989 = vld [vmem:[#allocation10 + $0xd8] sm:$0xff]
    %v3990 = vld [vmem:[#allocation10 + $0xe0] sm:$0xff]
    %v3991 = vld [vmem:[#allocation10 + $0xe8] sm:$0xff]
    %v3992 = vld [vmem:[#allocation10 + $0xf0] sm:$0xff]
    %v3993 = vld [vmem:[#allocation10 + $0xf8] sm:$0xff]
    %v3994 = vld [vmem:[#allocation2] sm:$0xff]
    %v3995 = vld [vmem:[#allocation2 + $0x8] sm:$0xff]
    %v3996 = vld [vmem:[#allocation2 + $0x10] sm:$0xff]
    %v3997 = vld [vmem:[#allocation2 + $0x18] sm:$0xff]
    %v3998 = vld [vmem:[#allocation2 + $0x20] sm:$0xff]
    %v3999 = vld [vmem:[#allocation2 + $0x28] sm:$0xff]
    %v4000 = vld [vmem:[#allocation2 + $0x30] sm:$0xff]
    %v4001 = vld [vmem:[#allocation2 + $0x38] sm:$0xff]
    %v4034 = vunpack.c.l.b16 %v3962
    %v4035 = vunpack.c.h.b16 %v3962
    %v4036 = vunpack.c.l.b16 %v3963
    %v4037 = vunpack.c.h.b16 %v3963
    %v4038 = vunpack.c.l.b16 %v3964
    %v4039 = vunpack.c.h.b16 %v3964
    %v4040 = vunpack.c.l.b16 %v3965
    %v4041 = vunpack.c.h.b16 %v3965
    %v4042 = vunpack.c.l.b16 %v3966
    %v4043 = vunpack.c.h.b16 %v3966
    %v4044 = vunpack.c.l.b16 %v3967
    %v4045 = vunpack.c.h.b16 %v3967
    %v4046 = vunpack.c.l.b16 %v3968
    %v4047 = vunpack.c.h.b16 %v3968
    %v4048 = vunpack.c.l.b16 %v3969
    %v4049 = vunpack.c.h.b16 %v3969
    %v4050 = vunpack.c.l.b16 %v3970
    %v4051 = vunpack.c.h.b16 %v3970
    %v4052 = vunpack.c.l.b16 %v3971
    %v4053 = vunpack.c.h.b16 %v3971
    %v4054 = vunpack.c.l.b16 %v3972
    %v4055 = vunpack.c.h.b16 %v3972
    %v4056 = vunpack.c.l.b16 %v3973
    %v4057 = vunpack.c.h.b16 %v3973
    %v4058 = vunpack.c.l.b16 %v3974
    %v4059 = vunpack.c.h.b16 %v3974
    %v4060 = vunpack.c.l.b16 %v3975
    %v4061 = vunpack.c.h.b16 %v3975
    %v4062 = vunpack.c.l.b16 %v3976
    %v4063 = vunpack.c.h.b16 %v3976
    %v4064 = vunpack.c.l.b16 %v3977
    %v4065 = vunpack.c.h.b16 %v3977
    %v4066 = vunpack.c.l.b16 %v3978
    %v4067 = vunpack.c.h.b16 %v3978
    %v4068 = vunpack.c.l.b16 %v3979
    %v4069 = vunpack.c.h.b16 %v3979
    %v4070 = vunpack.c.l.b16 %v3980
    %v4071 = vunpack.c.h.b16 %v3980
    %v4072 = vunpack.c.l.b16 %v3981
    %v4073 = vunpack.c.h.b16 %v3981
    %v4074 = vunpack.c.l.b16 %v3982
    %v4075 = vunpack.c.h.b16 %v3982
    %v4076 = vunpack.c.l.b16 %v3983
    %v4077 = vunpack.c.h.b16 %v3983
    %v4078 = vunpack.c.l.b16 %v3984
    %v4079 = vunpack.c.h.b16 %v3984
    %v4080 = vunpack.c.l.b16 %v3985
    %v4081 = vunpack.c.h.b16 %v3985
    %v4082 = vunpack.c.l.b16 %v3986
    %v4083 = vunpack.c.h.b16 %v3986
    %v4084 = vunpack.c.l.b16 %v3987
    %v4085 = vunpack.c.h.b16 %v3987
    %v4086 = vunpack.c.l.b16 %v3988
    %v4087 = vunpack.c.h.b16 %v3988
    %v4088 = vunpack.c.l.b16 %v3989
    %v4089 = vunpack.c.h.b16 %v3989
    %v4090 = vunpack.c.l.b16 %v3990
    %v4091 = vunpack.c.h.b16 %v3990
    %v4092 = vunpack.c.l.b16 %v3991
    %v4093 = vunpack.c.h.b16 %v3991
    %v4094 = vunpack.c.l.b16 %v3992
    %v4095 = vunpack.c.h.b16 %v3992
    %v4096 = vunpack.c.l.b16 %v3993
    %v4097 = vunpack.c.h.b16 %v3993
    %v4098 = vpack.c.b16 %v4038, %v4034
    %v4099 = vpack.c.b16 %v4039, %v4035
    %v4100 = vpack.c.b16 %v4040, %v4036
    %v4101 = vpack.c.b16 %v4041, %v4037
    %v4102 = vpack.c.b16 %v4046, %v4042
    %v4103 = vpack.c.b16 %v4047, %v4043
    %v4104 = vpack.c.b16 %v4048, %v4044
    %v4105 = vpack.c.b16 %v4049, %v4045
    %v4106 = vpack.c.b16 %v4054, %v4050
    %v4107 = vpack.c.b16 %v4055, %v4051
    %v4108 = vpack.c.b16 %v4056, %v4052
    %v4109 = vpack.c.b16 %v4057, %v4053
    %v4110 = vpack.c.b16 %v4062, %v4058
    %v4111 = vpack.c.b16 %v4063, %v4059
    %v4112 = vpack.c.b16 %v4064, %v4060
    %v4113 = vpack.c.b16 %v4065, %v4061
    %v4114 = vpack.c.b16 %v4070, %v4066
    %v4115 = vpack.c.b16 %v4071, %v4067
    %v4116 = vpack.c.b16 %v4072, %v4068
    %v4117 = vpack.c.b16 %v4073, %v4069
    %v4118 = vpack.c.b16 %v4078, %v4074
    %v4119 = vpack.c.b16 %v4079, %v4075
    %v4120 = vpack.c.b16 %v4080, %v4076
    %v4121 = vpack.c.b16 %v4081, %v4077
    %v4122 = vpack.c.b16 %v4086, %v4082
    %v4123 = vpack.c.b16 %v4087, %v4083
    %v4124 = vpack.c.b16 %v4088, %v4084
    %v4125 = vpack.c.b16 %v4089, %v4085
    %v4126 = vpack.c.b16 %v4094, %v4090
    %v4127 = vpack.c.b16 %v4095, %v4091
    %v4128 = vpack.c.b16 %v4096, %v4092
    %v4129 = vpack.c.b16 %v4097, %v4093
    %4162 = vmatprep.subr.bf16.mxu0 %v4127
    %4163 = vmatpush1.bf16.msra.mxu0 %v4126
    %4164 = vmatprep.subr.bf16.mxu0 %v4123
    %4165 = vmatpush1.bf16.msra.mxu0 %v4122
    %4166 = vmatprep.subr.bf16.mxu0 %v4119
    %4167 = vmatpush1.bf16.msra.mxu0 %v4118
    %4168 = vmatprep.subr.bf16.mxu0 %v4115
    %4169 = vmatpush1.bf16.msra.mxu0 %v4114
    %4170 = vmatprep.subr.bf16.mxu0 %v4111
    %4171 = vmatpush1.bf16.msra.mxu0 %v4110
    %4172 = vmatprep.subr.bf16.mxu0 %v4107
    %4173 = vmatpush1.bf16.msra.mxu0 %v4106
    %4174 = vmatprep.subr.bf16.mxu0 %v4103
    %4175 = vmatpush1.bf16.msra.mxu0 %v4102
    %4176 = vmatprep.subr.bf16.mxu0 %v4099
    %4177 = vmatpush1.bf16.msra.mxu0 %v4098
    %4178 = vmatprep.subr.bf16.mxu0 0
    %4179 = vmatpush2.bf16.msra.mxu0 0
    %4180 = vmatprep.subr.bf16.mxu0 0
    %4181 = vmatpush2.bf16.msra.mxu0 0
    %4182 = vmatprep.subr.bf16.mxu0 0
    %4183 = vmatpush2.bf16.msra.mxu0 0
    %4184 = vmatprep.subr.bf16.mxu0 0
    %4185 = vmatpush2.bf16.msra.mxu0 0
    %4186 = vmatprep.subr.bf16.mxu0 0
    %4187 = vmatpush2.bf16.msra.mxu0 0
    %4188 = vmatprep.subr.bf16.mxu0 0
    %4189 = vmatpush2.bf16.msra.mxu0 0
    %4190 = vmatprep.subr.bf16.mxu0 0
    %4191 = vmatpush2.bf16.msra.mxu0 0
    %4192 = vmatprep.subr.bf16.mxu0 0
    %4193 = vmatpush2.bf16.msra.mxu0 0
    %4194 = vmatprep.mubr.bf16.mxu0 0
    %4195 = vmatmul.mubr.bf16.gmra.mxu0 %v3958
    %v4196 = vpop.f32.mrf.mxu0
    %v4197 = vadd.f32 %v3994, %v4196
    %v4198 = vpop.f32.mrf.mxu0
    %v4199 = vadd.f32 %v3995, %v4198
    %v4200 = vpop.f32.mrf.mxu0
    %v4201 = vadd.f32 %v3998, %v4200
    %v4202 = vpop.f32.mrf.mxu0
    %v4203 = vadd.f32 %v3999, %v4202
    %4204 = vdwg.mxu0
    %4205 = vmatprep.subr.bf16.mxu0 %v4129
    %4206 = vmatpush1.bf16.msra.mxu0 %v4128
    %4207 = vmatprep.subr.bf16.mxu0 %v4125
    %4208 = vmatpush1.bf16.msra.mxu0 %v4124
    %4209 = vmatprep.subr.bf16.mxu0 %v4121
    %4210 = vmatpush1.bf16.msra.mxu0 %v4120
    %4211 = vmatprep.subr.bf16.mxu0 %v4117
    %4212 = vmatpush1.bf16.msra.mxu0 %v4116
    %4213 = vmatprep.subr.bf16.mxu0 %v4113
    %4214 = vmatpush1.bf16.msra.mxu0 %v4112
    %4215 = vmatprep.subr.bf16.mxu0 %v4109
    %4216 = vmatpush1.bf16.msra.mxu0 %v4108
    %4217 = vmatprep.subr.bf16.mxu0 %v4105
    %4218 = vmatpush1.bf16.msra.mxu0 %v4104
    %4219 = vmatprep.subr.bf16.mxu0 %v4101
    %4220 = vmatpush1.bf16.msra.mxu0 %v4100
    %4221 = vmatprep.subr.bf16.mxu0 0
    %4222 = vmatpush2.bf16.msra.mxu0 0
    %4223 = vmatprep.subr.bf16.mxu0 0
    %4224 = vmatpush2.bf16.msra.mxu0 0
    %4225 = vmatprep.subr.bf16.mxu0 0
    %4226 = vmatpush2.bf16.msra.mxu0 0
    %4227 = vmatprep.subr.bf16.mxu0 0
    %4228 = vmatpush2.bf16.msra.mxu0 0
    %4229 = vmatprep.subr.bf16.mxu0 0
    %4230 = vmatpush2.bf16.msra.mxu0 0
    %4231 = vmatprep.subr.bf16.mxu0 0
    %4232 = vmatpush2.bf16.msra.mxu0 0
    %4233 = vmatprep.subr.bf16.mxu0 0
    %4234 = vmatpush2.bf16.msra.mxu0 0
    %4235 = vmatprep.subr.bf16.mxu0 0
    %4236 = vmatpush2.bf16.msra.mxu0 0
    %4237 = vmatprep.mubr.bf16.mxu0 0
    %4238 = vmatmul.mubr.bf16.gmra.mxu0 %v3958
    %v4239 = vpop.f32.mrf.mxu0
    %v4240 = vadd.f32 %v3996, %v4239
    %v4241 = vpop.f32.mrf.mxu0
    %v4242 = vadd.f32 %v3997, %v4241
    %v4243 = vpop.f32.mrf.mxu0
    %v4244 = vadd.f32 %v4000, %v4243
    %v4245 = vpop.f32.mrf.mxu0
    %v4246 = vadd.f32 %v4001, %v4245
    %4247 = vdwg.mxu0
    %v4248 = vxor.u32 %v4197, 2147483648
    %v4249 = vxor.u32 %v4199, 2147483648
    %v4250 = vxor.u32 %v4240, 2147483648
    %v4251 = vxor.u32 %v4201, 2147483648
    %v4252 = vxor.u32 %v4203, 2147483648
    %v4253 = vxor.u32 %v4244, 2147483648
    %v4254 = vmul.f32 %v4248, 1.442695
    %v4255 = vpow.pop %v4254
    %v4256 = vmul.f32 %v4249, 1.442695
    %v4257 = vpow.pop %v4256
    %v4258 = vmul.f32 %v4250, 1.442695
    %v4259 = vpow.pop %v4258
    %v4260 = vmul.f32 %v4251, 1.442695
    %v4261 = vpow.pop %v4260
    %v4262 = vmul.f32 %v4252, 1.442695
    %v4263 = vpow.pop %v4262
    %v4264 = vmul.f32 %v4253, 1.442695
    %v4265 = vpow.pop %v4264
    %v4266 = vadd.f32 %v4255, 1.0
    %v4267 = vadd.f32 %v4257, 1.0
    %v4268 = vadd.f32 %v4259, 1.0
    %v4269 = vadd.f32 %v4261, 1.0
    %v4270 = vadd.f32 %v4263, 1.0
    %v4271 = vadd.f32 %v4265, 1.0
    %v4272 = vrcp.pop %v4266
    %v4273 = vmul.f32 1.0, %v4272
    %v4274 = vrcp.pop %v4267
    %v4275 = vmul.f32 1.0, %v4274
    %v4276 = vrcp.pop %v4268
    %v4277 = vmul.f32 1.0, %v4276
    %v4278 = vrcp.pop %v4269
    %v4279 = vmul.f32 1.0, %v4278
    %v4280 = vrcp.pop %v4270
    %v4281 = vmul.f32 1.0, %v4280
    %v4282 = vrcp.pop %v4271
    %v4283 = vmul.f32 1.0, %v4282
    %v4284 = vtanh.pop %v4242
    %v4285 = vtanh.pop %v4246
    %v4286 = vmul.f32 %v4275, %v3960
    %v4287 = vmul.f32 %v4281, %v3961
    %v4288 = vmul.f32 %v4273, %v4284
    %v4289 = vmul.f32 %v4279, %v4285
    %v4290 = vadd.f32 %v4286, %v4288
    %v4291 = vadd.f32 %v4287, %v4289
    %v4292 = vtanh.pop %v4290
    %v4293 = vtanh.pop %v4291
    %v4294 = vmul.f32 %v4277, %v4292
    %v4295 = vmul.f32 %v4283, %v4293
    %v4296 = vpack.c.bf16 %v4295, %v4294
    %v4297 = vld [vmem:[#allocation2 + $0x40] sm:$0xff]
    %v4298 = vld [vmem:[#allocation2 + $0x48] sm:$0xff]
    %v4299 = vld [vmem:[#allocation2 + $0x50] sm:$0xff]
    %v4300 = vld [vmem:[#allocation2 + $0x58] sm:$0xff]
    %v4301 = vld [vmem:[#allocation2 + $0x60] sm:$0xff]
    %v4302 = vld [vmem:[#allocation2 + $0x68] sm:$0xff]
    %v4303 = vld [vmem:[#allocation2 + $0x70] sm:$0xff]
    %v4304 = vld [vmem:[#allocation2 + $0x78] sm:$0xff]
    %4305 = vmatprep.subr.bf16.mxu0 %v4127
    %4306 = vmatpush1.bf16.msra.mxu0 %v4126
    %4307 = vmatprep.subr.bf16.mxu0 %v4123
    %4308 = vmatpush1.bf16.msra.mxu0 %v4122
    %4309 = vmatprep.subr.bf16.mxu0 %v4119
    %4310 = vmatpush1.bf16.msra.mxu0 %v4118
    %4311 = vmatprep.subr.bf16.mxu0 %v4115
    %4312 = vmatpush1.bf16.msra.mxu0 %v4114
    %4313 = vmatprep.subr.bf16.mxu0 %v4111
    %4314 = vmatpush1.bf16.msra.mxu0 %v4110
    %4315 = vmatprep.subr.bf16.mxu0 %v4107
    %4316 = vmatpush1.bf16.msra.mxu0 %v4106
    %4317 = vmatprep.subr.bf16.mxu0 %v4103
    %4318 = vmatpush1.bf16.msra.mxu0 %v4102
    %4319 = vmatprep.subr.bf16.mxu0 %v4099
    %4320 = vmatpush1.bf16.msra.mxu0 %v4098
    %4321 = vmatprep.subr.bf16.mxu0 0
    %4322 = vmatpush2.bf16.msra.mxu0 0
    %4323 = vmatprep.subr.bf16.mxu0 0
    %4324 = vmatpush2.bf16.msra.mxu0 0
    %4325 = vmatprep.subr.bf16.mxu0 0
    %4326 = vmatpush2.bf16.msra.mxu0 0
    %4327 = vmatprep.subr.bf16.mxu0 0
    %4328 = vmatpush2.bf16.msra.mxu0 0
    %4329 = vmatprep.subr.bf16.mxu0 0
    %4330 = vmatpush2.bf16.msra.mxu0 0
    %4331 = vmatprep.subr.bf16.mxu0 0
    %4332 = vmatpush2.bf16.msra.mxu0 0
    %4333 = vmatprep.subr.bf16.mxu0 0
    %4334 = vmatpush2.bf16.msra.mxu0 0
    %4335 = vmatprep.subr.bf16.mxu0 0
    %4336 = vmatpush2.bf16.msra.mxu0 0
    %4337 = vmatprep.mubr.bf16.mxu0 0
    %4338 = vmatmul.mubr.bf16.gmra.mxu0 %v4296
    %v4339 = vpop.f32.mrf.mxu0
    %v4340 = vadd.f32 %v4297, %v4339
    %v4341 = vpop.f32.mrf.mxu0
    %v4342 = vadd.f32 %v4298, %v4341
    %v4343 = vpop.f32.mrf.mxu0
    %v4344 = vadd.f32 %v4301, %v4343
    %v4345 = vpop.f32.mrf.mxu0
    %v4346 = vadd.f32 %v4302, %v4345
    %4347 = vdwg.mxu0
    %4348 = vmatprep.subr.bf16.mxu0 %v4129
    %4349 = vmatpush1.bf16.msra.mxu0 %v4128
    %4350 = vmatprep.subr.bf16.mxu0 %v4125
    %4351 = vmatpush1.bf16.msra.mxu0 %v4124
    %4352 = vmatprep.subr.bf16.mxu0 %v4121
    %4353 = vmatpush1.bf16.msra.mxu0 %v4120
    %4354 = vmatprep.subr.bf16.mxu0 %v4117
    %4355 = vmatpush1.bf16.msra.mxu0 %v4116
    %4356 = vmatprep.subr.bf16.mxu0 %v4113
    %4357 = vmatpush1.bf16.msra.mxu0 %v4112
    %4358 = vmatprep.subr.bf16.mxu0 %v4109
    %4359 = vmatpush1.bf16.msra.mxu0 %v4108
    %4360 = vmatprep.subr.bf16.mxu0 %v4105
    %4361 = vmatpush1.bf16.msra.mxu0 %v4104
    %4362 = vmatprep.subr.bf16.mxu0 %v4101
    %4363 = vmatpush1.bf16.msra.mxu0 %v4100
    %4364 = vmatprep.subr.bf16.mxu0 0
    %4365 = vmatpush2.bf16.msra.mxu0 0
    %4366 = vmatprep.subr.bf16.mxu0 0
    %4367 = vmatpush2.bf16.msra.mxu0 0
    %4368 = vmatprep.subr.bf16.mxu0 0
    %4369 = vmatpush2.bf16.msra.mxu0 0
    %4370 = vmatprep.subr.bf16.mxu0 0
    %4371 = vmatpush2.bf16.msra.mxu0 0
    %4372 = vmatprep.subr.bf16.mxu0 0
    %4373 = vmatpush2.bf16.msra.mxu0 0
    %4374 = vmatprep.subr.bf16.mxu0 0
    %4375 = vmatpush2.bf16.msra.mxu0 0
    %4376 = vmatprep.subr.bf16.mxu0 0
    %4377 = vmatpush2.bf16.msra.mxu0 0
    %4378 = vmatprep.subr.bf16.mxu0 0
    %4379 = vmatpush2.bf16.msra.mxu0 0
    %4380 = vmatprep.mubr.bf16.mxu0 0
    %4381 = vmatmul.mubr.bf16.gmra.mxu0 %v4296
    %v4382 = vpop.f32.mrf.mxu0
    %v4383 = vadd.f32 %v4299, %v4382
    %v4384 = vpop.f32.mrf.mxu0
    %v4385 = vadd.f32 %v4300, %v4384
    %v4386 = vpop.f32.mrf.mxu0
    %v4387 = vadd.f32 %v4303, %v4386
    %v4388 = vpop.f32.mrf.mxu0
    %v4389 = vadd.f32 %v4304, %v4388
    %4390 = vdwg.mxu0
    %v4391 = vxor.u32 %v4340, 2147483648
    %v4392 = vxor.u32 %v4342, 2147483648
    %v4393 = vxor.u32 %v4383, 2147483648
    %v4394 = vxor.u32 %v4344, 2147483648
    %v4395 = vxor.u32 %v4346, 2147483648
    %v4396 = vxor.u32 %v4387, 2147483648
    %v4397 = vmul.f32 %v4391, 1.442695
    %v4398 = vpow.pop %v4397
    %v4399 = vmul.f32 %v4392, 1.442695
    %v4400 = vpow.pop %v4399
    %v4401 = vmul.f32 %v4393, 1.442695
    %v4402 = vpow.pop %v4401
    %v4403 = vmul.f32 %v4394, 1.442695
    %v4404 = vpow.pop %v4403
    %v4405 = vmul.f32 %v4395, 1.442695
    %v4406 = vpow.pop %v4405
    %v4407 = vmul.f32 %v4396, 1.442695
    %v4408 = vpow.pop %v4407
    %v4409 = vadd.f32 %v4398, 1.0
    %v4410 = vadd.f32 %v4400, 1.0
    %v4411 = vadd.f32 %v4402, 1.0
    %v4412 = vadd.f32 %v4404, 1.0
    %v4413 = vadd.f32 %v4406, 1.0
    %v4414 = vadd.f32 %v4408, 1.0
    %v4415 = vrcp.pop %v4409
    %v4416 = vmul.f32 1.0, %v4415
    %v4417 = vrcp.pop %v4410
    %v4418 = vmul.f32 1.0, %v4417
    %v4419 = vrcp.pop %v4411
    %v4420 = vmul.f32 1.0, %v4419
    %v4421 = vrcp.pop %v4412
    %v4422 = vmul.f32 1.0, %v4421
    %v4423 = vrcp.pop %v4413
    %v4424 = vmul.f32 1.0, %v4423
    %v4425 = vrcp.pop %v4414
    %v4426 = vmul.f32 1.0, %v4425
    %v4427 = vtanh.pop %v4385
    %v4428 = vtanh.pop %v4389
    %v4429 = vmul.f32 %v4418, %v4290
    %v4430 = vmul.f32 %v4424, %v4291
    %v4431 = vmul.f32 %v4416, %v4427
    %v4432 = vmul.f32 %v4422, %v4428
    %v4433 = vadd.f32 %v4429, %v4431
    %v4434 = vadd.f32 %v4430, %v4432
    %v4435 = vtanh.pop %v4433
    %v4436 = vtanh.pop %v4434
    %v4437 = vmul.f32 %v4420, %v4435
    %v4438 = vmul.f32 %v4426, %v4436
    %v4439 = vpack.c.bf16 %v4438, %v4437
    %v4440 = vld [vmem:[#allocation2 + $0x80] sm:$0xff]
    %v4441 = vld [vmem:[#allocation2 + $0x88] sm:$0xff]
    %v4442 = vld [vmem:[#allocation2 + $0x90] sm:$0xff]
    %v4443 = vld [vmem:[#allocation2 + $0x98] sm:$0xff]
    %v4444 = vld [vmem:[#allocation2 + $0xa0] sm:$0xff]
    %v4445 = vld [vmem:[#allocation2 + $0xa8] sm:$0xff]
    %v4446 = vld [vmem:[#allocation2 + $0xb0] sm:$0xff]
    %v4447 = vld [vmem:[#allocation2 + $0xb8] sm:$0xff]
    %4448 = vmatprep.subr.bf16.mxu0 %v4127
    %4449 = vmatpush1.bf16.msra.mxu0 %v4126
    %4450 = vmatprep.subr.bf16.mxu0 %v4123
    %4451 = vmatpush1.bf16.msra.mxu0 %v4122
    %4452 = vmatprep.subr.bf16.mxu0 %v4119
    %4453 = vmatpush1.bf16.msra.mxu0 %v4118
    %4454 = vmatprep.subr.bf16.mxu0 %v4115
    %4455 = vmatpush1.bf16.msra.mxu0 %v4114
    %4456 = vmatprep.subr.bf16.mxu0 %v4111
    %4457 = vmatpush1.bf16.msra.mxu0 %v4110
    %4458 = vmatprep.subr.bf16.mxu0 %v4107
    %4459 = vmatpush1.bf16.msra.mxu0 %v4106
    %4460 = vmatprep.subr.bf16.mxu0 %v4103
    %4461 = vmatpush1.bf16.msra.mxu0 %v4102
    %4462 = vmatprep.subr.bf16.mxu0 %v4099
    %4463 = vmatpush1.bf16.msra.mxu0 %v4098
    %4464 = vmatprep.subr.bf16.mxu0 0
    %4465 = vmatpush2.bf16.msra.mxu0 0
    %4466 = vmatprep.subr.bf16.mxu0 0
    %4467 = vmatpush2.bf16.msra.mxu0 0
    %4468 = vmatprep.subr.bf16.mxu0 0
    %4469 = vmatpush2.bf16.msra.mxu0 0
    %4470 = vmatprep.subr.bf16.mxu0 0
    %4471 = vmatpush2.bf16.msra.mxu0 0
    %4472 = vmatprep.subr.bf16.mxu0 0
    %4473 = vmatpush2.bf16.msra.mxu0 0
    %4474 = vmatprep.subr.bf16.mxu0 0
    %4475 = vmatpush2.bf16.msra.mxu0 0
    %4476 = vmatprep.subr.bf16.mxu0 0
    %4477 = vmatpush2.bf16.msra.mxu0 0
    %4478 = vmatprep.subr.bf16.mxu0 0
    %4479 = vmatpush2.bf16.msra.mxu0 0
    %4480 = vmatprep.mubr.bf16.mxu0 0
    %4481 = vmatmul.mubr.bf16.gmra.mxu0 %v4439
    %v4482 = vpop.f32.mrf.mxu0
    %v4483 = vadd.f32 %v4440, %v4482
    %v4484 = vpop.f32.mrf.mxu0
    %v4485 = vadd.f32 %v4441, %v4484
    %v4486 = vpop.f32.mrf.mxu0
    %v4487 = vadd.f32 %v4444, %v4486
    %v4488 = vpop.f32.mrf.mxu0
    %v4489 = vadd.f32 %v4445, %v4488
    %4490 = vdwg.mxu0
    %4491 = vmatprep.subr.bf16.mxu0 %v4129
    %4492 = vmatpush1.bf16.msra.mxu0 %v4128
    %4493 = vmatprep.subr.bf16.mxu0 %v4125
    %4494 = vmatpush1.bf16.msra.mxu0 %v4124
    %4495 = vmatprep.subr.bf16.mxu0 %v4121
    %4496 = vmatpush1.bf16.msra.mxu0 %v4120
    %4497 = vmatprep.subr.bf16.mxu0 %v4117
    %4498 = vmatpush1.bf16.msra.mxu0 %v4116
    %4499 = vmatprep.subr.bf16.mxu0 %v4113
    %4500 = vmatpush1.bf16.msra.mxu0 %v4112
    %4501 = vmatprep.subr.bf16.mxu0 %v4109
    %4502 = vmatpush1.bf16.msra.mxu0 %v4108
    %4503 = vmatprep.subr.bf16.mxu0 %v4105
    %4504 = vmatpush1.bf16.msra.mxu0 %v4104
    %4505 = vmatprep.subr.bf16.mxu0 %v4101
    %4506 = vmatpush1.bf16.msra.mxu0 %v4100
    %4507 = vmatprep.subr.bf16.mxu0 0
    %4508 = vmatpush2.bf16.msra.mxu0 0
    %4509 = vmatprep.subr.bf16.mxu0 0
    %4510 = vmatpush2.bf16.msra.mxu0 0
    %4511 = vmatprep.subr.bf16.mxu0 0
    %4512 = vmatpush2.bf16.msra.mxu0 0
    %4513 = vmatprep.subr.bf16.mxu0 0
    %4514 = vmatpush2.bf16.msra.mxu0 0
    %4515 = vmatprep.subr.bf16.mxu0 0
    %4516 = vmatpush2.bf16.msra.mxu0 0
    %4517 = vmatprep.subr.bf16.mxu0 0
    %4518 = vmatpush2.bf16.msra.mxu0 0
    %4519 = vmatprep.subr.bf16.mxu0 0
    %4520 = vmatpush2.bf16.msra.mxu0 0
    %4521 = vmatprep.subr.bf16.mxu0 0
    %4522 = vmatpush2.bf16.msra.mxu0 0
    %4523 = vmatprep.mubr.bf16.mxu0 0
    %4524 = vmatmul.mubr.bf16.gmra.mxu0 %v4439
    %v4525 = vpop.f32.mrf.mxu0
    %v4526 = vadd.f32 %v4442, %v4525
    %v4527 = vpop.f32.mrf.mxu0
    %v4528 = vadd.f32 %v4443, %v4527
    %v4529 = vpop.f32.mrf.mxu0
    %v4530 = vadd.f32 %v4446, %v4529
    %v4531 = vpop.f32.mrf.mxu0
    %v4532 = vadd.f32 %v4447, %v4531
    %4533 = vdwg.mxu0
    %v4534 = vxor.u32 %v4483, 2147483648
    %v4535 = vxor.u32 %v4485, 2147483648
    %v4536 = vxor.u32 %v4526, 2147483648
    %v4537 = vxor.u32 %v4487, 2147483648
    %v4538 = vxor.u32 %v4489, 2147483648
    %v4539 = vxor.u32 %v4530, 2147483648
    %v4540 = vmul.f32 %v4534, 1.442695
    %v4541 = vpow.pop %v4540
    %v4542 = vmul.f32 %v4535, 1.442695
    %v4543 = vpow.pop %v4542
    %v4544 = vmul.f32 %v4536, 1.442695
    %v4545 = vpow.pop %v4544
    %v4546 = vmul.f32 %v4537, 1.442695
    %v4547 = vpow.pop %v4546
    %v4548 = vmul.f32 %v4538, 1.442695
    %v4549 = vpow.pop %v4548
    %v4550 = vmul.f32 %v4539, 1.442695
    %v4551 = vpow.pop %v4550
    %v4552 = vadd.f32 %v4541, 1.0
    %v4553 = vadd.f32 %v4543, 1.0
    %v4554 = vadd.f32 %v4545, 1.0
    %v4555 = vadd.f32 %v4547, 1.0
    %v4556 = vadd.f32 %v4549, 1.0
    %v4557 = vadd.f32 %v4551, 1.0
    %v4558 = vrcp.pop %v4552
    %v4559 = vmul.f32 1.0, %v4558
    %v4560 = vrcp.pop %v4553
    %v4561 = vmul.f32 1.0, %v4560
    %v4562 = vrcp.pop %v4554
    %v4563 = vmul.f32 1.0, %v4562
    %v4564 = vrcp.pop %v4555
    %v4565 = vmul.f32 1.0, %v4564
    %v4566 = vrcp.pop %v4556
    %v4567 = vmul.f32 1.0, %v4566
    %v4568 = vrcp.pop %v4557
    %v4569 = vmul.f32 1.0, %v4568
    %v4570 = vtanh.pop %v4528
    %v4571 = vtanh.pop %v4532
    %v4572 = vmul.f32 %v4561, %v4433
    %v4573 = vmul.f32 %v4567, %v4434
    %v4574 = vmul.f32 %v4559, %v4570
    %v4575 = vmul.f32 %v4565, %v4571
    %v4576 = vadd.f32 %v4572, %v4574
    %v4577 = vadd.f32 %v4573, %v4575
    %v4578 = vtanh.pop %v4576
    %v4579 = vtanh.pop %v4577
    %v4580 = vmul.f32 %v4563, %v4578
    %v4581 = vmul.f32 %v4569, %v4579
    %v4582 = vpack.c.bf16 %v4581, %v4580
    %v4583 = vld [vmem:[#allocation2 + $0xc0] sm:$0xff]
    %v4584 = vld [vmem:[#allocation2 + $0xc8] sm:$0xff]
    %v4585 = vld [vmem:[#allocation2 + $0xd0] sm:$0xff]
    %v4586 = vld [vmem:[#allocation2 + $0xd8] sm:$0xff]
    %v4587 = vld [vmem:[#allocation2 + $0xe0] sm:$0xff]
    %v4588 = vld [vmem:[#allocation2 + $0xe8] sm:$0xff]
    %v4589 = vld [vmem:[#allocation2 + $0xf0] sm:$0xff]
    %v4590 = vld [vmem:[#allocation2 + $0xf8] sm:$0xff]
    %4591 = vmatprep.subr.bf16.mxu0 %v4127
    %4592 = vmatpush1.bf16.msra.mxu0 %v4126
    %4593 = vmatprep.subr.bf16.mxu0 %v4123
    %4594 = vmatpush1.bf16.msra.mxu0 %v4122
    %4595 = vmatprep.subr.bf16.mxu0 %v4119
    %4596 = vmatpush1.bf16.msra.mxu0 %v4118
    %4597 = vmatprep.subr.bf16.mxu0 %v4115
    %4598 = vmatpush1.bf16.msra.mxu0 %v4114
    %4599 = vmatprep.subr.bf16.mxu0 %v4111
    %4600 = vmatpush1.bf16.msra.mxu0 %v4110
    %4601 = vmatprep.subr.bf16.mxu0 %v4107
    %4602 = vmatpush1.bf16.msra.mxu0 %v4106
    %4603 = vmatprep.subr.bf16.mxu0 %v4103
    %4604 = vmatpush1.bf16.msra.mxu0 %v4102
    %4605 = vmatprep.subr.bf16.mxu0 %v4099
    %4606 = vmatpush1.bf16.msra.mxu0 %v4098
    %4607 = vmatprep.subr.bf16.mxu0 0
    %4608 = vmatpush2.bf16.msra.mxu0 0
    %4609 = vmatprep.subr.bf16.mxu0 0
    %4610 = vmatpush2.bf16.msra.mxu0 0
    %4611 = vmatprep.subr.bf16.mxu0 0
    %4612 = vmatpush2.bf16.msra.mxu0 0
    %4613 = vmatprep.subr.bf16.mxu0 0
    %4614 = vmatpush2.bf16.msra.mxu0 0
    %4615 = vmatprep.subr.bf16.mxu0 0
    %4616 = vmatpush2.bf16.msra.mxu0 0
    %4617 = vmatprep.subr.bf16.mxu0 0
    %4618 = vmatpush2.bf16.msra.mxu0 0
    %4619 = vmatprep.subr.bf16.mxu0 0
    %4620 = vmatpush2.bf16.msra.mxu0 0
    %4621 = vmatprep.subr.bf16.mxu0 0
    %4622 = vmatpush2.bf16.msra.mxu0 0
    %4623 = vmatprep.mubr.bf16.mxu0 0
    %4624 = vmatmul.mubr.bf16.gmra.mxu0 %v4582
    %v4625 = vpop.f32.mrf.mxu0
    %v4626 = vadd.f32 %v4583, %v4625
    %v4627 = vpop.f32.mrf.mxu0
    %v4628 = vadd.f32 %v4584, %v4627
    %v4629 = vpop.f32.mrf.mxu0
    %v4630 = vadd.f32 %v4587, %v4629
    %v4631 = vpop.f32.mrf.mxu0
    %v4632 = vadd.f32 %v4588, %v4631
    %4633 = vdwg.mxu0
    %4634 = vmatprep.subr.bf16.mxu0 %v4129
    %4635 = vmatpush1.bf16.msra.mxu0 %v4128
    %4636 = vmatprep.subr.bf16.mxu0 %v4125
    %4637 = vmatpush1.bf16.msra.mxu0 %v4124
    %4638 = vmatprep.subr.bf16.mxu0 %v4121
    %4639 = vmatpush1.bf16.msra.mxu0 %v4120
    %4640 = vmatprep.subr.bf16.mxu0 %v4117
    %4641 = vmatpush1.bf16.msra.mxu0 %v4116
    %4642 = vmatprep.subr.bf16.mxu0 %v4113
    %4643 = vmatpush1.bf16.msra.mxu0 %v4112
    %4644 = vmatprep.subr.bf16.mxu0 %v4109
    %4645 = vmatpush1.bf16.msra.mxu0 %v4108
    %4646 = vmatprep.subr.bf16.mxu0 %v4105
    %4647 = vmatpush1.bf16.msra.mxu0 %v4104
    %4648 = vmatprep.subr.bf16.mxu0 %v4101
    %4649 = vmatpush1.bf16.msra.mxu0 %v4100
    %4650 = vmatprep.subr.bf16.mxu0 0
    %4651 = vmatpush2.bf16.msra.mxu0 0
    %4652 = vmatprep.subr.bf16.mxu0 0
    %4653 = vmatpush2.bf16.msra.mxu0 0
    %4654 = vmatprep.subr.bf16.mxu0 0
    %4655 = vmatpush2.bf16.msra.mxu0 0
    %4656 = vmatprep.subr.bf16.mxu0 0
    %4657 = vmatpush2.bf16.msra.mxu0 0
    %4658 = vmatprep.subr.bf16.mxu0 0
    %4659 = vmatpush2.bf16.msra.mxu0 0
    %4660 = vmatprep.subr.bf16.mxu0 0
    %4661 = vmatpush2.bf16.msra.mxu0 0
    %4662 = vmatprep.subr.bf16.mxu0 0
    %4663 = vmatpush2.bf16.msra.mxu0 0
    %4664 = vmatprep.subr.bf16.mxu0 0
    %4665 = vmatpush2.bf16.msra.mxu0 0
    %4666 = vmatprep.mubr.bf16.mxu0 0
    %4667 = vmatmul.mubr.bf16.gmra.mxu0 %v4582
    %v4668 = vpop.f32.mrf.mxu0
    %v4669 = vadd.f32 %v4585, %v4668
    %v4670 = vpop.f32.mrf.mxu0
    %v4671 = vadd.f32 %v4586, %v4670
    %v4672 = vpop.f32.mrf.mxu0
    %v4673 = vadd.f32 %v4589, %v4672
    %v4674 = vpop.f32.mrf.mxu0
    %v4675 = vadd.f32 %v4590, %v4674
    %4676 = vdwg.mxu0
    %v4677 = vxor.u32 %v4626, 2147483648
    %v4678 = vxor.u32 %v4628, 2147483648
    %v4679 = vxor.u32 %v4669, 2147483648
    %v4680 = vxor.u32 %v4630, 2147483648
    %v4681 = vxor.u32 %v4632, 2147483648
    %v4682 = vxor.u32 %v4673, 2147483648
    %v4683 = vmul.f32 %v4677, 1.442695
    %v4684 = vpow.pop %v4683
    %v4685 = vmul.f32 %v4678, 1.442695
    %v4686 = vpow.pop %v4685
    %v4687 = vmul.f32 %v4679, 1.442695
    %v4688 = vpow.pop %v4687
    %v4689 = vmul.f32 %v4680, 1.442695
    %v4690 = vpow.pop %v4689
    %v4691 = vmul.f32 %v4681, 1.442695
    %v4692 = vpow.pop %v4691
    %v4693 = vmul.f32 %v4682, 1.442695
    %v4694 = vpow.pop %v4693
    %v4695 = vadd.f32 %v4684, 1.0
    %v4696 = vadd.f32 %v4686, 1.0
    %v4697 = vadd.f32 %v4688, 1.0
    %v4698 = vadd.f32 %v4690, 1.0
    %v4699 = vadd.f32 %v4692, 1.0
    %v4700 = vadd.f32 %v4694, 1.0
    %v4701 = vrcp.pop %v4695
    %v4702 = vmul.f32 1.0, %v4701
    %v4703 = vrcp.pop %v4696
    %v4704 = vmul.f32 1.0, %v4703
    %v4705 = vrcp.pop %v4697
    %v4706 = vmul.f32 1.0, %v4705
    %v4707 = vrcp.pop %v4698
    %v4708 = vmul.f32 1.0, %v4707
    %v4709 = vrcp.pop %v4699
    %v4710 = vmul.f32 1.0, %v4709
    %v4711 = vrcp.pop %v4700
    %v4712 = vmul.f32 1.0, %v4711
    %v4713 = vtanh.pop %v4671
    %v4714 = vtanh.pop %v4675
    %v4715 = vmul.f32 %v4704, %v4576
    %v4716 = vmul.f32 %v4710, %v4577
    %v4717 = vmul.f32 %v4702, %v4713
    %v4718 = vmul.f32 %v4708, %v4714
    %v4719 = vadd.f32 %v4715, %v4717
    %v4720 = vadd.f32 %v4716, %v4718
    %v4721 = vtanh.pop %v4719
    %v4722 = vtanh.pop %v4720
    %v4723 = vmul.f32 %v4706, %v4721
    %v4724 = vmul.f32 %v4712, %v4722
    %v4725 = vpack.c.bf16 %v4724, %v4723
    %v4726 = vld [vmem:[#allocation2 + $0x100] sm:$0xff]
    %v4727 = vld [vmem:[#allocation2 + $0x108] sm:$0xff]
    %v4728 = vld [vmem:[#allocation2 + $0x110] sm:$0xff]
    %v4729 = vld [vmem:[#allocation2 + $0x118] sm:$0xff]
    %v4730 = vld [vmem:[#allocation2 + $0x120] sm:$0xff]
    %v4731 = vld [vmem:[#allocation2 + $0x128] sm:$0xff]
    %v4732 = vld [vmem:[#allocation2 + $0x130] sm:$0xff]
    %v4733 = vld [vmem:[#allocation2 + $0x138] sm:$0xff]
    %4734 = vmatprep.subr.bf16.mxu0 %v4127
    %4735 = vmatpush1.bf16.msra.mxu0 %v4126
    %4736 = vmatprep.subr.bf16.mxu0 %v4123
    %4737 = vmatpush1.bf16.msra.mxu0 %v4122
    %4738 = vmatprep.subr.bf16.mxu0 %v4119
    %4739 = vmatpush1.bf16.msra.mxu0 %v4118
    %4740 = vmatprep.subr.bf16.mxu0 %v4115
    %4741 = vmatpush1.bf16.msra.mxu0 %v4114
    %4742 = vmatprep.subr.bf16.mxu0 %v4111
    %4743 = vmatpush1.bf16.msra.mxu0 %v4110
    %4744 = vmatprep.subr.bf16.mxu0 %v4107
    %4745 = vmatpush1.bf16.msra.mxu0 %v4106
    %4746 = vmatprep.subr.bf16.mxu0 %v4103
    %4747 = vmatpush1.bf16.msra.mxu0 %v4102
    %4748 = vmatprep.subr.bf16.mxu0 %v4099
    %4749 = vmatpush1.bf16.msra.mxu0 %v4098
    %4750 = vmatprep.subr.bf16.mxu0 0
    %4751 = vmatpush2.bf16.msra.mxu0 0
    %4752 = vmatprep.subr.bf16.mxu0 0
    %4753 = vmatpush2.bf16.msra.mxu0 0
    %4754 = vmatprep.subr.bf16.mxu0 0
    %4755 = vmatpush2.bf16.msra.mxu0 0
    %4756 = vmatprep.subr.bf16.mxu0 0
    %4757 = vmatpush2.bf16.msra.mxu0 0
    %4758 = vmatprep.subr.bf16.mxu0 0
    %4759 = vmatpush2.bf16.msra.mxu0 0
    %4760 = vmatprep.subr.bf16.mxu0 0
    %4761 = vmatpush2.bf16.msra.mxu0 0
    %4762 = vmatprep.subr.bf16.mxu0 0
    %4763 = vmatpush2.bf16.msra.mxu0 0
    %4764 = vmatprep.subr.bf16.mxu0 0
    %4765 = vmatpush2.bf16.msra.mxu0 0
    %4766 = vmatprep.mubr.bf16.mxu0 0
    %4767 = vmatmul.mubr.bf16.gmra.mxu0 %v4725
    %v4768 = vpop.f32.mrf.mxu0
    %v4769 = vadd.f32 %v4726, %v4768
    %v4770 = vpop.f32.mrf.mxu0
    %v4771 = vadd.f32 %v4727, %v4770
    %v4772 = vpop.f32.mrf.mxu0
    %v4773 = vadd.f32 %v4730, %v4772
    %v4774 = vpop.f32.mrf.mxu0
    %v4775 = vadd.f32 %v4731, %v4774
    %4776 = vdwg.mxu0
    %4777 = vmatprep.subr.bf16.mxu0 %v4129
    %4778 = vmatpush1.bf16.msra.mxu0 %v4128
    %4779 = vmatprep.subr.bf16.mxu0 %v4125
    %4780 = vmatpush1.bf16.msra.mxu0 %v4124
    %4781 = vmatprep.subr.bf16.mxu0 %v4121
    %4782 = vmatpush1.bf16.msra.mxu0 %v4120
    %4783 = vmatprep.subr.bf16.mxu0 %v4117
    %4784 = vmatpush1.bf16.msra.mxu0 %v4116
    %4785 = vmatprep.subr.bf16.mxu0 %v4113
    %4786 = vmatpush1.bf16.msra.mxu0 %v4112
    %4787 = vmatprep.subr.bf16.mxu0 %v4109
    %4788 = vmatpush1.bf16.msra.mxu0 %v4108
    %4789 = vmatprep.subr.bf16.mxu0 %v4105
    %4790 = vmatpush1.bf16.msra.mxu0 %v4104
    %4791 = vmatprep.subr.bf16.mxu0 %v4101
    %4792 = vmatpush1.bf16.msra.mxu0 %v4100
    %4793 = vmatprep.subr.bf16.mxu0 0
    %4794 = vmatpush2.bf16.msra.mxu0 0
    %4795 = vmatprep.subr.bf16.mxu0 0
    %4796 = vmatpush2.bf16.msra.mxu0 0
    %4797 = vmatprep.subr.bf16.mxu0 0
    %4798 = vmatpush2.bf16.msra.mxu0 0
    %4799 = vmatprep.subr.bf16.mxu0 0
    %4800 = vmatpush2.bf16.msra.mxu0 0
    %4801 = vmatprep.subr.bf16.mxu0 0
    %4802 = vmatpush2.bf16.msra.mxu0 0
    %4803 = vmatprep.subr.bf16.mxu0 0
    %4804 = vmatpush2.bf16.msra.mxu0 0
    %4805 = vmatprep.subr.bf16.mxu0 0
    %4806 = vmatpush2.bf16.msra.mxu0 0
    %4807 = vmatprep.subr.bf16.mxu0 0
    %4808 = vmatpush2.bf16.msra.mxu0 0
    %4809 = vmatprep.mubr.bf16.mxu0 0
    %4810 = vmatmul.mubr.bf16.gmra.mxu0 %v4725
    %v4811 = vpop.f32.mrf.mxu0
    %v4812 = vadd.f32 %v4728, %v4811
    %v4813 = vpop.f32.mrf.mxu0
    %v4814 = vadd.f32 %v4729, %v4813
    %v4815 = vpop.f32.mrf.mxu0
    %v4816 = vadd.f32 %v4732, %v4815
    %v4817 = vpop.f32.mrf.mxu0
    %v4818 = vadd.f32 %v4733, %v4817
    %4819 = vdwg.mxu0
    %v4820 = vxor.u32 %v4769, 2147483648
    %v4821 = vxor.u32 %v4771, 2147483648
    %v4822 = vxor.u32 %v4812, 2147483648
    %v4823 = vxor.u32 %v4773, 2147483648
    %v4824 = vxor.u32 %v4775, 2147483648
    %v4825 = vxor.u32 %v4816, 2147483648
    %v4826 = vmul.f32 %v4820, 1.442695
    %v4827 = vpow.pop %v4826
    %v4828 = vmul.f32 %v4821, 1.442695
    %v4829 = vpow.pop %v4828
    %v4830 = vmul.f32 %v4822, 1.442695
    %v4831 = vpow.pop %v4830
    %v4832 = vmul.f32 %v4823, 1.442695
    %v4833 = vpow.pop %v4832
    %v4834 = vmul.f32 %v4824, 1.442695
    %v4835 = vpow.pop %v4834
    %v4836 = vmul.f32 %v4825, 1.442695
    %v4837 = vpow.pop %v4836
    %v4838 = vadd.f32 %v4827, 1.0
    %v4839 = vadd.f32 %v4829, 1.0
    %v4840 = vadd.f32 %v4831, 1.0
    %v4841 = vadd.f32 %v4833, 1.0
    %v4842 = vadd.f32 %v4835, 1.0
    %v4843 = vadd.f32 %v4837, 1.0
    %v4844 = vrcp.pop %v4838
    %v4845 = vmul.f32 1.0, %v4844
    %v4846 = vrcp.pop %v4839
    %v4847 = vmul.f32 1.0, %v4846
    %v4848 = vrcp.pop %v4840
    %v4849 = vmul.f32 1.0, %v4848
    %v4850 = vrcp.pop %v4841
    %v4851 = vmul.f32 1.0, %v4850
    %v4852 = vrcp.pop %v4842
    %v4853 = vmul.f32 1.0, %v4852
    %v4854 = vrcp.pop %v4843
    %v4855 = vmul.f32 1.0, %v4854
    %v4856 = vtanh.pop %v4814
    %v4857 = vtanh.pop %v4818
    %v4858 = vmul.f32 %v4847, %v4719
    %v4859 = vmul.f32 %v4853, %v4720
    %v4860 = vmul.f32 %v4845, %v4856
    %v4861 = vmul.f32 %v4851, %v4857
    %v4862 = vadd.f32 %v4858, %v4860
    %v4863 = vadd.f32 %v4859, %v4861
    %v4864 = vtanh.pop %v4862
    %v4865 = vtanh.pop %v4863
    %v4866 = vmul.f32 %v4849, %v4864
    %v4867 = vmul.f32 %v4855, %v4865
    %v4868 = vpack.c.bf16 %v4867, %v4866
    %v4869 = vld [vmem:[#allocation2 + $0x140] sm:$0xff]
    %v4870 = vld [vmem:[#allocation2 + $0x148] sm:$0xff]
    %v4871 = vld [vmem:[#allocation2 + $0x150] sm:$0xff]
    %v4872 = vld [vmem:[#allocation2 + $0x158] sm:$0xff]
    %v4873 = vld [vmem:[#allocation2 + $0x160] sm:$0xff]
    %v4874 = vld [vmem:[#allocation2 + $0x168] sm:$0xff]
    %v4875 = vld [vmem:[#allocation2 + $0x170] sm:$0xff]
    %v4876 = vld [vmem:[#allocation2 + $0x178] sm:$0xff]
    %4877 = vmatprep.subr.bf16.mxu0 %v4127
    %4878 = vmatpush1.bf16.msra.mxu0 %v4126
    %4879 = vmatprep.subr.bf16.mxu0 %v4123
    %4880 = vmatpush1.bf16.msra.mxu0 %v4122
    %4881 = vmatprep.subr.bf16.mxu0 %v4119
    %4882 = vmatpush1.bf16.msra.mxu0 %v4118
    %4883 = vmatprep.subr.bf16.mxu0 %v4115
    %4884 = vmatpush1.bf16.msra.mxu0 %v4114
    %4885 = vmatprep.subr.bf16.mxu0 %v4111
    %4886 = vmatpush1.bf16.msra.mxu0 %v4110
    %4887 = vmatprep.subr.bf16.mxu0 %v4107
    %4888 = vmatpush1.bf16.msra.mxu0 %v4106
    %4889 = vmatprep.subr.bf16.mxu0 %v4103
    %4890 = vmatpush1.bf16.msra.mxu0 %v4102
    %4891 = vmatprep.subr.bf16.mxu0 %v4099
    %4892 = vmatpush1.bf16.msra.mxu0 %v4098
    %4893 = vmatprep.subr.bf16.mxu0 0
    %4894 = vmatpush2.bf16.msra.mxu0 0
    %4895 = vmatprep.subr.bf16.mxu0 0
    %4896 = vmatpush2.bf16.msra.mxu0 0
    %4897 = vmatprep.subr.bf16.mxu0 0
    %4898 = vmatpush2.bf16.msra.mxu0 0
    %4899 = vmatprep.subr.bf16.mxu0 0
    %4900 = vmatpush2.bf16.msra.mxu0 0
    %4901 = vmatprep.subr.bf16.mxu0 0
    %4902 = vmatpush2.bf16.msra.mxu0 0
    %4903 = vmatprep.subr.bf16.mxu0 0
    %4904 = vmatpush2.bf16.msra.mxu0 0
    %4905 = vmatprep.subr.bf16.mxu0 0
    %4906 = vmatpush2.bf16.msra.mxu0 0
    %4907 = vmatprep.subr.bf16.mxu0 0
    %4908 = vmatpush2.bf16.msra.mxu0 0
    %4909 = vmatprep.mubr.bf16.mxu0 0
    %4910 = vmatmul.mubr.bf16.gmra.mxu0 %v4868
    %v4911 = vpop.f32.mrf.mxu0
    %v4912 = vadd.f32 %v4869, %v4911
    %v4913 = vpop.f32.mrf.mxu0
    %v4914 = vadd.f32 %v4870, %v4913
    %v4915 = vpop.f32.mrf.mxu0
    %v4916 = vadd.f32 %v4873, %v4915
    %v4917 = vpop.f32.mrf.mxu0
    %v4918 = vadd.f32 %v4874, %v4917
    %4919 = vdwg.mxu0
    %4920 = vmatprep.subr.bf16.mxu0 %v4129
    %4921 = vmatpush1.bf16.msra.mxu0 %v4128
    %4922 = vmatprep.subr.bf16.mxu0 %v4125
    %4923 = vmatpush1.bf16.msra.mxu0 %v4124
    %4924 = vmatprep.subr.bf16.mxu0 %v4121
    %4925 = vmatpush1.bf16.msra.mxu0 %v4120
    %4926 = vmatprep.subr.bf16.mxu0 %v4117
    %4927 = vmatpush1.bf16.msra.mxu0 %v4116
    %4928 = vmatprep.subr.bf16.mxu0 %v4113
    %4929 = vmatpush1.bf16.msra.mxu0 %v4112
    %4930 = vmatprep.subr.bf16.mxu0 %v4109
    %4931 = vmatpush1.bf16.msra.mxu0 %v4108
    %4932 = vmatprep.subr.bf16.mxu0 %v4105
    %4933 = vmatpush1.bf16.msra.mxu0 %v4104
    %4934 = vmatprep.subr.bf16.mxu0 %v4101
    %4935 = vmatpush1.bf16.msra.mxu0 %v4100
    %4936 = vmatprep.subr.bf16.mxu0 0
    %4937 = vmatpush2.bf16.msra.mxu0 0
    %4938 = vmatprep.subr.bf16.mxu0 0
    %4939 = vmatpush2.bf16.msra.mxu0 0
    %4940 = vmatprep.subr.bf16.mxu0 0
    %4941 = vmatpush2.bf16.msra.mxu0 0
    %4942 = vmatprep.subr.bf16.mxu0 0
    %4943 = vmatpush2.bf16.msra.mxu0 0
    %4944 = vmatprep.subr.bf16.mxu0 0
    %4945 = vmatpush2.bf16.msra.mxu0 0
    %4946 = vmatprep.subr.bf16.mxu0 0
    %4947 = vmatpush2.bf16.msra.mxu0 0
    %4948 = vmatprep.subr.bf16.mxu0 0
    %4949 = vmatpush2.bf16.msra.mxu0 0
    %4950 = vmatprep.subr.bf16.mxu0 0
    %4951 = vmatpush2.bf16.msra.mxu0 0
    %4952 = vmatprep.mubr.bf16.mxu0 0
    %4953 = vmatmul.mubr.bf16.gmra.mxu0 %v4868
    %v4954 = vpop.f32.mrf.mxu0
    %v4955 = vadd.f32 %v4871, %v4954
    %v4956 = vpop.f32.mrf.mxu0
    %v4957 = vadd.f32 %v4872, %v4956
    %v4958 = vpop.f32.mrf.mxu0
    %v4959 = vadd.f32 %v4875, %v4958
    %v4960 = vpop.f32.mrf.mxu0
    %v4961 = vadd.f32 %v4876, %v4960
    %4962 = vdwg.mxu0
    %v4963 = vxor.u32 %v4912, 2147483648
    %v4964 = vxor.u32 %v4914, 2147483648
    %v4965 = vxor.u32 %v4955, 2147483648
    %v4966 = vxor.u32 %v4916, 2147483648
    %v4967 = vxor.u32 %v4918, 2147483648
    %v4968 = vxor.u32 %v4959, 2147483648
    %v4969 = vmul.f32 %v4963, 1.442695
    %v4970 = vpow.pop %v4969
    %v4971 = vmul.f32 %v4964, 1.442695
    %v4972 = vpow.pop %v4971
    %v4973 = vmul.f32 %v4965, 1.442695
    %v4974 = vpow.pop %v4973
    %v4975 = vmul.f32 %v4966, 1.442695
    %v4976 = vpow.pop %v4975
    %v4977 = vmul.f32 %v4967, 1.442695
    %v4978 = vpow.pop %v4977
    %v4979 = vmul.f32 %v4968, 1.442695
    %v4980 = vpow.pop %v4979
    %v4981 = vadd.f32 %v4970, 1.0
    %v4982 = vadd.f32 %v4972, 1.0
    %v4983 = vadd.f32 %v4974, 1.0
    %v4984 = vadd.f32 %v4976, 1.0
    %v4985 = vadd.f32 %v4978, 1.0
    %v4986 = vadd.f32 %v4980, 1.0
    %v4987 = vrcp.pop %v4981
    %v4988 = vmul.f32 1.0, %v4987
    %v4989 = vrcp.pop %v4982
    %v4990 = vmul.f32 1.0, %v4989
    %v4991 = vrcp.pop %v4983
    %v4992 = vmul.f32 1.0, %v4991
    %v4993 = vrcp.pop %v4984
    %v4994 = vmul.f32 1.0, %v4993
    %v4995 = vrcp.pop %v4985
    %v4996 = vmul.f32 1.0, %v4995
    %v4997 = vrcp.pop %v4986
    %v4998 = vmul.f32 1.0, %v4997
    %v4999 = vtanh.pop %v4957
    %v5000 = vtanh.pop %v4961
    %v5001 = vmul.f32 %v4990, %v4862
    %v5002 = vmul.f32 %v4996, %v4863
    %v5003 = vmul.f32 %v4988, %v4999
    %v5004 = vmul.f32 %v4994, %v5000
    %v5005 = vadd.f32 %v5001, %v5003
    %v5006 = vadd.f32 %v5002, %v5004
    %v5007 = vtanh.pop %v5005
    %v5008 = vtanh.pop %v5006
    %v5009 = vmul.f32 %v4992, %v5007
    %v5010 = vmul.f32 %v4998, %v5008
    %v5011 = vpack.c.bf16 %v5010, %v5009
    %v5012 = vld [vmem:[#allocation2 + $0x180] sm:$0xff]
    %v5013 = vld [vmem:[#allocation2 + $0x188] sm:$0xff]
    %v5014 = vld [vmem:[#allocation2 + $0x190] sm:$0xff]
    %v5015 = vld [vmem:[#allocation2 + $0x198] sm:$0xff]
    %v5016 = vld [vmem:[#allocation2 + $0x1a0] sm:$0xff]
    %v5017 = vld [vmem:[#allocation2 + $0x1a8] sm:$0xff]
    %v5018 = vld [vmem:[#allocation2 + $0x1b0] sm:$0xff]
    %v5019 = vld [vmem:[#allocation2 + $0x1b8] sm:$0xff]
    %5020 = vmatprep.subr.bf16.mxu0 %v4127
    %5021 = vmatpush1.bf16.msra.mxu0 %v4126
    %5022 = vmatprep.subr.bf16.mxu0 %v4123
    %5023 = vmatpush1.bf16.msra.mxu0 %v4122
    %5024 = vmatprep.subr.bf16.mxu0 %v4119
    %5025 = vmatpush1.bf16.msra.mxu0 %v4118
    %5026 = vmatprep.subr.bf16.mxu0 %v4115
    %5027 = vmatpush1.bf16.msra.mxu0 %v4114
    %5028 = vmatprep.subr.bf16.mxu0 %v4111
    %5029 = vmatpush1.bf16.msra.mxu0 %v4110
    %5030 = vmatprep.subr.bf16.mxu0 %v4107
    %5031 = vmatpush1.bf16.msra.mxu0 %v4106
    %5032 = vmatprep.subr.bf16.mxu0 %v4103
    %5033 = vmatpush1.bf16.msra.mxu0 %v4102
    %5034 = vmatprep.subr.bf16.mxu0 %v4099
    %5035 = vmatpush1.bf16.msra.mxu0 %v4098
    %5036 = vmatprep.subr.bf16.mxu0 0
    %5037 = vmatpush2.bf16.msra.mxu0 0
    %5038 = vmatprep.subr.bf16.mxu0 0
    %5039 = vmatpush2.bf16.msra.mxu0 0
    %5040 = vmatprep.subr.bf16.mxu0 0
    %5041 = vmatpush2.bf16.msra.mxu0 0
    %5042 = vmatprep.subr.bf16.mxu0 0
    %5043 = vmatpush2.bf16.msra.mxu0 0
    %5044 = vmatprep.subr.bf16.mxu0 0
    %5045 = vmatpush2.bf16.msra.mxu0 0
    %5046 = vmatprep.subr.bf16.mxu0 0
    %5047 = vmatpush2.bf16.msra.mxu0 0
    %5048 = vmatprep.subr.bf16.mxu0 0
    %5049 = vmatpush2.bf16.msra.mxu0 0
    %5050 = vmatprep.subr.bf16.mxu0 0
    %5051 = vmatpush2.bf16.msra.mxu0 0
    %5052 = vmatprep.mubr.bf16.mxu0 0
    %5053 = vmatmul.mubr.bf16.gmra.mxu0 %v5011
    %v5054 = vpop.f32.mrf.mxu0
    %v5055 = vadd.f32 %v5012, %v5054
    %v5056 = vpop.f32.mrf.mxu0
    %v5057 = vadd.f32 %v5013, %v5056
    %v5058 = vpop.f32.mrf.mxu0
    %v5059 = vadd.f32 %v5016, %v5058
    %v5060 = vpop.f32.mrf.mxu0
    %v5061 = vadd.f32 %v5017, %v5060
    %5062 = vdwg.mxu0
    %5063 = vmatprep.subr.bf16.mxu0 %v4129
    %5064 = vmatpush1.bf16.msra.mxu0 %v4128
    %5065 = vmatprep.subr.bf16.mxu0 %v4125
    %5066 = vmatpush1.bf16.msra.mxu0 %v4124
    %5067 = vmatprep.subr.bf16.mxu0 %v4121
    %5068 = vmatpush1.bf16.msra.mxu0 %v4120
    %5069 = vmatprep.subr.bf16.mxu0 %v4117
    %5070 = vmatpush1.bf16.msra.mxu0 %v4116
    %5071 = vmatprep.subr.bf16.mxu0 %v4113
    %5072 = vmatpush1.bf16.msra.mxu0 %v4112
    %5073 = vmatprep.subr.bf16.mxu0 %v4109
    %5074 = vmatpush1.bf16.msra.mxu0 %v4108
    %5075 = vmatprep.subr.bf16.mxu0 %v4105
    %5076 = vmatpush1.bf16.msra.mxu0 %v4104
    %5077 = vmatprep.subr.bf16.mxu0 %v4101
    %5078 = vmatpush1.bf16.msra.mxu0 %v4100
    %5079 = vmatprep.subr.bf16.mxu0 0
    %5080 = vmatpush2.bf16.msra.mxu0 0
    %5081 = vmatprep.subr.bf16.mxu0 0
    %5082 = vmatpush2.bf16.msra.mxu0 0
    %5083 = vmatprep.subr.bf16.mxu0 0
    %5084 = vmatpush2.bf16.msra.mxu0 0
    %5085 = vmatprep.subr.bf16.mxu0 0
    %5086 = vmatpush2.bf16.msra.mxu0 0
    %5087 = vmatprep.subr.bf16.mxu0 0
    %5088 = vmatpush2.bf16.msra.mxu0 0
    %5089 = vmatprep.subr.bf16.mxu0 0
    %5090 = vmatpush2.bf16.msra.mxu0 0
    %5091 = vmatprep.subr.bf16.mxu0 0
    %5092 = vmatpush2.bf16.msra.mxu0 0
    %5093 = vmatprep.subr.bf16.mxu0 0
    %5094 = vmatpush2.bf16.msra.mxu0 0
    %5095 = vmatprep.mubr.bf16.mxu0 0
    %5096 = vmatmul.mubr.bf16.gmra.mxu0 %v5011
    %v5097 = vpop.f32.mrf.mxu0
    %v5098 = vadd.f32 %v5014, %v5097
    %v5099 = vpop.f32.mrf.mxu0
    %v5100 = vadd.f32 %v5015, %v5099
    %v5101 = vpop.f32.mrf.mxu0
    %v5102 = vadd.f32 %v5018, %v5101
    %v5103 = vpop.f32.mrf.mxu0
    %v5104 = vadd.f32 %v5019, %v5103
    %5105 = vdwg.mxu0
    %v5106 = vxor.u32 %v5055, 2147483648
    %v5107 = vxor.u32 %v5057, 2147483648
    %v5108 = vxor.u32 %v5098, 2147483648
    %v5109 = vxor.u32 %v5059, 2147483648
    %v5110 = vxor.u32 %v5061, 2147483648
    %v5111 = vxor.u32 %v5102, 2147483648
    %v5112 = vmul.f32 %v5106, 1.442695
    %v5113 = vpow.pop %v5112
    %v5114 = vmul.f32 %v5107, 1.442695
    %v5115 = vpow.pop %v5114
    %v5116 = vmul.f32 %v5108, 1.442695
    %v5117 = vpow.pop %v5116
    %v5118 = vmul.f32 %v5109, 1.442695
    %v5119 = vpow.pop %v5118
    %v5120 = vmul.f32 %v5110, 1.442695
    %v5121 = vpow.pop %v5120
    %v5122 = vmul.f32 %v5111, 1.442695
    %v5123 = vpow.pop %v5122
    %v5124 = vadd.f32 %v5113, 1.0
    %v5125 = vadd.f32 %v5115, 1.0
    %v5126 = vadd.f32 %v5117, 1.0
    %v5127 = vadd.f32 %v5119, 1.0
    %v5128 = vadd.f32 %v5121, 1.0
    %v5129 = vadd.f32 %v5123, 1.0
    %v5130 = vrcp.pop %v5124
    %v5131 = vmul.f32 1.0, %v5130
    %v5132 = vrcp.pop %v5125
    %v5133 = vmul.f32 1.0, %v5132
    %v5134 = vrcp.pop %v5126
    %v5135 = vmul.f32 1.0, %v5134
    %v5136 = vrcp.pop %v5127
    %v5137 = vmul.f32 1.0, %v5136
    %v5138 = vrcp.pop %v5128
    %v5139 = vmul.f32 1.0, %v5138
    %v5140 = vrcp.pop %v5129
    %v5141 = vmul.f32 1.0, %v5140
    %v5142 = vtanh.pop %v5100
    %v5143 = vtanh.pop %v5104
    %v5144 = vmul.f32 %v5133, %v5005
    %v5145 = vmul.f32 %v5139, %v5006
    %v5146 = vmul.f32 %v5131, %v5142
    %v5147 = vmul.f32 %v5137, %v5143
    %v5148 = vadd.f32 %v5144, %v5146
    %v5149 = vadd.f32 %v5145, %v5147
    %v5150 = vtanh.pop %v5148
    %v5151 = vtanh.pop %v5149
    %v5152 = vmul.f32 %v5135, %v5150
    %v5153 = vmul.f32 %v5141, %v5151
    %v5154 = vpack.c.bf16 %v5153, %v5152
    %v5155 = vld [vmem:[#allocation2 + $0x1c0] sm:$0xff]
    %v5156 = vld [vmem:[#allocation2 + $0x1c8] sm:$0xff]
    %v5157 = vld [vmem:[#allocation2 + $0x1d0] sm:$0xff]
    %v5158 = vld [vmem:[#allocation2 + $0x1d8] sm:$0xff]
    %v5159 = vld [vmem:[#allocation2 + $0x1e0] sm:$0xff]
    %v5160 = vld [vmem:[#allocation2 + $0x1e8] sm:$0xff]
    %v5161 = vld [vmem:[#allocation2 + $0x1f0] sm:$0xff]
    %v5162 = vld [vmem:[#allocation2 + $0x1f8] sm:$0xff]
    %5163 = vmatprep.subr.bf16.mxu0 %v4127
    %5164 = vmatpush1.bf16.msra.mxu0 %v4126
    %5165 = vmatprep.subr.bf16.mxu0 %v4123
    %5166 = vmatpush1.bf16.msra.mxu0 %v4122
    %5167 = vmatprep.subr.bf16.mxu0 %v4119
    %5168 = vmatpush1.bf16.msra.mxu0 %v4118
    %5169 = vmatprep.subr.bf16.mxu0 %v4115
    %5170 = vmatpush1.bf16.msra.mxu0 %v4114
    %5171 = vmatprep.subr.bf16.mxu0 %v4111
    %5172 = vmatpush1.bf16.msra.mxu0 %v4110
    %5173 = vmatprep.subr.bf16.mxu0 %v4107
    %5174 = vmatpush1.bf16.msra.mxu0 %v4106
    %5175 = vmatprep.subr.bf16.mxu0 %v4103
    %5176 = vmatpush1.bf16.msra.mxu0 %v4102
    %5177 = vmatprep.subr.bf16.mxu0 %v4099
    %5178 = vmatpush1.bf16.msra.mxu0 %v4098
    %5179 = vmatprep.subr.bf16.mxu0 0
    %5180 = vmatpush2.bf16.msra.mxu0 0
    %5181 = vmatprep.subr.bf16.mxu0 0
    %5182 = vmatpush2.bf16.msra.mxu0 0
    %5183 = vmatprep.subr.bf16.mxu0 0
    %5184 = vmatpush2.bf16.msra.mxu0 0
    %5185 = vmatprep.subr.bf16.mxu0 0
    %5186 = vmatpush2.bf16.msra.mxu0 0
    %5187 = vmatprep.subr.bf16.mxu0 0
    %5188 = vmatpush2.bf16.msra.mxu0 0
    %5189 = vmatprep.subr.bf16.mxu0 0
    %5190 = vmatpush2.bf16.msra.mxu0 0
    %5191 = vmatprep.subr.bf16.mxu0 0
    %5192 = vmatpush2.bf16.msra.mxu0 0
    %5193 = vmatprep.subr.bf16.mxu0 0
    %5194 = vmatpush2.bf16.msra.mxu0 0
    %5195 = vmatprep.mubr.bf16.mxu0 0
    %5196 = vmatmul.mubr.bf16.gmra.mxu0 %v5154
    %v5197 = vpop.f32.mrf.mxu0
    %v5198 = vadd.f32 %v5155, %v5197
    %v5199 = vpop.f32.mrf.mxu0
    %v5200 = vadd.f32 %v5156, %v5199
    %v5201 = vpop.f32.mrf.mxu0
    %v5202 = vadd.f32 %v5159, %v5201
    %v5203 = vpop.f32.mrf.mxu0
    %v5204 = vadd.f32 %v5160, %v5203
    %5205 = vdwg.mxu0
    %5206 = vmatprep.subr.bf16.mxu0 %v4129
    %5207 = vmatpush1.bf16.msra.mxu0 %v4128
    %5208 = vmatprep.subr.bf16.mxu0 %v4125
    %5209 = vmatpush1.bf16.msra.mxu0 %v4124
    %5210 = vmatprep.subr.bf16.mxu0 %v4121
    %5211 = vmatpush1.bf16.msra.mxu0 %v4120
    %5212 = vmatprep.subr.bf16.mxu0 %v4117
    %5213 = vmatpush1.bf16.msra.mxu0 %v4116
    %5214 = vmatprep.subr.bf16.mxu0 %v4113
    %5215 = vmatpush1.bf16.msra.mxu0 %v4112
    %5216 = vmatprep.subr.bf16.mxu0 %v4109
    %5217 = vmatpush1.bf16.msra.mxu0 %v4108
    %5218 = vmatprep.subr.bf16.mxu0 %v4105
    %5219 = vmatpush1.bf16.msra.mxu0 %v4104
    %5220 = vmatprep.subr.bf16.mxu0 %v4101
    %5221 = vmatpush1.bf16.msra.mxu0 %v4100
    %5222 = vmatprep.subr.bf16.mxu0 0
    %5223 = vmatpush2.bf16.msra.mxu0 0
    %5224 = vmatprep.subr.bf16.mxu0 0
    %5225 = vmatpush2.bf16.msra.mxu0 0
    %5226 = vmatprep.subr.bf16.mxu0 0
    %5227 = vmatpush2.bf16.msra.mxu0 0
    %5228 = vmatprep.subr.bf16.mxu0 0
    %5229 = vmatpush2.bf16.msra.mxu0 0
    %5230 = vmatprep.subr.bf16.mxu0 0
    %5231 = vmatpush2.bf16.msra.mxu0 0
    %5232 = vmatprep.subr.bf16.mxu0 0
    %5233 = vmatpush2.bf16.msra.mxu0 0
    %5234 = vmatprep.subr.bf16.mxu0 0
    %5235 = vmatpush2.bf16.msra.mxu0 0
    %5236 = vmatprep.subr.bf16.mxu0 0
    %5237 = vmatpush2.bf16.msra.mxu0 0
    %5238 = vmatprep.mubr.bf16.mxu0 0
    %5239 = vmatmul.mubr.bf16.gmra.mxu0 %v5154
    %v5240 = vpop.f32.mrf.mxu0
    %v5241 = vadd.f32 %v5157, %v5240
    %v5242 = vpop.f32.mrf.mxu0
    %v5243 = vadd.f32 %v5158, %v5242
    %v5244 = vpop.f32.mrf.mxu0
    %v5245 = vadd.f32 %v5161, %v5244
    %v5246 = vpop.f32.mrf.mxu0
    %v5247 = vadd.f32 %v5162, %v5246
    %5248 = vdwg.mxu0
    %v5249 = vxor.u32 %v5198, 2147483648
    %v5250 = vxor.u32 %v5200, 2147483648
    %v5251 = vxor.u32 %v5241, 2147483648
    %v5252 = vxor.u32 %v5202, 2147483648
    %v5253 = vxor.u32 %v5204, 2147483648
    %v5254 = vxor.u32 %v5245, 2147483648
    %v5255 = vmul.f32 %v5249, 1.442695
    %v5256 = vpow.pop %v5255
    %v5257 = vmul.f32 %v5250, 1.442695
    %v5258 = vpow.pop %v5257
    %v5259 = vmul.f32 %v5251, 1.442695
    %v5260 = vpow.pop %v5259
    %v5261 = vmul.f32 %v5252, 1.442695
    %v5262 = vpow.pop %v5261
    %v5263 = vmul.f32 %v5253, 1.442695
    %v5264 = vpow.pop %v5263
    %v5265 = vmul.f32 %v5254, 1.442695
    %v5266 = vpow.pop %v5265
    %v5267 = vadd.f32 %v5256, 1.0
    %v5268 = vadd.f32 %v5258, 1.0
    %v5269 = vadd.f32 %v5260, 1.0
    %v5270 = vadd.f32 %v5262, 1.0
    %v5271 = vadd.f32 %v5264, 1.0
    %v5272 = vadd.f32 %v5266, 1.0
    %v5273 = vrcp.pop %v5267
    %v5274 = vmul.f32 1.0, %v5273
    %v5275 = vrcp.pop %v5268
    %v5276 = vmul.f32 1.0, %v5275
    %v5277 = vrcp.pop %v5269
    %v5278 = vmul.f32 1.0, %v5277
    %v5279 = vrcp.pop %v5270
    %v5280 = vmul.f32 1.0, %v5279
    %v5281 = vrcp.pop %v5271
    %v5282 = vmul.f32 1.0, %v5281
    %v5283 = vrcp.pop %v5272
    %v5284 = vmul.f32 1.0, %v5283
    %v5285 = vtanh.pop %v5243
    %v5286 = vtanh.pop %v5247
    %v5287 = vmul.f32 %v5276, %v5148
    %v5288 = vmul.f32 %v5282, %v5149
    %v5289 = vmul.f32 %v5274, %v5285
    %v5290 = vmul.f32 %v5280, %v5286
    %v5291 = vadd.f32 %v5287, %v5289
    %v5292 = vadd.f32 %v5288, %v5290
    %v5293 = vtanh.pop %v5291
    %v5294 = vtanh.pop %v5292
    %v5295 = vmul.f32 %v5278, %v5293
    %v5296 = vmul.f32 %v5284, %v5294
    %s5297 = scalar_lea.vmem [#allocation16], 16
    %5298 = vst [vmem:[%s5297] sm:$0xff] %v5295
    %5299 = vst [vmem:[%s5297 + $0x8] sm:$0xff] %v5296
    %s5300 = scalar_lea.vmem [#allocation17], 16
    %5301 = vst [vmem:[%s5300] sm:$0xff] %v5291
    %5302 = vst [vmem:[%s5300 + $0x8] sm:$0xff] %v5292
    %v5303 = vld [vmem:[%s19] sm:$0xff]
    %v5304 = vld [vmem:[%s19 + $0x8] sm:$0xff]
    %v5305 = vld [vmem:[%s19 + $0x10] sm:$0xff]
    %v5306 = vld [vmem:[%s19 + $0x18] sm:$0xff]
    %v5307 = vld [vmem:[%s19 + $0x20] sm:$0xff]
    %v5308 = vld [vmem:[%s19 + $0x28] sm:$0xff]
    %v5309 = vld [vmem:[%s19 + $0x30] sm:$0xff]
    %v5310 = vld [vmem:[%s19 + $0x38] sm:$0xff]
    %v5311 = vld [vmem:[%s19 + $0x40] sm:$0xff]
    %v5312 = vld [vmem:[%s19 + $0x48] sm:$0xff]
    %v5313 = vld [vmem:[%s19 + $0x50] sm:$0xff]
    %v5314 = vld [vmem:[%s19 + $0x58] sm:$0xff]
    %v5315 = vld [vmem:[%s19 + $0x60] sm:$0xff]
    %v5316 = vld [vmem:[%s19 + $0x68] sm:$0xff]
    %v5317 = vld [vmem:[%s19 + $0x70] sm:$0xff]
    %v5318 = vld [vmem:[%s19 + $0x78] sm:$0xff]
    %v5319 = vld [vmem:[#allocation13] sm:$0x1]
    %v5320 = vld [vmem:[#allocation15] sm:$0x1]
    %v5321 = vld [vmem:[%s25] sm:$0x1]
    %v5323 = vlaneseq
    %v5324 = vshrl.u32 %v5323, 7
    %v5325 = vsub.s32 0, %v5324
    %v5326 = vrot.slane %v5319, %v5325
    %5328 = vmatprep.subr.mxu0 0.0
    %5329 = vmatpush1.msra.mxu0 %v5318
    %5330 = vmatprep.subr.mxu0 0.0
    %5331 = vmatpush1.msra.mxu0 %v5317
    %5332 = vmatprep.subr.mxu0 0.0
    %5333 = vmatpush1.msra.mxu0 %v5316
    %5334 = vmatprep.subr.mxu0 0.0
    %5335 = vmatpush1.msra.mxu0 %v5315
    %5336 = vmatprep.subr.mxu0 0.0
    %5337 = vmatpush1.msra.mxu0 %v5314
    %5338 = vmatprep.subr.mxu0 0.0
    %5339 = vmatpush1.msra.mxu0 %v5313
    %5340 = vmatprep.subr.mxu0 0.0
    %5341 = vmatpush1.msra.mxu0 %v5312
    %5342 = vmatprep.subr.mxu0 0.0
    %5343 = vmatpush1.msra.mxu0 %v5311
    %5344 = vmatprep.subr.mxu0 0.0
    %5345 = vmatpush1.msra.mxu0 %v5310
    %5346 = vmatprep.subr.mxu0 0.0
    %5347 = vmatpush1.msra.mxu0 %v5309
    %5348 = vmatprep.subr.mxu0 0.0
    %5349 = vmatpush1.msra.mxu0 %v5308
    %5350 = vmatprep.subr.mxu0 0.0
    %5351 = vmatpush1.msra.mxu0 %v5307
    %5352 = vmatprep.subr.mxu0 0.0
    %5353 = vmatpush1.msra.mxu0 %v5306
    %5354 = vmatprep.subr.mxu0 0.0
    %5355 = vmatpush1.msra.mxu0 %v5305
    %5356 = vmatprep.subr.mxu0 0.0
    %5357 = vmatpush1.msra.mxu0 %v5304
    %5358 = vmatprep.subr.mxu0 0.0
    %5359 = vmatpush1.msra.mxu0 %v5303
    %5360 = vmatprep.subr.mxu0 0.0
    %5361 = vmatpush2.msra.mxu0 0.0
    %5362 = vmatprep.subr.mxu0 0.0
    %5363 = vmatpush2.msra.mxu0 0.0
    %5364 = vmatprep.subr.mxu0 0.0
    %5365 = vmatpush2.msra.mxu0 0.0
    %5366 = vmatprep.subr.mxu0 0.0
    %5367 = vmatpush2.msra.mxu0 0.0
    %5368 = vmatprep.subr.mxu0 0.0
    %5369 = vmatpush2.msra.mxu0 0.0
    %5370 = vmatprep.subr.mxu0 0.0
    %5371 = vmatpush2.msra.mxu0 0.0
    %5372 = vmatprep.subr.mxu0 0.0
    %5373 = vmatpush2.msra.mxu0 0.0
    %5374 = vmatprep.subr.mxu0 0.0
    %5375 = vmatpush2.msra.mxu0 0.0
    %5376 = vmatprep.subr.mxu0 0.0
    %5377 = vmatpush2.msra.mxu0 0.0
    %5378 = vmatprep.subr.mxu0 0.0
    %5379 = vmatpush2.msra.mxu0 0.0
    %5380 = vmatprep.subr.mxu0 0.0
    %5381 = vmatpush2.msra.mxu0 0.0
    %5382 = vmatprep.subr.mxu0 0.0
    %5383 = vmatpush2.msra.mxu0 0.0
    %5384 = vmatprep.subr.mxu0 0.0
    %5385 = vmatpush2.msra.mxu0 0.0
    %5386 = vmatprep.subr.mxu0 0.0
    %5387 = vmatpush2.msra.mxu0 0.0
    %5388 = vmatprep.subr.mxu0 0.0
    %5389 = vmatpush2.msra.mxu0 0.0
    %5390 = vmatprep.subr.mxu0 0.0
    %5391 = vmatpush2.msra.mxu0 0.0
    %5392 = vmatprep.mubr.f32.mxu0 0.0
    %5393 = vmatmul.mubr.f32.gmra.mxu0 %v5295
    %v5394 = vpop.f32.mrf.mxu0
    %v5395 = vadd.f32 %v5326, %v5394
    %v5396 = vpop.f32.mrf.mxu0
    %5397 = vmatprep.mubr.f32.mxu0 0.0
    %5398 = vmatmul.mubr.f32.gmra.mxu0 %v5296
    %v5399 = vpop.f32.mrf.mxu0
    %v5400 = vadd.f32 %v5326, %v5399
    %v5401 = vpop.f32.mrf.mxu0
    %5402 = vdwg.mxu0
    %vm5403 = vcmask 523264
    %v5404 = vsel %vm5403, %v5395, 0.0
    %5405 = vadd.xlane.f32.xlu0 %v5404
    %v5406 = vpop.xlane.xlu0 %5405
    %v5407 = vsel %vm5403, %v5400, 0.0
    %5408 = vadd.xlane.f32.xlu0 %v5407
    %v5409 = vpop.xlane.xlu0 %5408
    %v5410 = vrcp.pop 64.0
    %v5411 = vmul.f32 %v5406, %v5410
    %v5412 = vmul.f32 %v5409, %v5410
    %v5413 = vsub.f32 %v5395, %v5411
    %v5414 = vsub.f32 %v5400, %v5412
    %v5415 = vmul.f32 %v5413, %v5413
    %v5416 = vmul.f32 %v5414, %v5414
    %v5417 = vsel %vm5403, %v5415, 0.0
    %5418 = vadd.xlane.f32.xlu0 %v5417
    %v5419 = vpop.xlane.xlu0 %5418
    %v5420 = vsel %vm5403, %v5416, 0.0
    %5421 = vadd.xlane.f32.xlu0 %v5420
    %v5422 = vpop.xlane.xlu0 %5421
    %v5423 = vmul.f32 %v5419, %v5410
    %v5424 = vmul.f32 %v5422, %v5410
    %v5425 = vadd.f32 %v5423, 1e-05
    %v5426 = vadd.f32 %v5424, 1e-05
    %v5427 = vrsqrt.pop %v5425
    %v5428 = vrsqrt.pop %v5426
    %v5429 = vmul.f32 %v5413, %v5427
    %v5430 = vmul.f32 %v5414, %v5428
    %v5432 = vlaneseq
    %v5433 = vshrl.u32 %v5432, 7
    %v5434 = vsub.s32 0, %v5433
    %v5435 = vrot.slane %v5320, %v5434
    %v5437 = vmul.f32 %v5429, %v5435
    %v5438 = vmul.f32 %v5430, %v5435
    %v5440 = vlaneseq
    %v5441 = vshrl.u32 %v5440, 7
    %v5442 = vsub.s32 0, %v5441
    %v5443 = vrot.slane %v5321, %v5442
    %v5445 = vadd.f32 %v5437, %v5443
    %v5446 = vadd.f32 %v5438, %v5443
    %v5447 = vmax.f32 %v5445, 0.0
    %v5448 = vmax.f32 %v5446, 0.0
    %v5449 = vld [vmem:[%s27] sm:$0xff]
    %v5450 = vld [vmem:[%s27 + $0x8] sm:$0xff]
    %v5451 = vld [vmem:[%s27 + $0x10] sm:$0xff]
    %v5452 = vld [vmem:[%s27 + $0x18] sm:$0xff]
    %v5453 = vld [vmem:[%s27 + $0x20] sm:$0xff]
    %v5454 = vld [vmem:[%s27 + $0x28] sm:$0xff]
    %v5455 = vld [vmem:[%s27 + $0x30] sm:$0xff]
    %v5456 = vld [vmem:[%s27 + $0x38] sm:$0xff]
    %v5457 = vld [vmem:[%s29] sm:$0x1]
    %v5458 = vld [vmem:[%s31] sm:$0x1]
    %v5459 = vld [vmem:[%s33] sm:$0x1]
    %v5461 = vlaneseq
    %v5462 = vshrl.u32 %v5461, 7
    %v5463 = vsub.s32 0, %v5462
    %v5464 = vrot.slane %v5457, %v5463
    %v5467 = vsel %vm5403, %v5447, 0
    %v5470 = vsel %vm5403, %v5448, 0
    %5472 = vmatprep.subr.mxu0 0.0
    %5473 = vmatpush1.msra.mxu0 0.0
    %5474 = vmatprep.subr.mxu0 0.0
    %5475 = vmatpush1.msra.mxu0 0.0
    %5476 = vmatprep.subr.mxu0 0.0
    %5477 = vmatpush1.msra.mxu0 0.0
    %5478 = vmatprep.subr.mxu0 0.0
    %5479 = vmatpush1.msra.mxu0 0.0
    %5480 = vmatprep.subr.mxu0 0.0
    %5481 = vmatpush1.msra.mxu0 0.0
    %5482 = vmatprep.subr.mxu0 0.0
    %5483 = vmatpush1.msra.mxu0 0.0
    %5484 = vmatprep.subr.mxu0 0.0
    %5485 = vmatpush1.msra.mxu0 0.0
    %5486 = vmatprep.subr.mxu0 0.0
    %5487 = vmatpush1.msra.mxu0 0.0
    %5488 = vmatprep.subr.mxu0 0.0
    %5489 = vmatpush1.msra.mxu0 %v5456
    %5490 = vmatprep.subr.mxu0 0.0
    %5491 = vmatpush1.msra.mxu0 %v5455
    %5492 = vmatprep.subr.mxu0 0.0
    %5493 = vmatpush1.msra.mxu0 %v5454
    %5494 = vmatprep.subr.mxu0 0.0
    %5495 = vmatpush1.msra.mxu0 %v5453
    %5496 = vmatprep.subr.mxu0 0.0
    %5497 = vmatpush1.msra.mxu0 %v5452
    %5498 = vmatprep.subr.mxu0 0.0
    %5499 = vmatpush1.msra.mxu0 %v5451
    %5500 = vmatprep.subr.mxu0 0.0
    %5501 = vmatpush1.msra.mxu0 %v5450
    %5502 = vmatprep.subr.mxu0 0.0
    %5503 = vmatpush1.msra.mxu0 %v5449
    %5504 = vmatprep.subr.mxu0 0.0
    %5505 = vmatpush2.msra.mxu0 0.0
    %5506 = vmatprep.subr.mxu0 0.0
    %5507 = vmatpush2.msra.mxu0 0.0
    %5508 = vmatprep.subr.mxu0 0.0
    %5509 = vmatpush2.msra.mxu0 0.0
    %5510 = vmatprep.subr.mxu0 0.0
    %5511 = vmatpush2.msra.mxu0 0.0
    %5512 = vmatprep.subr.mxu0 0.0
    %5513 = vmatpush2.msra.mxu0 0.0
    %5514 = vmatprep.subr.mxu0 0.0
    %5515 = vmatpush2.msra.mxu0 0.0
    %5516 = vmatprep.subr.mxu0 0.0
    %5517 = vmatpush2.msra.mxu0 0.0
    %5518 = vmatprep.subr.mxu0 0.0
    %5519 = vmatpush2.msra.mxu0 0.0
    %5520 = vmatprep.subr.mxu0 0.0
    %5521 = vmatpush2.msra.mxu0 0.0
    %5522 = vmatprep.subr.mxu0 0.0
    %5523 = vmatpush2.msra.mxu0 0.0
    %5524 = vmatprep.subr.mxu0 0.0
    %5525 = vmatpush2.msra.mxu0 0.0
    %5526 = vmatprep.subr.mxu0 0.0
    %5527 = vmatpush2.msra.mxu0 0.0
    %5528 = vmatprep.subr.mxu0 0.0
    %5529 = vmatpush2.msra.mxu0 0.0
    %5530 = vmatprep.subr.mxu0 0.0
    %5531 = vmatpush2.msra.mxu0 0.0
    %5532 = vmatprep.subr.mxu0 0.0
    %5533 = vmatpush2.msra.mxu0 0.0
    %5534 = vmatprep.subr.mxu0 0.0
    %5535 = vmatpush2.msra.mxu0 0.0
    %5536 = vmatprep.mubr.f32.mxu0 0.0
    %5537 = vmatmul.mubr.f32.gmra.mxu0 %v5467
    %v5538 = vpop.f32.mrf.mxu0
    %v5539 = vadd.f32 %v5464, %v5538
    %v5540 = vpop.f32.mrf.mxu0
    %5541 = vmatprep.mubr.f32.mxu0 0.0
    %5542 = vmatmul.mubr.f32.gmra.mxu0 %v5470
    %v5543 = vpop.f32.mrf.mxu0
    %v5544 = vadd.f32 %v5464, %v5543
    %v5545 = vpop.f32.mrf.mxu0
    %5546 = vdwg.mxu0
    %vm5547 = vcmask 261120
    %v5548 = vsel %vm5547, %v5539, 0.0
    %5549 = vadd.xlane.f32.xlu0 %v5548
    %v5550 = vpop.xlane.xlu0 %5549
    %v5551 = vsel %vm5547, %v5544, 0.0
    %5552 = vadd.xlane.f32.xlu0 %v5551
    %v5553 = vpop.xlane.xlu0 %5552
    %v5554 = vrcp.pop 32.0
    %v5555 = vmul.f32 %v5550, %v5554
    %v5556 = vmul.f32 %v5553, %v5554
    %v5557 = vsub.f32 %v5539, %v5555
    %v5558 = vsub.f32 %v5544, %v5556
    %v5559 = vmul.f32 %v5557, %v5557
    %v5560 = vmul.f32 %v5558, %v5558
    %v5561 = vsel %vm5547, %v5559, 0.0
    %5562 = vadd.xlane.f32.xlu0 %v5561
    %v5563 = vpop.xlane.xlu0 %5562
    %v5564 = vsel %vm5547, %v5560, 0.0
    %5565 = vadd.xlane.f32.xlu0 %v5564
    %v5566 = vpop.xlane.xlu0 %5565
    %v5567 = vmul.f32 %v5563, %v5554
    %v5568 = vmul.f32 %v5566, %v5554
    %v5569 = vadd.f32 %v5567, 1e-05
    %v5570 = vadd.f32 %v5568, 1e-05
    %v5571 = vrsqrt.pop %v5569
    %v5572 = vrsqrt.pop %v5570
    %v5573 = vmul.f32 %v5557, %v5571
    %v5574 = vmul.f32 %v5558, %v5572
    %v5576 = vlaneseq
    %v5577 = vshrl.u32 %v5576, 7
    %v5578 = vsub.s32 0, %v5577
    %v5579 = vrot.slane %v5458, %v5578
    %v5581 = vmul.f32 %v5573, %v5579
    %v5582 = vmul.f32 %v5574, %v5579
    %v5584 = vlaneseq
    %v5585 = vshrl.u32 %v5584, 7
    %v5586 = vsub.s32 0, %v5585
    %v5587 = vrot.slane %v5459, %v5586
    %v5589 = vadd.f32 %v5581, %v5587
    %v5590 = vadd.f32 %v5582, %v5587
    %v5591 = vmax.f32 %v5589, 0.0
    %v5592 = vmax.f32 %v5590, 0.0
    %v5593 = vld [vmem:[%s35] sm:$0xff]
    %v5594 = vld [vmem:[%s35 + $0x8] sm:$0xff]
    %v5595 = vld [vmem:[%s35 + $0x10] sm:$0xff]
    %v5596 = vld [vmem:[%s35 + $0x18] sm:$0xff]
    %v5597 = vld [vmem:[%s37] sm:$0x1]
    %v5598 = vld [vmem:[%s39] sm:$0x1]
    %v5599 = vld [vmem:[%s41] sm:$0x1]
    %v5601 = vlaneseq
    %v5602 = vshrl.u32 %v5601, 7
    %v5603 = vsub.s32 0, %v5602
    %v5604 = vrot.slane %v5597, %v5603
    %v5607 = vsel %vm5547, %v5591, 0
    %v5610 = vsel %vm5547, %v5592, 0
    %5612 = vmatprep.subr.mxu0 0.0
    %5613 = vmatpush1.msra.mxu0 0.0
    %5614 = vmatprep.subr.mxu0 0.0
    %5615 = vmatpush1.msra.mxu0 0.0
    %5616 = vmatprep.subr.mxu0 0.0
    %5617 = vmatpush1.msra.mxu0 0.0
    %5618 = vmatprep.subr.mxu0 0.0
    %5619 = vmatpush1.msra.mxu0 0.0
    %5620 = vmatprep.subr.mxu0 0.0
    %5621 = vmatpush1.msra.mxu0 0.0
    %5622 = vmatprep.subr.mxu0 0.0
    %5623 = vmatpush1.msra.mxu0 0.0
    %5624 = vmatprep.subr.mxu0 0.0
    %5625 = vmatpush1.msra.mxu0 0.0
    %5626 = vmatprep.subr.mxu0 0.0
    %5627 = vmatpush1.msra.mxu0 0.0
    %5628 = vmatprep.subr.mxu0 0.0
    %5629 = vmatpush1.msra.mxu0 0.0
    %5630 = vmatprep.subr.mxu0 0.0
    %5631 = vmatpush1.msra.mxu0 0.0
    %5632 = vmatprep.subr.mxu0 0.0
    %5633 = vmatpush1.msra.mxu0 0.0
    %5634 = vmatprep.subr.mxu0 0.0
    %5635 = vmatpush1.msra.mxu0 0.0
    %5636 = vmatprep.subr.mxu0 0.0
    %5637 = vmatpush1.msra.mxu0 %v5596
    %5638 = vmatprep.subr.mxu0 0.0
    %5639 = vmatpush1.msra.mxu0 %v5595
    %5640 = vmatprep.subr.mxu0 0.0
    %5641 = vmatpush1.msra.mxu0 %v5594
    %5642 = vmatprep.subr.mxu0 0.0
    %5643 = vmatpush1.msra.mxu0 %v5593
    %5644 = vmatprep.subr.mxu0 0.0
    %5645 = vmatpush2.msra.mxu0 0.0
    %5646 = vmatprep.subr.mxu0 0.0
    %5647 = vmatpush2.msra.mxu0 0.0
    %5648 = vmatprep.subr.mxu0 0.0
    %5649 = vmatpush2.msra.mxu0 0.0
    %5650 = vmatprep.subr.mxu0 0.0
    %5651 = vmatpush2.msra.mxu0 0.0
    %5652 = vmatprep.subr.mxu0 0.0
    %5653 = vmatpush2.msra.mxu0 0.0
    %5654 = vmatprep.subr.mxu0 0.0
    %5655 = vmatpush2.msra.mxu0 0.0
    %5656 = vmatprep.subr.mxu0 0.0
    %5657 = vmatpush2.msra.mxu0 0.0
    %5658 = vmatprep.subr.mxu0 0.0
    %5659 = vmatpush2.msra.mxu0 0.0
    %5660 = vmatprep.subr.mxu0 0.0
    %5661 = vmatpush2.msra.mxu0 0.0
    %5662 = vmatprep.subr.mxu0 0.0
    %5663 = vmatpush2.msra.mxu0 0.0
    %5664 = vmatprep.subr.mxu0 0.0
    %5665 = vmatpush2.msra.mxu0 0.0
    %5666 = vmatprep.subr.mxu0 0.0
    %5667 = vmatpush2.msra.mxu0 0.0
    %5668 = vmatprep.subr.mxu0 0.0
    %5669 = vmatpush2.msra.mxu0 0.0
    %5670 = vmatprep.subr.mxu0 0.0
    %5671 = vmatpush2.msra.mxu0 0.0
    %5672 = vmatprep.subr.mxu0 0.0
    %5673 = vmatpush2.msra.mxu0 0.0
    %5674 = vmatprep.subr.mxu0 0.0
    %5675 = vmatpush2.msra.mxu0 0.0
    %5676 = vmatprep.mubr.f32.mxu0 0.0
    %5677 = vmatmul.mubr.f32.gmra.mxu0 %v5607
    %v5678 = vpop.f32.mrf.mxu0
    %v5679 = vadd.f32 %v5604, %v5678
    %v5680 = vpop.f32.mrf.mxu0
    %5681 = vmatprep.mubr.f32.mxu0 0.0
    %5682 = vmatmul.mubr.f32.gmra.mxu0 %v5610
    %v5683 = vpop.f32.mrf.mxu0
    %v5684 = vadd.f32 %v5604, %v5683
    %v5685 = vpop.f32.mrf.mxu0
    %5686 = vdwg.mxu0
    %v5687 = vsel %vm311, %v5679, 0.0
    %5688 = vadd.xlane.f32.xlu0 %v5687
    %v5689 = vpop.xlane.xlu0 %5688
    %v5690 = vsel %vm311, %v5684, 0.0
    %5691 = vadd.xlane.f32.xlu0 %v5690
    %v5692 = vpop.xlane.xlu0 %5691
    %v5693 = vrcp.pop 16.0
    %v5694 = vmul.f32 %v5689, %v5693
    %v5695 = vmul.f32 %v5692, %v5693
    %v5696 = vsub.f32 %v5679, %v5694
    %v5697 = vsub.f32 %v5684, %v5695
    %v5698 = vmul.f32 %v5696, %v5696
    %v5699 = vmul.f32 %v5697, %v5697
    %v5700 = vsel %vm311, %v5698, 0.0
    %5701 = vadd.xlane.f32.xlu0 %v5700
    %v5702 = vpop.xlane.xlu0 %5701
    %v5703 = vsel %vm311, %v5699, 0.0
    %5704 = vadd.xlane.f32.xlu0 %v5703
    %v5705 = vpop.xlane.xlu0 %5704
    %v5706 = vmul.f32 %v5702, %v5693
    %v5707 = vmul.f32 %v5705, %v5693
    %v5708 = vadd.f32 %v5706, 1e-05
    %v5709 = vadd.f32 %v5707, 1e-05
    %v5710 = vrsqrt.pop %v5708
    %v5711 = vrsqrt.pop %v5709
    %v5712 = vmul.f32 %v5696, %v5710
    %v5713 = vmul.f32 %v5697, %v5711
    %v5715 = vlaneseq
    %v5716 = vshrl.u32 %v5715, 7
    %v5717 = vsub.s32 0, %v5716
    %v5718 = vrot.slane %v5598, %v5717
    %v5720 = vmul.f32 %v5712, %v5718
    %v5721 = vmul.f32 %v5713, %v5718
    %v5723 = vlaneseq
    %v5724 = vshrl.u32 %v5723, 7
    %v5725 = vsub.s32 0, %v5724
    %v5726 = vrot.slane %v5599, %v5725
    %v5728 = vadd.f32 %v5720, %v5726
    %v5729 = vadd.f32 %v5721, %v5726
    %v5730 = vmax.f32 %v5728, 0.0
    %v5731 = vmax.f32 %v5729, 0.0
    %v5732 = vld [vmem:[%s43] sm:$0xff]
    %v5733 = vld [vmem:[%s43 + $0x8] sm:$0xff]
    %v5734 = vld [vmem:[%s45] sm:$0x1]
    %v5735 = vld [vmem:[%s47] sm:$0x1]
    %v5736 = vld [vmem:[%s49] sm:$0x1]
    %v5738 = vlaneseq
    %v5739 = vshrl.u32 %v5738, 7
    %v5740 = vsub.s32 0, %v5739
    %v5741 = vrot.slane %v5734, %v5740
    %v5744 = vsel %vm311, %v5730, 0
    %v5747 = vsel %vm311, %v5731, 0
    %5749 = vmatprep.subr.mxu0 0.0
    %5750 = vmatpush1.msra.mxu0 0.0
    %5751 = vmatprep.subr.mxu0 0.0
    %5752 = vmatpush1.msra.mxu0 0.0
    %5753 = vmatprep.subr.mxu0 0.0
    %5754 = vmatpush1.msra.mxu0 0.0
    %5755 = vmatprep.subr.mxu0 0.0
    %5756 = vmatpush1.msra.mxu0 0.0
    %5757 = vmatprep.subr.mxu0 0.0
    %5758 = vmatpush1.msra.mxu0 0.0
    %5759 = vmatprep.subr.mxu0 0.0
    %5760 = vmatpush1.msra.mxu0 0.0
    %5761 = vmatprep.subr.mxu0 0.0
    %5762 = vmatpush1.msra.mxu0 0.0
    %5763 = vmatprep.subr.mxu0 0.0
    %5764 = vmatpush1.msra.mxu0 0.0
    %5765 = vmatprep.subr.mxu0 0.0
    %5766 = vmatpush1.msra.mxu0 0.0
    %5767 = vmatprep.subr.mxu0 0.0
    %5768 = vmatpush1.msra.mxu0 0.0
    %5769 = vmatprep.subr.mxu0 0.0
    %5770 = vmatpush1.msra.mxu0 0.0
    %5771 = vmatprep.subr.mxu0 0.0
    %5772 = vmatpush1.msra.mxu0 0.0
    %5773 = vmatprep.subr.mxu0 0.0
    %5774 = vmatpush1.msra.mxu0 0.0
    %5775 = vmatprep.subr.mxu0 0.0
    %5776 = vmatpush1.msra.mxu0 0.0
    %5777 = vmatprep.subr.mxu0 0.0
    %5778 = vmatpush1.msra.mxu0 %v5733
    %5779 = vmatprep.subr.mxu0 0.0
    %5780 = vmatpush1.msra.mxu0 %v5732
    %5781 = vmatprep.subr.mxu0 0.0
    %5782 = vmatpush2.msra.mxu0 0.0
    %5783 = vmatprep.subr.mxu0 0.0
    %5784 = vmatpush2.msra.mxu0 0.0
    %5785 = vmatprep.subr.mxu0 0.0
    %5786 = vmatpush2.msra.mxu0 0.0
    %5787 = vmatprep.subr.mxu0 0.0
    %5788 = vmatpush2.msra.mxu0 0.0
    %5789 = vmatprep.subr.mxu0 0.0
    %5790 = vmatpush2.msra.mxu0 0.0
    %5791 = vmatprep.subr.mxu0 0.0
    %5792 = vmatpush2.msra.mxu0 0.0
    %5793 = vmatprep.subr.mxu0 0.0
    %5794 = vmatpush2.msra.mxu0 0.0
    %5795 = vmatprep.subr.mxu0 0.0
    %5796 = vmatpush2.msra.mxu0 0.0
    %5797 = vmatprep.subr.mxu0 0.0
    %5798 = vmatpush2.msra.mxu0 0.0
    %5799 = vmatprep.subr.mxu0 0.0
    %5800 = vmatpush2.msra.mxu0 0.0
    %5801 = vmatprep.subr.mxu0 0.0
    %5802 = vmatpush2.msra.mxu0 0.0
    %5803 = vmatprep.subr.mxu0 0.0
    %5804 = vmatpush2.msra.mxu0 0.0
    %5805 = vmatprep.subr.mxu0 0.0
    %5806 = vmatpush2.msra.mxu0 0.0
    %5807 = vmatprep.subr.mxu0 0.0
    %5808 = vmatpush2.msra.mxu0 0.0
    %5809 = vmatprep.subr.mxu0 0.0
    %5810 = vmatpush2.msra.mxu0 0.0
    %5811 = vmatprep.subr.mxu0 0.0
    %5812 = vmatpush2.msra.mxu0 0.0
    %5813 = vmatprep.mubr.f32.mxu0 0.0
    %5814 = vmatmul.mubr.f32.gmra.mxu0 %v5744
    %v5815 = vpop.f32.mrf.mxu0
    %v5816 = vadd.f32 %v5741, %v5815
    %v5817 = vpop.f32.mrf.mxu0
    %5818 = vmatprep.mubr.f32.mxu0 0.0
    %5819 = vmatmul.mubr.f32.gmra.mxu0 %v5747
    %v5820 = vpop.f32.mrf.mxu0
    %v5821 = vadd.f32 %v5741, %v5820
    %v5822 = vpop.f32.mrf.mxu0
    %5823 = vdwg.mxu0
    %vm5824 = vcmask 64512
    %v5825 = vsel %vm5824, %v5816, 0.0
    %5826 = vadd.xlane.f32.xlu0 %v5825
    %v5827 = vpop.xlane.xlu0 %5826
    %v5828 = vsel %vm5824, %v5821, 0.0
    %5829 = vadd.xlane.f32.xlu0 %v5828
    %v5830 = vpop.xlane.xlu0 %5829
    %v5831 = vrcp.pop 8.0
    %v5832 = vmul.f32 %v5827, %v5831
    %v5833 = vmul.f32 %v5830, %v5831
    %v5834 = vsub.f32 %v5816, %v5832
    %v5835 = vsub.f32 %v5821, %v5833
    %v5836 = vmul.f32 %v5834, %v5834
    %v5837 = vmul.f32 %v5835, %v5835
    %v5838 = vsel %vm5824, %v5836, 0.0
    %5839 = vadd.xlane.f32.xlu0 %v5838
    %v5840 = vpop.xlane.xlu0 %5839
    %v5841 = vsel %vm5824, %v5837, 0.0
    %5842 = vadd.xlane.f32.xlu0 %v5841
    %v5843 = vpop.xlane.xlu0 %5842
    %v5844 = vmul.f32 %v5840, %v5831
    %v5845 = vmul.f32 %v5843, %v5831
    %v5846 = vadd.f32 %v5844, 1e-05
    %v5847 = vadd.f32 %v5845, 1e-05
    %v5848 = vrsqrt.pop %v5846
    %v5849 = vrsqrt.pop %v5847
    %v5850 = vmul.f32 %v5834, %v5848
    %v5851 = vmul.f32 %v5835, %v5849
    %v5853 = vlaneseq
    %v5854 = vshrl.u32 %v5853, 7
    %v5855 = vsub.s32 0, %v5854
    %v5856 = vrot.slane %v5735, %v5855
    %v5858 = vmul.f32 %v5850, %v5856
    %v5859 = vmul.f32 %v5851, %v5856
    %v5861 = vlaneseq
    %v5862 = vshrl.u32 %v5861, 7
    %v5863 = vsub.s32 0, %v5862
    %v5864 = vrot.slane %v5736, %v5863
    %v5866 = vadd.f32 %v5858, %v5864
    %v5867 = vadd.f32 %v5859, %v5864
    %v5868 = vmax.f32 %v5866, 0.0
    %v5869 = vmax.f32 %v5867, 0.0
    %v5870 = vld [vmem:[%s51] sm:$0xff]
    %v5871 = vld [vmem:[%s53] sm:$0x1]
    %v5873 = vlaneseq
    %v5874 = vshrl.u32 %v5873, 7
    %v5875 = vsub.s32 0, %v5874
    %v5876 = vrot.slane %v5871, %v5875
    %v5879 = vsel %vm5824, %v5868, 0
    %v5882 = vsel %vm5824, %v5869, 0
    %5884 = vmatprep.subr.mxu0 0.0
    %5885 = vmatpush1.msra.mxu0 0.0
    %5886 = vmatprep.subr.mxu0 0.0
    %5887 = vmatpush1.msra.mxu0 0.0
    %5888 = vmatprep.subr.mxu0 0.0
    %5889 = vmatpush1.msra.mxu0 0.0
    %5890 = vmatprep.subr.mxu0 0.0
    %5891 = vmatpush1.msra.mxu0 0.0
    %5892 = vmatprep.subr.mxu0 0.0
    %5893 = vmatpush1.msra.mxu0 0.0
    %5894 = vmatprep.subr.mxu0 0.0
    %5895 = vmatpush1.msra.mxu0 0.0
    %5896 = vmatprep.subr.mxu0 0.0
    %5897 = vmatpush1.msra.mxu0 0.0
    %5898 = vmatprep.subr.mxu0 0.0
    %5899 = vmatpush1.msra.mxu0 0.0
    %5900 = vmatprep.subr.mxu0 0.0
    %5901 = vmatpush1.msra.mxu0 0.0
    %5902 = vmatprep.subr.mxu0 0.0
    %5903 = vmatpush1.msra.mxu0 0.0
    %5904 = vmatprep.subr.mxu0 0.0
    %5905 = vmatpush1.msra.mxu0 0.0
    %5906 = vmatprep.subr.mxu0 0.0
    %5907 = vmatpush1.msra.mxu0 0.0
    %5908 = vmatprep.subr.mxu0 0.0
    %5909 = vmatpush1.msra.mxu0 0.0
    %5910 = vmatprep.subr.mxu0 0.0
    %5911 = vmatpush1.msra.mxu0 0.0
    %5912 = vmatprep.subr.mxu0 0.0
    %5913 = vmatpush1.msra.mxu0 0.0
    %5914 = vmatprep.subr.mxu0 0.0
    %5915 = vmatpush1.msra.mxu0 %v5870
    %5916 = vmatprep.subr.mxu0 0.0
    %5917 = vmatpush2.msra.mxu0 0.0
    %5918 = vmatprep.subr.mxu0 0.0
    %5919 = vmatpush2.msra.mxu0 0.0
    %5920 = vmatprep.subr.mxu0 0.0
    %5921 = vmatpush2.msra.mxu0 0.0
    %5922 = vmatprep.subr.mxu0 0.0
    %5923 = vmatpush2.msra.mxu0 0.0
    %5924 = vmatprep.subr.mxu0 0.0
    %5925 = vmatpush2.msra.mxu0 0.0
    %5926 = vmatprep.subr.mxu0 0.0
    %5927 = vmatpush2.msra.mxu0 0.0
    %5928 = vmatprep.subr.mxu0 0.0
    %5929 = vmatpush2.msra.mxu0 0.0
    %5930 = vmatprep.subr.mxu0 0.0
    %5931 = vmatpush2.msra.mxu0 0.0
    %5932 = vmatprep.subr.mxu0 0.0
    %5933 = vmatpush2.msra.mxu0 0.0
    %5934 = vmatprep.subr.mxu0 0.0
    %5935 = vmatpush2.msra.mxu0 0.0
    %5936 = vmatprep.subr.mxu0 0.0
    %5937 = vmatpush2.msra.mxu0 0.0
    %5938 = vmatprep.subr.mxu0 0.0
    %5939 = vmatpush2.msra.mxu0 0.0
    %5940 = vmatprep.subr.mxu0 0.0
    %5941 = vmatpush2.msra.mxu0 0.0
    %5942 = vmatprep.subr.mxu0 0.0
    %5943 = vmatpush2.msra.mxu0 0.0
    %5944 = vmatprep.subr.mxu0 0.0
    %5945 = vmatpush2.msra.mxu0 0.0
    %5946 = vmatprep.subr.mxu0 0.0
    %5947 = vmatpush2.msra.mxu0 0.0
    %5948 = vmatprep.mubr.f32.mxu0 0.0
    %5949 = vmatmul.mubr.f32.gmra.mxu0 %v5879
    %v5950 = vpop.f32.mrf.mxu0
    %v5951 = vadd.f32 %v5876, %v5950
    %v5952 = vpop.f32.mrf.mxu0
    %5953 = vmatprep.mubr.f32.mxu0 0.0
    %5954 = vmatmul.mubr.f32.gmra.mxu0 %v5882
    %v5955 = vpop.f32.mrf.mxu0
    %v5956 = vadd.f32 %v5876, %v5955
    %v5957 = vpop.f32.mrf.mxu0
    %5958 = vdwg.mxu0
    %5959 = vst.msk [vmem:[%s55] sm:$0xff] %vm5824, %v5951
    %5960 = vst.msk [vmem:[%s55 + $0x8] sm:$0xff] %vm5824, %v5956
    // Predicated region
    $region138: #{tpu_custom_call.1} parent=1 // pred_check
      _
    $region139: #{tpu_custom_call.1} parent=1 // pred_check_branch
      %5962 = sbr.rel (0) target = $region141
    $region140: #{tpu_custom_call.1} parent=1 // pred_region
      _
    $region141: #{tpu_custom_call.1} parent=1 // pred_fallthru
      _
    // Predicated region
    $region142: #{tpu_custom_call.1} parent=1 // pred_check
      _
    $region143: #{tpu_custom_call.1} parent=1 // pred_check_branch
      %5964 = sbr.rel (0) target = $region145
    $region144: #{tpu_custom_call.1} parent=1 // pred_region
      %s5966 = ssub.s32 512, 512
      %5967 = vsyncadd [#allocation6], %s5966
      %s5968 = sshll.u32 [#allocation16], 4
      %s5969 = int_to_ptr.vmem [resolvable:$true] %s5968
      %5974 = dma.vmem_to_hbm [thread:$0]  %s5969, 512, %s57, [#allocation6], 128, 128, 8
    $region145: #{tpu_custom_call.1} parent=1 // pred_fallthru
      _
    // Predicated region
    $region146: #{tpu_custom_call.1} parent=1 // pred_check
      _
    $region147: #{tpu_custom_call.1} parent=1 // pred_check_branch
      %5976 = sbr.rel (0) target = $region149
    $region148: #{tpu_custom_call.1} parent=1 // pred_region
      %s5978 = ssub.s32 512, 512
      %5979 = vsyncadd [#allocation18], %s5978
      %s5980 = sshll.u32 [#allocation17], 4
      %s5981 = int_to_ptr.vmem [resolvable:$true] %s5980
      %5986 = dma.vmem_to_hbm [thread:$0]  %s5981, 512, %s59, [#allocation18], 128, 128, 8
    $region149: #{tpu_custom_call.1} parent=1 // pred_fallthru
      _
    // Predicated region
    $region150: #{tpu_custom_call.1} parent=1 // pred_check
      _
    $region151: #{tpu_custom_call.1} parent=1 // pred_check_branch
      %5988 = sbr.rel (0) target = $region153
    $region152: #{tpu_custom_call.1} parent=1 // pred_region
      _
    $region153: #{tpu_custom_call.1} parent=1 // pred_fallthru
      _
    // Predicated region
    $region154: #{tpu_custom_call.1} parent=1 // pred_check
      _
    $region155: #{tpu_custom_call.1} parent=1 // pred_check_branch
      %5990 = sbr.rel (0) target = $region157
    $region156: #{tpu_custom_call.1} parent=1 // pred_region
      %5991 = dma.done [#allocation6], 512
    $region157: #{tpu_custom_call.1} parent=1 // pred_fallthru
      _
    // Predicated region
    $region158: #{tpu_custom_call.1} parent=1 // pred_check
      _
    $region159: #{tpu_custom_call.1} parent=1 // pred_check_branch
      %5993 = sbr.rel (0) target = $region161
    $region160: #{tpu_custom_call.1} parent=1 // pred_region
      %5994 = dma.done [#allocation18], 512
    $region161: #{tpu_custom_call.1} parent=1 // pred_fallthru
      _
    %5995 = vsyncpa [#allocation5], 1
    %5996 = vsyncpa [#allocation8], 1
    %5997 = vsyncpa [#allocation11], 1
    %5998 = vsyncpa [#allocation14], 1
    %5999 = vsyncpa [#allocation6], 1
    %6000 = vsyncpa [#allocation18], 1

</llo_original>
